<compile_context>
chip_gen: v5e
topology: v5e:2x2
jax: 0.10.0
libtpu: 0.0.40
codegen_flags: <defaults>
</compile_context>

<pallas_src>
import math
from functools import partial

import jax
import jax.numpy as jnp
from jax import lax
from jax.experimental import pallas as pl
from jax.experimental.pallas import tpu as pltpu

D_MODEL = 100                        # fixed by the module: MultiHeadAttention(4, 100, ...)
N_HEADS = 4
D_HEAD = D_MODEL // N_HEADS          # 25 (true head width; softmax scale uses this)
D_HEAD_PAD = 32                      # lane-aligned head width
D_PAD = N_HEADS * D_HEAD_PAD         # 128
LN_EPS = 1e-5
BN_EPS = 1e-5
LEAKY_SLOPE = 0.2
# softmax exp dtype: bf16 halves EUP pressure on v6e/v7x; set to jnp.float32 on v5e.
EXP_DTYPE = jnp.bfloat16


def _round_up(v, m):
    return ((v + m - 1) // m) * m


def _leaky(y):
    return jnp.where(y >= 0.0, y, LEAKY_SLOPE * y)


def _cparams(dims, tile_bytes, scratch_bytes=0):
    """CompilerParams with a vmem limit sized from the per-step block footprint."""
    need = 3 * int(tile_bytes) + int(scratch_bytes) + (4 << 20)
    try:
        cap = int(pltpu.get_tpu_info().vmem_capacity_bytes)
    except Exception:
        cap = 64 << 20                      # conservative (v7x physical VMEM per TC)
    limit = int(min(max(need, 32 << 20), (cap * 9) // 10))
    return pltpu.CompilerParams(dimension_semantics=dims, vmem_limit_bytes=limit)


# --------------------------------------------------------------------------------------
# MultiHeadAttention block: y = LayerNorm(x + Wo @ Attention(Wq x, Wk x, Wv x)), eps=1e-5.
# Flash-tiled over (query block, kv block) with online softmax; applied twice (two calls).
# --------------------------------------------------------------------------------------
def mha_block(x_pad, p, n_real, tq, tk):
    n_pad = x_pad.shape[0]
    assert n_pad % tq == 0 and n_pad % tk == 0
    nq, nk = n_pad // tq, n_pad // tk

    def kernel(xq_ref, xkv_ref, wq_ref, wk_ref, wvo_ref,
               bq_ref, bk_ref, bvo_ref, bo_ref, g_ref, b_ref,
               o_ref, m_sc, l_sc, acc_sc):
        ki = pl.program_id(1)

        @pl.when(ki == 0)
        def _init():
            m_sc[...] = jnp.full_like(m_sc, -1e30)
            l_sc[...] = jnp.zeros_like(l_sc)
            acc_sc[...] = jnp.zeros_like(acc_sc)

        xq = xq_ref[...]
        xkvb = xkv_ref[...].astype(jnp.bfloat16)
        # projections: 1/sqrt(d_head) already folded into wq/bq at init time
        q = jnp.dot(xq.astype(jnp.bfloat16), wq_ref[...],
                    preferred_element_type=jnp.float32) + bq_ref[...]
        k = jnp.dot(xkvb, wk_ref[...],
                    preferred_element_type=jnp.float32) + bk_ref[...]
        # fused per-head V.Wo projection (bv.Wo folded into bvo): one 512-wide MXU matmul
        v_all = (jnp.dot(xkvb, wvo_ref[...], preferred_element_type=jnp.float32)
                 + bvo_ref[...]).astype(jnp.bfloat16)

        # padded node rows must not enter the softmax
        kv_ok = (ki * tk + lax.broadcasted_iota(jnp.int32, (1, tk), 1)) < n_real

        for h in range(N_HEADS):                           # static unroll over 4 heads
            lo = h * D_HEAD_PAD
            qh = q[:, lo:lo + D_HEAD_PAD].astype(jnp.bfloat16)
            kh = k[:, lo:lo + D_HEAD_PAD].astype(jnp.bfloat16)
            s = lax.dot_general(qh, kh, (((1,), (1,)), ((), ())),
                                preferred_element_type=jnp.float32)       # [tq, tk]
            s = jnp.where(kv_ok, s, -1e30)
            m_prev = m_sc[h]
            m_new = jnp.maximum(m_prev, jnp.max(s, axis=-1, keepdims=True))
            alpha = jnp.exp(m_prev - m_new)
            pb = jnp.exp((s - m_new).astype(EXP_DTYPE)).astype(jnp.bfloat16)
            l_sc[h] = alpha * l_sc[h] + jnp.sum(pb.astype(jnp.float32),
                                                axis=-1, keepdims=True)
            acc_sc[h] = alpha * acc_sc[h] + jnp.dot(
                pb, v_all[:, h * D_PAD:(h + 1) * D_PAD],
                preferred_element_type=jnp.float32)
            m_sc[h] = m_new

        @pl.when(ki == nk - 1)
        def _finalize():
            proj = jnp.zeros((tq, D_PAD), jnp.float32)
            for h in range(N_HEADS):
                proj = proj + acc_sc[h] * pl.reciprocal(l_sc[h], approx=True)
            # TODO(synk): attention/projection dropout (p=0.5) is stochastic; identity (eval).
            y = xq + proj + bo_ref[...]
            lane = lax.broadcasted_iota(jnp.int32, (1, D_PAD), 1)
            ln_mask = (lane < D_MODEL).astype(jnp.float32)
            mu = jnp.sum(y, axis=-1, keepdims=True) * (1.0 / D_MODEL)
            diff = (y - mu) * ln_mask
            var = jnp.sum(diff * diff, axis=-1, keepdims=True) * (1.0 / D_MODEL)
            o_ref[...] = diff * lax.rsqrt(var + LN_EPS) * g_ref[...] + b_ref[...]

    def _w(shape):
        return pl.BlockSpec(shape, lambda qi, ki: (0, 0))

    tile_bytes = (tq * D_PAD * 4 * 2 + tk * D_PAD * 4
                  + 2 * D_PAD * D_PAD * 2 + D_PAD * N_HEADS * D_PAD * 2
                  + 8 * N_HEADS * D_PAD * 4)
    scratch_bytes = N_HEADS * tq * (D_PAD + 2) * 4

    return pl.pallas_call(
        kernel,
        out_shape=jax.ShapeDtypeStruct((n_pad, D_PAD), jnp.float32),
        grid=(nq, nk),
        in_specs=[
            pl.BlockSpec((tq, D_PAD), lambda qi, ki: (qi, 0)),    # x (query block)
            pl.BlockSpec((tk, D_PAD), lambda qi, ki: (ki, 0)),    # x (key/value block)
            _w((D_PAD, D_PAD)),                                   # wq (scale folded)
            _w((D_PAD, D_PAD)),                                   # wk
            _w((D_PAD, N_HEADS * D_PAD)),                         # wvo = Wv_h @ Wo_h per head
            _w((1, D_PAD)),                                       # bq (scale folded)
            _w((1, D_PAD)),                                       # bk
            _w((1, N_HEADS * D_PAD)),                             # bvo = bv_h @ Wo_h per head
            _w((1, D_PAD)),                                       # bo
            _w((1, D_PAD)),                                       # LN gamma
            _w((1, D_PAD)),                                       # LN beta
        ],
        out_specs=pl.BlockSpec((tq, D_PAD), lambda qi, ki: (qi, 0)),
        scratch_shapes=[pltpu.VMEM((N_HEADS, tq, 1), jnp.float32),      # running max
                        pltpu.VMEM((N_HEADS, tq, 1), jnp.float32),      # running sum
                        pltpu.VMEM((N_HEADS, tq, D_PAD), jnp.float32)], # running acc
        compiler_params=_cparams(("parallel", "arbitrary"), tile_bytes, scratch_bytes),
    )(x_pad, x_pad, p["wq"], p["wk"], p["wvo"],
      p["bq"], p["bk"], p["bvo"], p["bo"], p["ln_g"], p["ln_b"])


# --------------------------------------------------------------------------------------
# HypergraphConv(in,512)+LeakyReLU -> BatchNorm1d(512) -> [Dropout=id] ->
# HypergraphConv(512,out)+LeakyReLU, streamed over node blocks in 4 phases.
# --------------------------------------------------------------------------------------
def hgnn_forward(x_pad, h_bin, htb, dinv, p, n_real, blk):
    n_pad, e_pad = h_bin.shape
    assert n_pad % blk == 0
    nb = n_pad // blk
    hidden = p["conv1_w"].shape[1]
    out_pad = p["conv2_w"].shape[1]

    # ---- phase A: T1 = (B^-1 H^T) X  (node-block reduction) ------------------------
    def agg_x_kernel(htb_ref, x_ref, t1_ref):
        @pl.when(pl.program_id(0) == 0)
        def _():
            t1_ref[...] = jnp.zeros_like(t1_ref)
        t1_ref[...] += jnp.dot(htb_ref[...], x_ref[...].astype(jnp.bfloat16),
                               preferred_element_type=jnp.float32)

    t1 = pl.pallas_call(
        agg_x_kernel,
        out_shape=jax.ShapeDtypeStruct((e_pad, D_PAD), jnp.float32),
        grid=(nb,),
        in_specs=[pl.BlockSpec((e_pad, blk), lambda i: (0, i)),
                  pl.BlockSpec((blk, D_PAD), lambda i: (i, 0))],
        out_specs=pl.BlockSpec((e_pad, D_PAD), lambda i: (0, 0)),
        compiler_params=_cparams(("arbitrary",),
                                 e_pad * blk * 2 + blk * D_PAD * 4 + e_pad * D_PAD * 4),
    )(htb, x_pad)

    # ---- phase B: y1 = leaky(D^-1 H T1 Theta1 + b1), one-pass BN sum / sumsq -------
    def conv1_bn_kernel(h_ref, dinv_ref, t1_ref, th1_ref, b1_ref,
                        y1_ref, sum_ref, ssq_ref):
        i = pl.program_id(0)

        @pl.when(i == 0)
        def _():
            sum_ref[...] = jnp.zeros_like(sum_ref)
            ssq_ref[...] = jnp.zeros_like(ssq_ref)

        u = jnp.dot(h_ref[...], t1_ref[...].astype(jnp.bfloat16),
                    preferred_element_type=jnp.float32) * dinv_ref[...]
        y1 = _leaky(jnp.dot(u.astype(jnp.bfloat16), th1_ref[...],
                            preferred_element_type=jnp.float32) + b1_ref[...])
        y1_ref[...] = y1
        # BN statistics over real nodes only (padded rows masked out)
        row_ok = ((i * blk + lax.broadcasted_iota(jnp.int32, (blk, 1), 0)) < n_real
                  ).astype(jnp.float32)
        ym = y1 * row_ok
        sum_ref[...] += jnp.sum(ym, axis=0, keepdims=True)
        ssq_ref[...] += jnp.sum(ym * y1, axis=0, keepdims=True)

    y1, bn_sum, bn_ssq = pl.pallas_call(
        conv1_bn_kernel,
        out_shape=(jax.ShapeDtypeStruct((n_pad, hidden), jnp.float32),
                   jax.ShapeDtypeStruct((1, hidden), jnp.float32),
                   jax.ShapeDtypeStruct((1, hidden), jnp.float32)),
        grid=(nb,),
        in_specs=[pl.BlockSpec((blk, e_pad), lambda i: (i, 0)),
                  pl.BlockSpec((blk, 1), lambda i: (i, 0)),
                  pl.BlockSpec((e_pad, D_PAD), lambda i: (0, 0)),
                  pl.BlockSpec((D_PAD, hidden), lambda i: (0, 0)),
                  pl.BlockSpec((1, hidden), lambda i: (0, 0))],
        out_specs=(pl.BlockSpec((blk, hidden), lambda i: (i, 0)),
                   pl.BlockSpec((1, hidden), lambda i: (0, 0)),
                   pl.BlockSpec((1, hidden), lambda i: (0, 0))),
        compiler_params=_cparams(
            ("arbitrary",),
            blk * e_pad * 2 + blk * 4 + e_pad * D_PAD * 4
            + D_PAD * hidden * 2 + blk * hidden * 4 + 3 * hidden * 4),
    )(h_bin, dinv, t1, p["conv1_w"], p["conv1_b"])

    # ---- phase C: T2 = (B^-1 H^T)(BN(y1) Theta2)  (node-block reduction) -----------
    def bn_conv2_agg_kernel(htb_ref, y1_ref, sum_ref, ssq_ref, g_ref, b_ref,
                            th2_ref, t2_ref):
        @pl.when(pl.program_id(0) == 0)
        def _():
            t2_ref[...] = jnp.zeros_like(t2_ref)
        inv_n = 1.0 / n_real
        mu = sum_ref[...] * inv_n
        var = ssq_ref[...] * inv_n - mu * mu          # E[x^2]-E[x]^2, biased (train-mode BN)
        z = (y1_ref[...] - mu) * lax.rsqrt(var + BN_EPS) * g_ref[...] + b_ref[...]
        # TODO(synk): nn.Dropout(0.3) is stochastic (train mode); identity under eval semantics.
        zt = jnp.dot(z.astype(jnp.bfloat16), th2_ref[...],
                     preferred_element_type=jnp.float32)
        t2_ref[...] += jnp.dot(htb_ref[...], zt.astype(jnp.bfloat16),
                               preferred_element_type=jnp.float32)

    t2 = pl.pallas_call(
        bn_conv2_agg_kernel,
        out_shape=jax.ShapeDtypeStruct((e_pad, out_pad), jnp.float32),
        grid=(nb,),
        in_specs=[pl.BlockSpec((e_pad, blk), lambda i: (0, i)),
                  pl.BlockSpec((blk, hidden), lambda i: (i, 0)),
                  pl.BlockSpec((1, hidden), lambda i: (0, 0)),
                  pl.BlockSpec((1, hidden), lambda i: (0, 0)),
                  pl.BlockSpec((1, hidden), lambda i: (0, 0)),
                  pl.BlockSpec((1, hidden), lambda i: (0, 0)),
                  pl.BlockSpec((hidden, out_pad), lambda i: (0, 0))],
        out_specs=pl.BlockSpec((e_pad, out_pad), lambda i: (0, 0)),
        compiler_params=_cparams(
            ("arbitrary",),
            e_pad * blk * 2 + blk * hidden * 4 + 4 * hidden * 4
            + hidden * out_pad * 2 + e_pad * out_pad * 4),
    )(htb, y1, bn_sum, bn_ssq, p["bn_g"], p["bn_b"], p["conv2_w"])

    # ---- phase D: y2 = leaky(D^-1 H T2 + b2)  (node-parallel, shards over TCs) -----
    def conv2_out_kernel(h_ref, dinv_ref, t2_ref, b2_ref, o_ref):
        u = jnp.dot(h_ref[...], t2_ref[...].astype(jnp.bfloat16),
                    preferred_element_type=jnp.float32) * dinv_ref[...]
        o_ref[...] = _leaky(u + b2_ref[...])

    return pl.pallas_call(
        conv2_out_kernel,
        out_shape=jax.ShapeDtypeStruct((n_pad, out_pad), jnp.float32),
        grid=(nb,),
        in_specs=[pl.BlockSpec((blk, e_pad), lambda i: (i, 0)),
                  pl.BlockSpec((blk, 1), lambda i: (i, 0)),
                  pl.BlockSpec((e_pad, out_pad), lambda i: (0, 0)),
                  pl.BlockSpec((1, out_pad), lambda i: (0, 0))],
        out_specs=pl.BlockSpec((blk, out_pad), lambda i: (i, 0)),
        compiler_params=_cparams(
            ("parallel",),
            blk * e_pad * 2 + blk * 4 + e_pad * out_pad * 4
            + out_pad * 4 + blk * out_pad * 4),
    )(h_bin, dinv, t2, p["conv2_b"])


# --------------------------------------------------------------------------------------
# Glue: dense incidence + degree inverses from the hyperedge index [2, M].
# h_bin: binary H (bf16, exact).  htb: B^-1 H^T (hyperedge-degree inverse folded in so no
# in-kernel *binv passes and every matmul contracts along its natural axis).
# --------------------------------------------------------------------------------------
def incidence_from_edge(edge, n_pad, e_pad):
    nodes, hedges = edge[0], edge[1]
    H = jnp.zeros((n_pad, e_pad), jnp.float32).at[nodes, hedges].set(1.0)
    deg = jnp.sum(H, axis=1, keepdims=True)
    dinv = jnp.where(deg > 0, 1.0 / deg, 0.0)                 # [n_pad, 1]
    edeg = jnp.sum(H, axis=0, keepdims=True)
    binv = jnp.where(edeg > 0, 1.0 / edeg, 0.0)               # [1, e_pad]
    htb = (H.T * binv.T).astype(jnp.bfloat16)                 # [e_pad, n_pad]
    return H.astype(jnp.bfloat16), htb, dinv


# --------------------------------------------------------------------------------------
# Padding helpers (zero padding, applied once to the parameters).
# --------------------------------------------------------------------------------------
def _pad_cols(a, width):
    return jnp.pad(a, ((0, 0), (0, width - a.shape[1])))


def _pad_rows(a, height):
    return jnp.pad(a, ((0, height - a.shape[0]), (0, 0)))


def _pad_heads_cols(w):
    # [*, 100] -> [*, 128]: pad each head's 25 output columns to 32
    r = w.shape[0]
    w = w.reshape(r, N_HEADS, D_HEAD)
    w = jnp.pad(w, ((0, 0), (0, 0), (0, D_HEAD_PAD - D_HEAD)))
    return w.reshape(r, D_PAD)


@partial(jax.jit, static_argnames=("num_hyperedges", "out_channels", "blk"))
def interactive_forward(x, edge, params, num_hyperedges, out_channels, blk=256):
    assert blk % 128 == 0, "block size must be lane-aligned (multiple of 128)"
    n_real, in_ch = x.shape
    n_pad = _round_up(max(n_real, blk), blk)
    e_pad = _round_up(max(num_hyperedges, 128), 128)
    h_bin, htb, dinv = incidence_from_edge(edge, n_pad, e_pad)
    x_pad = jnp.pad(x.astype(jnp.float32), ((0, n_pad - n_real), (0, D_PAD - in_ch)))
    x_pad = mha_block(x_pad, params["mh"], n_real, blk, blk)   # x = MH(x, None)
    x_pad = mha_block(x_pad, params["mh"], n_real, blk, blk)   # x = MH(x, None)
    y2 = hgnn_forward(x_pad, h_bin, htb, dinv, params, n_real, blk)
    return y2[:n_real, :out_channels]                          # drop node/lane padding


def init_params(key, in_channels, hidden, out_channels):
    assert in_channels == D_MODEL, "conv1 in_channels must equal MH d_model (100)"
    ks = jax.random.split(key, 10)

    def w(k, shape, scale=0.1):
        return scale * jax.random.normal(k, shape, jnp.float32)

    wq, wk, wv, wo = (w(ks[i], (D_MODEL, D_MODEL)) for i in range(4))
    bq, bk, bv, bo = (w(ks[4 + i], (1, D_MODEL)) for i in range(4))

    scale = 1.0 / math.sqrt(D_HEAD)           # folded into Wq / bq (no per-score multiply)

    # fused per-head value/output projection: Wvo_h = Wv[:,h] @ Wo[h,:]  ([100,100] -> [128,128])
    wvo_heads, bvo_heads = [], []
    for h in range(N_HEADS):
        sl = slice(h * D_HEAD, (h + 1) * D_HEAD)
        wvo_heads.append(_pad_rows(_pad_cols(wv[:, sl] @ wo[sl, :], D_PAD), D_PAD))
        bvo_heads.append(_pad_cols(bv[:, sl] @ wo[sl, :], D_PAD))
    wvo = jnp.concatenate(wvo_heads, axis=1)                   # [128, 512]
    bvo = jnp.concatenate(bvo_heads, axis=1)                   # [1, 512]

    mh = dict(
        wq=_pad_rows(_pad_heads_cols(wq * scale), D_PAD).astype(jnp.bfloat16),
        wk=_pad_rows(_pad_heads_cols(wk), D_PAD).astype(jnp.bfloat16),
        wvo=wvo.astype(jnp.bfloat16),
        bq=_pad_heads_cols(bq * scale),
        bk=_pad_heads_cols(bk),
        bvo=bvo,
        bo=_pad_cols(bo, D_PAD),
        ln_g=_pad_cols(jnp.ones((1, D_MODEL), jnp.float32), D_PAD),
        ln_b=_pad_cols(jnp.zeros((1, D_MODEL), jnp.float32), D_PAD),
    )

    out_pad = _round_up(out_channels, 128)     # lane-dense final store
    return dict(
        mh=mh,
        conv1_w=_pad_rows(w(ks[8], (in_channels, hidden)), D_PAD).astype(jnp.bfloat16),
        conv1_b=jnp.zeros((1, hidden), jnp.float32),
        bn_g=jnp.ones((1, hidden), jnp.float32),
        bn_b=jnp.zeros((1, hidden), jnp.float32),
        conv2_w=_pad_cols(w(ks[9], (hidden, out_channels)), out_pad).astype(jnp.bfloat16),
        conv2_b=_pad_cols(jnp.zeros((1, out_channels), jnp.float32), out_pad),
    )


if __name__ == "__main__":
    key = jax.random.PRNGKey(0)
    k_x, k_e, k_p = jax.random.split(key, 3)

    N = 300                 # nodes -> 3 blocks of 128 after padding (exercises all tiled grids)
    E = 40                  # hyperedges (padded to 128 lanes)
    M = 1200                # unique (node, hyperedge) incidences
    IN_CH = D_MODEL         # conv1 in_channels must equal MH d_model = 100
    HID = 512               # fixed by module
    OUT_CH = 64             # chosen out_channels

    x = jax.random.normal(k_x, (N, IN_CH), jnp.float32)
    flat = jax.random.choice(k_e, N * E, (M,), replace=False)   # unique incidences
    edge = jnp.stack([flat // E, flat % E]).astype(jnp.int32)

    params = init_params(k_p, IN_CH, HID, OUT_CH)

    out = interactive_forward(x, edge, params, num_hyperedges=E,
                              out_channels=OUT_CH, blk=128)
    out = jax.block_until_ready(out)
    assert out.shape == (N, OUT_CH) and out.dtype == jnp.float32
    assert bool(jnp.all(jnp.isfinite(out)))
    print("KERNEL_OK")
</pallas_src>

<mosaic_0001>
module attributes {stable_mosaic.version = 11 : i64} {
  func.func @conv1_bn_kernel(%arg0: i32, %arg1: memref<128x128xbf16, #tpu.memory_space<vmem>>, %arg2: memref<128x1xf32, #tpu.memory_space<vmem>>, %arg3: memref<128x128xf32, #tpu.memory_space<vmem>>, %arg4: memref<128x512xbf16, #tpu.memory_space<vmem>>, %arg5: memref<1x512xf32, #tpu.memory_space<vmem>>, %arg6: memref<128x512xf32, #tpu.memory_space<vmem>>, %arg7: memref<1x512xf32, #tpu.memory_space<vmem>>, %arg8: memref<1x512xf32, #tpu.memory_space<vmem>>) attributes {dimension_semantics = [#tpu.dimension_semantics<arbitrary>], iteration_bounds = array<i64: 3>, scalar_prefetch = 0 : i64, scratch_operands = 0 : i64, tpu.core_type = #tpu.core_type<tc>, window_params = [{transform_indices = @transform_0, window_bounds = array<i64: 128, 128>}, {transform_indices = @transform_1, window_bounds = array<i64: 128, 1>}, {pipeline_mode = #tpu.pipeline_mode<synchronous>, transform_indices = @transform_2, window_bounds = array<i64: 128, 128>}, {pipeline_mode = #tpu.pipeline_mode<synchronous>, transform_indices = @transform_3, window_bounds = array<i64: 128, 512>}, {pipeline_mode = #tpu.pipeline_mode<synchronous>, transform_indices = @transform_4, window_bounds = array<i64: 1, 512>}, {transform_indices = @transform_5, window_bounds = array<i64: 128, 512>}, {pipeline_mode = #tpu.pipeline_mode<synchronous>, transform_indices = @transform_6, window_bounds = array<i64: 1, 512>}, {pipeline_mode = #tpu.pipeline_mode<synchronous>, transform_indices = @transform_7, window_bounds = array<i64: 1, 512>}]} {
    %c0_i32 = arith.constant 0 : i32
    %0 = arith.cmpi eq, %arg0, %c0_i32 : i32
    %1 = arith.extui %0 : i1 to i32
    %c0_i32_0 = arith.constant 0 : i32
    %2 = arith.cmpi ne, %1, %c0_i32_0 : i32
    scf.if %2 {
      %cst_25 = arith.constant 0.000000e+00 : f32
      %43 = vector.broadcast %cst_25 : f32 to vector<1x512xf32>
      %c0_26 = arith.constant 0 : index
      %c0_27 = arith.constant 0 : index
      %44 = vector.load %arg7[%c0_26, %c0_27] : memref<1x512xf32, #tpu.memory_space<vmem>>, vector<1x512xf32>
      tpu.vector_store %arg7[%c0_26, %c0_27], %43 {strides = array<i32>} : memref<1x512xf32, #tpu.memory_space<vmem>>, vector<1x512xf32>,
      %cst_28 = arith.constant 0.000000e+00 : f32
      %45 = vector.broadcast %cst_28 : f32 to vector<1x512xf32>
      %c0_29 = arith.constant 0 : index
      %c0_30 = arith.constant 0 : index
      %46 = vector.load %arg8[%c0_29, %c0_30] : memref<1x512xf32, #tpu.memory_space<vmem>>, vector<1x512xf32>
      tpu.vector_store %arg8[%c0_29, %c0_30], %45 {strides = array<i32>} : memref<1x512xf32, #tpu.memory_space<vmem>>, vector<1x512xf32>,
    } else {
    }
    %c0 = arith.constant 0 : index
    %c0_1 = arith.constant 0 : index
    %3 = vector.load %arg1[%c0, %c0_1] : memref<128x128xbf16, #tpu.memory_space<vmem>>, vector<128x128xbf16>
    %c0_2 = arith.constant 0 : index
    %c0_3 = arith.constant 0 : index
    %4 = vector.load %arg3[%c0_2, %c0_3] : memref<128x128xf32, #tpu.memory_space<vmem>>, vector<128x128xf32>
    %5 = arith.truncf %4 : vector<128x128xf32> to vector<128x128xbf16>
    %cst = arith.constant dense<0.000000e+00> : vector<128x128xf32>
    %6 = tpu.matmul %3, %5, %cst {dimension_numbers = #tpu.dot_dimension_numbers<[1], [0], [0], [1], [0, 0, 1, 1], [], []>} : vector<128x128xbf16>, vector<128x128xbf16>, vector<128x128xf32> -> vector<128x128xf32>
    %c0_4 = arith.constant 0 : index
    %c0_5 = arith.constant 0 : index
    %7 = vector.load %arg2[%c0_4, %c0_5] : memref<128x1xf32, #tpu.memory_space<vmem>>, vector<128x1xf32>
    %8 = vector.broadcast %7 : vector<128x1xf32> to vector<128x128xf32>
    %9 = arith.mulf %6, %8 : vector<128x128xf32>
    %10 = arith.truncf %9 : vector<128x128xf32> to vector<128x128xbf16>
    %c0_6 = arith.constant 0 : index
    %c0_7 = arith.constant 0 : index
    %11 = vector.load %arg4[%c0_6, %c0_7] : memref<128x512xbf16, #tpu.memory_space<vmem>>, vector<128x512xbf16>
    %cst_8 = arith.constant dense<0.000000e+00> : vector<128x512xf32>
    %12 = tpu.matmul %10, %11, %cst_8 {dimension_numbers = #tpu.dot_dimension_numbers<[1], [0], [0], [1], [0, 0, 1, 1], [], []>} : vector<128x128xbf16>, vector<128x512xbf16>, vector<128x512xf32> -> vector<128x512xf32>
    %c0_9 = arith.constant 0 : index
    %c0_10 = arith.constant 0 : index
    %13 = vector.load %arg5[%c0_9, %c0_10] : memref<1x512xf32, #tpu.memory_space<vmem>>, vector<1x512xf32>
    %14 = vector.broadcast %13 : vector<1x512xf32> to vector<128x512xf32>
    %15 = arith.addf %12, %14 : vector<128x512xf32>
    %cst_11 = arith.constant 0.000000e+00 : f32
    %16 = vector.broadcast %cst_11 : f32 to vector<128x512xf32>
    %17 = arith.cmpf oge, %15, %16 : vector<128x512xf32>
    %cst_12 = arith.constant 2.000000e-01 : f32
    %18 = vector.broadcast %cst_12 : f32 to vector<128x512xf32>
    %19 = arith.mulf %18, %15 : vector<128x512xf32>
    %20 = arith.select %17, %15, %19 : vector<128x512xi1>, vector<128x512xf32>
    %c0_13 = arith.constant 0 : index
    %c0_14 = arith.constant 0 : index
    %21 = vector.load %arg6[%c0_13, %c0_14] : memref<128x512xf32, #tpu.memory_space<vmem>>, vector<128x512xf32>
    tpu.vector_store %arg6[%c0_13, %c0_14], %20 {strides = array<i32>} : memref<128x512xf32, #tpu.memory_space<vmem>>, vector<128x512xf32>,
    %c128_i32 = arith.constant 128 : i32
    %22 = arith.muli %arg0, %c128_i32 : i32
    %23 = tpu.iota {dimensions = array<i32: 0>} : vector<128x1xi32>
    %24 = vector.broadcast %22 : i32 to vector<128x1xi32>
    %25 = arith.addi %24, %23 : vector<128x1xi32>
    %c300_i32 = arith.constant 300 : i32
    %26 = vector.broadcast %c300_i32 : i32 to vector<128x1xi32>
    %27 = arith.cmpi slt, %25, %26 : vector<128x1xi32>
    %28 = arith.extui %27 : vector<128x1xi1> to vector<128x1xi32>
    %29 = arith.sitofp %28 : vector<128x1xi32> to vector<128x1xf32>
    %30 = vector.broadcast %29 : vector<128x1xf32> to vector<128x512xf32>
    %31 = arith.mulf %20, %30 : vector<128x512xf32>
    %c0_15 = arith.constant 0 : index
    %c0_16 = arith.constant 0 : index
    %32 = vector.load %arg7[%c0_15, %c0_16] : memref<1x512xf32, #tpu.memory_space<vmem>>, vector<1x512xf32>
    %cst_17 = arith.constant dense<0.000000e+00> : vector<512xf32>
    %33 = vector.multi_reduction <add>, %31, %cst_17 [0] : vector<128x512xf32> to vector<512xf32>
    %34 = vector.shape_cast %33 : vector<512xf32> to vector<1x512xf32>
    %35 = arith.addf %32, %34 : vector<1x512xf32>
    %c0_18 = arith.constant 0 : index
    %c0_19 = arith.constant 0 : index
    %36 = vector.load %arg7[%c0_18, %c0_19] : memref<1x512xf32, #tpu.memory_space<vmem>>, vector<1x512xf32>
    tpu.vector_store %arg7[%c0_18, %c0_19], %35 {strides = array<i32>} : memref<1x512xf32, #tpu.memory_space<vmem>>, vector<1x512xf32>,
    %c0_20 = arith.constant 0 : index
    %c0_21 = arith.constant 0 : index
    %37 = vector.load %arg8[%c0_20, %c0_21] : memref<1x512xf32, #tpu.memory_space<vmem>>, vector<1x512xf32>
    %38 = arith.mulf %31, %20 : vector<128x512xf32>
    %cst_22 = arith.constant dense<0.000000e+00> : vector<512xf32>
    %39 = vector.multi_reduction <add>, %38, %cst_22 [0] : vector<128x512xf32> to vector<512xf32>
    %40 = vector.shape_cast %39 : vector<512xf32> to vector<1x512xf32>
    %41 = arith.addf %37, %40 : vector<1x512xf32>
    %c0_23 = arith.constant 0 : index
    %c0_24 = arith.constant 0 : index
    %42 = vector.load %arg8[%c0_23, %c0_24] : memref<1x512xf32, #tpu.memory_space<vmem>>, vector<1x512xf32>
    tpu.vector_store %arg8[%c0_23, %c0_24], %41 {strides = array<i32>} : memref<1x512xf32, #tpu.memory_space<vmem>>, vector<1x512xf32>,
    return
  }
  func.func @transform_0(%arg0: i32) -> (i32, i32) {
    %c0_i32 = arith.constant 0 : i32
    %c0_i32_0 = arith.constant 0 : i32
    return %arg0, %c0_i32 : i32, i32
  }
  func.func @transform_1(%arg0: i32) -> (i32, i32) {
    %c0_i32 = arith.constant 0 : i32
    %c0_i32_0 = arith.constant 0 : i32
    return %arg0, %c0_i32 : i32, i32
  }
  func.func @transform_2(%arg0: i32) -> (i32, i32) {
    %c0_i32 = arith.constant 0 : i32
    %c0_i32_0 = arith.constant 0 : i32
    %c0_i32_1 = arith.constant 0 : i32
    return %c0_i32, %c0_i32_0 : i32, i32
  }
  func.func @transform_3(%arg0: i32) -> (i32, i32) {
    %c0_i32 = arith.constant 0 : i32
    %c0_i32_0 = arith.constant 0 : i32
    %c0_i32_1 = arith.constant 0 : i32
    return %c0_i32, %c0_i32_0 : i32, i32
  }
  func.func @transform_4(%arg0: i32) -> (i32, i32) {
    %c0_i32 = arith.constant 0 : i32
    %c0_i32_0 = arith.constant 0 : i32
    %c0_i32_1 = arith.constant 0 : i32
    return %c0_i32, %c0_i32_0 : i32, i32
  }
  func.func @transform_5(%arg0: i32) -> (i32, i32) {
    %c0_i32 = arith.constant 0 : i32
    %c0_i32_0 = arith.constant 0 : i32
    return %arg0, %c0_i32 : i32, i32
  }
  func.func @transform_6(%arg0: i32) -> (i32, i32) {
    %c0_i32 = arith.constant 0 : i32
    %c0_i32_0 = arith.constant 0 : i32
    %c0_i32_1 = arith.constant 0 : i32
    return %c0_i32, %c0_i32_0 : i32, i32
  }
  func.func @transform_7(%arg0: i32) -> (i32, i32) {
    %c0_i32 = arith.constant 0 : i32
    %c0_i32_0 = arith.constant 0 : i32
    %c0_i32_1 = arith.constant 0 : i32
    return %c0_i32, %c0_i32_0 : i32, i32
  }
}

module attributes {stable_mosaic.version = 11 : i64} {
  func.func @agg_x_kernel(%arg0: i32, %arg1: memref<128x128xbf16, #tpu.memory_space<vmem>>, %arg2: memref<128x128xf32, #tpu.memory_space<vmem>>, %arg3: memref<128x128xf32, #tpu.memory_space<vmem>>) attributes {dimension_semantics = [#tpu.dimension_semantics<arbitrary>], iteration_bounds = array<i64: 3>, scalar_prefetch = 0 : i64, scratch_operands = 0 : i64, tpu.core_type = #tpu.core_type<tc>, window_params = [{transform_indices = @transform_0, window_bounds = array<i64: 128, 128>}, {transform_indices = @transform_1, window_bounds = array<i64: 128, 128>}, {pipeline_mode = #tpu.pipeline_mode<synchronous>, transform_indices = @transform_2, window_bounds = array<i64: 128, 128>}]} {
    %c0_i32 = arith.constant 0 : i32
    %0 = arith.cmpi eq, %arg0, %c0_i32 : i32
    %1 = arith.extui %0 : i1 to i32
    %c0_i32_0 = arith.constant 0 : i32
    %2 = arith.cmpi ne, %1, %c0_i32_0 : i32
    scf.if %2 {
      %cst_8 = arith.constant 0.000000e+00 : f32
      %10 = vector.broadcast %cst_8 : f32 to vector<128x128xf32>
      %c0_9 = arith.constant 0 : index
      %c0_10 = arith.constant 0 : index
      %11 = vector.load %arg3[%c0_9, %c0_10] : memref<128x128xf32, #tpu.memory_space<vmem>>, vector<128x128xf32>
      tpu.vector_store %arg3[%c0_9, %c0_10], %10 {strides = array<i32>} : memref<128x128xf32, #tpu.memory_space<vmem>>, vector<128x128xf32>,
    } else {
    }
    %c0 = arith.constant 0 : index
    %c0_1 = arith.constant 0 : index
    %3 = vector.load %arg3[%c0, %c0_1] : memref<128x128xf32, #tpu.memory_space<vmem>>, vector<128x128xf32>
    %c0_2 = arith.constant 0 : index
    %c0_3 = arith.constant 0 : index
    %4 = vector.load %arg1[%c0_2, %c0_3] : memref<128x128xbf16, #tpu.memory_space<vmem>>, vector<128x128xbf16>
    %c0_4 = arith.constant 0 : index
    %c0_5 = arith.constant 0 : index
    %5 = vector.load %arg2[%c0_4, %c0_5] : memref<128x128xf32, #tpu.memory_space<vmem>>, vector<128x128xf32>
    %6 = arith.truncf %5 : vector<128x128xf32> to vector<128x128xbf16>
    %cst = arith.constant dense<0.000000e+00> : vector<128x128xf32>
    %7 = tpu.matmul %4, %6, %cst {dimension_numbers = #tpu.dot_dimension_numbers<[1], [0], [0], [1], [0, 0, 1, 1], [], []>} : vector<128x128xbf16>, vector<128x128xbf16>, vector<128x128xf32> -> vector<128x128xf32>
    %8 = arith.addf %3, %7 : vector<128x128xf32>
    %c0_6 = arith.constant 0 : index
    %c0_7 = arith.constant 0 : index
    %9 = vector.load %arg3[%c0_6, %c0_7] : memref<128x128xf32, #tpu.memory_space<vmem>>, vector<128x128xf32>
    tpu.vector_store %arg3[%c0_6, %c0_7], %8 {strides = array<i32>} : memref<128x128xf32, #tpu.memory_space<vmem>>, vector<128x128xf32>,
    return
  }
  func.func @transform_0(%arg0: i32) -> (i32, i32) {
    %c0_i32 = arith.constant 0 : i32
    %c0_i32_0 = arith.constant 0 : i32
    return %c0_i32, %arg0 : i32, i32
  }
  func.func @transform_1(%arg0: i32) -> (i32, i32) {
    %c0_i32 = arith.constant 0 : i32
    %c0_i32_0 = arith.constant 0 : i32
    return %arg0, %c0_i32 : i32, i32
  }
  func.func @transform_2(%arg0: i32) -> (i32, i32) {
    %c0_i32 = arith.constant 0 : i32
    %c0_i32_0 = arith.constant 0 : i32
    %c0_i32_1 = arith.constant 0 : i32
    return %c0_i32, %c0_i32_0 : i32, i32
  }
}

module attributes {stable_mosaic.version = 11 : i64} {
  func.func @kernel(%arg0: i32, %arg1: i32, %arg2: memref<128x128xf32, #tpu.memory_space<vmem>>, %arg3: memref<128x128xf32, #tpu.memory_space<vmem>>, %arg4: memref<128x128xbf16, #tpu.memory_space<vmem>>, %arg5: memref<128x128xbf16, #tpu.memory_space<vmem>>, %arg6: memref<128x512xbf16, #tpu.memory_space<vmem>>, %arg7: memref<1x128xf32, #tpu.memory_space<vmem>>, %arg8: memref<1x128xf32, #tpu.memory_space<vmem>>, %arg9: memref<1x512xf32, #tpu.memory_space<vmem>>, %arg10: memref<1x128xf32, #tpu.memory_space<vmem>>, %arg11: memref<1x128xf32, #tpu.memory_space<vmem>>, %arg12: memref<1x128xf32, #tpu.memory_space<vmem>>, %arg13: memref<128x128xf32, #tpu.memory_space<vmem>>, %arg14: memref<4x128x1xf32, #tpu.memory_space<vmem>>, %arg15: memref<4x128x1xf32, #tpu.memory_space<vmem>>, %arg16: memref<4x128x128xf32, #tpu.memory_space<vmem>>) attributes {dimension_semantics = [#tpu.dimension_semantics<parallel>, #tpu.dimension_semantics<arbitrary>], iteration_bounds = array<i64: 3, 3>, scalar_prefetch = 0 : i64, scratch_operands = 3 : i64, tpu.core_type = #tpu.core_type<tc>, window_params = [{transform_indices = @transform_0, window_bounds = array<i64: 128, 128>}, {transform_indices = @transform_1, window_bounds = array<i64: 128, 128>}, {pipeline_mode = #tpu.pipeline_mode<synchronous>, transform_indices = @transform_2, window_bounds = array<i64: 128, 128>}, {pipeline_mode = #tpu.pipeline_mode<synchronous>, transform_indices = @transform_3, window_bounds = array<i64: 128, 128>}, {pipeline_mode = #tpu.pipeline_mode<synchronous>, transform_indices = @transform_4, window_bounds = array<i64: 128, 512>}, {pipeline_mode = #tpu.pipeline_mode<synchronous>, transform_indices = @transform_5, window_bounds = array<i64: 1, 128>}, {pipeline_mode = #tpu.pipeline_mode<synchronous>, transform_indices = @transform_6, window_bounds = array<i64: 1, 128>}, {pipeline_mode = #tpu.pipeline_mode<synchronous>, transform_indices = @transform_7, window_bounds = array<i64: 1, 512>}, {pipeline_mode = #tpu.pipeline_mode<synchronous>, transform_indices = @transform_8, window_bounds = array<i64: 1, 128>}, {pipeline_mode = #tpu.pipeline_mode<synchronous>, transform_indices = @transform_9, window_bounds = array<i64: 1, 128>}, {pipeline_mode = #tpu.pipeline_mode<synchronous>, transform_indices = @transform_10, window_bounds = array<i64: 1, 128>}, {transform_indices = @transform_11, window_bounds = array<i64: 128, 128>}]} {
    %c0_i32 = arith.constant 0 : i32
    %0 = arith.cmpi eq, %arg1, %c0_i32 : i32
    %1 = arith.extui %0 : i1 to i32
    %c0_i32_0 = arith.constant 0 : i32
    %2 = arith.cmpi ne, %1, %c0_i32_0 : i32
    scf.if %2 {
      %cst_108 = arith.constant -1.000000e+30 : f32
      %204 = vector.broadcast %cst_108 : f32 to vector<4x128x1xf32>
      %c0_109 = arith.constant 0 : index
      %c0_110 = arith.constant 0 : index
      %c0_111 = arith.constant 0 : index
      %205 = vector.load %arg14[%c0_109, %c0_110, %c0_111] : memref<4x128x1xf32, #tpu.memory_space<vmem>>, vector<4x128x1xf32>
      tpu.vector_store %arg14[%c0_109, %c0_110, %c0_111], %204 {strides = array<i32>} : memref<4x128x1xf32, #tpu.memory_space<vmem>>, vector<4x128x1xf32>,
      %cst_112 = arith.constant 0.000000e+00 : f32
      %206 = vector.broadcast %cst_112 : f32 to vector<4x128x1xf32>
      %c0_113 = arith.constant 0 : index
      %c0_114 = arith.constant 0 : index
      %c0_115 = arith.constant 0 : index
      %207 = vector.load %arg15[%c0_113, %c0_114, %c0_115] : memref<4x128x1xf32, #tpu.memory_space<vmem>>, vector<4x128x1xf32>
      tpu.vector_store %arg15[%c0_113, %c0_114, %c0_115], %206 {strides = array<i32>} : memref<4x128x1xf32, #tpu.memory_space<vmem>>, vector<4x128x1xf32>,
      %cst_116 = arith.constant 0.000000e+00 : f32
      %208 = vector.broadcast %cst_116 : f32 to vector<4x128x128xf32>
      %c0_117 = arith.constant 0 : index
      %c0_118 = arith.constant 0 : index
      %c0_119 = arith.constant 0 : index
      %209 = vector.load %arg16[%c0_117, %c0_118, %c0_119] : memref<4x128x128xf32, #tpu.memory_space<vmem>>, vector<4x128x128xf32>
      tpu.vector_store %arg16[%c0_117, %c0_118, %c0_119], %208 {strides = array<i32>} : memref<4x128x128xf32, #tpu.memory_space<vmem>>, vector<4x128x128xf32>,
    } else {
    }
    %c0 = arith.constant 0 : index
    %c0_1 = arith.constant 0 : index
    %3 = vector.load %arg2[%c0, %c0_1] : memref<128x128xf32, #tpu.memory_space<vmem>>, vector<128x128xf32>
    %c0_2 = arith.constant 0 : index
    %c0_3 = arith.constant 0 : index
    %4 = vector.load %arg3[%c0_2, %c0_3] : memref<128x128xf32, #tpu.memory_space<vmem>>, vector<128x128xf32>
    %5 = arith.truncf %4 : vector<128x128xf32> to vector<128x128xbf16>
    %6 = arith.truncf %3 : vector<128x128xf32> to vector<128x128xbf16>
    %c0_4 = arith.constant 0 : index
    %c0_5 = arith.constant 0 : index
    %7 = vector.load %arg4[%c0_4, %c0_5] : memref<128x128xbf16, #tpu.memory_space<vmem>>, vector<128x128xbf16>
    %cst = arith.constant dense<0.000000e+00> : vector<128x128xf32>
    %8 = tpu.matmul %6, %7, %cst {dimension_numbers = #tpu.dot_dimension_numbers<[1], [0], [0], [1], [0, 0, 1, 1], [], []>} : vector<128x128xbf16>, vector<128x128xbf16>, vector<128x128xf32> -> vector<128x128xf32>
    %c0_6 = arith.constant 0 : index
    %c0_7 = arith.constant 0 : index
    %9 = vector.load %arg7[%c0_6, %c0_7] : memref<1x128xf32, #tpu.memory_space<vmem>>, vector<1x128xf32>
    %10 = vector.broadcast %9 : vector<1x128xf32> to vector<128x128xf32>
    %11 = arith.addf %8, %10 : vector<128x128xf32>
    %c0_8 = arith.constant 0 : index
    %c0_9 = arith.constant 0 : index
    %12 = vector.load %arg5[%c0_8, %c0_9] : memref<128x128xbf16, #tpu.memory_space<vmem>>, vector<128x128xbf16>
    %cst_10 = arith.constant dense<0.000000e+00> : vector<128x128xf32>
    %13 = tpu.matmul %5, %12, %cst_10 {dimension_numbers = #tpu.dot_dimension_numbers<[1], [0], [0], [1], [0, 0, 1, 1], [], []>} : vector<128x128xbf16>, vector<128x128xbf16>, vector<128x128xf32> -> vector<128x128xf32>
    %c0_11 = arith.constant 0 : index
    %c0_12 = arith.constant 0 : index
    %14 = vector.load %arg8[%c0_11, %c0_12] : memref<1x128xf32, #tpu.memory_space<vmem>>, vector<1x128xf32>
    %15 = vector.broadcast %14 : vector<1x128xf32> to vector<128x128xf32>
    %16 = arith.addf %13, %15 : vector<128x128xf32>
    %c0_13 = arith.constant 0 : index
    %c0_14 = arith.constant 0 : index
    %17 = vector.load %arg6[%c0_13, %c0_14] : memref<128x512xbf16, #tpu.memory_space<vmem>>, vector<128x512xbf16>
    %cst_15 = arith.constant dense<0.000000e+00> : vector<128x512xf32>
    %18 = tpu.matmul %5, %17, %cst_15 {dimension_numbers = #tpu.dot_dimension_numbers<[1], [0], [0], [1], [0, 0, 1, 1], [], []>} : vector<128x128xbf16>, vector<128x512xbf16>, vector<128x512xf32> -> vector<128x512xf32>
    %c0_16 = arith.constant 0 : index
    %c0_17 = arith.constant 0 : index
    %19 = vector.load %arg9[%c0_16, %c0_17] : memref<1x512xf32, #tpu.memory_space<vmem>>, vector<1x512xf32>
    %20 = vector.broadcast %19 : vector<1x512xf32> to vector<128x512xf32>
    %21 = arith.addf %18, %20 : vector<128x512xf32>
    %22 = arith.truncf %21 : vector<128x512xf32> to vector<128x512xbf16>
    %c128_i32 = arith.constant 128 : i32
    %23 = arith.muli %arg1, %c128_i32 : i32
    %24 = tpu.iota {dimensions = array<i32: 1>} : vector<1x128xi32>
    %25 = vector.broadcast %23 : i32 to vector<1x128xi32>
    %26 = arith.addi %25, %24 : vector<1x128xi32>
    %c300_i32 = arith.constant 300 : i32
    %27 = vector.broadcast %c300_i32 : i32 to vector<1x128xi32>
    %28 = arith.cmpi slt, %26, %27 : vector<1x128xi32>
    %29 = vector.extract_strided_slice %11 {offsets = [0, 0], sizes = [128, 32], strides = [1, 1]} : vector<128x128xf32> to vector<128x32xf32>
    %30 = arith.truncf %29 : vector<128x32xf32> to vector<128x32xbf16>
    %31 = vector.extract_strided_slice %16 {offsets = [0, 0], sizes = [128, 32], strides = [1, 1]} : vector<128x128xf32> to vector<128x32xf32>
    %32 = arith.truncf %31 : vector<128x32xf32> to vector<128x32xbf16>
    %cst_18 = arith.constant dense<0.000000e+00> : vector<128x128xf32>
    %33 = tpu.matmul %30, %32, %cst_18 {dimension_numbers = #tpu.dot_dimension_numbers<[1], [1], [0], [0], [0, 0, 1, 0], [], []>} : vector<128x32xbf16>, vector<128x32xbf16>, vector<128x128xf32> -> vector<128x128xf32>
    %cst_19 = arith.constant -1.000000e+30 : f32
    %34 = vector.shape_cast %28 : vector<1x128xi1> to vector<1x128xi1>
    %35 = vector.broadcast %34 : vector<1x128xi1> to vector<128x128xi1>
    %36 = vector.broadcast %cst_19 : f32 to vector<128x128xf32>
    %37 = arith.select %35, %33, %36 : vector<128x128xi1>, vector<128x128xf32>
    %c0_20 = arith.constant 0 : index
    %c0_21 = arith.constant 0 : index
    %c0_22 = arith.constant 0 : index
    %38 = vector.load %arg14[%c0_20, %c0_21, %c0_22] : memref<4x128x1xf32, #tpu.memory_space<vmem>>, vector<1x128x1xf32>
    %39 = vector.shape_cast %38 : vector<1x128x1xf32> to vector<128x1xf32>
    %cst_23 = arith.constant dense<0xFF800000> : vector<128xf32>
    %40 = vector.multi_reduction <maximumf>, %37, %cst_23 [1] : vector<128x128xf32> to vector<128xf32>
    %41 = vector.shape_cast %40 : vector<128xf32> to vector<128x1xf32>
    %42 = arith.maximumf %39, %41 : vector<128x1xf32>
    %43 = arith.subf %39, %42 : vector<128x1xf32>
    %44 = math.exp %43 : vector<128x1xf32>
    %45 = vector.broadcast %42 : vector<128x1xf32> to vector<128x128xf32>
    %46 = arith.subf %37, %45 : vector<128x128xf32>
    %47 = arith.truncf %46 : vector<128x128xf32> to vector<128x128xbf16>
    %48 = math.exp %47 : vector<128x128xbf16>
    %c0_24 = arith.constant 0 : index
    %c0_25 = arith.constant 0 : index
    %c0_26 = arith.constant 0 : index
    %49 = vector.load %arg15[%c0_24, %c0_25, %c0_26] : memref<4x128x1xf32, #tpu.memory_space<vmem>>, vector<1x128x1xf32>
    %50 = vector.shape_cast %49 : vector<1x128x1xf32> to vector<128x1xf32>
    %51 = arith.mulf %44, %50 : vector<128x1xf32>
    %52 = arith.extf %48 : vector<128x128xbf16> to vector<128x128xf32>
    %cst_27 = arith.constant dense<0.000000e+00> : vector<128xf32>
    %53 = vector.multi_reduction <add>, %52, %cst_27 [1] : vector<128x128xf32> to vector<128xf32>
    %54 = vector.shape_cast %53 : vector<128xf32> to vector<128x1xf32>
    %55 = arith.addf %51, %54 : vector<128x1xf32>
    %c0_28 = arith.constant 0 : index
    %c0_29 = arith.constant 0 : index
    %c0_30 = arith.constant 0 : index
    %56 = vector.load %arg15[%c0_28, %c0_29, %c0_30] : memref<4x128x1xf32, #tpu.memory_space<vmem>>, vector<1x128x1xf32>
    %57 = vector.shape_cast %56 : vector<1x128x1xf32> to vector<128x1xf32>
    %58 = vector.shape_cast %55 : vector<128x1xf32> to vector<1x128x1xf32>
    tpu.vector_store %arg15[%c0_28, %c0_29, %c0_30], %58 {strides = array<i32>} : memref<4x128x1xf32, #tpu.memory_space<vmem>>, vector<1x128x1xf32>,
    %c0_31 = arith.constant 0 : index
    %c0_32 = arith.constant 0 : index
    %c0_33 = arith.constant 0 : index
    %59 = vector.load %arg16[%c0_31, %c0_32, %c0_33] : memref<4x128x128xf32, #tpu.memory_space<vmem>>, vector<1x128x128xf32>
    %60 = vector.shape_cast %59 : vector<1x128x128xf32> to vector<128x128xf32>
    %61 = vector.broadcast %44 : vector<128x1xf32> to vector<128x128xf32>
    %62 = arith.mulf %61, %60 : vector<128x128xf32>
    %63 = vector.extract_strided_slice %22 {offsets = [0, 0], sizes = [128, 128], strides = [1, 1]} : vector<128x512xbf16> to vector<128x128xbf16>
    %cst_34 = arith.constant dense<0.000000e+00> : vector<128x128xf32>
    %64 = tpu.matmul %48, %63, %cst_34 {dimension_numbers = #tpu.dot_dimension_numbers<[1], [0], [0], [1], [0, 0, 1, 1], [], []>} : vector<128x128xbf16>, vector<128x128xbf16>, vector<128x128xf32> -> vector<128x128xf32>
    %65 = arith.addf %62, %64 : vector<128x128xf32>
    %c0_35 = arith.constant 0 : index
    %c0_36 = arith.constant 0 : index
    %c0_37 = arith.constant 0 : index
    %66 = vector.load %arg16[%c0_35, %c0_36, %c0_37] : memref<4x128x128xf32, #tpu.memory_space<vmem>>, vector<1x128x128xf32>
    %67 = vector.shape_cast %66 : vector<1x128x128xf32> to vector<128x128xf32>
    %68 = vector.shape_cast %65 : vector<128x128xf32> to vector<1x128x128xf32>
    tpu.vector_store %arg16[%c0_35, %c0_36, %c0_37], %68 {strides = array<i32>} : memref<4x128x128xf32, #tpu.memory_space<vmem>>, vector<1x128x128xf32>,
    %c0_38 = arith.constant 0 : index
    %c0_39 = arith.constant 0 : index
    %c0_40 = arith.constant 0 : index
    %69 = vector.load %arg14[%c0_38, %c0_39, %c0_40] : memref<4x128x1xf32, #tpu.memory_space<vmem>>, vector<1x128x1xf32>
    %70 = vector.shape_cast %69 : vector<1x128x1xf32> to vector<128x1xf32>
    %71 = vector.shape_cast %42 : vector<128x1xf32> to vector<1x128x1xf32>
    tpu.vector_store %arg14[%c0_38, %c0_39, %c0_40], %71 {strides = array<i32>} : memref<4x128x1xf32, #tpu.memory_space<vmem>>, vector<1x128x1xf32>,
    %72 = vector.extract_strided_slice %11 {offsets = [0, 32], sizes = [128, 32], strides = [1, 1]} : vector<128x128xf32> to vector<128x32xf32>
    %73 = arith.truncf %72 : vector<128x32xf32> to vector<128x32xbf16>
    %74 = vector.extract_strided_slice %16 {offsets = [0, 32], sizes = [128, 32], strides = [1, 1]} : vector<128x128xf32> to vector<128x32xf32>
    %75 = arith.truncf %74 : vector<128x32xf32> to vector<128x32xbf16>
    %cst_41 = arith.constant dense<0.000000e+00> : vector<128x128xf32>
    %76 = tpu.matmul %73, %75, %cst_41 {dimension_numbers = #tpu.dot_dimension_numbers<[1], [1], [0], [0], [0, 0, 1, 0], [], []>} : vector<128x32xbf16>, vector<128x32xbf16>, vector<128x128xf32> -> vector<128x128xf32>
    %cst_42 = arith.constant -1.000000e+30 : f32
    %77 = vector.shape_cast %28 : vector<1x128xi1> to vector<1x128xi1>
    %78 = vector.broadcast %77 : vector<1x128xi1> to vector<128x128xi1>
    %79 = vector.broadcast %cst_42 : f32 to vector<128x128xf32>
    %80 = arith.select %78, %76, %79 : vector<128x128xi1>, vector<128x128xf32>
    %c1 = arith.constant 1 : index
    %c0_43 = arith.constant 0 : index
    %c0_44 = arith.constant 0 : index
    %81 = vector.load %arg14[%c1, %c0_43, %c0_44] : memref<4x128x1xf32, #tpu.memory_space<vmem>>, vector<1x128x1xf32>
    %82 = vector.shape_cast %81 : vector<1x128x1xf32> to vector<128x1xf32>
    %cst_45 = arith.constant dense<0xFF800000> : vector<128xf32>
    %83 = vector.multi_reduction <maximumf>, %80, %cst_45 [1] : vector<128x128xf32> to vector<128xf32>
    %84 = vector.shape_cast %83 : vector<128xf32> to vector<128x1xf32>
    %85 = arith.maximumf %82, %84 : vector<128x1xf32>
    %86 = arith.subf %82, %85 : vector<128x1xf32>
    %87 = math.exp %86 : vector<128x1xf32>
    %88 = vector.broadcast %85 : vector<128x1xf32> to vector<128x128xf32>
    %89 = arith.subf %80, %88 : vector<128x128xf32>
    %90 = arith.truncf %89 : vector<128x128xf32> to vector<128x128xbf16>
    %91 = math.exp %90 : vector<128x128xbf16>
    %c1_46 = arith.constant 1 : index
    %c0_47 = arith.constant 0 : index
    %c0_48 = arith.constant 0 : index
    %92 = vector.load %arg15[%c1_46, %c0_47, %c0_48] : memref<4x128x1xf32, #tpu.memory_space<vmem>>, vector<1x128x1xf32>
    %93 = vector.shape_cast %92 : vector<1x128x1xf32> to vector<128x1xf32>
    %94 = arith.mulf %87, %93 : vector<128x1xf32>
    %95 = arith.extf %91 : vector<128x128xbf16> to vector<128x128xf32>
    %cst_49 = arith.constant dense<0.000000e+00> : vector<128xf32>
    %96 = vector.multi_reduction <add>, %95, %cst_49 [1] : vector<128x128xf32> to vector<128xf32>
    %97 = vector.shape_cast %96 : vector<128xf32> to vector<128x1xf32>
    %98 = arith.addf %94, %97 : vector<128x1xf32>
    %c1_50 = arith.constant 1 : index
    %c0_51 = arith.constant 0 : index
    %c0_52 = arith.constant 0 : index
    %99 = vector.load %arg15[%c1_50, %c0_51, %c0_52] : memref<4x128x1xf32, #tpu.memory_space<vmem>>, vector<1x128x1xf32>
    %100 = vector.shape_cast %99 : vector<1x128x1xf32> to vector<128x1xf32>
    %101 = vector.shape_cast %98 : vector<128x1xf32> to vector<1x128x1xf32>
    tpu.vector_store %arg15[%c1_50, %c0_51, %c0_52], %101 {strides = array<i32>} : memref<4x128x1xf32, #tpu.memory_space<vmem>>, vector<1x128x1xf32>,
    %c1_53 = arith.constant 1 : index
    %c0_54 = arith.constant 0 : index
    %c0_55 = arith.constant 0 : index
    %102 = vector.load %arg16[%c1_53, %c0_54, %c0_55] : memref<4x128x128xf32, #tpu.memory_space<vmem>>, vector<1x128x128xf32>
    %103 = vector.shape_cast %102 : vector<1x128x128xf32> to vector<128x128xf32>
    %104 = vector.broadcast %87 : vector<128x1xf32> to vector<128x128xf32>
    %105 = arith.mulf %104, %103 : vector<128x128xf32>
    %106 = vector.extract_strided_slice %22 {offsets = [0, 128], sizes = [128, 128], strides = [1, 1]} : vector<128x512xbf16> to vector<128x128xbf16>
    %cst_56 = arith.constant dense<0.000000e+00> : vector<128x128xf32>
    %107 = tpu.matmul %91, %106, %cst_56 {dimension_numbers = #tpu.dot_dimension_numbers<[1], [0], [0], [1], [0, 0, 1, 1], [], []>} : vector<128x128xbf16>, vector<128x128xbf16>, vector<128x128xf32> -> vector<128x128xf32>
    %108 = arith.addf %105, %107 : vector<128x128xf32>
    %c1_57 = arith.constant 1 : index
    %c0_58 = arith.constant 0 : index
    %c0_59 = arith.constant 0 : index
    %109 = vector.load %arg16[%c1_57, %c0_58, %c0_59] : memref<4x128x128xf32, #tpu.memory_space<vmem>>, vector<1x128x128xf32>
    %110 = vector.shape_cast %109 : vector<1x128x128xf32> to vector<128x128xf32>
    %111 = vector.shape_cast %108 : vector<128x128xf32> to vector<1x128x128xf32>
    tpu.vector_store %arg16[%c1_57, %c0_58, %c0_59], %111 {strides = array<i32>} : memref<4x128x128xf32, #tpu.memory_space<vmem>>, vector<1x128x128xf32>,
    %c1_60 = arith.constant 1 : index
    %c0_61 = arith.constant 0 : index
    %c0_62 = arith.constant 0 : index
    %112 = vector.load %arg14[%c1_60, %c0_61, %c0_62] : memref<4x128x1xf32, #tpu.memory_space<vmem>>, vector<1x128x1xf32>
    %113 = vector.shape_cast %112 : vector<1x128x1xf32> to vector<128x1xf32>
    %114 = vector.shape_cast %85 : vector<128x1xf32> to vector<1x128x1xf32>
    tpu.vector_store %arg14[%c1_60, %c0_61, %c0_62], %114 {strides = array<i32>} : memref<4x128x1xf32, #tpu.memory_space<vmem>>, vector<1x128x1xf32>,
    %115 = vector.extract_strided_slice %11 {offsets = [0, 64], sizes = [128, 32], strides = [1, 1]} : vector<128x128xf32> to vector<128x32xf32>
    %116 = arith.truncf %115 : vector<128x32xf32> to vector<128x32xbf16>
    %117 = vector.extract_strided_slice %16 {offsets = [0, 64], sizes = [128, 32], strides = [1, 1]} : vector<128x128xf32> to vector<128x32xf32>
    %118 = arith.truncf %117 : vector<128x32xf32> to vector<128x32xbf16>
    %cst_63 = arith.constant dense<0.000000e+00> : vector<128x128xf32>
    %119 = tpu.matmul %116, %118, %cst_63 {dimension_numbers = #tpu.dot_dimension_numbers<[1], [1], [0], [0], [0, 0, 1, 0], [], []>} : vector<128x32xbf16>, vector<128x32xbf16>, vector<128x128xf32> -> vector<128x128xf32>
    %cst_64 = arith.constant -1.000000e+30 : f32
    %120 = vector.shape_cast %28 : vector<1x128xi1> to vector<1x128xi1>
    %121 = vector.broadcast %120 : vector<1x128xi1> to vector<128x128xi1>
    %122 = vector.broadcast %cst_64 : f32 to vector<128x128xf32>
    %123 = arith.select %121, %119, %122 : vector<128x128xi1>, vector<128x128xf32>
    %c2 = arith.constant 2 : index
    %c0_65 = arith.constant 0 : index
    %c0_66 = arith.constant 0 : index
    %124 = vector.load %arg14[%c2, %c0_65, %c0_66] : memref<4x128x1xf32, #tpu.memory_space<vmem>>, vector<1x128x1xf32>
    %125 = vector.shape_cast %124 : vector<1x128x1xf32> to vector<128x1xf32>
    %cst_67 = arith.constant dense<0xFF800000> : vector<128xf32>
    %126 = vector.multi_reduction <maximumf>, %123, %cst_67 [1] : vector<128x128xf32> to vector<128xf32>
    %127 = vector.shape_cast %126 : vector<128xf32> to vector<128x1xf32>
    %128 = arith.maximumf %125, %127 : vector<128x1xf32>
    %129 = arith.subf %125, %128 : vector<128x1xf32>
    %130 = math.exp %129 : vector<128x1xf32>
    %131 = vector.broadcast %128 : vector<128x1xf32> to vector<128x128xf32>
    %132 = arith.subf %123, %131 : vector<128x128xf32>
    %133 = arith.truncf %132 : vector<128x128xf32> to vector<128x128xbf16>
    %134 = math.exp %133 : vector<128x128xbf16>
    %c2_68 = arith.constant 2 : index
    %c0_69 = arith.constant 0 : index
    %c0_70 = arith.constant 0 : index
    %135 = vector.load %arg15[%c2_68, %c0_69, %c0_70] : memref<4x128x1xf32, #tpu.memory_space<vmem>>, vector<1x128x1xf32>
    %136 = vector.shape_cast %135 : vector<1x128x1xf32> to vector<128x1xf32>
    %137 = arith.mulf %130, %136 : vector<128x1xf32>
    %138 = arith.extf %134 : vector<128x128xbf16> to vector<128x128xf32>
    %cst_71 = arith.constant dense<0.000000e+00> : vector<128xf32>
    %139 = vector.multi_reduction <add>, %138, %cst_71 [1] : vector<128x128xf32> to vector<128xf32>
    %140 = vector.shape_cast %139 : vector<128xf32> to vector<128x1xf32>
    %141 = arith.addf %137, %140 : vector<128x1xf32>
    %c2_72 = arith.constant 2 : index
    %c0_73 = arith.constant 0 : index
    %c0_74 = arith.constant 0 : index
    %142 = vector.load %arg15[%c2_72, %c0_73, %c0_74] : memref<4x128x1xf32, #tpu.memory_space<vmem>>, vector<1x128x1xf32>
    %143 = vector.shape_cast %142 : vector<1x128x1xf32> to vector<128x1xf32>
    %144 = vector.shape_cast %141 : vector<128x1xf32> to vector<1x128x1xf32>
    tpu.vector_store %arg15[%c2_72, %c0_73, %c0_74], %144 {strides = array<i32>} : memref<4x128x1xf32, #tpu.memory_space<vmem>>, vector<1x128x1xf32>,
    %c2_75 = arith.constant 2 : index
    %c0_76 = arith.constant 0 : index
    %c0_77 = arith.constant 0 : index
    %145 = vector.load %arg16[%c2_75, %c0_76, %c0_77] : memref<4x128x128xf32, #tpu.memory_space<vmem>>, vector<1x128x128xf32>
    %146 = vector.shape_cast %145 : vector<1x128x128xf32> to vector<128x128xf32>
    %147 = vector.broadcast %130 : vector<128x1xf32> to vector<128x128xf32>
    %148 = arith.mulf %147, %146 : vector<128x128xf32>
    %149 = vector.extract_strided_slice %22 {offsets = [0, 256], sizes = [128, 128], strides = [1, 1]} : vector<128x512xbf16> to vector<128x128xbf16>
    %cst_78 = arith.constant dense<0.000000e+00> : vector<128x128xf32>
    %150 = tpu.matmul %134, %149, %cst_78 {dimension_numbers = #tpu.dot_dimension_numbers<[1], [0], [0], [1], [0, 0, 1, 1], [], []>} : vector<128x128xbf16>, vector<128x128xbf16>, vector<128x128xf32> -> vector<128x128xf32>
    %151 = arith.addf %148, %150 : vector<128x128xf32>
    %c2_79 = arith.constant 2 : index
    %c0_80 = arith.constant 0 : index
    %c0_81 = arith.constant 0 : index
    %152 = vector.load %arg16[%c2_79, %c0_80, %c0_81] : memref<4x128x128xf32, #tpu.memory_space<vmem>>, vector<1x128x128xf32>
    %153 = vector.shape_cast %152 : vector<1x128x128xf32> to vector<128x128xf32>
    %154 = vector.shape_cast %151 : vector<128x128xf32> to vector<1x128x128xf32>
    tpu.vector_store %arg16[%c2_79, %c0_80, %c0_81], %154 {strides = array<i32>} : memref<4x128x128xf32, #tpu.memory_space<vmem>>, vector<1x128x128xf32>,
    %c2_82 = arith.constant 2 : index
    %c0_83 = arith.constant 0 : index
    %c0_84 = arith.constant 0 : index
    %155 = vector.load %arg14[%c2_82, %c0_83, %c0_84] : memref<4x128x1xf32, #tpu.memory_space<vmem>>, vector<1x128x1xf32>
    %156 = vector.shape_cast %155 : vector<1x128x1xf32> to vector<128x1xf32>
    %157 = vector.shape_cast %128 : vector<128x1xf32> to vector<1x128x1xf32>
    tpu.vector_store %arg14[%c2_82, %c0_83, %c0_84], %157 {strides = array<i32>} : memref<4x128x1xf32, #tpu.memory_space<vmem>>, vector<1x128x1xf32>,
    %158 = vector.extract_strided_slice %11 {offsets = [0, 96], sizes = [128, 32], strides = [1, 1]} : vector<128x128xf32> to vector<128x32xf32>
    %159 = arith.truncf %158 : vector<128x32xf32> to vector<128x32xbf16>
    %160 = vector.extract_strided_slice %16 {offsets = [0, 96], sizes = [128, 32], strides = [1, 1]} : vector<128x128xf32> to vector<128x32xf32>
    %161 = arith.truncf %160 : vector<128x32xf32> to vector<128x32xbf16>
    %cst_85 = arith.constant dense<0.000000e+00> : vector<128x128xf32>
    %162 = tpu.matmul %159, %161, %cst_85 {dimension_numbers = #tpu.dot_dimension_numbers<[1], [1], [0], [0], [0, 0, 1, 0], [], []>} : vector<128x32xbf16>, vector<128x32xbf16>, vector<128x128xf32> -> vector<128x128xf32>
    %cst_86 = arith.constant -1.000000e+30 : f32
    %163 = vector.shape_cast %28 : vector<1x128xi1> to vector<1x128xi1>
    %164 = vector.broadcast %163 : vector<1x128xi1> to vector<128x128xi1>
    %165 = vector.broadcast %cst_86 : f32 to vector<128x128xf32>
    %166 = arith.select %164, %162, %165 : vector<128x128xi1>, vector<128x128xf32>
    %c3 = arith.constant 3 : index
    %c0_87 = arith.constant 0 : index
    %c0_88 = arith.constant 0 : index
    %167 = vector.load %arg14[%c3, %c0_87, %c0_88] : memref<4x128x1xf32, #tpu.memory_space<vmem>>, vector<1x128x1xf32>
    %168 = vector.shape_cast %167 : vector<1x128x1xf32> to vector<128x1xf32>
    %cst_89 = arith.constant dense<0xFF800000> : vector<128xf32>
    %169 = vector.multi_reduction <maximumf>, %166, %cst_89 [1] : vector<128x128xf32> to vector<128xf32>
    %170 = vector.shape_cast %169 : vector<128xf32> to vector<128x1xf32>
    %171 = arith.maximumf %168, %170 : vector<128x1xf32>
    %172 = arith.subf %168, %171 : vector<128x1xf32>
    %173 = math.exp %172 : vector<128x1xf32>
    %174 = vector.broadcast %171 : vector<128x1xf32> to vector<128x128xf32>
    %175 = arith.subf %166, %174 : vector<128x128xf32>
    %176 = arith.truncf %175 : vector<128x128xf32> to vector<128x128xbf16>
    %177 = math.exp %176 : vector<128x128xbf16>
    %c3_90 = arith.constant 3 : index
    %c0_91 = arith.constant 0 : index
    %c0_92 = arith.constant 0 : index
    %178 = vector.load %arg15[%c3_90, %c0_91, %c0_92] : memref<4x128x1xf32, #tpu.memory_space<vmem>>, vector<1x128x1xf32>
    %179 = vector.shape_cast %178 : vector<1x128x1xf32> to vector<128x1xf32>
    %180 = arith.mulf %173, %179 : vector<128x1xf32>
    %181 = arith.extf %177 : vector<128x128xbf16> to vector<128x128xf32>
    %cst_93 = arith.constant dense<0.000000e+00> : vector<128xf32>
    %182 = vector.multi_reduction <add>, %181, %cst_93 [1] : vector<128x128xf32> to vector<128xf32>
    %183 = vector.shape_cast %182 : vector<128xf32> to vector<128x1xf32>
    %184 = arith.addf %180, %183 : vector<128x1xf32>
    %c3_94 = arith.constant 3 : index
    %c0_95 = arith.constant 0 : index
    %c0_96 = arith.constant 0 : index
    %185 = vector.load %arg15[%c3_94, %c0_95, %c0_96] : memref<4x128x1xf32, #tpu.memory_space<vmem>>, vector<1x128x1xf32>
    %186 = vector.shape_cast %185 : vector<1x128x1xf32> to vector<128x1xf32>
    %187 = vector.shape_cast %184 : vector<128x1xf32> to vector<1x128x1xf32>
    tpu.vector_store %arg15[%c3_94, %c0_95, %c0_96], %187 {strides = array<i32>} : memref<4x128x1xf32, #tpu.memory_space<vmem>>, vector<1x128x1xf32>,
    %c3_97 = arith.constant 3 : index
    %c0_98 = arith.constant 0 : index
    %c0_99 = arith.constant 0 : index
    %188 = vector.load %arg16[%c3_97, %c0_98, %c0_99] : memref<4x128x128xf32, #tpu.memory_space<vmem>>, vector<1x128x128xf32>
    %189 = vector.shape_cast %188 : vector<1x128x128xf32> to vector<128x128xf32>
    %190 = vector.broadcast %173 : vector<128x1xf32> to vector<128x128xf32>
    %191 = arith.mulf %190, %189 : vector<128x128xf32>
    %192 = vector.extract_strided_slice %22 {offsets = [0, 384], sizes = [128, 128], strides = [1, 1]} : vector<128x512xbf16> to vector<128x128xbf16>
    %cst_100 = arith.constant dense<0.000000e+00> : vector<128x128xf32>
    %193 = tpu.matmul %177, %192, %cst_100 {dimension_numbers = #tpu.dot_dimension_numbers<[1], [0], [0], [1], [0, 0, 1, 1], [], []>} : vector<128x128xbf16>, vector<128x128xbf16>, vector<128x128xf32> -> vector<128x128xf32>
    %194 = arith.addf %191, %193 : vector<128x128xf32>
    %c3_101 = arith.constant 3 : index
    %c0_102 = arith.constant 0 : index
    %c0_103 = arith.constant 0 : index
    %195 = vector.load %arg16[%c3_101, %c0_102, %c0_103] : memref<4x128x128xf32, #tpu.memory_space<vmem>>, vector<1x128x128xf32>
    %196 = vector.shape_cast %195 : vector<1x128x128xf32> to vector<128x128xf32>
    %197 = vector.shape_cast %194 : vector<128x128xf32> to vector<1x128x128xf32>
    tpu.vector_store %arg16[%c3_101, %c0_102, %c0_103], %197 {strides = array<i32>} : memref<4x128x128xf32, #tpu.memory_space<vmem>>, vector<1x128x128xf32>,
    %c3_104 = arith.constant 3 : index
    %c0_105 = arith.constant 0 : index
    %c0_106 = arith.constant 0 : index
    %198 = vector.load %arg14[%c3_104, %c0_105, %c0_106] : memref<4x128x1xf32, #tpu.memory_space<vmem>>, vector<1x128x1xf32>
    %199 = vector.shape_cast %198 : vector<1x128x1xf32> to vector<128x1xf32>
    %200 = vector.shape_cast %171 : vector<128x1xf32> to vector<1x128x1xf32>
    tpu.vector_store %arg14[%c3_104, %c0_105, %c0_106], %200 {strides = array<i32>} : memref<4x128x1xf32, #tpu.memory_space<vmem>>, vector<1x128x1xf32>,
    %c2_i32 = arith.constant 2 : i32
    %201 = arith.cmpi eq, %arg1, %c2_i32 : i32
    %202 = arith.extui %201 : i1 to i32
    %c0_i32_107 = arith.constant 0 : i32
    %203 = arith.cmpi ne, %202, %c0_i32_107 : i32
    scf.if %203 {
      %cst_108 = arith.constant 0.000000e+00 : f32
      %204 = vector.broadcast %cst_108 : f32 to vector<128x128xf32>
      %c0_109 = arith.constant 0 : index
      %c0_110 = arith.constant 0 : index
      %c0_111 = arith.constant 0 : index
      %205 = vector.load %arg16[%c0_109, %c0_110, %c0_111] : memref<4x128x128xf32, #tpu.memory_space<vmem>>, vector<1x128x128xf32>
      %206 = vector.shape_cast %205 : vector<1x128x128xf32> to vector<128x128xf32>
      %c0_112 = arith.constant 0 : index
      %c0_113 = arith.constant 0 : index
      %c0_114 = arith.constant 0 : index
      %207 = vector.load %arg15[%c0_112, %c0_113, %c0_114] : memref<4x128x1xf32, #tpu.memory_space<vmem>>, vector<1x128x1xf32>
      %208 = vector.shape_cast %207 : vector<1x128x1xf32> to vector<128x1xf32>
      %209 = tpu.reciprocal %208 {approx = true} : vector<128x1xf32> -> vector<128x1xf32>
      %210 = vector.broadcast %209 : vector<128x1xf32> to vector<128x128xf32>
      %211 = arith.mulf %206, %210 : vector<128x128xf32>
      %212 = arith.addf %204, %211 : vector<128x128xf32>
      %c1_115 = arith.constant 1 : index
      %c0_116 = arith.constant 0 : index
      %c0_117 = arith.constant 0 : index
      %213 = vector.load %arg16[%c1_115, %c0_116, %c0_117] : memref<4x128x128xf32, #tpu.memory_space<vmem>>, vector<1x128x128xf32>
      %214 = vector.shape_cast %213 : vector<1x128x128xf32> to vector<128x128xf32>
      %c1_118 = arith.constant 1 : index
      %c0_119 = arith.constant 0 : index
      %c0_120 = arith.constant 0 : index
      %215 = vector.load %arg15[%c1_118, %c0_119, %c0_120] : memref<4x128x1xf32, #tpu.memory_space<vmem>>, vector<1x128x1xf32>
      %216 = vector.shape_cast %215 : vector<1x128x1xf32> to vector<128x1xf32>
      %217 = tpu.reciprocal %216 {approx = true} : vector<128x1xf32> -> vector<128x1xf32>
      %218 = vector.broadcast %217 : vector<128x1xf32> to vector<128x128xf32>
      %219 = arith.mulf %214, %218 : vector<128x128xf32>
      %220 = arith.addf %212, %219 : vector<128x128xf32>
      %c2_121 = arith.constant 2 : index
      %c0_122 = arith.constant 0 : index
      %c0_123 = arith.constant 0 : index
      %221 = vector.load %arg16[%c2_121, %c0_122, %c0_123] : memref<4x128x128xf32, #tpu.memory_space<vmem>>, vector<1x128x128xf32>
      %222 = vector.shape_cast %221 : vector<1x128x128xf32> to vector<128x128xf32>
      %c2_124 = arith.constant 2 : index
      %c0_125 = arith.constant 0 : index
      %c0_126 = arith.constant 0 : index
      %223 = vector.load %arg15[%c2_124, %c0_125, %c0_126] : memref<4x128x1xf32, #tpu.memory_space<vmem>>, vector<1x128x1xf32>
      %224 = vector.shape_cast %223 : vector<1x128x1xf32> to vector<128x1xf32>
      %225 = tpu.reciprocal %224 {approx = true} : vector<128x1xf32> -> vector<128x1xf32>
      %226 = vector.broadcast %225 : vector<128x1xf32> to vector<128x128xf32>
      %227 = arith.mulf %222, %226 : vector<128x128xf32>
      %228 = arith.addf %220, %227 : vector<128x128xf32>
      %c3_127 = arith.constant 3 : index
      %c0_128 = arith.constant 0 : index
      %c0_129 = arith.constant 0 : index
      %229 = vector.load %arg16[%c3_127, %c0_128, %c0_129] : memref<4x128x128xf32, #tpu.memory_space<vmem>>, vector<1x128x128xf32>
      %230 = vector.shape_cast %229 : vector<1x128x128xf32> to vector<128x128xf32>
      %c3_130 = arith.constant 3 : index
      %c0_131 = arith.constant 0 : index
      %c0_132 = arith.constant 0 : index
      %231 = vector.load %arg15[%c3_130, %c0_131, %c0_132] : memref<4x128x1xf32, #tpu.memory_space<vmem>>, vector<1x128x1xf32>
      %232 = vector.shape_cast %231 : vector<1x128x1xf32> to vector<128x1xf32>
      %233 = tpu.reciprocal %232 {approx = true} : vector<128x1xf32> -> vector<128x1xf32>
      %234 = vector.broadcast %233 : vector<128x1xf32> to vector<128x128xf32>
      %235 = arith.mulf %230, %234 : vector<128x128xf32>
      %236 = arith.addf %228, %235 : vector<128x128xf32>
      %237 = arith.addf %3, %236 : vector<128x128xf32>
      %c0_133 = arith.constant 0 : index
      %c0_134 = arith.constant 0 : index
      %238 = vector.load %arg10[%c0_133, %c0_134] : memref<1x128xf32, #tpu.memory_space<vmem>>, vector<1x128xf32>
      %239 = vector.broadcast %238 : vector<1x128xf32> to vector<128x128xf32>
      %240 = arith.addf %237, %239 : vector<128x128xf32>
      %241 = tpu.iota {dimensions = array<i32: 1>} : vector<1x128xi32>
      %c100_i32 = arith.constant 100 : i32
      %242 = vector.broadcast %c100_i32 : i32 to vector<1x128xi32>
      %243 = arith.cmpi slt, %241, %242 : vector<1x128xi32>
      %244 = arith.extui %243 : vector<1x128xi1> to vector<1x128xi32>
      %245 = arith.sitofp %244 : vector<1x128xi32> to vector<1x128xf32>
      %cst_135 = arith.constant dense<0.000000e+00> : vector<128xf32>
      %246 = vector.multi_reduction <add>, %240, %cst_135 [1] : vector<128x128xf32> to vector<128xf32>
      %247 = vector.shape_cast %246 : vector<128xf32> to vector<128x1xf32>
      %cst_136 = arith.constant 0.00999999977 : f32
      %248 = vector.broadcast %cst_136 : f32 to vector<128x1xf32>
      %249 = arith.mulf %247, %248 : vector<128x1xf32>
      %250 = vector.broadcast %249 : vector<128x1xf32> to vector<128x128xf32>
      %251 = arith.subf %240, %250 : vector<128x128xf32>
      %252 = vector.broadcast %245 : vector<1x128xf32> to vector<128x128xf32>
      %253 = arith.mulf %251, %252 : vector<128x128xf32>
      %254 = arith.mulf %253, %253 : vector<128x128xf32>
      %cst_137 = arith.constant dense<0.000000e+00> : vector<128xf32>
      %255 = vector.multi_reduction <add>, %254, %cst_137 [1] : vector<128x128xf32> to vector<128xf32>
      %256 = vector.shape_cast %255 : vector<128xf32> to vector<128x1xf32>
      %cst_138 = arith.constant 0.00999999977 : f32
      %257 = vector.broadcast %cst_138 : f32 to vector<128x1xf32>
      %258 = arith.mulf %256, %257 : vector<128x1xf32>
      %cst_139 = arith.constant 9.99999974E-6 : f32
      %259 = vector.broadcast %cst_139 : f32 to vector<128x1xf32>
      %260 = arith.addf %258, %259 : vector<128x1xf32>
      %261 = math.rsqrt %260 : vector<128x1xf32>
      %262 = vector.broadcast %261 : vector<128x1xf32> to vector<128x128xf32>
      %263 = arith.mulf %253, %262 : vector<128x128xf32>
      %c0_140 = arith.constant 0 : index
      %c0_141 = arith.constant 0 : index
      %264 = vector.load %arg11[%c0_140, %c0_141] : memref<1x128xf32, #tpu.memory_space<vmem>>, vector<1x128xf32>
      %265 = vector.broadcast %264 : vector<1x128xf32> to vector<128x128xf32>
      %266 = arith.mulf %263, %265 : vector<128x128xf32>
      %c0_142 = arith.constant 0 : index
      %c0_143 = arith.constant 0 : index
      %267 = vector.load %arg12[%c0_142, %c0_143] : memref<1x128xf32, #tpu.memory_space<vmem>>, vector<1x128xf32>
      %268 = vector.broadcast %267 : vector<1x128xf32> to vector<128x128xf32>
      %269 = arith.addf %266, %268 : vector<128x128xf32>
      %c0_144 = arith.constant 0 : index
      %c0_145 = arith.constant 0 : index
      %270 = vector.load %arg13[%c0_144, %c0_145] : memref<128x128xf32, #tpu.memory_space<vmem>>, vector<128x128xf32>
      tpu.vector_store %arg13[%c0_144, %c0_145], %269 {strides = array<i32>} : memref<128x128xf32, #tpu.memory_space<vmem>>, vector<128x128xf32>,
    } else {
    }
    return
  }
  func.func @transform_0(%arg0: i32, %arg1: i32) -> (i32, i32) {
    %c0_i32 = arith.constant 0 : i32
    %c0_i32_0 = arith.constant 0 : i32
    return %arg0, %c0_i32 : i32, i32
  }
  func.func @transform_1(%arg0: i32, %arg1: i32) -> (i32, i32) {
    %c0_i32 = arith.constant 0 : i32
    %c0_i32_0 = arith.constant 0 : i32
    return %arg1, %c0_i32 : i32, i32
  }
  func.func @transform_2(%arg0: i32, %arg1: i32) -> (i32, i32) {
    %c0_i32 = arith.constant 0 : i32
    %c0_i32_0 = arith.constant 0 : i32
    %c0_i32_1 = arith.constant 0 : i32
    return %c0_i32, %c0_i32_0 : i32, i32
  }
  func.func @transform_3(%arg0: i32, %arg1: i32) -> (i32, i32) {
    %c0_i32 = arith.constant 0 : i32
    %c0_i32_0 = arith.constant 0 : i32
    %c0_i32_1 = arith.constant 0 : i32
    return %c0_i32, %c0_i32_0 : i32, i32
  }
  func.func @transform_4(%arg0: i32, %arg1: i32) -> (i32, i32) {
    %c0_i32 = arith.constant 0 : i32
    %c0_i32_0 = arith.constant 0 : i32
    %c0_i32_1 = arith.constant 0 : i32
    return %c0_i32, %c0_i32_0 : i32, i32
  }
  func.func @transform_5(%arg0: i32, %arg1: i32) -> (i32, i32) {
    %c0_i32 = arith.constant 0 : i32
    %c0_i32_0 = arith.constant 0 : i32
    %c0_i32_1 = arith.constant 0 : i32
    return %c0_i32, %c0_i32_0 : i32, i32
  }
  func.func @transform_6(%arg0: i32, %arg1: i32) -> (i32, i32) {
    %c0_i32 = arith.constant 0 : i32
    %c0_i32_0 = arith.constant 0 : i32
    %c0_i32_1 = arith.constant 0 : i32
    return %c0_i32, %c0_i32_0 : i32, i32
  }
  func.func @transform_7(%arg0: i32, %arg1: i32) -> (i32, i32) {
    %c0_i32 = arith.constant 0 : i32
    %c0_i32_0 = arith.constant 0 : i32
    %c0_i32_1 = arith.constant 0 : i32
    return %c0_i32, %c0_i32_0 : i32, i32
  }
  func.func @transform_8(%arg0: i32, %arg1: i32) -> (i32, i32) {
    %c0_i32 = arith.constant 0 : i32
    %c0_i32_0 = arith.constant 0 : i32
    %c0_i32_1 = arith.constant 0 : i32
    return %c0_i32, %c0_i32_0 : i32, i32
  }
  func.func @transform_9(%arg0: i32, %arg1: i32) -> (i32, i32) {
    %c0_i32 = arith.constant 0 : i32
    %c0_i32_0 = arith.constant 0 : i32
    %c0_i32_1 = arith.constant 0 : i32
    return %c0_i32, %c0_i32_0 : i32, i32
  }
  func.func @transform_10(%arg0: i32, %arg1: i32) -> (i32, i32) {
    %c0_i32 = arith.constant 0 : i32
    %c0_i32_0 = arith.constant 0 : i32
    %c0_i32_1 = arith.constant 0 : i32
    return %c0_i32, %c0_i32_0 : i32, i32
  }
  func.func @transform_11(%arg0: i32, %arg1: i32) -> (i32, i32) {
    %c0_i32 = arith.constant 0 : i32
    %c0_i32_0 = arith.constant 0 : i32
    return %arg0, %c0_i32 : i32, i32
  }
}

module attributes {stable_mosaic.version = 11 : i64} {
  func.func @bn_conv2_agg_kernel(%arg0: i32, %arg1: memref<128x128xbf16, #tpu.memory_space<vmem>>, %arg2: memref<128x512xf32, #tpu.memory_space<vmem>>, %arg3: memref<1x512xf32, #tpu.memory_space<vmem>>, %arg4: memref<1x512xf32, #tpu.memory_space<vmem>>, %arg5: memref<1x512xf32, #tpu.memory_space<vmem>>, %arg6: memref<1x512xf32, #tpu.memory_space<vmem>>, %arg7: memref<512x128xbf16, #tpu.memory_space<vmem>>, %arg8: memref<128x128xf32, #tpu.memory_space<vmem>>) attributes {dimension_semantics = [#tpu.dimension_semantics<arbitrary>], iteration_bounds = array<i64: 3>, scalar_prefetch = 0 : i64, scratch_operands = 0 : i64, tpu.core_type = #tpu.core_type<tc>, window_params = [{transform_indices = @transform_0, window_bounds = array<i64: 128, 128>}, {transform_indices = @transform_1, window_bounds = array<i64: 128, 512>}, {pipeline_mode = #tpu.pipeline_mode<synchronous>, transform_indices = @transform_2, window_bounds = array<i64: 1, 512>}, {pipeline_mode = #tpu.pipeline_mode<synchronous>, transform_indices = @transform_3, window_bounds = array<i64: 1, 512>}, {pipeline_mode = #tpu.pipeline_mode<synchronous>, transform_indices = @transform_4, window_bounds = array<i64: 1, 512>}, {pipeline_mode = #tpu.pipeline_mode<synchronous>, transform_indices = @transform_5, window_bounds = array<i64: 1, 512>}, {pipeline_mode = #tpu.pipeline_mode<synchronous>, transform_indices = @transform_6, window_bounds = array<i64: 512, 128>}, {pipeline_mode = #tpu.pipeline_mode<synchronous>, transform_indices = @transform_7, window_bounds = array<i64: 128, 128>}]} {
    %c0_i32 = arith.constant 0 : i32
    %0 = arith.cmpi eq, %arg0, %c0_i32 : i32
    %1 = arith.extui %0 : i1 to i32
    %c0_i32_0 = arith.constant 0 : i32
    %2 = arith.cmpi ne, %1, %c0_i32_0 : i32
    scf.if %2 {
      %cst_22 = arith.constant 0.000000e+00 : f32
      %34 = vector.broadcast %cst_22 : f32 to vector<128x128xf32>
      %c0_23 = arith.constant 0 : index
      %c0_24 = arith.constant 0 : index
      %35 = vector.load %arg8[%c0_23, %c0_24] : memref<128x128xf32, #tpu.memory_space<vmem>>, vector<128x128xf32>
      tpu.vector_store %arg8[%c0_23, %c0_24], %34 {strides = array<i32>} : memref<128x128xf32, #tpu.memory_space<vmem>>, vector<128x128xf32>,
    } else {
    }
    %c0 = arith.constant 0 : index
    %c0_1 = arith.constant 0 : index
    %3 = vector.load %arg3[%c0, %c0_1] : memref<1x512xf32, #tpu.memory_space<vmem>>, vector<1x512xf32>
    %cst = arith.constant 0.00333333341 : f32
    %4 = vector.broadcast %cst : f32 to vector<1x512xf32>
    %5 = arith.mulf %3, %4 : vector<1x512xf32>
    %c0_2 = arith.constant 0 : index
    %c0_3 = arith.constant 0 : index
    %6 = vector.load %arg4[%c0_2, %c0_3] : memref<1x512xf32, #tpu.memory_space<vmem>>, vector<1x512xf32>
    %cst_4 = arith.constant 0.00333333341 : f32
    %7 = vector.broadcast %cst_4 : f32 to vector<1x512xf32>
    %8 = arith.mulf %6, %7 : vector<1x512xf32>
    %9 = arith.mulf %5, %5 : vector<1x512xf32>
    %10 = arith.subf %8, %9 : vector<1x512xf32>
    %c0_5 = arith.constant 0 : index
    %c0_6 = arith.constant 0 : index
    %11 = vector.load %arg2[%c0_5, %c0_6] : memref<128x512xf32, #tpu.memory_space<vmem>>, vector<128x512xf32>
    %12 = vector.broadcast %5 : vector<1x512xf32> to vector<128x512xf32>
    %13 = arith.subf %11, %12 : vector<128x512xf32>
    %cst_7 = arith.constant 9.99999974E-6 : f32
    %14 = vector.broadcast %cst_7 : f32 to vector<1x512xf32>
    %15 = arith.addf %10, %14 : vector<1x512xf32>
    %16 = math.rsqrt %15 : vector<1x512xf32>
    %17 = vector.broadcast %16 : vector<1x512xf32> to vector<128x512xf32>
    %18 = arith.mulf %13, %17 : vector<128x512xf32>
    %c0_8 = arith.constant 0 : index
    %c0_9 = arith.constant 0 : index
    %19 = vector.load %arg5[%c0_8, %c0_9] : memref<1x512xf32, #tpu.memory_space<vmem>>, vector<1x512xf32>
    %20 = vector.broadcast %19 : vector<1x512xf32> to vector<128x512xf32>
    %21 = arith.mulf %18, %20 : vector<128x512xf32>
    %c0_10 = arith.constant 0 : index
    %c0_11 = arith.constant 0 : index
    %22 = vector.load %arg6[%c0_10, %c0_11] : memref<1x512xf32, #tpu.memory_space<vmem>>, vector<1x512xf32>
    %23 = vector.broadcast %22 : vector<1x512xf32> to vector<128x512xf32>
    %24 = arith.addf %21, %23 : vector<128x512xf32>
    %25 = arith.truncf %24 : vector<128x512xf32> to vector<128x512xbf16>
    %c0_12 = arith.constant 0 : index
    %c0_13 = arith.constant 0 : index
    %26 = vector.load %arg7[%c0_12, %c0_13] : memref<512x128xbf16, #tpu.memory_space<vmem>>, vector<512x128xbf16>
    %cst_14 = arith.constant dense<0.000000e+00> : vector<128x128xf32>
    %27 = tpu.matmul %25, %26, %cst_14 {dimension_numbers = #tpu.dot_dimension_numbers<[1], [0], [0], [1], [0, 0, 1, 1], [], []>} : vector<128x512xbf16>, vector<512x128xbf16>, vector<128x128xf32> -> vector<128x128xf32>
    %c0_15 = arith.constant 0 : index
    %c0_16 = arith.constant 0 : index
    %28 = vector.load %arg8[%c0_15, %c0_16] : memref<128x128xf32, #tpu.memory_space<vmem>>, vector<128x128xf32>
    %c0_17 = arith.constant 0 : index
    %c0_18 = arith.constant 0 : index
    %29 = vector.load %arg1[%c0_17, %c0_18] : memref<128x128xbf16, #tpu.memory_space<vmem>>, vector<128x128xbf16>
    %30 = arith.truncf %27 : vector<128x128xf32> to vector<128x128xbf16>
    %cst_19 = arith.constant dense<0.000000e+00> : vector<128x128xf32>
    %31 = tpu.matmul %29, %30, %cst_19 {dimension_numbers = #tpu.dot_dimension_numbers<[1], [0], [0], [1], [0, 0, 1, 1], [], []>} : vector<128x128xbf16>, vector<128x128xbf16>, vector<128x128xf32> -> vector<128x128xf32>
    %32 = arith.addf %28, %31 : vector<128x128xf32>
    %c0_20 = arith.constant 0 : index
    %c0_21 = arith.constant 0 : index
    %33 = vector.load %arg8[%c0_20, %c0_21] : memref<128x128xf32, #tpu.memory_space<vmem>>, vector<128x128xf32>
    tpu.vector_store %arg8[%c0_20, %c0_21], %32 {strides = array<i32>} : memref<128x128xf32, #tpu.memory_space<vmem>>, vector<128x128xf32>,
    return
  }
  func.func @transform_0(%arg0: i32) -> (i32, i32) {
    %c0_i32 = arith.constant 0 : i32
    %c0_i32_0 = arith.constant 0 : i32
    return %c0_i32, %arg0 : i32, i32
  }
  func.func @transform_1(%arg0: i32) -> (i32, i32) {
    %c0_i32 = arith.constant 0 : i32
    %c0_i32_0 = arith.constant 0 : i32
    return %arg0, %c0_i32 : i32, i32
  }
  func.func @transform_2(%arg0: i32) -> (i32, i32) {
    %c0_i32 = arith.constant 0 : i32
    %c0_i32_0 = arith.constant 0 : i32
    %c0_i32_1 = arith.constant 0 : i32
    return %c0_i32, %c0_i32_0 : i32, i32
  }
  func.func @transform_3(%arg0: i32) -> (i32, i32) {
    %c0_i32 = arith.constant 0 : i32
    %c0_i32_0 = arith.constant 0 : i32
    %c0_i32_1 = arith.constant 0 : i32
    return %c0_i32, %c0_i32_0 : i32, i32
  }
  func.func @transform_4(%arg0: i32) -> (i32, i32) {
    %c0_i32 = arith.constant 0 : i32
    %c0_i32_0 = arith.constant 0 : i32
    %c0_i32_1 = arith.constant 0 : i32
    return %c0_i32, %c0_i32_0 : i32, i32
  }
  func.func @transform_5(%arg0: i32) -> (i32, i32) {
    %c0_i32 = arith.constant 0 : i32
    %c0_i32_0 = arith.constant 0 : i32
    %c0_i32_1 = arith.constant 0 : i32
    return %c0_i32, %c0_i32_0 : i32, i32
  }
  func.func @transform_6(%arg0: i32) -> (i32, i32) {
    %c0_i32 = arith.constant 0 : i32
    %c0_i32_0 = arith.constant 0 : i32
    %c0_i32_1 = arith.constant 0 : i32
    return %c0_i32, %c0_i32_0 : i32, i32
  }
  func.func @transform_7(%arg0: i32) -> (i32, i32) {
    %c0_i32 = arith.constant 0 : i32
    %c0_i32_0 = arith.constant 0 : i32
    %c0_i32_1 = arith.constant 0 : i32
    return %c0_i32, %c0_i32_0 : i32, i32
  }
}

module attributes {stable_mosaic.version = 11 : i64} {
  func.func @conv2_out_kernel(%arg0: i32, %arg1: memref<128x128xbf16, #tpu.memory_space<vmem>>, %arg2: memref<128x1xf32, #tpu.memory_space<vmem>>, %arg3: memref<128x128xf32, #tpu.memory_space<vmem>>, %arg4: memref<1x128xf32, #tpu.memory_space<vmem>>, %arg5: memref<128x128xf32, #tpu.memory_space<vmem>>) attributes {dimension_semantics = [#tpu.dimension_semantics<parallel>], iteration_bounds = array<i64: 3>, scalar_prefetch = 0 : i64, scratch_operands = 0 : i64, tpu.core_type = #tpu.core_type<tc>, window_params = [{transform_indices = @transform_0, window_bounds = array<i64: 128, 128>}, {transform_indices = @transform_1, window_bounds = array<i64: 128, 1>}, {pipeline_mode = #tpu.pipeline_mode<synchronous>, transform_indices = @transform_2, window_bounds = array<i64: 128, 128>}, {pipeline_mode = #tpu.pipeline_mode<synchronous>, transform_indices = @transform_3, window_bounds = array<i64: 1, 128>}, {transform_indices = @transform_4, window_bounds = array<i64: 128, 128>}]} {
    %c0 = arith.constant 0 : index
    %c0_0 = arith.constant 0 : index
    %0 = vector.load %arg1[%c0, %c0_0] : memref<128x128xbf16, #tpu.memory_space<vmem>>, vector<128x128xbf16>
    %c0_1 = arith.constant 0 : index
    %c0_2 = arith.constant 0 : index
    %1 = vector.load %arg3[%c0_1, %c0_2] : memref<128x128xf32, #tpu.memory_space<vmem>>, vector<128x128xf32>
    %2 = arith.truncf %1 : vector<128x128xf32> to vector<128x128xbf16>
    %cst = arith.constant dense<0.000000e+00> : vector<128x128xf32>
    %3 = tpu.matmul %0, %2, %cst {dimension_numbers = #tpu.dot_dimension_numbers<[1], [0], [0], [1], [0, 0, 1, 1], [], []>} : vector<128x128xbf16>, vector<128x128xbf16>, vector<128x128xf32> -> vector<128x128xf32>
    %c0_3 = arith.constant 0 : index
    %c0_4 = arith.constant 0 : index
    %4 = vector.load %arg2[%c0_3, %c0_4] : memref<128x1xf32, #tpu.memory_space<vmem>>, vector<128x1xf32>
    %5 = vector.broadcast %4 : vector<128x1xf32> to vector<128x128xf32>
    %6 = arith.mulf %3, %5 : vector<128x128xf32>
    %c0_5 = arith.constant 0 : index
    %c0_6 = arith.constant 0 : index
    %7 = vector.load %arg4[%c0_5, %c0_6] : memref<1x128xf32, #tpu.memory_space<vmem>>, vector<1x128xf32>
    %8 = vector.broadcast %7 : vector<1x128xf32> to vector<128x128xf32>
    %9 = arith.addf %6, %8 : vector<128x128xf32>
    %cst_7 = arith.constant 0.000000e+00 : f32
    %10 = vector.broadcast %cst_7 : f32 to vector<128x128xf32>
    %11 = arith.cmpf oge, %9, %10 : vector<128x128xf32>
    %cst_8 = arith.constant 2.000000e-01 : f32
    %12 = vector.broadcast %cst_8 : f32 to vector<128x128xf32>
    %13 = arith.mulf %12, %9 : vector<128x128xf32>
    %14 = arith.select %11, %9, %13 : vector<128x128xi1>, vector<128x128xf32>
    %c0_9 = arith.constant 0 : index
    %c0_10 = arith.constant 0 : index
    %15 = vector.load %arg5[%c0_9, %c0_10] : memref<128x128xf32, #tpu.memory_space<vmem>>, vector<128x128xf32>
    tpu.vector_store %arg5[%c0_9, %c0_10], %14 {strides = array<i32>} : memref<128x128xf32, #tpu.memory_space<vmem>>, vector<128x128xf32>,
    return
  }
  func.func @transform_0(%arg0: i32) -> (i32, i32) {
    %c0_i32 = arith.constant 0 : i32
    %c0_i32_0 = arith.constant 0 : i32
    return %arg0, %c0_i32 : i32, i32
  }
  func.func @transform_1(%arg0: i32) -> (i32, i32) {
    %c0_i32 = arith.constant 0 : i32
    %c0_i32_0 = arith.constant 0 : i32
    return %arg0, %c0_i32 : i32, i32
  }
  func.func @transform_2(%arg0: i32) -> (i32, i32) {
    %c0_i32 = arith.constant 0 : i32
    %c0_i32_0 = arith.constant 0 : i32
    %c0_i32_1 = arith.constant 0 : i32
    return %c0_i32, %c0_i32_0 : i32, i32
  }
  func.func @transform_3(%arg0: i32) -> (i32, i32) {
    %c0_i32 = arith.constant 0 : i32
    %c0_i32_0 = arith.constant 0 : i32
    %c0_i32_1 = arith.constant 0 : i32
    return %c0_i32, %c0_i32_0 : i32, i32
  }
  func.func @transform_4(%arg0: i32) -> (i32, i32) {
    %c0_i32 = arith.constant 0 : i32
    %c0_i32_0 = arith.constant 0 : i32
    return %arg0, %c0_i32 : i32, i32
  }
}

</mosaic_0001>

<llo_original>
// kernel: interactive_forward.8
$region0: #{interactive_forward.8}
  #allocation0 [shape = 'u32[]', space=smem, size = 0x4, offset = 0x4, fixed_abs, tag = 'smem constant byte address 0x4 - core index']
  #allocation1 [shape = 'u32[72,128]{1,0:T(1,128)}', space=vmem, size = 0x9000, scoped, tag = 'internal scratch']
  %s0 = inlined_call_operand.vmem [shape: bf16[128,384], index: 0, kind: input, shape index: {}]
  %s1 = inlined_call_operand.vmem [shape: f32[384,128], index: 1, kind: input, shape index: {}]
  %s2 = inlined_call_operand.vmem [shape: f32[128,128], index: 2, kind: output, shape index: {}]
  %s3 = sld [smem:[#allocation0]]
  $region86: #{interactive_forward.8} parent=0
    _
  %s5 = ssub.s32 1, %s3
  %s6 = scalar_select 0, %s5, %s3
  $region1: #{interactive_forward.8} parent=0
    #allocation2 [shape = 'u8[65536]{0}', space=vmem, size = 0x10000, scoped, tag = 'input window, operand 0']
    loop: start=0, step=1, limit=5
    $region2: #{interactive_forward.8} parent=1 // loop_pre_header
      _
    $region3: #{interactive_forward.8} parent=1 // loop_header
      %s8 = sphi 0, %s12
      %p9 = scmp.ge.s32.totalorder %s8, 5
      %s18 = sphi 0, %s20
      %s21 = sphi 0, %s18
      %s22 = sphi 0, %s21
      %s38 = sphi 0, %s22
      %s44 = sphi 0, %s46
      %s47 = sphi 0, %s44
      %s48 = sphi 0, %s47
      %s64 = sphi 0, %s48
      %s68 = sphi 0, %s68
      %s70 = sphi 0, %s68
      %s71 = sphi 0, %s70
      %s85 = sphi 0, %s71
    $region4: #{interactive_forward.8} parent=1 // loop_header_branch
      %11 = sbr.rel (%p9) target = $region8
    $region5: #{interactive_forward.8} parent=1 // loop_body
      %s13 = ssub.s32 %s8, 1
      %s14 = ssub.s32 %s8, 2
      %s15 = sadd.s32 %s8, 1
      %s16 = ssub.s32 %s8, %s15
      %p17 = scmp.eq.s32.totalorder %s16, 0
      %s19 = sadd.s32 %s18, 1
      %s20 = scalar_select %p17, %s18, %s19
      %p23 = pneg %p17
      %p24 = scmp.eq.s32.totalorder %s8, 2
      %p25 = por %p23, %p24
      %p26 = scmp.ne.s32.totalorder %s18, %s21
      %p27 = scmp.eq.s32.totalorder %s8, 0
      %p28 = por %p26, %p27
      %p29 = scmp.ne.s32.totalorder %s18, %s21
      %p30 = scmp.eq.s32.totalorder %s13, 2
      %p31 = por %p29, %p30
      %p32 = scmp.ne.s32.totalorder %s21, %s22
      %p33 = scmp.eq.s32.totalorder %s13, 0
      %p34 = por %p32, %p33
      %p35 = scmp.ne.s32.totalorder %s21, %s22
      %p36 = scmp.eq.s32.totalorder %s14, 2
      %p37 = por %p35, %p36
      %p39 = scmp.ne.s32.totalorder %s22, %s38
      %p40 = scmp.eq.s32.totalorder %s14, 0
      %p41 = por %p39, %p40
      %s42 = ssub.s32 %s8, %s15
      %p43 = scmp.eq.s32.totalorder %s42, 0
      %s45 = sadd.s32 %s44, 1
      %s46 = scalar_select %p43, %s44, %s45
      %p49 = pneg %p43
      %p50 = scmp.eq.s32.totalorder %s8, 2
      %p51 = por %p49, %p50
      %p52 = scmp.ne.s32.totalorder %s44, %s47
      %p53 = scmp.eq.s32.totalorder %s8, 0
      %p54 = por %p52, %p53
      %p55 = scmp.ne.s32.totalorder %s44, %s47
      %p56 = scmp.eq.s32.totalorder %s13, 2
      %p57 = por %p55, %p56
      %p58 = scmp.ne.s32.totalorder %s47, %s48
      %p59 = scmp.eq.s32.totalorder %s13, 0
      %p60 = por %p58, %p59
      %p61 = scmp.ne.s32.totalorder %s47, %s48
      %p62 = scmp.eq.s32.totalorder %s14, 2
      %p63 = por %p61, %p62
      %p65 = scmp.ne.s32.totalorder %s48, %s64
      %p66 = scmp.eq.s32.totalorder %s14, 0
      %p67 = por %p65, %p66
      %s69 = sadd.s32 %s68, 1
      %p72 = scmp.eq.s32.totalorder %s8, 2
      %p73 = scmp.ne.s32.totalorder %s68, %s70
      %p74 = scmp.eq.s32.totalorder %s8, 0
      %p75 = por %p73, %p74
      %p76 = scmp.ne.s32.totalorder %s68, %s70
      %p77 = scmp.eq.s32.totalorder %s13, 2
      %p78 = por %p76, %p77
      %p79 = scmp.ne.s32.totalorder %s70, %s71
      %p80 = scmp.eq.s32.totalorder %s13, 0
      %p81 = por %p79, %p80
      %p82 = scmp.ne.s32.totalorder %s70, %s71
      %p83 = scmp.eq.s32.totalorder %s14, 2
      %p84 = por %p82, %p83
      %p86 = scmp.ne.s32.totalorder %s71, %s85
      %p87 = scmp.eq.s32.totalorder %s14, 0
      %p88 = por %p86, %p87
      %p89 = scmp.le.s32.totalorder 1, %s8
      %p90 = scmp.lt.s32.totalorder %s8, 4
      %p91 = pnand %p89, %p90
      %p92 = pneg %p91
      // Predicated region
      $region9: #{interactive_forward.8} parent=5 // pred_check
        _
      $region10: #{interactive_forward.8} parent=5 // pred_check_branch
        %94 = sbr.rel (%p91) target = $region12
      $region11: #{interactive_forward.8} parent=5 // pred_region
        %s95 = ssub.s32 %s8, 1
      $region12: #{interactive_forward.8} parent=5 // pred_fallthru
        _
      %p96 = scmp.lt.s32.totalorder %s8, 3
      // Predicated region
      $region13: #{interactive_forward.8} parent=5 // pred_check
        %p97 = pneg %p96
      $region14: #{interactive_forward.8} parent=5 // pred_check_branch
        %99 = sbr.rel (%p97) target = $region16
      $region15: #{interactive_forward.8} parent=5 // pred_region
        // Predicated region
        $region17: #{interactive_forward.8} parent=15 // pred_check
          %p100 = pneg %p28
        $region18: #{interactive_forward.8} parent=15 // pred_check_branch
          %102 = sbr.rel (%p100) target = $region20
        $region19: #{interactive_forward.8} parent=15 // pred_region
          %s103 = sand.u32 %s18, 1
          %s104 = sand.u32 %s18, 1
          %s105 = smul.addr %s104, 64
          %s106 = scalar_lea.vmem [#allocation2], %s105
          %s107 = smul.addr %s8, 4
          %s108 = scalar_lea.vmem %s0, %s107
          // Predicated region
          $region21: #{interactive_forward.8} parent=19 // pred_check
            _
          $region22: #{interactive_forward.8} parent=19 // pred_check_branch
            %110 = sbr.rel (0) target = $region24
          $region23: #{interactive_forward.8} parent=19 // pred_region
            // Predicated region
            $region25: #{interactive_forward.8} parent=23 // pred_check
              _
            $region26: #{interactive_forward.8} parent=23 // pred_check_branch
              %112 = sbr.rel target = $region28
            $region27: #{interactive_forward.8} parent=23 // pred_region
              // Predicated region
              $region40: #{interactive_forward.8} parent=27 // pred_check
                _
              $region41: #{interactive_forward.8} parent=27 // pred_check_branch
                %158 = sbr.rel (0) target = $region43
              $region42: #{interactive_forward.8} parent=27 // pred_region
                loop: start=0, step=1, limit=1
                $region44: #{interactive_forward.8} parent=42 // loop_pre_header
                  _
                $region45: #{interactive_forward.8} parent=42 // loop_header
                  %s160 = sphi 0, %s164
                  %p161 = scmp.ge.s32.totalorder %s160, 1
                  %s165 = sphi %s108, %s108
                  %s166 = sphi %s106, %s106
                $region46: #{interactive_forward.8} parent=42 // loop_header_branch
                  %163 = sbr.rel (%p161) target = $region50
                $region47: #{interactive_forward.8} parent=42 // loop_body
                  _
                $region48: #{interactive_forward.8} parent=42 // loop_footer
                  %s164 = sadd.s32 1, %s160
                $region49: #{interactive_forward.8} parent=42 // loop_footer_branch
                  %159 = sbr.rel target = $region45
                $region50: #{interactive_forward.8} parent=42 // loop_exit
                  _
                %s168 = ssub.s32 16, 1
                loop: start=0, step=1, limit=1
                $region51: #{interactive_forward.8} parent=42 // loop_pre_header
                  _
                $region52: #{interactive_forward.8} parent=42 // loop_header
                  %s170 = sphi 0, %s174
                  %p171 = scmp.ge.s32.totalorder %s170, 1
                  %s175 = sphi %s108, %s108
                  %s176 = sphi %s106, %s106
                $region53: #{interactive_forward.8} parent=42 // loop_header_branch
                  %173 = sbr.rel (%p171) target = $region57
                $region54: #{interactive_forward.8} parent=42 // loop_body
                  %v177 = vld [vmem:[%s175] sm:%s168]
                  %178 = vst [vmem:[%s176] sm:%s168] %v177
                  %v179 = vld [vmem:[%s175 + $0xc] sm:%s168]
                  %180 = vst [vmem:[%s176 + $0x4] sm:%s168] %v179
                  %v181 = vld [vmem:[%s175 + $0x18] sm:%s168]
                  %182 = vst [vmem:[%s176 + $0x8] sm:%s168] %v181
                  %v183 = vld [vmem:[%s175 + $0x24] sm:%s168]
                  %184 = vst [vmem:[%s176 + $0xc] sm:%s168] %v183
                  %v185 = vld [vmem:[%s175 + $0x30] sm:%s168]
                  %186 = vst [vmem:[%s176 + $0x10] sm:%s168] %v185
                  %v187 = vld [vmem:[%s175 + $0x3c] sm:%s168]
                  %188 = vst [vmem:[%s176 + $0x14] sm:%s168] %v187
                  %v189 = vld [vmem:[%s175 + $0x48] sm:%s168]
                  %190 = vst [vmem:[%s176 + $0x18] sm:%s168] %v189
                  %v191 = vld [vmem:[%s175 + $0x54] sm:%s168]
                  %192 = vst [vmem:[%s176 + $0x1c] sm:%s168] %v191
                  %v193 = vld [vmem:[%s175 + $0x60] sm:%s168]
                  %194 = vst [vmem:[%s176 + $0x20] sm:%s168] %v193
                  %v195 = vld [vmem:[%s175 + $0x6c] sm:%s168]
                  %196 = vst [vmem:[%s176 + $0x24] sm:%s168] %v195
                  %v197 = vld [vmem:[%s175 + $0x78] sm:%s168]
                  %198 = vst [vmem:[%s176 + $0x28] sm:%s168] %v197
                  %v199 = vld [vmem:[%s175 + $0x84] sm:%s168]
                  %200 = vst [vmem:[%s176 + $0x2c] sm:%s168] %v199
                  %v201 = vld [vmem:[%s175 + $0x90] sm:%s168]
                  %202 = vst [vmem:[%s176 + $0x30] sm:%s168] %v201
                  %v203 = vld [vmem:[%s175 + $0x9c] sm:%s168]
                  %204 = vst [vmem:[%s176 + $0x34] sm:%s168] %v203
                  %v205 = vld [vmem:[%s175 + $0xa8] sm:%s168]
                  %206 = vst [vmem:[%s176 + $0x38] sm:%s168] %v205
                  %v207 = vld [vmem:[%s175 + $0xb4] sm:%s168]
                  %208 = vst [vmem:[%s176 + $0x3c] sm:%s168] %v207
                $region55: #{interactive_forward.8} parent=42 // loop_footer
                  %s174 = sadd.s32 1, %s170
                $region56: #{interactive_forward.8} parent=42 // loop_footer_branch
                  %169 = sbr.rel target = $region52
                $region57: #{interactive_forward.8} parent=42 // loop_exit
                  _
              $region43: #{interactive_forward.8} parent=27 // pred_fallthru
                _
            $region28: #{interactive_forward.8} parent=23 // pred_fallthru
              _
            // Predicated region
            $region29: #{interactive_forward.8} parent=23 // pred_check
              _
            $region30: #{interactive_forward.8} parent=23 // pred_check_branch
              %114 = sbr.rel (0) target = $region32
            $region31: #{interactive_forward.8} parent=23 // pred_region
              %s116 = ssub.s32 16, 1
              loop: start=0, step=1, limit=1
              $region33: #{interactive_forward.8} parent=31 // loop_pre_header
                _
              $region34: #{interactive_forward.8} parent=31 // loop_header
                %s118 = sphi 0, %s122
                %p119 = scmp.ge.s32.totalorder %s118, 1
                %s123 = sphi %s108, %s108
                %s124 = sphi %s106, %s106
              $region35: #{interactive_forward.8} parent=31 // loop_header_branch
                %121 = sbr.rel (%p119) target = $region39
              $region36: #{interactive_forward.8} parent=31 // loop_body
                %v125 = vld [vmem:[%s123] sm:%s116]
                %126 = vst [vmem:[%s124] sm:%s116] %v125
                %v127 = vld [vmem:[%s123 + $0xc] sm:%s116]
                %128 = vst [vmem:[%s124 + $0x4] sm:%s116] %v127
                %v129 = vld [vmem:[%s123 + $0x18] sm:%s116]
                %130 = vst [vmem:[%s124 + $0x8] sm:%s116] %v129
                %v131 = vld [vmem:[%s123 + $0x24] sm:%s116]
                %132 = vst [vmem:[%s124 + $0xc] sm:%s116] %v131
                %v133 = vld [vmem:[%s123 + $0x30] sm:%s116]
                %134 = vst [vmem:[%s124 + $0x10] sm:%s116] %v133
                %v135 = vld [vmem:[%s123 + $0x3c] sm:%s116]
                %136 = vst [vmem:[%s124 + $0x14] sm:%s116] %v135
                %v137 = vld [vmem:[%s123 + $0x48] sm:%s116]
                %138 = vst [vmem:[%s124 + $0x18] sm:%s116] %v137
                %v139 = vld [vmem:[%s123 + $0x54] sm:%s116]
                %140 = vst [vmem:[%s124 + $0x1c] sm:%s116] %v139
                %v141 = vld [vmem:[%s123 + $0x60] sm:%s116]
                %142 = vst [vmem:[%s124 + $0x20] sm:%s116] %v141
                %v143 = vld [vmem:[%s123 + $0x6c] sm:%s116]
                %144 = vst [vmem:[%s124 + $0x24] sm:%s116] %v143
                %v145 = vld [vmem:[%s123 + $0x78] sm:%s116]
                %146 = vst [vmem:[%s124 + $0x28] sm:%s116] %v145
                %v147 = vld [vmem:[%s123 + $0x84] sm:%s116]
                %148 = vst [vmem:[%s124 + $0x2c] sm:%s116] %v147
                %v149 = vld [vmem:[%s123 + $0x90] sm:%s116]
                %150 = vst [vmem:[%s124 + $0x30] sm:%s116] %v149
                %v151 = vld [vmem:[%s123 + $0x9c] sm:%s116]
                %152 = vst [vmem:[%s124 + $0x34] sm:%s116] %v151
                %v153 = vld [vmem:[%s123 + $0xa8] sm:%s116]
                %154 = vst [vmem:[%s124 + $0x38] sm:%s116] %v153
                %v155 = vld [vmem:[%s123 + $0xb4] sm:%s116]
                %156 = vst [vmem:[%s124 + $0x3c] sm:%s116] %v155
              $region37: #{interactive_forward.8} parent=31 // loop_footer
                %s122 = sadd.s32 1, %s118
              $region38: #{interactive_forward.8} parent=31 // loop_footer_branch
                %117 = sbr.rel target = $region34
              $region39: #{interactive_forward.8} parent=31 // loop_exit
                _
            $region32: #{interactive_forward.8} parent=23 // pred_fallthru
              _
          $region24: #{interactive_forward.8} parent=19 // pred_fallthru
            _
          %209 = vnop
        $region20: #{interactive_forward.8} parent=15 // pred_fallthru
          _
        // Predicated region
        $region58: #{interactive_forward.8} parent=15 // pred_check
          %p210 = pneg %p54
        $region59: #{interactive_forward.8} parent=15 // pred_check_branch
          %212 = sbr.rel (%p210) target = $region61
        $region60: #{interactive_forward.8} parent=15 // pred_region
          %s213 = smul.u32 16, %s8
          %p214 = scmp.lt.s32.totalorder %s213, 47
          %s215 = scalar_select %p214, %s213, 47
          %s216 = smul.addr %s215, 8
          %s217 = scalar_lea.vmem %s1, %s216
          %s218 = smul.u32 16, %s8
        $region61: #{interactive_forward.8} parent=15 // pred_fallthru
          _
      $region16: #{interactive_forward.8} parent=5 // pred_fallthru
        _
      %p219 = scmp.le.s32.totalorder 1, %s8
      %p220 = scmp.lt.s32.totalorder %s8, 4
      %p221 = pnand %p219, %p220
      %p222 = pneg %p221
      // Predicated region
      $region62: #{interactive_forward.8} parent=5 // pred_check
        _
      $region63: #{interactive_forward.8} parent=5 // pred_check_branch
        %224 = sbr.rel (%p221) target = $region65
      $region64: #{interactive_forward.8} parent=5 // pred_region
        %s225 = ssub.s32 %s8, 1
        %s226 = sand.u32 %s21, 1
        %s227 = sand.u32 %s21, 1
        %s228 = smul.addr %s227, 64
        %s229 = scalar_lea.vmem [#allocation2], %s228
        // Predicated region
        $region66: #{interactive_forward.8} parent=64 // pred_check
          %p230 = pneg %p34
        $region67: #{interactive_forward.8} parent=64 // pred_check_branch
          %232 = sbr.rel (%p230) target = $region69
        $region68: #{interactive_forward.8} parent=64 // pred_region
          _
        $region69: #{interactive_forward.8} parent=64 // pred_fallthru
          _
        %s233 = sand.u32 %s21, 1
        %s234 = sand.u32 %s21, 1
        %s235 = smul.addr %s234, 64
        %s236 = scalar_lea.vmem [#allocation2], %s235
        %p237 = pneg %p34
        %p238 = pneg %p31
        %s239 = smul.u32 16, %s13
        %p240 = scmp.lt.s32.totalorder %s239, 47
        %s241 = scalar_select %p240, %s239, 47
        %s242 = smul.addr %s241, 8
        %s243 = scalar_lea.vmem %s1, %s242
        %p244 = pneg %p60
        %p245 = pneg %p57
        %p246 = pneg %p81
        %p247 = pneg %p78
        %s248 = smul.u32 16, %s13
        %p249 = scmp.lt.s32.totalorder %s248, 47
        %s250 = scalar_select %p249, %s248, 47
        %s251 = smul.addr %s250, 8
        %s252 = scalar_lea.vmem %s1, %s251
        %s253 = smul.u32 16, %s13
        %p254 = scmp.eq.s32.totalorder %s13, 0
        // Predicated region
        $region70: #{interactive_forward.8} parent=64 // pred_check
          %p255 = pneg %p254
        $region71: #{interactive_forward.8} parent=64 // pred_check_branch
          %257 = sbr.rel (%p255) target = $region73
        $region72: #{interactive_forward.8} parent=64 // pred_region
          %258 = vst [vmem:[%s2] sm:$0xff] 0.0
          %259 = vst [vmem:[%s2 + $0x8] sm:$0xff] 0.0
          %260 = vst [vmem:[%s2 + $0x10] sm:$0xff] 0.0
          %261 = vst [vmem:[%s2 + $0x18] sm:$0xff] 0.0
          %262 = vst [vmem:[%s2 + $0x20] sm:$0xff] 0.0
          %263 = vst [vmem:[%s2 + $0x28] sm:$0xff] 0.0
          %264 = vst [vmem:[%s2 + $0x30] sm:$0xff] 0.0
          %265 = vst [vmem:[%s2 + $0x38] sm:$0xff] 0.0
          %266 = vst [vmem:[%s2 + $0x40] sm:$0xff] 0.0
          %267 = vst [vmem:[%s2 + $0x48] sm:$0xff] 0.0
          %268 = vst [vmem:[%s2 + $0x50] sm:$0xff] 0.0
          %269 = vst [vmem:[%s2 + $0x58] sm:$0xff] 0.0
          %270 = vst [vmem:[%s2 + $0x60] sm:$0xff] 0.0
          %271 = vst [vmem:[%s2 + $0x68] sm:$0xff] 0.0
          %272 = vst [vmem:[%s2 + $0x70] sm:$0xff] 0.0
          %273 = vst [vmem:[%s2 + $0x78] sm:$0xff] 0.0
        $region73: #{interactive_forward.8} parent=64 // pred_fallthru
          _
        %v274 = vld [vmem:[%s2] sm:$0xff]
        %v275 = vld [vmem:[%s2 + $0x8] sm:$0xff]
        %v276 = vld [vmem:[%s2 + $0x10] sm:$0xff]
        %v277 = vld [vmem:[%s2 + $0x18] sm:$0xff]
        %v278 = vld [vmem:[%s2 + $0x20] sm:$0xff]
        %v279 = vld [vmem:[%s2 + $0x28] sm:$0xff]
        %v280 = vld [vmem:[%s2 + $0x30] sm:$0xff]
        %v281 = vld [vmem:[%s2 + $0x38] sm:$0xff]
        %v282 = vld [vmem:[%s2 + $0x40] sm:$0xff]
        %v283 = vld [vmem:[%s2 + $0x48] sm:$0xff]
        %v284 = vld [vmem:[%s2 + $0x50] sm:$0xff]
        %v285 = vld [vmem:[%s2 + $0x58] sm:$0xff]
        %v286 = vld [vmem:[%s2 + $0x60] sm:$0xff]
        %v287 = vld [vmem:[%s2 + $0x68] sm:$0xff]
        %v288 = vld [vmem:[%s2 + $0x70] sm:$0xff]
        %v289 = vld [vmem:[%s2 + $0x78] sm:$0xff]
        %v290 = vld [vmem:[%s229] sm:$0xf]
        %v291 = vld [vmem:[%s229 + $0x4] sm:$0xf]
        %v292 = vld [vmem:[%s229 + $0x8] sm:$0xf]
        %v293 = vld [vmem:[%s229 + $0xc] sm:$0xf]
        %v294 = vld [vmem:[%s229 + $0x10] sm:$0xf]
        %v295 = vld [vmem:[%s229 + $0x14] sm:$0xf]
        %v296 = vld [vmem:[%s229 + $0x18] sm:$0xf]
        %v297 = vld [vmem:[%s229 + $0x1c] sm:$0xf]
        %v298 = vld [vmem:[%s229 + $0x20] sm:$0xf]
        %v299 = vld [vmem:[%s229 + $0x24] sm:$0xf]
        %v300 = vld [vmem:[%s229 + $0x28] sm:$0xf]
        %v301 = vld [vmem:[%s229 + $0x2c] sm:$0xf]
        %v302 = vld [vmem:[%s229 + $0x30] sm:$0xf]
        %v303 = vld [vmem:[%s229 + $0x34] sm:$0xf]
        %v304 = vld [vmem:[%s229 + $0x38] sm:$0xf]
        %v305 = vld [vmem:[%s229 + $0x3c] sm:$0xf]
        %v306 = vld [vmem:[%s252] sm:$0xff]
        %v307 = vld [vmem:[%s252 + $0x8] sm:$0xff]
        %v308 = vld [vmem:[%s252 + $0x10] sm:$0xff]
        %v309 = vld [vmem:[%s252 + $0x18] sm:$0xff]
        %v310 = vld [vmem:[%s252 + $0x20] sm:$0xff]
        %v311 = vld [vmem:[%s252 + $0x28] sm:$0xff]
        %v312 = vld [vmem:[%s252 + $0x30] sm:$0xff]
        %v313 = vld [vmem:[%s252 + $0x38] sm:$0xff]
        %v314 = vld [vmem:[%s252 + $0x40] sm:$0xff]
        %v315 = vld [vmem:[%s252 + $0x48] sm:$0xff]
        %v316 = vld [vmem:[%s252 + $0x50] sm:$0xff]
        %v317 = vld [vmem:[%s252 + $0x58] sm:$0xff]
        %v318 = vld [vmem:[%s252 + $0x60] sm:$0xff]
        %v319 = vld [vmem:[%s252 + $0x68] sm:$0xff]
        %v320 = vld [vmem:[%s252 + $0x70] sm:$0xff]
        %v321 = vld [vmem:[%s252 + $0x78] sm:$0xff]
        %v322 = vpack.c.bf16 %v307, %v306
        %v323 = vpack.c.bf16 %v309, %v308
        %v324 = vpack.c.bf16 %v311, %v310
        %v325 = vpack.c.bf16 %v313, %v312
        %v326 = vpack.c.bf16 %v315, %v314
        %v327 = vpack.c.bf16 %v317, %v316
        %v328 = vpack.c.bf16 %v319, %v318
        %v329 = vpack.c.bf16 %v321, %v320
        %v346 = vunpack.c.l.b16 %v290
        %v347 = vunpack.c.l.b16 %v291
        %v348 = vunpack.c.l.b16 %v292
        %v349 = vunpack.c.l.b16 %v293
        %v350 = vunpack.c.l.b16 %v294
        %v351 = vunpack.c.l.b16 %v295
        %v352 = vunpack.c.l.b16 %v296
        %v353 = vunpack.c.l.b16 %v297
        %v354 = vunpack.c.l.b16 %v298
        %v355 = vunpack.c.l.b16 %v299
        %v356 = vunpack.c.l.b16 %v300
        %v357 = vunpack.c.l.b16 %v301
        %v358 = vunpack.c.l.b16 %v302
        %v359 = vunpack.c.l.b16 %v303
        %v360 = vunpack.c.l.b16 %v304
        %v361 = vunpack.c.l.b16 %v305
        %v362 = vpack.c.b16 %v347, %v346
        %v363 = vpack.c.b16 %v349, %v348
        %v364 = vpack.c.b16 %v351, %v350
        %v365 = vpack.c.b16 %v353, %v352
        %v366 = vpack.c.b16 %v355, %v354
        %v367 = vpack.c.b16 %v357, %v356
        %v368 = vpack.c.b16 %v359, %v358
        %v369 = vpack.c.b16 %v361, %v360
        %378 = vmatpush.bf16.msra.mxu0 %v329
        %379 = vmatpush.bf16.msra.mxu0 %v328
        %380 = vmatpush.bf16.msra.mxu0 %v327
        %381 = vmatpush.bf16.msra.mxu0 %v326
        %382 = vmatpush.bf16.msra.mxu0 %v325
        %383 = vmatpush.bf16.msra.mxu0 %v324
        %384 = vmatpush.bf16.msra.mxu0 %v323
        %385 = vmatpush.bf16.msra.mxu0 %v322
        %386 = vmatmul.bf16.gmra.mxu0 %v362
        %v387 = vpop.f32.mrf.mxu0
        %v388 = vadd.f32 0.0, %v387
        %v389 = vpop.f32.mrf.mxu0
        %v390 = vadd.f32 0.0, %v389
        %391 = vmatmul.bf16.gmra.mxu0 %v363
        %v392 = vpop.f32.mrf.mxu0
        %v393 = vadd.f32 0.0, %v392
        %v394 = vpop.f32.mrf.mxu0
        %v395 = vadd.f32 0.0, %v394
        %396 = vmatmul.bf16.gmra.mxu0 %v364
        %v397 = vpop.f32.mrf.mxu0
        %v398 = vadd.f32 0.0, %v397
        %v399 = vpop.f32.mrf.mxu0
        %v400 = vadd.f32 0.0, %v399
        %401 = vmatmul.bf16.gmra.mxu0 %v365
        %v402 = vpop.f32.mrf.mxu0
        %v403 = vadd.f32 0.0, %v402
        %v404 = vpop.f32.mrf.mxu0
        %v405 = vadd.f32 0.0, %v404
        %406 = vmatmul.bf16.gmra.mxu0 %v366
        %v407 = vpop.f32.mrf.mxu0
        %v408 = vadd.f32 0.0, %v407
        %v409 = vpop.f32.mrf.mxu0
        %v410 = vadd.f32 0.0, %v409
        %411 = vmatmul.bf16.gmra.mxu0 %v367
        %v412 = vpop.f32.mrf.mxu0
        %v413 = vadd.f32 0.0, %v412
        %v414 = vpop.f32.mrf.mxu0
        %v415 = vadd.f32 0.0, %v414
        %416 = vmatmul.bf16.gmra.mxu0 %v368
        %v417 = vpop.f32.mrf.mxu0
        %v418 = vadd.f32 0.0, %v417
        %v419 = vpop.f32.mrf.mxu0
        %v420 = vadd.f32 0.0, %v419
        %421 = vmatmul.bf16.gmra.mxu0 %v369
        %v422 = vpop.f32.mrf.mxu0
        %v423 = vadd.f32 0.0, %v422
        %v424 = vpop.f32.mrf.mxu0
        %v425 = vadd.f32 0.0, %v424
        %426 = vdwg.mxu0
        %v427 = vadd.f32 %v274, %v388
        %v428 = vadd.f32 %v275, %v390
        %v429 = vadd.f32 %v276, %v393
        %v430 = vadd.f32 %v277, %v395
        %v431 = vadd.f32 %v278, %v398
        %v432 = vadd.f32 %v279, %v400
        %v433 = vadd.f32 %v280, %v403
        %v434 = vadd.f32 %v281, %v405
        %v435 = vadd.f32 %v282, %v408
        %v436 = vadd.f32 %v283, %v410
        %v437 = vadd.f32 %v284, %v413
        %v438 = vadd.f32 %v285, %v415
        %v439 = vadd.f32 %v286, %v418
        %v440 = vadd.f32 %v287, %v420
        %v441 = vadd.f32 %v288, %v423
        %v442 = vadd.f32 %v289, %v425
        %443 = vst [vmem:[%s2] sm:$0xff] %v427
        %444 = vst [vmem:[%s2 + $0x8] sm:$0xff] %v428
        %445 = vst [vmem:[%s2 + $0x10] sm:$0xff] %v429
        %446 = vst [vmem:[%s2 + $0x18] sm:$0xff] %v430
        %447 = vst [vmem:[%s2 + $0x20] sm:$0xff] %v431
        %448 = vst [vmem:[%s2 + $0x28] sm:$0xff] %v432
        %449 = vst [vmem:[%s2 + $0x30] sm:$0xff] %v433
        %450 = vst [vmem:[%s2 + $0x38] sm:$0xff] %v434
        %451 = vst [vmem:[%s2 + $0x40] sm:$0xff] %v435
        %452 = vst [vmem:[%s2 + $0x48] sm:$0xff] %v436
        %453 = vst [vmem:[%s2 + $0x50] sm:$0xff] %v437
        %454 = vst [vmem:[%s2 + $0x58] sm:$0xff] %v438
        %455 = vst [vmem:[%s2 + $0x60] sm:$0xff] %v439
        %456 = vst [vmem:[%s2 + $0x68] sm:$0xff] %v440
        %457 = vst [vmem:[%s2 + $0x70] sm:$0xff] %v441
        %458 = vst [vmem:[%s2 + $0x78] sm:$0xff] %v442
        // Predicated region
        $region74: #{interactive_forward.8} parent=64 // pred_check
          %p459 = pneg %p78
        $region75: #{interactive_forward.8} parent=64 // pred_check_branch
          %461 = sbr.rel (%p459) target = $region77
        $region76: #{interactive_forward.8} parent=64 // pred_region
          _
        $region77: #{interactive_forward.8} parent=64 // pred_fallthru
          _
        // Predicated region
        $region78: #{interactive_forward.8} parent=64 // pred_check
          %p462 = pneg %p78
        $region79: #{interactive_forward.8} parent=64 // pred_check_branch
          %464 = sbr.rel (%p462) target = $region81
        $region80: #{interactive_forward.8} parent=64 // pred_region
          _
        $region81: #{interactive_forward.8} parent=64 // pred_fallthru
          _
      $region65: #{interactive_forward.8} parent=5 // pred_fallthru
        _
      %p465 = scmp.le.s32.totalorder 2, %s8
      // Predicated region
      $region82: #{interactive_forward.8} parent=5 // pred_check
        %p466 = pneg %p465
      $region83: #{interactive_forward.8} parent=5 // pred_check_branch
        %468 = sbr.rel (%p466) target = $region85
      $region84: #{interactive_forward.8} parent=5 // pred_region
        %s469 = ssub.s32 %s8, 2
      $region85: #{interactive_forward.8} parent=5 // pred_fallthru
        _
    $region6: #{interactive_forward.8} parent=1 // loop_footer
      %s12 = sadd.s32 1, %s8
    $region7: #{interactive_forward.8} parent=1 // loop_footer_branch
      %7 = sbr.rel target = $region3
    $region8: #{interactive_forward.8} parent=1 // loop_exit
      _

// kernel: interactive_forward.9
$region0: #{interactive_forward.9}
  #allocation0 [shape = 'u32[]', space=smem, size = 0x4, offset = 0x4, fixed_abs, tag = 'smem constant byte address 0x4 - core index']
  #allocation1 [shape = 'u32[72,128]{1,0:T(1,128)}', space=vmem, size = 0x9000, scoped, tag = 'internal scratch']
  %s0 = inlined_call_operand.vmem [shape: bf16[384,128], index: 0, kind: input, shape index: {}]
  %s1 = inlined_call_operand.vmem [shape: f32[384,1], index: 1, kind: input, shape index: {}]
  %s2 = inlined_call_operand.vmem [shape: f32[128,128], index: 2, kind: input, shape index: {}]
  %s3 = inlined_call_operand.vmem [shape: bf16[128,512], index: 3, kind: input, shape index: {}]
  %s4 = inlined_call_operand.vmem [shape: f32[1,512], index: 4, kind: input, shape index: {}]
  %s5 = inlined_call_operand.vmem [shape: f32[384,512], index: 5, kind: output, shape index: {0}]
  %s6 = inlined_call_operand.vmem [shape: f32[1,512], index: 6, kind: output, shape index: {1}]
  %s7 = inlined_call_operand.vmem [shape: f32[1,512], index: 7, kind: output, shape index: {2}]
  %8 = xla_tuple %s5, %s6, %s7
  %s9 = sld [smem:[#allocation0]]
  $region73: #{interactive_forward.9} parent=0
    _
  %s11 = ssub.s32 1, %s9
  %s12 = scalar_select 0, %s11, %s9
  loop: start=0, step=1, limit=5
  $region2: #{interactive_forward.9} parent=0 // loop_pre_header
    _
  $region3: #{interactive_forward.9} parent=0 // loop_header
    %s14 = sphi 0, %s18
    %p15 = scmp.ge.s32.totalorder %s14, 5
    %s24 = sphi 0, %s26
    %s27 = sphi 0, %s24
    %s28 = sphi 0, %s27
    %s44 = sphi 0, %s28
    %s50 = sphi 0, %s52
    %s53 = sphi 0, %s50
    %s54 = sphi 0, %s53
    %s70 = sphi 0, %s54
    %s74 = sphi 0, %s74
    %s76 = sphi 0, %s74
    %s77 = sphi 0, %s76
    %s91 = sphi 0, %s77
    %s95 = sphi 0, %s95
    %s97 = sphi 0, %s95
    %s98 = sphi 0, %s97
    %s112 = sphi 0, %s98
    %s116 = sphi 0, %s116
    %s118 = sphi 0, %s116
    %s119 = sphi 0, %s118
    %s133 = sphi 0, %s119
    %s139 = sphi 0, %s141
    %s142 = sphi 0, %s139
    %s143 = sphi 0, %s142
    %s159 = sphi 0, %s143
    %s163 = sphi 0, %s163
    %s165 = sphi 0, %s163
    %s166 = sphi 0, %s165
    %s180 = sphi 0, %s166
    %s184 = sphi 0, %s184
    %s186 = sphi 0, %s184
    %s187 = sphi 0, %s186
    %s201 = sphi 0, %s187
  $region4: #{interactive_forward.9} parent=0 // loop_header_branch
    %17 = sbr.rel (%p15) target = $region8
  $region5: #{interactive_forward.9} parent=0 // loop_body
    %s19 = ssub.s32 %s14, 1
    %s20 = ssub.s32 %s14, 2
    %s21 = sadd.s32 %s14, 1
    %s22 = ssub.s32 %s14, %s21
    %p23 = scmp.eq.s32.totalorder %s22, 0
    %s25 = sadd.s32 %s24, 1
    %s26 = scalar_select %p23, %s24, %s25
    %p29 = pneg %p23
    %p30 = scmp.eq.s32.totalorder %s14, 2
    %p31 = por %p29, %p30
    %p32 = scmp.ne.s32.totalorder %s24, %s27
    %p33 = scmp.eq.s32.totalorder %s14, 0
    %p34 = por %p32, %p33
    %p35 = scmp.ne.s32.totalorder %s24, %s27
    %p36 = scmp.eq.s32.totalorder %s19, 2
    %p37 = por %p35, %p36
    %p38 = scmp.ne.s32.totalorder %s27, %s28
    %p39 = scmp.eq.s32.totalorder %s19, 0
    %p40 = por %p38, %p39
    %p41 = scmp.ne.s32.totalorder %s27, %s28
    %p42 = scmp.eq.s32.totalorder %s20, 2
    %p43 = por %p41, %p42
    %p45 = scmp.ne.s32.totalorder %s28, %s44
    %p46 = scmp.eq.s32.totalorder %s20, 0
    %p47 = por %p45, %p46
    %s48 = ssub.s32 %s14, %s21
    %p49 = scmp.eq.s32.totalorder %s48, 0
    %s51 = sadd.s32 %s50, 1
    %s52 = scalar_select %p49, %s50, %s51
    %p55 = pneg %p49
    %p56 = scmp.eq.s32.totalorder %s14, 2
    %p57 = por %p55, %p56
    %p58 = scmp.ne.s32.totalorder %s50, %s53
    %p59 = scmp.eq.s32.totalorder %s14, 0
    %p60 = por %p58, %p59
    %p61 = scmp.ne.s32.totalorder %s50, %s53
    %p62 = scmp.eq.s32.totalorder %s19, 2
    %p63 = por %p61, %p62
    %p64 = scmp.ne.s32.totalorder %s53, %s54
    %p65 = scmp.eq.s32.totalorder %s19, 0
    %p66 = por %p64, %p65
    %p67 = scmp.ne.s32.totalorder %s53, %s54
    %p68 = scmp.eq.s32.totalorder %s20, 2
    %p69 = por %p67, %p68
    %p71 = scmp.ne.s32.totalorder %s54, %s70
    %p72 = scmp.eq.s32.totalorder %s20, 0
    %p73 = por %p71, %p72
    %s75 = sadd.s32 %s74, 1
    %p78 = scmp.eq.s32.totalorder %s14, 2
    %p79 = scmp.ne.s32.totalorder %s74, %s76
    %p80 = scmp.eq.s32.totalorder %s14, 0
    %p81 = por %p79, %p80
    %p82 = scmp.ne.s32.totalorder %s74, %s76
    %p83 = scmp.eq.s32.totalorder %s19, 2
    %p84 = por %p82, %p83
    %p85 = scmp.ne.s32.totalorder %s76, %s77
    %p86 = scmp.eq.s32.totalorder %s19, 0
    %p87 = por %p85, %p86
    %p88 = scmp.ne.s32.totalorder %s76, %s77
    %p89 = scmp.eq.s32.totalorder %s20, 2
    %p90 = por %p88, %p89
    %p92 = scmp.ne.s32.totalorder %s77, %s91
    %p93 = scmp.eq.s32.totalorder %s20, 0
    %p94 = por %p92, %p93
    %s96 = sadd.s32 %s95, 1
    %p99 = scmp.eq.s32.totalorder %s14, 2
    %p100 = scmp.ne.s32.totalorder %s95, %s97
    %p101 = scmp.eq.s32.totalorder %s14, 0
    %p102 = por %p100, %p101
    %p103 = scmp.ne.s32.totalorder %s95, %s97
    %p104 = scmp.eq.s32.totalorder %s19, 2
    %p105 = por %p103, %p104
    %p106 = scmp.ne.s32.totalorder %s97, %s98
    %p107 = scmp.eq.s32.totalorder %s19, 0
    %p108 = por %p106, %p107
    %p109 = scmp.ne.s32.totalorder %s97, %s98
    %p110 = scmp.eq.s32.totalorder %s20, 2
    %p111 = por %p109, %p110
    %p113 = scmp.ne.s32.totalorder %s98, %s112
    %p114 = scmp.eq.s32.totalorder %s20, 0
    %p115 = por %p113, %p114
    %s117 = sadd.s32 %s116, 1
    %p120 = scmp.eq.s32.totalorder %s14, 2
    %p121 = scmp.ne.s32.totalorder %s116, %s118
    %p122 = scmp.eq.s32.totalorder %s14, 0
    %p123 = por %p121, %p122
    %p124 = scmp.ne.s32.totalorder %s116, %s118
    %p125 = scmp.eq.s32.totalorder %s19, 2
    %p126 = por %p124, %p125
    %p127 = scmp.ne.s32.totalorder %s118, %s119
    %p128 = scmp.eq.s32.totalorder %s19, 0
    %p129 = por %p127, %p128
    %p130 = scmp.ne.s32.totalorder %s118, %s119
    %p131 = scmp.eq.s32.totalorder %s20, 2
    %p132 = por %p130, %p131
    %p134 = scmp.ne.s32.totalorder %s119, %s133
    %p135 = scmp.eq.s32.totalorder %s20, 0
    %p136 = por %p134, %p135
    %s137 = ssub.s32 %s14, %s21
    %p138 = scmp.eq.s32.totalorder %s137, 0
    %s140 = sadd.s32 %s139, 1
    %s141 = scalar_select %p138, %s139, %s140
    %p144 = pneg %p138
    %p145 = scmp.eq.s32.totalorder %s14, 2
    %p146 = por %p144, %p145
    %p147 = scmp.ne.s32.totalorder %s139, %s142
    %p148 = scmp.eq.s32.totalorder %s14, 0
    %p149 = por %p147, %p148
    %p150 = scmp.ne.s32.totalorder %s139, %s142
    %p151 = scmp.eq.s32.totalorder %s19, 2
    %p152 = por %p150, %p151
    %p153 = scmp.ne.s32.totalorder %s142, %s143
    %p154 = scmp.eq.s32.totalorder %s19, 0
    %p155 = por %p153, %p154
    %p156 = scmp.ne.s32.totalorder %s142, %s143
    %p157 = scmp.eq.s32.totalorder %s20, 2
    %p158 = por %p156, %p157
    %p160 = scmp.ne.s32.totalorder %s143, %s159
    %p161 = scmp.eq.s32.totalorder %s20, 0
    %p162 = por %p160, %p161
    %s164 = sadd.s32 %s163, 1
    %p167 = scmp.eq.s32.totalorder %s14, 2
    %p168 = scmp.ne.s32.totalorder %s163, %s165
    %p169 = scmp.eq.s32.totalorder %s14, 0
    %p170 = por %p168, %p169
    %p171 = scmp.ne.s32.totalorder %s163, %s165
    %p172 = scmp.eq.s32.totalorder %s19, 2
    %p173 = por %p171, %p172
    %p174 = scmp.ne.s32.totalorder %s165, %s166
    %p175 = scmp.eq.s32.totalorder %s19, 0
    %p176 = por %p174, %p175
    %p177 = scmp.ne.s32.totalorder %s165, %s166
    %p178 = scmp.eq.s32.totalorder %s20, 2
    %p179 = por %p177, %p178
    %p181 = scmp.ne.s32.totalorder %s166, %s180
    %p182 = scmp.eq.s32.totalorder %s20, 0
    %p183 = por %p181, %p182
    %s185 = sadd.s32 %s184, 1
    %p188 = scmp.eq.s32.totalorder %s14, 2
    %p189 = scmp.ne.s32.totalorder %s184, %s186
    %p190 = scmp.eq.s32.totalorder %s14, 0
    %p191 = por %p189, %p190
    %p192 = scmp.ne.s32.totalorder %s184, %s186
    %p193 = scmp.eq.s32.totalorder %s19, 2
    %p194 = por %p192, %p193
    %p195 = scmp.ne.s32.totalorder %s186, %s187
    %p196 = scmp.eq.s32.totalorder %s19, 0
    %p197 = por %p195, %p196
    %p198 = scmp.ne.s32.totalorder %s186, %s187
    %p199 = scmp.eq.s32.totalorder %s20, 2
    %p200 = por %p198, %p199
    %p202 = scmp.ne.s32.totalorder %s187, %s201
    %p203 = scmp.eq.s32.totalorder %s20, 0
    %p204 = por %p202, %p203
    %p205 = scmp.le.s32.totalorder 1, %s14
    %p206 = scmp.lt.s32.totalorder %s14, 4
    %p207 = pnand %p205, %p206
    %p208 = pneg %p207
    // Predicated region
    $region9: #{interactive_forward.9} parent=5 // pred_check
      _
    $region10: #{interactive_forward.9} parent=5 // pred_check_branch
      %210 = sbr.rel (%p207) target = $region12
    $region11: #{interactive_forward.9} parent=5 // pred_region
      %s211 = ssub.s32 %s14, 1
      // Predicated region
      $region13: #{interactive_forward.9} parent=11 // pred_check
        %p212 = pneg %p87
      $region14: #{interactive_forward.9} parent=11 // pred_check_branch
        %214 = sbr.rel (%p212) target = $region16
      $region15: #{interactive_forward.9} parent=11 // pred_region
        _
      $region16: #{interactive_forward.9} parent=11 // pred_fallthru
        _
      // Predicated region
      $region17: #{interactive_forward.9} parent=11 // pred_check
        %p215 = pneg %p108
      $region18: #{interactive_forward.9} parent=11 // pred_check_branch
        %217 = sbr.rel (%p215) target = $region20
      $region19: #{interactive_forward.9} parent=11 // pred_region
        _
      $region20: #{interactive_forward.9} parent=11 // pred_fallthru
        _
      // Predicated region
      $region21: #{interactive_forward.9} parent=11 // pred_check
        %p218 = pneg %p129
      $region22: #{interactive_forward.9} parent=11 // pred_check_branch
        %220 = sbr.rel (%p218) target = $region24
      $region23: #{interactive_forward.9} parent=11 // pred_region
        _
      $region24: #{interactive_forward.9} parent=11 // pred_fallthru
        _
    $region12: #{interactive_forward.9} parent=5 // pred_fallthru
      _
    %p221 = scmp.lt.s32.totalorder %s14, 3
    // Predicated region
    $region25: #{interactive_forward.9} parent=5 // pred_check
      %p222 = pneg %p221
    $region26: #{interactive_forward.9} parent=5 // pred_check_branch
      %224 = sbr.rel (%p222) target = $region28
    $region27: #{interactive_forward.9} parent=5 // pred_region
      // Predicated region
      $region29: #{interactive_forward.9} parent=27 // pred_check
        %p225 = pneg %p34
      $region30: #{interactive_forward.9} parent=27 // pred_check_branch
        %227 = sbr.rel (%p225) target = $region32
      $region31: #{interactive_forward.9} parent=27 // pred_region
        %s228 = smul.u32 16, %s14
        %p229 = scmp.lt.s32.totalorder %s228, 47
        %s230 = scalar_select %p229, %s228, 47
        %s231 = smul.addr %s230, 4
        %s232 = scalar_lea.vmem %s0, %s231
        %s233 = smul.u32 16, %s14
      $region32: #{interactive_forward.9} parent=27 // pred_fallthru
        _
      // Predicated region
      $region33: #{interactive_forward.9} parent=27 // pred_check
        %p234 = pneg %p60
      $region34: #{interactive_forward.9} parent=27 // pred_check_branch
        %236 = sbr.rel (%p234) target = $region36
      $region35: #{interactive_forward.9} parent=27 // pred_region
        %s237 = smul.u32 16, %s14
        %p238 = scmp.lt.s32.totalorder %s237, 47
        %s239 = scalar_select %p238, %s237, 47
        %s240 = smul.addr %s239, 8
        %s241 = scalar_lea.vmem %s1, %s240
        %s242 = smul.u32 16, %s14
      $region36: #{interactive_forward.9} parent=27 // pred_fallthru
        _
    $region28: #{interactive_forward.9} parent=5 // pred_fallthru
      _
    %p243 = scmp.le.s32.totalorder 1, %s14
    %p244 = scmp.lt.s32.totalorder %s14, 4
    %p245 = pnand %p243, %p244
    %p246 = pneg %p245
    // Predicated region
    $region37: #{interactive_forward.9} parent=5 // pred_check
      _
    $region38: #{interactive_forward.9} parent=5 // pred_check_branch
      %248 = sbr.rel (%p245) target = $region40
    $region39: #{interactive_forward.9} parent=5 // pred_region
      %s249 = ssub.s32 %s14, 1
      %s250 = smul.u32 16, %s19
      %p251 = scmp.lt.s32.totalorder %s250, 47
      %s252 = scalar_select %p251, %s250, 47
      %s253 = smul.addr %s252, 4
      %s254 = scalar_lea.vmem %s0, %s253
      %p255 = pneg %p40
      %p256 = pneg %p37
      %s257 = smul.u32 16, %s19
      %p258 = scmp.lt.s32.totalorder %s257, 47
      %s259 = scalar_select %p258, %s257, 47
      %s260 = smul.addr %s259, 8
      %s261 = scalar_lea.vmem %s1, %s260
      %p262 = pneg %p66
      %p263 = pneg %p63
      %p264 = pneg %p87
      %p265 = pneg %p84
      %p266 = pneg %p108
      %p267 = pneg %p105
      %p268 = pneg %p129
      %p269 = pneg %p126
      %p270 = pneg %p155
      %p271 = pneg %p152
      %s272 = smul.u32 16, %s19
      %p273 = scmp.lt.s32.totalorder %s272, 47
      %s274 = scalar_select %p273, %s272, 47
      %s275 = smul.addr %s274, 4
      %s276 = smul.addr %s275, 8
      %s277 = scalar_lea.vmem %s5, %s276
      %p278 = pneg %p176
      %p279 = pneg %p173
      %p280 = pneg %p197
      %p281 = pneg %p194
      %s282 = smul.u32 16, %s19
      %p283 = scmp.lt.s32.totalorder %s282, 47
      %s284 = scalar_select %p283, %s282, 47
      %s285 = smul.addr %s284, 4
      %s286 = scalar_lea.vmem %s0, %s285
      %s287 = smul.u32 16, %s19
      %s288 = smul.u32 16, %s19
      %p289 = scmp.lt.s32.totalorder %s288, 47
      %s290 = scalar_select %p289, %s288, 47
      %s291 = smul.addr %s290, 8
      %s292 = scalar_lea.vmem %s1, %s291
      %s293 = smul.u32 16, %s19
      %s294 = smul.u32 16, %s19
      %p295 = scmp.lt.s32.totalorder %s294, 47
      %s296 = scalar_select %p295, %s294, 47
      %s297 = smul.addr %s296, 4
      %s298 = smul.addr %s297, 8
      %s299 = scalar_lea.vmem %s5, %s298
      %s300 = smul.u32 16, %s19
      %p301 = scmp.eq.s32.totalorder %s19, 0
      // Predicated region
      $region41: #{interactive_forward.9} parent=39 // pred_check
        %p302 = pneg %p301
      $region42: #{interactive_forward.9} parent=39 // pred_check_branch
        %304 = sbr.rel (%p302) target = $region44
      $region43: #{interactive_forward.9} parent=39 // pred_region
        %v305 = vlaneseq
        %vm306 = vcmp.ge.s32.totalorder %v305, 0
        %vm307 = vcmp.lt.s32.totalorder %v305, 512
        %vm308 = vmand %vm306, %vm307
        %309 = vst.msk [vmem:[%s6] sm:$0xf] %vm308, 0.0
        %310 = vst.msk [vmem:[%s7] sm:$0xf] %vm308, 0.0
      $region44: #{interactive_forward.9} parent=39 // pred_fallthru
        _
      %v311 = vld [vmem:[%s286] sm:$0xf]
      %v312 = vld [vmem:[%s286 + $0x4] sm:$0xf]
      %v313 = vld [vmem:[%s286 + $0x8] sm:$0xf]
      %v314 = vld [vmem:[%s286 + $0xc] sm:$0xf]
      %v315 = vld [vmem:[%s286 + $0x10] sm:$0xf]
      %v316 = vld [vmem:[%s286 + $0x14] sm:$0xf]
      %v317 = vld [vmem:[%s286 + $0x18] sm:$0xf]
      %v318 = vld [vmem:[%s286 + $0x1c] sm:$0xf]
      %v319 = vld [vmem:[%s286 + $0x20] sm:$0xf]
      %v320 = vld [vmem:[%s286 + $0x24] sm:$0xf]
      %v321 = vld [vmem:[%s286 + $0x28] sm:$0xf]
      %v322 = vld [vmem:[%s286 + $0x2c] sm:$0xf]
      %v323 = vld [vmem:[%s286 + $0x30] sm:$0xf]
      %v324 = vld [vmem:[%s286 + $0x34] sm:$0xf]
      %v325 = vld [vmem:[%s286 + $0x38] sm:$0xf]
      %v326 = vld [vmem:[%s286 + $0x3c] sm:$0xf]
      %v327 = vld [vmem:[%s2] sm:$0xff]
      %v328 = vld [vmem:[%s2 + $0x8] sm:$0xff]
      %v329 = vld [vmem:[%s2 + $0x10] sm:$0xff]
      %v330 = vld [vmem:[%s2 + $0x18] sm:$0xff]
      %v331 = vld [vmem:[%s2 + $0x20] sm:$0xff]
      %v332 = vld [vmem:[%s2 + $0x28] sm:$0xff]
      %v333 = vld [vmem:[%s2 + $0x30] sm:$0xff]
      %v334 = vld [vmem:[%s2 + $0x38] sm:$0xff]
      %v335 = vld [vmem:[%s2 + $0x40] sm:$0xff]
      %v336 = vld [vmem:[%s2 + $0x48] sm:$0xff]
      %v337 = vld [vmem:[%s2 + $0x50] sm:$0xff]
      %v338 = vld [vmem:[%s2 + $0x58] sm:$0xff]
      %v339 = vld [vmem:[%s2 + $0x60] sm:$0xff]
      %v340 = vld [vmem:[%s2 + $0x68] sm:$0xff]
      %v341 = vld [vmem:[%s2 + $0x70] sm:$0xff]
      %v342 = vld [vmem:[%s2 + $0x78] sm:$0xff]
      %v343 = vpack.c.bf16 %v328, %v327
      %v344 = vpack.c.bf16 %v330, %v329
      %v345 = vpack.c.bf16 %v332, %v331
      %v346 = vpack.c.bf16 %v334, %v333
      %v347 = vpack.c.bf16 %v336, %v335
      %v348 = vpack.c.bf16 %v338, %v337
      %v349 = vpack.c.bf16 %v340, %v339
      %v350 = vpack.c.bf16 %v342, %v341
      %v367 = vunpack.c.l.b16 %v311
      %v368 = vunpack.c.l.b16 %v312
      %v369 = vunpack.c.l.b16 %v313
      %v370 = vunpack.c.l.b16 %v314
      %v371 = vunpack.c.l.b16 %v315
      %v372 = vunpack.c.l.b16 %v316
      %v373 = vunpack.c.l.b16 %v317
      %v374 = vunpack.c.l.b16 %v318
      %v375 = vunpack.c.l.b16 %v319
      %v376 = vunpack.c.l.b16 %v320
      %v377 = vunpack.c.l.b16 %v321
      %v378 = vunpack.c.l.b16 %v322
      %v379 = vunpack.c.l.b16 %v323
      %v380 = vunpack.c.l.b16 %v324
      %v381 = vunpack.c.l.b16 %v325
      %v382 = vunpack.c.l.b16 %v326
      %v383 = vpack.c.b16 %v368, %v367
      %v384 = vpack.c.b16 %v370, %v369
      %v385 = vpack.c.b16 %v372, %v371
      %v386 = vpack.c.b16 %v374, %v373
      %v387 = vpack.c.b16 %v376, %v375
      %v388 = vpack.c.b16 %v378, %v377
      %v389 = vpack.c.b16 %v380, %v379
      %v390 = vpack.c.b16 %v382, %v381
      %399 = vmatpush.bf16.msra.mxu0 %v350
      %400 = vmatpush.bf16.msra.mxu0 %v349
      %401 = vmatpush.bf16.msra.mxu0 %v348
      %402 = vmatpush.bf16.msra.mxu0 %v347
      %403 = vmatpush.bf16.msra.mxu0 %v346
      %404 = vmatpush.bf16.msra.mxu0 %v345
      %405 = vmatpush.bf16.msra.mxu0 %v344
      %406 = vmatpush.bf16.msra.mxu0 %v343
      %407 = vmatmul.bf16.gmra.mxu0 %v383
      %v408 = vpop.f32.mrf.mxu0
      %v409 = vadd.f32 0.0, %v408
      %v410 = vpop.f32.mrf.mxu0
      %v411 = vadd.f32 0.0, %v410
      %412 = vmatmul.bf16.gmra.mxu0 %v384
      %v413 = vpop.f32.mrf.mxu0
      %v414 = vadd.f32 0.0, %v413
      %v415 = vpop.f32.mrf.mxu0
      %v416 = vadd.f32 0.0, %v415
      %417 = vmatmul.bf16.gmra.mxu0 %v385
      %v418 = vpop.f32.mrf.mxu0
      %v419 = vadd.f32 0.0, %v418
      %v420 = vpop.f32.mrf.mxu0
      %v421 = vadd.f32 0.0, %v420
      %422 = vmatmul.bf16.gmra.mxu0 %v386
      %v423 = vpop.f32.mrf.mxu0
      %v424 = vadd.f32 0.0, %v423
      %v425 = vpop.f32.mrf.mxu0
      %v426 = vadd.f32 0.0, %v425
      %427 = vmatmul.bf16.gmra.mxu0 %v387
      %v428 = vpop.f32.mrf.mxu0
      %v429 = vadd.f32 0.0, %v428
      %v430 = vpop.f32.mrf.mxu0
      %v431 = vadd.f32 0.0, %v430
      %432 = vmatmul.bf16.gmra.mxu0 %v388
      %v433 = vpop.f32.mrf.mxu0
      %v434 = vadd.f32 0.0, %v433
      %v435 = vpop.f32.mrf.mxu0
      %v436 = vadd.f32 0.0, %v435
      %437 = vmatmul.bf16.gmra.mxu0 %v389
      %v438 = vpop.f32.mrf.mxu0
      %v439 = vadd.f32 0.0, %v438
      %v440 = vpop.f32.mrf.mxu0
      %v441 = vadd.f32 0.0, %v440
      %442 = vmatmul.bf16.gmra.mxu0 %v390
      %v443 = vpop.f32.mrf.mxu0
      %v444 = vadd.f32 0.0, %v443
      %v445 = vpop.f32.mrf.mxu0
      %v446 = vadd.f32 0.0, %v445
      %447 = vdwg.mxu0
      %v448 = vld [vmem:[%s292] sm:$0xff]
      %v449 = vld [vmem:[%s292 + $0x8] sm:$0xff]
      %v450 = vld [vmem:[%s292 + $0x10] sm:$0xff]
      %v451 = vld [vmem:[%s292 + $0x18] sm:$0xff]
      %v452 = vld [vmem:[%s292 + $0x20] sm:$0xff]
      %v453 = vld [vmem:[%s292 + $0x28] sm:$0xff]
      %v454 = vld [vmem:[%s292 + $0x30] sm:$0xff]
      %v455 = vld [vmem:[%s292 + $0x38] sm:$0xff]
      %v456 = vld [vmem:[%s292 + $0x40] sm:$0xff]
      %v457 = vld [vmem:[%s292 + $0x48] sm:$0xff]
      %v458 = vld [vmem:[%s292 + $0x50] sm:$0xff]
      %v459 = vld [vmem:[%s292 + $0x58] sm:$0xff]
      %v460 = vld [vmem:[%s292 + $0x60] sm:$0xff]
      %v461 = vld [vmem:[%s292 + $0x68] sm:$0xff]
      %v462 = vld [vmem:[%s292 + $0x70] sm:$0xff]
      %v463 = vld [vmem:[%s292 + $0x78] sm:$0xff]
      %465 = vset.pattern.permute.xlu0 0
      %466 = vperm.xlu0 %465, %v448
      %v467 = vpop.permute.xlu0 %466
      %470 = vset.pattern.permute.xlu0 0
      %471 = vperm.xlu0 %470, %v449
      %v472 = vpop.permute.xlu0 %471
      %475 = vset.pattern.permute.xlu0 0
      %476 = vperm.xlu0 %475, %v450
      %v477 = vpop.permute.xlu0 %476
      %480 = vset.pattern.permute.xlu0 0
      %481 = vperm.xlu0 %480, %v451
      %v482 = vpop.permute.xlu0 %481
      %485 = vset.pattern.permute.xlu0 0
      %486 = vperm.xlu0 %485, %v452
      %v487 = vpop.permute.xlu0 %486
      %490 = vset.pattern.permute.xlu0 0
      %491 = vperm.xlu0 %490, %v453
      %v492 = vpop.permute.xlu0 %491
      %495 = vset.pattern.permute.xlu0 0
      %496 = vperm.xlu0 %495, %v454
      %v497 = vpop.permute.xlu0 %496
      %500 = vset.pattern.permute.xlu0 0
      %501 = vperm.xlu0 %500, %v455
      %v502 = vpop.permute.xlu0 %501
      %505 = vset.pattern.permute.xlu0 0
      %506 = vperm.xlu0 %505, %v456
      %v507 = vpop.permute.xlu0 %506
      %510 = vset.pattern.permute.xlu0 0
      %511 = vperm.xlu0 %510, %v457
      %v512 = vpop.permute.xlu0 %511
      %515 = vset.pattern.permute.xlu0 0
      %516 = vperm.xlu0 %515, %v458
      %v517 = vpop.permute.xlu0 %516
      %520 = vset.pattern.permute.xlu0 0
      %521 = vperm.xlu0 %520, %v459
      %v522 = vpop.permute.xlu0 %521
      %525 = vset.pattern.permute.xlu0 0
      %526 = vperm.xlu0 %525, %v460
      %v527 = vpop.permute.xlu0 %526
      %530 = vset.pattern.permute.xlu0 0
      %531 = vperm.xlu0 %530, %v461
      %v532 = vpop.permute.xlu0 %531
      %535 = vset.pattern.permute.xlu0 0
      %536 = vperm.xlu0 %535, %v462
      %v537 = vpop.permute.xlu0 %536
      %540 = vset.pattern.permute.xlu0 0
      %541 = vperm.xlu0 %540, %v463
      %v542 = vpop.permute.xlu0 %541
      %v544 = vmul.f32 %v409, %v467
      %v545 = vmul.f32 %v411, %v472
      %v546 = vmul.f32 %v414, %v477
      %v547 = vmul.f32 %v416, %v482
      %v548 = vmul.f32 %v419, %v487
      %v549 = vmul.f32 %v421, %v492
      %v550 = vmul.f32 %v424, %v497
      %v551 = vmul.f32 %v426, %v502
      %v552 = vmul.f32 %v429, %v507
      %v553 = vmul.f32 %v431, %v512
      %v554 = vmul.f32 %v434, %v517
      %v555 = vmul.f32 %v436, %v522
      %v556 = vmul.f32 %v439, %v527
      %v557 = vmul.f32 %v441, %v532
      %v558 = vmul.f32 %v444, %v537
      %v559 = vmul.f32 %v446, %v542
      %v560 = vpack.c.bf16 %v545, %v544
      %v561 = vpack.c.bf16 %v547, %v546
      %v562 = vpack.c.bf16 %v549, %v548
      %v563 = vpack.c.bf16 %v551, %v550
      %v564 = vpack.c.bf16 %v553, %v552
      %v565 = vpack.c.bf16 %v555, %v554
      %v566 = vpack.c.bf16 %v557, %v556
      %v567 = vpack.c.bf16 %v559, %v558
      %v568 = vld [vmem:[%s3] sm:$0xff]
      %v569 = vld [vmem:[%s3 + $0x8] sm:$0xff]
      %v570 = vld [vmem:[%s3 + $0x10] sm:$0xff]
      %v571 = vld [vmem:[%s3 + $0x18] sm:$0xff]
      %v572 = vld [vmem:[%s3 + $0x20] sm:$0xff]
      %v573 = vld [vmem:[%s3 + $0x28] sm:$0xff]
      %v574 = vld [vmem:[%s3 + $0x30] sm:$0xff]
      %v575 = vld [vmem:[%s3 + $0x38] sm:$0xff]
      %v576 = vld [vmem:[%s3 + $0x40] sm:$0xff]
      %v577 = vld [vmem:[%s3 + $0x48] sm:$0xff]
      %v578 = vld [vmem:[%s3 + $0x50] sm:$0xff]
      %v579 = vld [vmem:[%s3 + $0x58] sm:$0xff]
      %v580 = vld [vmem:[%s3 + $0x60] sm:$0xff]
      %v581 = vld [vmem:[%s3 + $0x68] sm:$0xff]
      %v582 = vld [vmem:[%s3 + $0x70] sm:$0xff]
      %v583 = vld [vmem:[%s3 + $0x78] sm:$0xff]
      %v584 = vld [vmem:[%s3 + $0x80] sm:$0xff]
      %v585 = vld [vmem:[%s3 + $0x88] sm:$0xff]
      %v586 = vld [vmem:[%s3 + $0x90] sm:$0xff]
      %v587 = vld [vmem:[%s3 + $0x98] sm:$0xff]
      %v588 = vld [vmem:[%s3 + $0xa0] sm:$0xff]
      %v589 = vld [vmem:[%s3 + $0xa8] sm:$0xff]
      %v590 = vld [vmem:[%s3 + $0xb0] sm:$0xff]
      %v591 = vld [vmem:[%s3 + $0xb8] sm:$0xff]
      %v592 = vld [vmem:[%s3 + $0xc0] sm:$0xff]
      %v593 = vld [vmem:[%s3 + $0xc8] sm:$0xff]
      %v594 = vld [vmem:[%s3 + $0xd0] sm:$0xff]
      %v595 = vld [vmem:[%s3 + $0xd8] sm:$0xff]
      %v596 = vld [vmem:[%s3 + $0xe0] sm:$0xff]
      %v597 = vld [vmem:[%s3 + $0xe8] sm:$0xff]
      %v598 = vld [vmem:[%s3 + $0xf0] sm:$0xff]
      %v599 = vld [vmem:[%s3 + $0xf8] sm:$0xff]
      %v600 = vld [vmem:[%s4] sm:$0xf]
      %v602 = vperm.slane %v600, 0
      %v603 = vperm.slane %v600, 1
      %v604 = vperm.slane %v600, 2
      %v605 = vperm.slane %v600, 3
      %v642 = vunpack.c.l.b16 %v568
      %v643 = vunpack.c.h.b16 %v568
      %v644 = vunpack.c.l.b16 %v569
      %v645 = vunpack.c.h.b16 %v569
      %v646 = vunpack.c.l.b16 %v570
      %v647 = vunpack.c.h.b16 %v570
      %v648 = vunpack.c.l.b16 %v571
      %v649 = vunpack.c.h.b16 %v571
      %v650 = vunpack.c.l.b16 %v572
      %v651 = vunpack.c.h.b16 %v572
      %v652 = vunpack.c.l.b16 %v573
      %v653 = vunpack.c.h.b16 %v573
      %v654 = vunpack.c.l.b16 %v574
      %v655 = vunpack.c.h.b16 %v574
      %v656 = vunpack.c.l.b16 %v575
      %v657 = vunpack.c.h.b16 %v575
      %v658 = vunpack.c.l.b16 %v576
      %v659 = vunpack.c.h.b16 %v576
      %v660 = vunpack.c.l.b16 %v577
      %v661 = vunpack.c.h.b16 %v577
      %v662 = vunpack.c.l.b16 %v578
      %v663 = vunpack.c.h.b16 %v578
      %v664 = vunpack.c.l.b16 %v579
      %v665 = vunpack.c.h.b16 %v579
      %v666 = vunpack.c.l.b16 %v580
      %v667 = vunpack.c.h.b16 %v580
      %v668 = vunpack.c.l.b16 %v581
      %v669 = vunpack.c.h.b16 %v581
      %v670 = vunpack.c.l.b16 %v582
      %v671 = vunpack.c.h.b16 %v582
      %v672 = vunpack.c.l.b16 %v583
      %v673 = vunpack.c.h.b16 %v583
      %v674 = vunpack.c.l.b16 %v584
      %v675 = vunpack.c.h.b16 %v584
      %v676 = vunpack.c.l.b16 %v585
      %v677 = vunpack.c.h.b16 %v585
      %v678 = vunpack.c.l.b16 %v586
      %v679 = vunpack.c.h.b16 %v586
      %v680 = vunpack.c.l.b16 %v587
      %v681 = vunpack.c.h.b16 %v587
      %v682 = vunpack.c.l.b16 %v588
      %v683 = vunpack.c.h.b16 %v588
      %v684 = vunpack.c.l.b16 %v589
      %v685 = vunpack.c.h.b16 %v589
      %v686 = vunpack.c.l.b16 %v590
      %v687 = vunpack.c.h.b16 %v590
      %v688 = vunpack.c.l.b16 %v591
      %v689 = vunpack.c.h.b16 %v591
      %v690 = vunpack.c.l.b16 %v592
      %v691 = vunpack.c.h.b16 %v592
      %v692 = vunpack.c.l.b16 %v593
      %v693 = vunpack.c.h.b16 %v593
      %v694 = vunpack.c.l.b16 %v594
      %v695 = vunpack.c.h.b16 %v594
      %v696 = vunpack.c.l.b16 %v595
      %v697 = vunpack.c.h.b16 %v595
      %v698 = vunpack.c.l.b16 %v596
      %v699 = vunpack.c.h.b16 %v596
      %v700 = vunpack.c.l.b16 %v597
      %v701 = vunpack.c.h.b16 %v597
      %v702 = vunpack.c.l.b16 %v598
      %v703 = vunpack.c.h.b16 %v598
      %v704 = vunpack.c.l.b16 %v599
      %v705 = vunpack.c.h.b16 %v599
      %v706 = vpack.c.b16 %v646, %v642
      %v707 = vpack.c.b16 %v647, %v643
      %v708 = vpack.c.b16 %v648, %v644
      %v709 = vpack.c.b16 %v649, %v645
      %v710 = vpack.c.b16 %v654, %v650
      %v711 = vpack.c.b16 %v655, %v651
      %v712 = vpack.c.b16 %v656, %v652
      %v713 = vpack.c.b16 %v657, %v653
      %v714 = vpack.c.b16 %v662, %v658
      %v715 = vpack.c.b16 %v663, %v659
      %v716 = vpack.c.b16 %v664, %v660
      %v717 = vpack.c.b16 %v665, %v661
      %v718 = vpack.c.b16 %v670, %v666
      %v719 = vpack.c.b16 %v671, %v667
      %v720 = vpack.c.b16 %v672, %v668
      %v721 = vpack.c.b16 %v673, %v669
      %v722 = vpack.c.b16 %v678, %v674
      %v723 = vpack.c.b16 %v679, %v675
      %v724 = vpack.c.b16 %v680, %v676
      %v725 = vpack.c.b16 %v681, %v677
      %v726 = vpack.c.b16 %v686, %v682
      %v727 = vpack.c.b16 %v687, %v683
      %v728 = vpack.c.b16 %v688, %v684
      %v729 = vpack.c.b16 %v689, %v685
      %v730 = vpack.c.b16 %v694, %v690
      %v731 = vpack.c.b16 %v695, %v691
      %v732 = vpack.c.b16 %v696, %v692
      %v733 = vpack.c.b16 %v697, %v693
      %v734 = vpack.c.b16 %v702, %v698
      %v735 = vpack.c.b16 %v703, %v699
      %v736 = vpack.c.b16 %v704, %v700
      %v737 = vpack.c.b16 %v705, %v701
      %770 = vmatpush.bf16.msra.mxu0 %v734
      %771 = vmatpush.bf16.msra.mxu0 %v730
      %772 = vmatpush.bf16.msra.mxu0 %v726
      %773 = vmatpush.bf16.msra.mxu0 %v722
      %774 = vmatpush.bf16.msra.mxu0 %v718
      %775 = vmatpush.bf16.msra.mxu0 %v714
      %776 = vmatpush.bf16.msra.mxu0 %v710
      %777 = vmatpush.bf16.msra.mxu0 %v706
      %778 = vmatmul.bf16.gmra.mxu0 %v560
      %v779 = vpop.f32.mrf.mxu0
      %v780 = vadd.f32 %v602, %v779
      %v781 = vpop.f32.mrf.mxu0
      %v782 = vadd.f32 %v602, %v781
      %783 = vmatmul.bf16.gmra.mxu0 %v561
      %v784 = vpop.f32.mrf.mxu0
      %v785 = vadd.f32 %v602, %v784
      %v786 = vpop.f32.mrf.mxu0
      %v787 = vadd.f32 %v602, %v786
      %788 = vmatmul.bf16.gmra.mxu0 %v562
      %v789 = vpop.f32.mrf.mxu0
      %v790 = vadd.f32 %v602, %v789
      %v791 = vpop.f32.mrf.mxu0
      %v792 = vadd.f32 %v602, %v791
      %793 = vmatmul.bf16.gmra.mxu0 %v563
      %v794 = vpop.f32.mrf.mxu0
      %v795 = vadd.f32 %v602, %v794
      %v796 = vpop.f32.mrf.mxu0
      %v797 = vadd.f32 %v602, %v796
      %798 = vmatmul.bf16.gmra.mxu0 %v564
      %v799 = vpop.f32.mrf.mxu0
      %v800 = vadd.f32 %v602, %v799
      %v801 = vpop.f32.mrf.mxu0
      %v802 = vadd.f32 %v602, %v801
      %803 = vmatmul.bf16.gmra.mxu0 %v565
      %v804 = vpop.f32.mrf.mxu0
      %v805 = vadd.f32 %v602, %v804
      %v806 = vpop.f32.mrf.mxu0
      %v807 = vadd.f32 %v602, %v806
      %808 = vmatmul.bf16.gmra.mxu0 %v566
      %v809 = vpop.f32.mrf.mxu0
      %v810 = vadd.f32 %v602, %v809
      %v811 = vpop.f32.mrf.mxu0
      %v812 = vadd.f32 %v602, %v811
      %813 = vmatmul.bf16.gmra.mxu0 %v567
      %v814 = vpop.f32.mrf.mxu0
      %v815 = vadd.f32 %v602, %v814
      %v816 = vpop.f32.mrf.mxu0
      %v817 = vadd.f32 %v602, %v816
      %818 = vdwg.mxu0
      %819 = vmatpush.bf16.msra.mxu0 %v735
      %820 = vmatpush.bf16.msra.mxu0 %v731
      %821 = vmatpush.bf16.msra.mxu0 %v727
      %822 = vmatpush.bf16.msra.mxu0 %v723
      %823 = vmatpush.bf16.msra.mxu0 %v719
      %824 = vmatpush.bf16.msra.mxu0 %v715
      %825 = vmatpush.bf16.msra.mxu0 %v711
      %826 = vmatpush.bf16.msra.mxu0 %v707
      %827 = vmatmul.bf16.gmra.mxu0 %v560
      %v828 = vpop.f32.mrf.mxu0
      %v829 = vadd.f32 %v603, %v828
      %v830 = vpop.f32.mrf.mxu0
      %v831 = vadd.f32 %v603, %v830
      %832 = vmatmul.bf16.gmra.mxu0 %v561
      %v833 = vpop.f32.mrf.mxu0
      %v834 = vadd.f32 %v603, %v833
      %v835 = vpop.f32.mrf.mxu0
      %v836 = vadd.f32 %v603, %v835
      %837 = vmatmul.bf16.gmra.mxu0 %v562
      %v838 = vpop.f32.mrf.mxu0
      %v839 = vadd.f32 %v603, %v838
      %v840 = vpop.f32.mrf.mxu0
      %v841 = vadd.f32 %v603, %v840
      %842 = vmatmul.bf16.gmra.mxu0 %v563
      %v843 = vpop.f32.mrf.mxu0
      %v844 = vadd.f32 %v603, %v843
      %v845 = vpop.f32.mrf.mxu0
      %v846 = vadd.f32 %v603, %v845
      %847 = vmatmul.bf16.gmra.mxu0 %v564
      %v848 = vpop.f32.mrf.mxu0
      %v849 = vadd.f32 %v603, %v848
      %v850 = vpop.f32.mrf.mxu0
      %v851 = vadd.f32 %v603, %v850
      %852 = vmatmul.bf16.gmra.mxu0 %v565
      %v853 = vpop.f32.mrf.mxu0
      %v854 = vadd.f32 %v603, %v853
      %v855 = vpop.f32.mrf.mxu0
      %v856 = vadd.f32 %v603, %v855
      %857 = vmatmul.bf16.gmra.mxu0 %v566
      %v858 = vpop.f32.mrf.mxu0
      %v859 = vadd.f32 %v603, %v858
      %v860 = vpop.f32.mrf.mxu0
      %v861 = vadd.f32 %v603, %v860
      %862 = vmatmul.bf16.gmra.mxu0 %v567
      %v863 = vpop.f32.mrf.mxu0
      %v864 = vadd.f32 %v603, %v863
      %v865 = vpop.f32.mrf.mxu0
      %v866 = vadd.f32 %v603, %v865
      %867 = vdwg.mxu0
      %868 = vmatpush.bf16.msra.mxu0 %v736
      %869 = vmatpush.bf16.msra.mxu0 %v732
      %870 = vmatpush.bf16.msra.mxu0 %v728
      %871 = vmatpush.bf16.msra.mxu0 %v724
      %872 = vmatpush.bf16.msra.mxu0 %v720
      %873 = vmatpush.bf16.msra.mxu0 %v716
      %874 = vmatpush.bf16.msra.mxu0 %v712
      %875 = vmatpush.bf16.msra.mxu0 %v708
      %876 = vmatmul.bf16.gmra.mxu0 %v560
      %v877 = vpop.f32.mrf.mxu0
      %v878 = vadd.f32 %v604, %v877
      %v879 = vpop.f32.mrf.mxu0
      %v880 = vadd.f32 %v604, %v879
      %881 = vmatmul.bf16.gmra.mxu0 %v561
      %v882 = vpop.f32.mrf.mxu0
      %v883 = vadd.f32 %v604, %v882
      %v884 = vpop.f32.mrf.mxu0
      %v885 = vadd.f32 %v604, %v884
      %886 = vmatmul.bf16.gmra.mxu0 %v562
      %v887 = vpop.f32.mrf.mxu0
      %v888 = vadd.f32 %v604, %v887
      %v889 = vpop.f32.mrf.mxu0
      %v890 = vadd.f32 %v604, %v889
      %891 = vmatmul.bf16.gmra.mxu0 %v563
      %v892 = vpop.f32.mrf.mxu0
      %v893 = vadd.f32 %v604, %v892
      %v894 = vpop.f32.mrf.mxu0
      %v895 = vadd.f32 %v604, %v894
      %896 = vmatmul.bf16.gmra.mxu0 %v564
      %v897 = vpop.f32.mrf.mxu0
      %v898 = vadd.f32 %v604, %v897
      %v899 = vpop.f32.mrf.mxu0
      %v900 = vadd.f32 %v604, %v899
      %901 = vmatmul.bf16.gmra.mxu0 %v565
      %v902 = vpop.f32.mrf.mxu0
      %v903 = vadd.f32 %v604, %v902
      %v904 = vpop.f32.mrf.mxu0
      %v905 = vadd.f32 %v604, %v904
      %906 = vmatmul.bf16.gmra.mxu0 %v566
      %v907 = vpop.f32.mrf.mxu0
      %v908 = vadd.f32 %v604, %v907
      %v909 = vpop.f32.mrf.mxu0
      %v910 = vadd.f32 %v604, %v909
      %911 = vmatmul.bf16.gmra.mxu0 %v567
      %v912 = vpop.f32.mrf.mxu0
      %v913 = vadd.f32 %v604, %v912
      %v914 = vpop.f32.mrf.mxu0
      %v915 = vadd.f32 %v604, %v914
      %916 = vdwg.mxu0
      %917 = vmatpush.bf16.msra.mxu0 %v737
      %918 = vmatpush.bf16.msra.mxu0 %v733
      %919 = vmatpush.bf16.msra.mxu0 %v729
      %920 = vmatpush.bf16.msra.mxu0 %v725
      %921 = vmatpush.bf16.msra.mxu0 %v721
      %922 = vmatpush.bf16.msra.mxu0 %v717
      %923 = vmatpush.bf16.msra.mxu0 %v713
      %924 = vmatpush.bf16.msra.mxu0 %v709
      %925 = vmatmul.bf16.gmra.mxu0 %v560
      %v926 = vpop.f32.mrf.mxu0
      %v927 = vadd.f32 %v605, %v926
      %v928 = vpop.f32.mrf.mxu0
      %v929 = vadd.f32 %v605, %v928
      %930 = vmatmul.bf16.gmra.mxu0 %v561
      %v931 = vpop.f32.mrf.mxu0
      %v932 = vadd.f32 %v605, %v931
      %v933 = vpop.f32.mrf.mxu0
      %v934 = vadd.f32 %v605, %v933
      %935 = vmatmul.bf16.gmra.mxu0 %v562
      %v936 = vpop.f32.mrf.mxu0
      %v937 = vadd.f32 %v605, %v936
      %v938 = vpop.f32.mrf.mxu0
      %v939 = vadd.f32 %v605, %v938
      %940 = vmatmul.bf16.gmra.mxu0 %v563
      %v941 = vpop.f32.mrf.mxu0
      %v942 = vadd.f32 %v605, %v941
      %v943 = vpop.f32.mrf.mxu0
      %v944 = vadd.f32 %v605, %v943
      %945 = vmatmul.bf16.gmra.mxu0 %v564
      %v946 = vpop.f32.mrf.mxu0
      %v947 = vadd.f32 %v605, %v946
      %v948 = vpop.f32.mrf.mxu0
      %v949 = vadd.f32 %v605, %v948
      %950 = vmatmul.bf16.gmra.mxu0 %v565
      %v951 = vpop.f32.mrf.mxu0
      %v952 = vadd.f32 %v605, %v951
      %v953 = vpop.f32.mrf.mxu0
      %v954 = vadd.f32 %v605, %v953
      %955 = vmatmul.bf16.gmra.mxu0 %v566
      %v956 = vpop.f32.mrf.mxu0
      %v957 = vadd.f32 %v605, %v956
      %v958 = vpop.f32.mrf.mxu0
      %v959 = vadd.f32 %v605, %v958
      %960 = vmatmul.bf16.gmra.mxu0 %v567
      %v961 = vpop.f32.mrf.mxu0
      %v962 = vadd.f32 %v605, %v961
      %v963 = vpop.f32.mrf.mxu0
      %v964 = vadd.f32 %v605, %v963
      %965 = vdwg.mxu0
      %vm966 = vcmp.ge.f32.partialorder %v780, 0.0
      %vm967 = vcmp.ge.f32.partialorder %v829, 0.0
      %vm968 = vcmp.ge.f32.partialorder %v878, 0.0
      %vm969 = vcmp.ge.f32.partialorder %v927, 0.0
      %vm970 = vcmp.ge.f32.partialorder %v782, 0.0
      %vm971 = vcmp.ge.f32.partialorder %v831, 0.0
      %vm972 = vcmp.ge.f32.partialorder %v880, 0.0
      %vm973 = vcmp.ge.f32.partialorder %v929, 0.0
      %vm974 = vcmp.ge.f32.partialorder %v785, 0.0
      %vm975 = vcmp.ge.f32.partialorder %v834, 0.0
      %vm976 = vcmp.ge.f32.partialorder %v883, 0.0
      %vm977 = vcmp.ge.f32.partialorder %v932, 0.0
      %vm978 = vcmp.ge.f32.partialorder %v787, 0.0
      %vm979 = vcmp.ge.f32.partialorder %v836, 0.0
      %vm980 = vcmp.ge.f32.partialorder %v885, 0.0
      %vm981 = vcmp.ge.f32.partialorder %v934, 0.0
      %vm982 = vcmp.ge.f32.partialorder %v790, 0.0
      %vm983 = vcmp.ge.f32.partialorder %v839, 0.0
      %vm984 = vcmp.ge.f32.partialorder %v888, 0.0
      %vm985 = vcmp.ge.f32.partialorder %v937, 0.0
      %vm986 = vcmp.ge.f32.partialorder %v792, 0.0
      %vm987 = vcmp.ge.f32.partialorder %v841, 0.0
      %vm988 = vcmp.ge.f32.partialorder %v890, 0.0
      %vm989 = vcmp.ge.f32.partialorder %v939, 0.0
      %vm990 = vcmp.ge.f32.partialorder %v795, 0.0
      %vm991 = vcmp.ge.f32.partialorder %v844, 0.0
      %vm992 = vcmp.ge.f32.partialorder %v893, 0.0
      %vm993 = vcmp.ge.f32.partialorder %v942, 0.0
      %vm994 = vcmp.ge.f32.partialorder %v797, 0.0
      %vm995 = vcmp.ge.f32.partialorder %v846, 0.0
      %vm996 = vcmp.ge.f32.partialorder %v895, 0.0
      %vm997 = vcmp.ge.f32.partialorder %v944, 0.0
      %vm998 = vcmp.ge.f32.partialorder %v800, 0.0
      %vm999 = vcmp.ge.f32.partialorder %v849, 0.0
      %vm1000 = vcmp.ge.f32.partialorder %v898, 0.0
      %vm1001 = vcmp.ge.f32.partialorder %v947, 0.0
      %vm1002 = vcmp.ge.f32.partialorder %v802, 0.0
      %vm1003 = vcmp.ge.f32.partialorder %v851, 0.0
      %vm1004 = vcmp.ge.f32.partialorder %v900, 0.0
      %vm1005 = vcmp.ge.f32.partialorder %v949, 0.0
      %vm1006 = vcmp.ge.f32.partialorder %v805, 0.0
      %vm1007 = vcmp.ge.f32.partialorder %v854, 0.0
      %vm1008 = vcmp.ge.f32.partialorder %v903, 0.0
      %vm1009 = vcmp.ge.f32.partialorder %v952, 0.0
      %vm1010 = vcmp.ge.f32.partialorder %v807, 0.0
      %vm1011 = vcmp.ge.f32.partialorder %v856, 0.0
      %vm1012 = vcmp.ge.f32.partialorder %v905, 0.0
      %vm1013 = vcmp.ge.f32.partialorder %v954, 0.0
      %vm1014 = vcmp.ge.f32.partialorder %v810, 0.0
      %vm1015 = vcmp.ge.f32.partialorder %v859, 0.0
      %vm1016 = vcmp.ge.f32.partialorder %v908, 0.0
      %vm1017 = vcmp.ge.f32.partialorder %v957, 0.0
      %vm1018 = vcmp.ge.f32.partialorder %v812, 0.0
      %vm1019 = vcmp.ge.f32.partialorder %v861, 0.0
      %vm1020 = vcmp.ge.f32.partialorder %v910, 0.0
      %vm1021 = vcmp.ge.f32.partialorder %v959, 0.0
      %vm1022 = vcmp.ge.f32.partialorder %v815, 0.0
      %vm1023 = vcmp.ge.f32.partialorder %v864, 0.0
      %vm1024 = vcmp.ge.f32.partialorder %v913, 0.0
      %vm1025 = vcmp.ge.f32.partialorder %v962, 0.0
      %vm1026 = vcmp.ge.f32.partialorder %v817, 0.0
      %vm1027 = vcmp.ge.f32.partialorder %v866, 0.0
      %vm1028 = vcmp.ge.f32.partialorder %v915, 0.0
      %vm1029 = vcmp.ge.f32.partialorder %v964, 0.0
      %v1030 = vmul.f32 %v780, 0.2
      %v1031 = vmul.f32 %v829, 0.2
      %v1032 = vmul.f32 %v878, 0.2
      %v1033 = vmul.f32 %v927, 0.2
      %v1034 = vmul.f32 %v782, 0.2
      %v1035 = vmul.f32 %v831, 0.2
      %v1036 = vmul.f32 %v880, 0.2
      %v1037 = vmul.f32 %v929, 0.2
      %v1038 = vmul.f32 %v785, 0.2
      %v1039 = vmul.f32 %v834, 0.2
      %v1040 = vmul.f32 %v883, 0.2
      %v1041 = vmul.f32 %v932, 0.2
      %v1042 = vmul.f32 %v787, 0.2
      %v1043 = vmul.f32 %v836, 0.2
      %v1044 = vmul.f32 %v885, 0.2
      %v1045 = vmul.f32 %v934, 0.2
      %v1046 = vmul.f32 %v790, 0.2
      %v1047 = vmul.f32 %v839, 0.2
      %v1048 = vmul.f32 %v888, 0.2
      %v1049 = vmul.f32 %v937, 0.2
      %v1050 = vmul.f32 %v792, 0.2
      %v1051 = vmul.f32 %v841, 0.2
      %v1052 = vmul.f32 %v890, 0.2
      %v1053 = vmul.f32 %v939, 0.2
      %v1054 = vmul.f32 %v795, 0.2
      %v1055 = vmul.f32 %v844, 0.2
      %v1056 = vmul.f32 %v893, 0.2
      %v1057 = vmul.f32 %v942, 0.2
      %v1058 = vmul.f32 %v797, 0.2
      %v1059 = vmul.f32 %v846, 0.2
      %v1060 = vmul.f32 %v895, 0.2
      %v1061 = vmul.f32 %v944, 0.2
      %v1062 = vmul.f32 %v800, 0.2
      %v1063 = vmul.f32 %v849, 0.2
      %v1064 = vmul.f32 %v898, 0.2
      %v1065 = vmul.f32 %v947, 0.2
      %v1066 = vmul.f32 %v802, 0.2
      %v1067 = vmul.f32 %v851, 0.2
      %v1068 = vmul.f32 %v900, 0.2
      %v1069 = vmul.f32 %v949, 0.2
      %v1070 = vmul.f32 %v805, 0.2
      %v1071 = vmul.f32 %v854, 0.2
      %v1072 = vmul.f32 %v903, 0.2
      %v1073 = vmul.f32 %v952, 0.2
      %v1074 = vmul.f32 %v807, 0.2
      %v1075 = vmul.f32 %v856, 0.2
      %v1076 = vmul.f32 %v905, 0.2
      %v1077 = vmul.f32 %v954, 0.2
      %v1078 = vmul.f32 %v810, 0.2
      %v1079 = vmul.f32 %v859, 0.2
      %v1080 = vmul.f32 %v908, 0.2
      %v1081 = vmul.f32 %v957, 0.2
      %v1082 = vmul.f32 %v812, 0.2
      %v1083 = vmul.f32 %v861, 0.2
      %v1084 = vmul.f32 %v910, 0.2
      %v1085 = vmul.f32 %v959, 0.2
      %v1086 = vmul.f32 %v815, 0.2
      %v1087 = vmul.f32 %v864, 0.2
      %v1088 = vmul.f32 %v913, 0.2
      %v1089 = vmul.f32 %v962, 0.2
      %v1090 = vmul.f32 %v817, 0.2
      %v1091 = vmul.f32 %v866, 0.2
      %v1092 = vmul.f32 %v915, 0.2
      %v1093 = vmul.f32 %v964, 0.2
      %v1094 = vsel %vm966, %v780, %v1030
      %v1095 = vsel %vm967, %v829, %v1031
      %v1096 = vsel %vm968, %v878, %v1032
      %v1097 = vsel %vm969, %v927, %v1033
      %v1098 = vsel %vm970, %v782, %v1034
      %v1099 = vsel %vm971, %v831, %v1035
      %v1100 = vsel %vm972, %v880, %v1036
      %v1101 = vsel %vm973, %v929, %v1037
      %v1102 = vsel %vm974, %v785, %v1038
      %v1103 = vsel %vm975, %v834, %v1039
      %v1104 = vsel %vm976, %v883, %v1040
      %v1105 = vsel %vm977, %v932, %v1041
      %v1106 = vsel %vm978, %v787, %v1042
      %v1107 = vsel %vm979, %v836, %v1043
      %v1108 = vsel %vm980, %v885, %v1044
      %v1109 = vsel %vm981, %v934, %v1045
      %v1110 = vsel %vm982, %v790, %v1046
      %v1111 = vsel %vm983, %v839, %v1047
      %v1112 = vsel %vm984, %v888, %v1048
      %v1113 = vsel %vm985, %v937, %v1049
      %v1114 = vsel %vm986, %v792, %v1050
      %v1115 = vsel %vm987, %v841, %v1051
      %v1116 = vsel %vm988, %v890, %v1052
      %v1117 = vsel %vm989, %v939, %v1053
      %v1118 = vsel %vm990, %v795, %v1054
      %v1119 = vsel %vm991, %v844, %v1055
      %v1120 = vsel %vm992, %v893, %v1056
      %v1121 = vsel %vm993, %v942, %v1057
      %v1122 = vsel %vm994, %v797, %v1058
      %v1123 = vsel %vm995, %v846, %v1059
      %v1124 = vsel %vm996, %v895, %v1060
      %v1125 = vsel %vm997, %v944, %v1061
      %v1126 = vsel %vm998, %v800, %v1062
      %v1127 = vsel %vm999, %v849, %v1063
      %v1128 = vsel %vm1000, %v898, %v1064
      %v1129 = vsel %vm1001, %v947, %v1065
      %v1130 = vsel %vm1002, %v802, %v1066
      %v1131 = vsel %vm1003, %v851, %v1067
      %v1132 = vsel %vm1004, %v900, %v1068
      %v1133 = vsel %vm1005, %v949, %v1069
      %v1134 = vsel %vm1006, %v805, %v1070
      %v1135 = vsel %vm1007, %v854, %v1071
      %v1136 = vsel %vm1008, %v903, %v1072
      %v1137 = vsel %vm1009, %v952, %v1073
      %v1138 = vsel %vm1010, %v807, %v1074
      %v1139 = vsel %vm1011, %v856, %v1075
      %v1140 = vsel %vm1012, %v905, %v1076
      %v1141 = vsel %vm1013, %v954, %v1077
      %v1142 = vsel %vm1014, %v810, %v1078
      %v1143 = vsel %vm1015, %v859, %v1079
      %v1144 = vsel %vm1016, %v908, %v1080
      %v1145 = vsel %vm1017, %v957, %v1081
      %v1146 = vsel %vm1018, %v812, %v1082
      %v1147 = vsel %vm1019, %v861, %v1083
      %v1148 = vsel %vm1020, %v910, %v1084
      %v1149 = vsel %vm1021, %v959, %v1085
      %v1150 = vsel %vm1022, %v815, %v1086
      %v1151 = vsel %vm1023, %v864, %v1087
      %v1152 = vsel %vm1024, %v913, %v1088
      %v1153 = vsel %vm1025, %v962, %v1089
      %v1154 = vsel %vm1026, %v817, %v1090
      %v1155 = vsel %vm1027, %v866, %v1091
      %v1156 = vsel %vm1028, %v915, %v1092
      %v1157 = vsel %vm1029, %v964, %v1093
      %1158 = vst [vmem:[%s299] sm:$0xff] %v1094
      %1159 = vst [vmem:[%s299 + $0x8] sm:$0xff] %v1095
      %1160 = vst [vmem:[%s299 + $0x10] sm:$0xff] %v1096
      %1161 = vst [vmem:[%s299 + $0x18] sm:$0xff] %v1097
      %1162 = vst [vmem:[%s299 + $0x20] sm:$0xff] %v1098
      %1163 = vst [vmem:[%s299 + $0x28] sm:$0xff] %v1099
      %1164 = vst [vmem:[%s299 + $0x30] sm:$0xff] %v1100
      %1165 = vst [vmem:[%s299 + $0x38] sm:$0xff] %v1101
      %1166 = vst [vmem:[%s299 + $0x40] sm:$0xff] %v1102
      %1167 = vst [vmem:[%s299 + $0x48] sm:$0xff] %v1103
      %1168 = vst [vmem:[%s299 + $0x50] sm:$0xff] %v1104
      %1169 = vst [vmem:[%s299 + $0x58] sm:$0xff] %v1105
      %1170 = vst [vmem:[%s299 + $0x60] sm:$0xff] %v1106
      %1171 = vst [vmem:[%s299 + $0x68] sm:$0xff] %v1107
      %1172 = vst [vmem:[%s299 + $0x70] sm:$0xff] %v1108
      %1173 = vst [vmem:[%s299 + $0x78] sm:$0xff] %v1109
      %1174 = vst [vmem:[%s299 + $0x80] sm:$0xff] %v1110
      %1175 = vst [vmem:[%s299 + $0x88] sm:$0xff] %v1111
      %1176 = vst [vmem:[%s299 + $0x90] sm:$0xff] %v1112
      %1177 = vst [vmem:[%s299 + $0x98] sm:$0xff] %v1113
      %1178 = vst [vmem:[%s299 + $0xa0] sm:$0xff] %v1114
      %1179 = vst [vmem:[%s299 + $0xa8] sm:$0xff] %v1115
      %1180 = vst [vmem:[%s299 + $0xb0] sm:$0xff] %v1116
      %1181 = vst [vmem:[%s299 + $0xb8] sm:$0xff] %v1117
      %1182 = vst [vmem:[%s299 + $0xc0] sm:$0xff] %v1118
      %1183 = vst [vmem:[%s299 + $0xc8] sm:$0xff] %v1119
      %1184 = vst [vmem:[%s299 + $0xd0] sm:$0xff] %v1120
      %1185 = vst [vmem:[%s299 + $0xd8] sm:$0xff] %v1121
      %1186 = vst [vmem:[%s299 + $0xe0] sm:$0xff] %v1122
      %1187 = vst [vmem:[%s299 + $0xe8] sm:$0xff] %v1123
      %1188 = vst [vmem:[%s299 + $0xf0] sm:$0xff] %v1124
      %1189 = vst [vmem:[%s299 + $0xf8] sm:$0xff] %v1125
      %1190 = vst [vmem:[%s299 + $0x100] sm:$0xff] %v1126
      %1191 = vst [vmem:[%s299 + $0x108] sm:$0xff] %v1127
      %1192 = vst [vmem:[%s299 + $0x110] sm:$0xff] %v1128
      %1193 = vst [vmem:[%s299 + $0x118] sm:$0xff] %v1129
      %1194 = vst [vmem:[%s299 + $0x120] sm:$0xff] %v1130
      %1195 = vst [vmem:[%s299 + $0x128] sm:$0xff] %v1131
      %1196 = vst [vmem:[%s299 + $0x130] sm:$0xff] %v1132
      %1197 = vst [vmem:[%s299 + $0x138] sm:$0xff] %v1133
      %1198 = vst [vmem:[%s299 + $0x140] sm:$0xff] %v1134
      %1199 = vst [vmem:[%s299 + $0x148] sm:$0xff] %v1135
      %1200 = vst [vmem:[%s299 + $0x150] sm:$0xff] %v1136
      %1201 = vst [vmem:[%s299 + $0x158] sm:$0xff] %v1137
      %1202 = vst [vmem:[%s299 + $0x160] sm:$0xff] %v1138
      %1203 = vst [vmem:[%s299 + $0x168] sm:$0xff] %v1139
      %1204 = vst [vmem:[%s299 + $0x170] sm:$0xff] %v1140
      %1205 = vst [vmem:[%s299 + $0x178] sm:$0xff] %v1141
      %1206 = vst [vmem:[%s299 + $0x180] sm:$0xff] %v1142
      %1207 = vst [vmem:[%s299 + $0x188] sm:$0xff] %v1143
      %1208 = vst [vmem:[%s299 + $0x190] sm:$0xff] %v1144
      %1209 = vst [vmem:[%s299 + $0x198] sm:$0xff] %v1145
      %1210 = vst [vmem:[%s299 + $0x1a0] sm:$0xff] %v1146
      %1211 = vst [vmem:[%s299 + $0x1a8] sm:$0xff] %v1147
      %1212 = vst [vmem:[%s299 + $0x1b0] sm:$0xff] %v1148
      %1213 = vst [vmem:[%s299 + $0x1b8] sm:$0xff] %v1149
      %1214 = vst [vmem:[%s299 + $0x1c0] sm:$0xff] %v1150
      %1215 = vst [vmem:[%s299 + $0x1c8] sm:$0xff] %v1151
      %1216 = vst [vmem:[%s299 + $0x1d0] sm:$0xff] %v1152
      %1217 = vst [vmem:[%s299 + $0x1d8] sm:$0xff] %v1153
      %1218 = vst [vmem:[%s299 + $0x1e0] sm:$0xff] %v1154
      %1219 = vst [vmem:[%s299 + $0x1e8] sm:$0xff] %v1155
      %1220 = vst [vmem:[%s299 + $0x1f0] sm:$0xff] %v1156
      %1221 = vst [vmem:[%s299 + $0x1f8] sm:$0xff] %v1157
      %s1222 = smul.u32 %s19, 128
      %v1223 = vlaneseq
      %v1224 = vshrl.u32 %v1223, 7
      %v1225 = vadd.s32 %v1224, 8
      %v1226 = vadd.s32 %v1224, 16
      %v1227 = vadd.s32 %v1224, 24
      %v1228 = vadd.s32 %v1224, 32
      %v1229 = vadd.s32 %v1224, 40
      %v1230 = vadd.s32 %v1224, 48
      %v1231 = vadd.s32 %v1224, 56
      %v1232 = vadd.s32 %v1224, 64
      %v1233 = vadd.s32 %v1224, 72
      %v1234 = vadd.s32 %v1224, 80
      %v1235 = vadd.s32 %v1224, 88
      %v1236 = vadd.s32 %v1224, 96
      %v1237 = vadd.s32 %v1224, 104
      %v1238 = vadd.s32 %v1224, 112
      %v1239 = vadd.s32 %v1224, 120
      %v1240 = vstv %s1222
      %v1241 = vadd.s32 %v1240, %v1224
      %v1242 = vadd.s32 %v1240, %v1225
      %v1243 = vadd.s32 %v1240, %v1226
      %v1244 = vadd.s32 %v1240, %v1227
      %v1245 = vadd.s32 %v1240, %v1228
      %v1246 = vadd.s32 %v1240, %v1229
      %v1247 = vadd.s32 %v1240, %v1230
      %v1248 = vadd.s32 %v1240, %v1231
      %v1249 = vadd.s32 %v1240, %v1232
      %v1250 = vadd.s32 %v1240, %v1233
      %v1251 = vadd.s32 %v1240, %v1234
      %v1252 = vadd.s32 %v1240, %v1235
      %v1253 = vadd.s32 %v1240, %v1236
      %v1254 = vadd.s32 %v1240, %v1237
      %v1255 = vadd.s32 %v1240, %v1238
      %v1256 = vadd.s32 %v1240, %v1239
      %vm1257 = vcmp.lt.s32.totalorder %v1241, 300
      %vm1258 = vcmp.lt.s32.totalorder %v1242, 300
      %vm1259 = vcmp.lt.s32.totalorder %v1243, 300
      %vm1260 = vcmp.lt.s32.totalorder %v1244, 300
      %vm1261 = vcmp.lt.s32.totalorder %v1245, 300
      %vm1262 = vcmp.lt.s32.totalorder %v1246, 300
      %vm1263 = vcmp.lt.s32.totalorder %v1247, 300
      %vm1264 = vcmp.lt.s32.totalorder %v1248, 300
      %vm1265 = vcmp.lt.s32.totalorder %v1249, 300
      %vm1266 = vcmp.lt.s32.totalorder %v1250, 300
      %vm1267 = vcmp.lt.s32.totalorder %v1251, 300
      %vm1268 = vcmp.lt.s32.totalorder %v1252, 300
      %vm1269 = vcmp.lt.s32.totalorder %v1253, 300
      %vm1270 = vcmp.lt.s32.totalorder %v1254, 300
      %vm1271 = vcmp.lt.s32.totalorder %v1255, 300
      %vm1272 = vcmp.lt.s32.totalorder %v1256, 300
      %v1273 = vsel %vm1257, 1, 0
      %v1274 = vsel %vm1258, 1, 0
      %v1275 = vsel %vm1259, 1, 0
      %v1276 = vsel %vm1260, 1, 0
      %v1277 = vsel %vm1261, 1, 0
      %v1278 = vsel %vm1262, 1, 0
      %v1279 = vsel %vm1263, 1, 0
      %v1280 = vsel %vm1264, 1, 0
      %v1281 = vsel %vm1265, 1, 0
      %v1282 = vsel %vm1266, 1, 0
      %v1283 = vsel %vm1267, 1, 0
      %v1284 = vsel %vm1268, 1, 0
      %v1285 = vsel %vm1269, 1, 0
      %v1286 = vsel %vm1270, 1, 0
      %v1287 = vsel %vm1271, 1, 0
      %v1288 = vsel %vm1272, 1, 0
      %v1289 = vcvt.s32.f32 %v1273
      %v1290 = vcvt.s32.f32 %v1274
      %v1291 = vcvt.s32.f32 %v1275
      %v1292 = vcvt.s32.f32 %v1276
      %v1293 = vcvt.s32.f32 %v1277
      %v1294 = vcvt.s32.f32 %v1278
      %v1295 = vcvt.s32.f32 %v1279
      %v1296 = vcvt.s32.f32 %v1280
      %v1297 = vcvt.s32.f32 %v1281
      %v1298 = vcvt.s32.f32 %v1282
      %v1299 = vcvt.s32.f32 %v1283
      %v1300 = vcvt.s32.f32 %v1284
      %v1301 = vcvt.s32.f32 %v1285
      %v1302 = vcvt.s32.f32 %v1286
      %v1303 = vcvt.s32.f32 %v1287
      %v1304 = vcvt.s32.f32 %v1288
      %v1305 = vmul.f32 %v1094, %v1289
      %v1306 = vmul.f32 %v1095, %v1289
      %v1307 = vmul.f32 %v1096, %v1289
      %v1308 = vmul.f32 %v1097, %v1289
      %v1309 = vmul.f32 %v1098, %v1290
      %v1310 = vmul.f32 %v1099, %v1290
      %v1311 = vmul.f32 %v1100, %v1290
      %v1312 = vmul.f32 %v1101, %v1290
      %v1313 = vmul.f32 %v1102, %v1291
      %v1314 = vmul.f32 %v1103, %v1291
      %v1315 = vmul.f32 %v1104, %v1291
      %v1316 = vmul.f32 %v1105, %v1291
      %v1317 = vmul.f32 %v1106, %v1292
      %v1318 = vmul.f32 %v1107, %v1292
      %v1319 = vmul.f32 %v1108, %v1292
      %v1320 = vmul.f32 %v1109, %v1292
      %v1321 = vmul.f32 %v1110, %v1293
      %v1322 = vmul.f32 %v1111, %v1293
      %v1323 = vmul.f32 %v1112, %v1293
      %v1324 = vmul.f32 %v1113, %v1293
      %v1325 = vmul.f32 %v1114, %v1294
      %v1326 = vmul.f32 %v1115, %v1294
      %v1327 = vmul.f32 %v1116, %v1294
      %v1328 = vmul.f32 %v1117, %v1294
      %v1329 = vmul.f32 %v1118, %v1295
      %v1330 = vmul.f32 %v1119, %v1295
      %v1331 = vmul.f32 %v1120, %v1295
      %v1332 = vmul.f32 %v1121, %v1295
      %v1333 = vmul.f32 %v1122, %v1296
      %v1334 = vmul.f32 %v1123, %v1296
      %v1335 = vmul.f32 %v1124, %v1296
      %v1336 = vmul.f32 %v1125, %v1296
      %v1337 = vmul.f32 %v1126, %v1297
      %v1338 = vmul.f32 %v1127, %v1297
      %v1339 = vmul.f32 %v1128, %v1297
      %v1340 = vmul.f32 %v1129, %v1297
      %v1341 = vmul.f32 %v1130, %v1298
      %v1342 = vmul.f32 %v1131, %v1298
      %v1343 = vmul.f32 %v1132, %v1298
      %v1344 = vmul.f32 %v1133, %v1298
      %v1345 = vmul.f32 %v1134, %v1299
      %v1346 = vmul.f32 %v1135, %v1299
      %v1347 = vmul.f32 %v1136, %v1299
      %v1348 = vmul.f32 %v1137, %v1299
      %v1349 = vmul.f32 %v1138, %v1300
      %v1350 = vmul.f32 %v1139, %v1300
      %v1351 = vmul.f32 %v1140, %v1300
      %v1352 = vmul.f32 %v1141, %v1300
      %v1353 = vmul.f32 %v1142, %v1301
      %v1354 = vmul.f32 %v1143, %v1301
      %v1355 = vmul.f32 %v1144, %v1301
      %v1356 = vmul.f32 %v1145, %v1301
      %v1357 = vmul.f32 %v1146, %v1302
      %v1358 = vmul.f32 %v1147, %v1302
      %v1359 = vmul.f32 %v1148, %v1302
      %v1360 = vmul.f32 %v1149, %v1302
      %v1361 = vmul.f32 %v1150, %v1303
      %v1362 = vmul.f32 %v1151, %v1303
      %v1363 = vmul.f32 %v1152, %v1303
      %v1364 = vmul.f32 %v1153, %v1303
      %v1365 = vmul.f32 %v1154, %v1304
      %v1366 = vmul.f32 %v1155, %v1304
      %v1367 = vmul.f32 %v1156, %v1304
      %v1368 = vmul.f32 %v1157, %v1304
      %v1369 = vld [vmem:[%s6] sm:$0xf]
      %v1370 = vadd.f32 %v1305, %v1309
      %v1371 = vadd.f32 %v1370, %v1313
      %v1372 = vadd.f32 %v1371, %v1317
      %v1373 = vadd.f32 %v1372, %v1321
      %v1374 = vadd.f32 %v1373, %v1325
      %v1375 = vadd.f32 %v1374, %v1329
      %v1376 = vadd.f32 %v1375, %v1333
      %v1377 = vadd.f32 %v1376, %v1337
      %v1378 = vadd.f32 %v1377, %v1341
      %v1379 = vadd.f32 %v1378, %v1345
      %v1380 = vadd.f32 %v1379, %v1349
      %v1381 = vadd.f32 %v1380, %v1353
      %v1382 = vadd.f32 %v1381, %v1357
      %v1383 = vadd.f32 %v1382, %v1361
      %v1384 = vadd.f32 %v1383, %v1365
      %v1385 = vrot.slane %v1384, 4
      %v1386 = vadd.f32 %v1384, %v1385
      %v1387 = vrot.slane %v1386, 2
      %v1388 = vadd.f32 %v1386, %v1387
      %v1389 = vrot.slane %v1388, 1
      %v1390 = vadd.f32 %v1388, %v1389
      %v1391 = vadd.f32 %v1306, %v1310
      %v1392 = vadd.f32 %v1391, %v1314
      %v1393 = vadd.f32 %v1392, %v1318
      %v1394 = vadd.f32 %v1393, %v1322
      %v1395 = vadd.f32 %v1394, %v1326
      %v1396 = vadd.f32 %v1395, %v1330
      %v1397 = vadd.f32 %v1396, %v1334
      %v1398 = vadd.f32 %v1397, %v1338
      %v1399 = vadd.f32 %v1398, %v1342
      %v1400 = vadd.f32 %v1399, %v1346
      %v1401 = vadd.f32 %v1400, %v1350
      %v1402 = vadd.f32 %v1401, %v1354
      %v1403 = vadd.f32 %v1402, %v1358
      %v1404 = vadd.f32 %v1403, %v1362
      %v1405 = vadd.f32 %v1404, %v1366
      %v1406 = vrot.slane %v1405, 4
      %v1407 = vadd.f32 %v1405, %v1406
      %v1408 = vrot.slane %v1407, 2
      %v1409 = vadd.f32 %v1407, %v1408
      %v1410 = vrot.slane %v1409, 1
      %v1411 = vadd.f32 %v1409, %v1410
      %v1412 = vadd.f32 %v1307, %v1311
      %v1413 = vadd.f32 %v1412, %v1315
      %v1414 = vadd.f32 %v1413, %v1319
      %v1415 = vadd.f32 %v1414, %v1323
      %v1416 = vadd.f32 %v1415, %v1327
      %v1417 = vadd.f32 %v1416, %v1331
      %v1418 = vadd.f32 %v1417, %v1335
      %v1419 = vadd.f32 %v1418, %v1339
      %v1420 = vadd.f32 %v1419, %v1343
      %v1421 = vadd.f32 %v1420, %v1347
      %v1422 = vadd.f32 %v1421, %v1351
      %v1423 = vadd.f32 %v1422, %v1355
      %v1424 = vadd.f32 %v1423, %v1359
      %v1425 = vadd.f32 %v1424, %v1363
      %v1426 = vadd.f32 %v1425, %v1367
      %v1427 = vrot.slane %v1426, 4
      %v1428 = vadd.f32 %v1426, %v1427
      %v1429 = vrot.slane %v1428, 2
      %v1430 = vadd.f32 %v1428, %v1429
      %v1431 = vrot.slane %v1430, 1
      %v1432 = vadd.f32 %v1430, %v1431
      %v1433 = vadd.f32 %v1308, %v1312
      %v1434 = vadd.f32 %v1433, %v1316
      %v1435 = vadd.f32 %v1434, %v1320
      %v1436 = vadd.f32 %v1435, %v1324
      %v1437 = vadd.f32 %v1436, %v1328
      %v1438 = vadd.f32 %v1437, %v1332
      %v1439 = vadd.f32 %v1438, %v1336
      %v1440 = vadd.f32 %v1439, %v1340
      %v1441 = vadd.f32 %v1440, %v1344
      %v1442 = vadd.f32 %v1441, %v1348
      %v1443 = vadd.f32 %v1442, %v1352
      %v1444 = vadd.f32 %v1443, %v1356
      %v1445 = vadd.f32 %v1444, %v1360
      %v1446 = vadd.f32 %v1445, %v1364
      %v1447 = vadd.f32 %v1446, %v1368
      %v1448 = vrot.slane %v1447, 4
      %v1449 = vadd.f32 %v1447, %v1448
      %v1450 = vrot.slane %v1449, 2
      %v1451 = vadd.f32 %v1449, %v1450
      %v1452 = vrot.slane %v1451, 1
      %v1453 = vadd.f32 %v1451, %v1452
      %v1458 = vrot.slane %v1411, 7
      %v1459 = vrot.slane %v1432, 6
      %v1460 = vrot.slane %v1453, 5
      %vm1461 = vcmask 1040384
      %v1462 = vsel %vm1461, %v1390, %v1458
      %vm1463 = vcmask 1042434
      %v1464 = vsel %vm1463, %v1459, %v1460
      %vm1465 = vcmask 1041408
      %v1466 = vsel %vm1465, %v1462, %v1464
      %v1468 = vadd.f32 %v1369, %v1466
      %v1469 = vlaneseq
      %vm1470 = vcmp.ge.s32.totalorder %v1469, 0
      %vm1471 = vcmp.lt.s32.totalorder %v1469, 512
      %vm1472 = vmand %vm1470, %vm1471
      %1473 = vst.msk [vmem:[%s6] sm:$0xf] %vm1472, %v1468
      %v1474 = vld [vmem:[%s7] sm:$0xf]
      %v1475 = vmul.f32 %v1305, %v1094
      %v1476 = vmul.f32 %v1306, %v1095
      %v1477 = vmul.f32 %v1307, %v1096
      %v1478 = vmul.f32 %v1308, %v1097
      %v1479 = vmul.f32 %v1309, %v1098
      %v1480 = vmul.f32 %v1310, %v1099
      %v1481 = vmul.f32 %v1311, %v1100
      %v1482 = vmul.f32 %v1312, %v1101
      %v1483 = vmul.f32 %v1313, %v1102
      %v1484 = vmul.f32 %v1314, %v1103
      %v1485 = vmul.f32 %v1315, %v1104
      %v1486 = vmul.f32 %v1316, %v1105
      %v1487 = vmul.f32 %v1317, %v1106
      %v1488 = vmul.f32 %v1318, %v1107
      %v1489 = vmul.f32 %v1319, %v1108
      %v1490 = vmul.f32 %v1320, %v1109
      %v1491 = vmul.f32 %v1321, %v1110
      %v1492 = vmul.f32 %v1322, %v1111
      %v1493 = vmul.f32 %v1323, %v1112
      %v1494 = vmul.f32 %v1324, %v1113
      %v1495 = vmul.f32 %v1325, %v1114
      %v1496 = vmul.f32 %v1326, %v1115
      %v1497 = vmul.f32 %v1327, %v1116
      %v1498 = vmul.f32 %v1328, %v1117
      %v1499 = vmul.f32 %v1329, %v1118
      %v1500 = vmul.f32 %v1330, %v1119
      %v1501 = vmul.f32 %v1331, %v1120
      %v1502 = vmul.f32 %v1332, %v1121
      %v1503 = vmul.f32 %v1333, %v1122
      %v1504 = vmul.f32 %v1334, %v1123
      %v1505 = vmul.f32 %v1335, %v1124
      %v1506 = vmul.f32 %v1336, %v1125
      %v1507 = vmul.f32 %v1337, %v1126
      %v1508 = vmul.f32 %v1338, %v1127
      %v1509 = vmul.f32 %v1339, %v1128
      %v1510 = vmul.f32 %v1340, %v1129
      %v1511 = vmul.f32 %v1341, %v1130
      %v1512 = vmul.f32 %v1342, %v1131
      %v1513 = vmul.f32 %v1343, %v1132
      %v1514 = vmul.f32 %v1344, %v1133
      %v1515 = vmul.f32 %v1345, %v1134
      %v1516 = vmul.f32 %v1346, %v1135
      %v1517 = vmul.f32 %v1347, %v1136
      %v1518 = vmul.f32 %v1348, %v1137
      %v1519 = vmul.f32 %v1349, %v1138
      %v1520 = vmul.f32 %v1350, %v1139
      %v1521 = vmul.f32 %v1351, %v1140
      %v1522 = vmul.f32 %v1352, %v1141
      %v1523 = vmul.f32 %v1353, %v1142
      %v1524 = vmul.f32 %v1354, %v1143
      %v1525 = vmul.f32 %v1355, %v1144
      %v1526 = vmul.f32 %v1356, %v1145
      %v1527 = vmul.f32 %v1357, %v1146
      %v1528 = vmul.f32 %v1358, %v1147
      %v1529 = vmul.f32 %v1359, %v1148
      %v1530 = vmul.f32 %v1360, %v1149
      %v1531 = vmul.f32 %v1361, %v1150
      %v1532 = vmul.f32 %v1362, %v1151
      %v1533 = vmul.f32 %v1363, %v1152
      %v1534 = vmul.f32 %v1364, %v1153
      %v1535 = vmul.f32 %v1365, %v1154
      %v1536 = vmul.f32 %v1366, %v1155
      %v1537 = vmul.f32 %v1367, %v1156
      %v1538 = vmul.f32 %v1368, %v1157
      %v1539 = vadd.f32 %v1475, %v1479
      %v1540 = vadd.f32 %v1539, %v1483
      %v1541 = vadd.f32 %v1540, %v1487
      %v1542 = vadd.f32 %v1541, %v1491
      %v1543 = vadd.f32 %v1542, %v1495
      %v1544 = vadd.f32 %v1543, %v1499
      %v1545 = vadd.f32 %v1544, %v1503
      %v1546 = vadd.f32 %v1545, %v1507
      %v1547 = vadd.f32 %v1546, %v1511
      %v1548 = vadd.f32 %v1547, %v1515
      %v1549 = vadd.f32 %v1548, %v1519
      %v1550 = vadd.f32 %v1549, %v1523
      %v1551 = vadd.f32 %v1550, %v1527
      %v1552 = vadd.f32 %v1551, %v1531
      %v1553 = vadd.f32 %v1552, %v1535
      %v1554 = vrot.slane %v1553, 4
      %v1555 = vadd.f32 %v1553, %v1554
      %v1556 = vrot.slane %v1555, 2
      %v1557 = vadd.f32 %v1555, %v1556
      %v1558 = vrot.slane %v1557, 1
      %v1559 = vadd.f32 %v1557, %v1558
      %v1560 = vadd.f32 %v1476, %v1480
      %v1561 = vadd.f32 %v1560, %v1484
      %v1562 = vadd.f32 %v1561, %v1488
      %v1563 = vadd.f32 %v1562, %v1492
      %v1564 = vadd.f32 %v1563, %v1496
      %v1565 = vadd.f32 %v1564, %v1500
      %v1566 = vadd.f32 %v1565, %v1504
      %v1567 = vadd.f32 %v1566, %v1508
      %v1568 = vadd.f32 %v1567, %v1512
      %v1569 = vadd.f32 %v1568, %v1516
      %v1570 = vadd.f32 %v1569, %v1520
      %v1571 = vadd.f32 %v1570, %v1524
      %v1572 = vadd.f32 %v1571, %v1528
      %v1573 = vadd.f32 %v1572, %v1532
      %v1574 = vadd.f32 %v1573, %v1536
      %v1575 = vrot.slane %v1574, 4
      %v1576 = vadd.f32 %v1574, %v1575
      %v1577 = vrot.slane %v1576, 2
      %v1578 = vadd.f32 %v1576, %v1577
      %v1579 = vrot.slane %v1578, 1
      %v1580 = vadd.f32 %v1578, %v1579
      %v1581 = vadd.f32 %v1477, %v1481
      %v1582 = vadd.f32 %v1581, %v1485
      %v1583 = vadd.f32 %v1582, %v1489
      %v1584 = vadd.f32 %v1583, %v1493
      %v1585 = vadd.f32 %v1584, %v1497
      %v1586 = vadd.f32 %v1585, %v1501
      %v1587 = vadd.f32 %v1586, %v1505
      %v1588 = vadd.f32 %v1587, %v1509
      %v1589 = vadd.f32 %v1588, %v1513
      %v1590 = vadd.f32 %v1589, %v1517
      %v1591 = vadd.f32 %v1590, %v1521
      %v1592 = vadd.f32 %v1591, %v1525
      %v1593 = vadd.f32 %v1592, %v1529
      %v1594 = vadd.f32 %v1593, %v1533
      %v1595 = vadd.f32 %v1594, %v1537
      %v1596 = vrot.slane %v1595, 4
      %v1597 = vadd.f32 %v1595, %v1596
      %v1598 = vrot.slane %v1597, 2
      %v1599 = vadd.f32 %v1597, %v1598
      %v1600 = vrot.slane %v1599, 1
      %v1601 = vadd.f32 %v1599, %v1600
      %v1602 = vadd.f32 %v1478, %v1482
      %v1603 = vadd.f32 %v1602, %v1486
      %v1604 = vadd.f32 %v1603, %v1490
      %v1605 = vadd.f32 %v1604, %v1494
      %v1606 = vadd.f32 %v1605, %v1498
      %v1607 = vadd.f32 %v1606, %v1502
      %v1608 = vadd.f32 %v1607, %v1506
      %v1609 = vadd.f32 %v1608, %v1510
      %v1610 = vadd.f32 %v1609, %v1514
      %v1611 = vadd.f32 %v1610, %v1518
      %v1612 = vadd.f32 %v1611, %v1522
      %v1613 = vadd.f32 %v1612, %v1526
      %v1614 = vadd.f32 %v1613, %v1530
      %v1615 = vadd.f32 %v1614, %v1534
      %v1616 = vadd.f32 %v1615, %v1538
      %v1617 = vrot.slane %v1616, 4
      %v1618 = vadd.f32 %v1616, %v1617
      %v1619 = vrot.slane %v1618, 2
      %v1620 = vadd.f32 %v1618, %v1619
      %v1621 = vrot.slane %v1620, 1
      %v1622 = vadd.f32 %v1620, %v1621
      %v1627 = vrot.slane %v1580, 7
      %v1628 = vrot.slane %v1601, 6
      %v1629 = vrot.slane %v1622, 5
      %v1630 = vsel %vm1461, %v1559, %v1627
      %v1631 = vsel %vm1463, %v1628, %v1629
      %v1632 = vsel %vm1465, %v1630, %v1631
      %v1634 = vadd.f32 %v1474, %v1632
      %1635 = vst.msk [vmem:[%s7] sm:$0xf] %vm1472, %v1634
      %s1636 = smul.u32 16, %s19
      %p1637 = scmp.lt.s32.totalorder %s1636, 47
      %s1638 = scalar_select %p1637, %s1636, 47
      %s1639 = smul.addr %s1638, 4
      %s1640 = smul.addr %s1639, 8
      %s1641 = scalar_lea.vmem %s5, %s1640
      // Predicated region
      $region45: #{interactive_forward.9} parent=39 // pred_check
        %p1642 = pneg %p152
      $region46: #{interactive_forward.9} parent=39 // pred_check_branch
        %1644 = sbr.rel (%p1642) target = $region48
      $region47: #{interactive_forward.9} parent=39 // pred_region
        %s1645 = smul.u32 16, %s19
      $region48: #{interactive_forward.9} parent=39 // pred_fallthru
        _
      // Predicated region
      $region49: #{interactive_forward.9} parent=39 // pred_check
        %p1646 = pneg %p173
      $region50: #{interactive_forward.9} parent=39 // pred_check_branch
        %1648 = sbr.rel (%p1646) target = $region52
      $region51: #{interactive_forward.9} parent=39 // pred_region
        _
      $region52: #{interactive_forward.9} parent=39 // pred_fallthru
        _
      // Predicated region
      $region53: #{interactive_forward.9} parent=39 // pred_check
        %p1649 = pneg %p194
      $region54: #{interactive_forward.9} parent=39 // pred_check_branch
        %1651 = sbr.rel (%p1649) target = $region56
      $region55: #{interactive_forward.9} parent=39 // pred_region
        _
      $region56: #{interactive_forward.9} parent=39 // pred_fallthru
        _
      // Predicated region
      $region57: #{interactive_forward.9} parent=39 // pred_check
        %p1652 = pneg %p173
      $region58: #{interactive_forward.9} parent=39 // pred_check_branch
        %1654 = sbr.rel (%p1652) target = $region60
      $region59: #{interactive_forward.9} parent=39 // pred_region
        _
      $region60: #{interactive_forward.9} parent=39 // pred_fallthru
        _
      // Predicated region
      $region61: #{interactive_forward.9} parent=39 // pred_check
        %p1655 = pneg %p194
      $region62: #{interactive_forward.9} parent=39 // pred_check_branch
        %1657 = sbr.rel (%p1655) target = $region64
      $region63: #{interactive_forward.9} parent=39 // pred_region
        _
      $region64: #{interactive_forward.9} parent=39 // pred_fallthru
        _
    $region40: #{interactive_forward.9} parent=5 // pred_fallthru
      _
    %p1658 = scmp.le.s32.totalorder 2, %s14
    // Predicated region
    $region65: #{interactive_forward.9} parent=5 // pred_check
      %p1659 = pneg %p1658
    $region66: #{interactive_forward.9} parent=5 // pred_check_branch
      %1661 = sbr.rel (%p1659) target = $region68
    $region67: #{interactive_forward.9} parent=5 // pred_region
      %s1662 = ssub.s32 %s14, 2
      // Predicated region
      $region69: #{interactive_forward.9} parent=67 // pred_check
        %p1663 = pneg %p158
      $region70: #{interactive_forward.9} parent=67 // pred_check_branch
        %1665 = sbr.rel (%p1663) target = $region72
      $region71: #{interactive_forward.9} parent=67 // pred_region
        %s1666 = smul.u32 16, %s20
        %p1667 = scmp.lt.s32.totalorder %s1666, 47
        %s1668 = scalar_select %p1667, %s1666, 47
        %s1669 = smul.addr %s1668, 4
        %s1670 = smul.addr %s1669, 8
        %s1671 = scalar_lea.vmem %s5, %s1670
      $region72: #{interactive_forward.9} parent=67 // pred_fallthru
        _
    $region68: #{interactive_forward.9} parent=5 // pred_fallthru
      _
  $region6: #{interactive_forward.9} parent=0 // loop_footer
    %s18 = sadd.s32 1, %s14
  $region7: #{interactive_forward.9} parent=0 // loop_footer_branch
    %13 = sbr.rel target = $region3
  $region8: #{interactive_forward.9} parent=0 // loop_exit
    _

// kernel: interactive_forward.10
$region0: #{interactive_forward.10}
  #allocation0 [shape = 'u32[]', space=smem, size = 0x4, offset = 0x4, fixed_abs, tag = 'smem constant byte address 0x4 - core index']
  #allocation1 [shape = 'u32[72,128]{1,0:T(1,128)}', space=vmem, size = 0x9000, scoped, tag = 'internal scratch']
  %s0 = inlined_call_operand.vmem [shape: bf16[128,384], index: 0, kind: input, shape index: {}]
  %s1 = inlined_call_operand.vmem [shape: f32[384,512], index: 1, kind: input, shape index: {}]
  %s2 = inlined_call_operand.vmem [shape: f32[1,512], index: 2, kind: input, shape index: {}]
  %s3 = inlined_call_operand.vmem [shape: f32[1,512], index: 3, kind: input, shape index: {}]
  %s4 = inlined_call_operand.vmem [shape: f32[1,512], index: 4, kind: input, shape index: {}]
  %s5 = inlined_call_operand.vmem [shape: f32[1,512], index: 5, kind: input, shape index: {}]
  %s6 = inlined_call_operand.vmem [shape: bf16[512,128], index: 6, kind: input, shape index: {}]
  %s7 = inlined_call_operand.vmem [shape: f32[128,128], index: 7, kind: output, shape index: {}]
  %s8 = sld [smem:[#allocation0]]
  $region106: #{interactive_forward.10} parent=0
    _
  %s10 = ssub.s32 1, %s8
  %s11 = scalar_select 0, %s10, %s8
  $region1: #{interactive_forward.10} parent=0
    #allocation2 [shape = 'u8[65536]{0}', space=vmem, size = 0x10000, scoped, tag = 'input window, operand 0']
    loop: start=0, step=1, limit=5
    $region2: #{interactive_forward.10} parent=1 // loop_pre_header
      _
    $region3: #{interactive_forward.10} parent=1 // loop_header
      %s13 = sphi 0, %s17
      %p14 = scmp.ge.s32.totalorder %s13, 5
      %s23 = sphi 0, %s25
      %s26 = sphi 0, %s23
      %s27 = sphi 0, %s26
      %s43 = sphi 0, %s27
      %s49 = sphi 0, %s51
      %s52 = sphi 0, %s49
      %s53 = sphi 0, %s52
      %s69 = sphi 0, %s53
      %s73 = sphi 0, %s73
      %s75 = sphi 0, %s73
      %s76 = sphi 0, %s75
      %s90 = sphi 0, %s76
      %s94 = sphi 0, %s94
      %s96 = sphi 0, %s94
      %s97 = sphi 0, %s96
      %s111 = sphi 0, %s97
      %s115 = sphi 0, %s115
      %s117 = sphi 0, %s115
      %s118 = sphi 0, %s117
      %s132 = sphi 0, %s118
      %s136 = sphi 0, %s136
      %s138 = sphi 0, %s136
      %s139 = sphi 0, %s138
      %s153 = sphi 0, %s139
      %s157 = sphi 0, %s157
      %s159 = sphi 0, %s157
      %s160 = sphi 0, %s159
      %s174 = sphi 0, %s160
      %s178 = sphi 0, %s178
      %s180 = sphi 0, %s178
      %s181 = sphi 0, %s180
      %s195 = sphi 0, %s181
    $region4: #{interactive_forward.10} parent=1 // loop_header_branch
      %16 = sbr.rel (%p14) target = $region8
    $region5: #{interactive_forward.10} parent=1 // loop_body
      %s18 = ssub.s32 %s13, 1
      %s19 = ssub.s32 %s13, 2
      %s20 = sadd.s32 %s13, 1
      %s21 = ssub.s32 %s13, %s20
      %p22 = scmp.eq.s32.totalorder %s21, 0
      %s24 = sadd.s32 %s23, 1
      %s25 = scalar_select %p22, %s23, %s24
      %p28 = pneg %p22
      %p29 = scmp.eq.s32.totalorder %s13, 2
      %p30 = por %p28, %p29
      %p31 = scmp.ne.s32.totalorder %s23, %s26
      %p32 = scmp.eq.s32.totalorder %s13, 0
      %p33 = por %p31, %p32
      %p34 = scmp.ne.s32.totalorder %s23, %s26
      %p35 = scmp.eq.s32.totalorder %s18, 2
      %p36 = por %p34, %p35
      %p37 = scmp.ne.s32.totalorder %s26, %s27
      %p38 = scmp.eq.s32.totalorder %s18, 0
      %p39 = por %p37, %p38
      %p40 = scmp.ne.s32.totalorder %s26, %s27
      %p41 = scmp.eq.s32.totalorder %s19, 2
      %p42 = por %p40, %p41
      %p44 = scmp.ne.s32.totalorder %s27, %s43
      %p45 = scmp.eq.s32.totalorder %s19, 0
      %p46 = por %p44, %p45
      %s47 = ssub.s32 %s13, %s20
      %p48 = scmp.eq.s32.totalorder %s47, 0
      %s50 = sadd.s32 %s49, 1
      %s51 = scalar_select %p48, %s49, %s50
      %p54 = pneg %p48
      %p55 = scmp.eq.s32.totalorder %s13, 2
      %p56 = por %p54, %p55
      %p57 = scmp.ne.s32.totalorder %s49, %s52
      %p58 = scmp.eq.s32.totalorder %s13, 0
      %p59 = por %p57, %p58
      %p60 = scmp.ne.s32.totalorder %s49, %s52
      %p61 = scmp.eq.s32.totalorder %s18, 2
      %p62 = por %p60, %p61
      %p63 = scmp.ne.s32.totalorder %s52, %s53
      %p64 = scmp.eq.s32.totalorder %s18, 0
      %p65 = por %p63, %p64
      %p66 = scmp.ne.s32.totalorder %s52, %s53
      %p67 = scmp.eq.s32.totalorder %s19, 2
      %p68 = por %p66, %p67
      %p70 = scmp.ne.s32.totalorder %s53, %s69
      %p71 = scmp.eq.s32.totalorder %s19, 0
      %p72 = por %p70, %p71
      %s74 = sadd.s32 %s73, 1
      %p77 = scmp.eq.s32.totalorder %s13, 2
      %p78 = scmp.ne.s32.totalorder %s73, %s75
      %p79 = scmp.eq.s32.totalorder %s13, 0
      %p80 = por %p78, %p79
      %p81 = scmp.ne.s32.totalorder %s73, %s75
      %p82 = scmp.eq.s32.totalorder %s18, 2
      %p83 = por %p81, %p82
      %p84 = scmp.ne.s32.totalorder %s75, %s76
      %p85 = scmp.eq.s32.totalorder %s18, 0
      %p86 = por %p84, %p85
      %p87 = scmp.ne.s32.totalorder %s75, %s76
      %p88 = scmp.eq.s32.totalorder %s19, 2
      %p89 = por %p87, %p88
      %p91 = scmp.ne.s32.totalorder %s76, %s90
      %p92 = scmp.eq.s32.totalorder %s19, 0
      %p93 = por %p91, %p92
      %s95 = sadd.s32 %s94, 1
      %p98 = scmp.eq.s32.totalorder %s13, 2
      %p99 = scmp.ne.s32.totalorder %s94, %s96
      %p100 = scmp.eq.s32.totalorder %s13, 0
      %p101 = por %p99, %p100
      %p102 = scmp.ne.s32.totalorder %s94, %s96
      %p103 = scmp.eq.s32.totalorder %s18, 2
      %p104 = por %p102, %p103
      %p105 = scmp.ne.s32.totalorder %s96, %s97
      %p106 = scmp.eq.s32.totalorder %s18, 0
      %p107 = por %p105, %p106
      %p108 = scmp.ne.s32.totalorder %s96, %s97
      %p109 = scmp.eq.s32.totalorder %s19, 2
      %p110 = por %p108, %p109
      %p112 = scmp.ne.s32.totalorder %s97, %s111
      %p113 = scmp.eq.s32.totalorder %s19, 0
      %p114 = por %p112, %p113
      %s116 = sadd.s32 %s115, 1
      %p119 = scmp.eq.s32.totalorder %s13, 2
      %p120 = scmp.ne.s32.totalorder %s115, %s117
      %p121 = scmp.eq.s32.totalorder %s13, 0
      %p122 = por %p120, %p121
      %p123 = scmp.ne.s32.totalorder %s115, %s117
      %p124 = scmp.eq.s32.totalorder %s18, 2
      %p125 = por %p123, %p124
      %p126 = scmp.ne.s32.totalorder %s117, %s118
      %p127 = scmp.eq.s32.totalorder %s18, 0
      %p128 = por %p126, %p127
      %p129 = scmp.ne.s32.totalorder %s117, %s118
      %p130 = scmp.eq.s32.totalorder %s19, 2
      %p131 = por %p129, %p130
      %p133 = scmp.ne.s32.totalorder %s118, %s132
      %p134 = scmp.eq.s32.totalorder %s19, 0
      %p135 = por %p133, %p134
      %s137 = sadd.s32 %s136, 1
      %p140 = scmp.eq.s32.totalorder %s13, 2
      %p141 = scmp.ne.s32.totalorder %s136, %s138
      %p142 = scmp.eq.s32.totalorder %s13, 0
      %p143 = por %p141, %p142
      %p144 = scmp.ne.s32.totalorder %s136, %s138
      %p145 = scmp.eq.s32.totalorder %s18, 2
      %p146 = por %p144, %p145
      %p147 = scmp.ne.s32.totalorder %s138, %s139
      %p148 = scmp.eq.s32.totalorder %s18, 0
      %p149 = por %p147, %p148
      %p150 = scmp.ne.s32.totalorder %s138, %s139
      %p151 = scmp.eq.s32.totalorder %s19, 2
      %p152 = por %p150, %p151
      %p154 = scmp.ne.s32.totalorder %s139, %s153
      %p155 = scmp.eq.s32.totalorder %s19, 0
      %p156 = por %p154, %p155
      %s158 = sadd.s32 %s157, 1
      %p161 = scmp.eq.s32.totalorder %s13, 2
      %p162 = scmp.ne.s32.totalorder %s157, %s159
      %p163 = scmp.eq.s32.totalorder %s13, 0
      %p164 = por %p162, %p163
      %p165 = scmp.ne.s32.totalorder %s157, %s159
      %p166 = scmp.eq.s32.totalorder %s18, 2
      %p167 = por %p165, %p166
      %p168 = scmp.ne.s32.totalorder %s159, %s160
      %p169 = scmp.eq.s32.totalorder %s18, 0
      %p170 = por %p168, %p169
      %p171 = scmp.ne.s32.totalorder %s159, %s160
      %p172 = scmp.eq.s32.totalorder %s19, 2
      %p173 = por %p171, %p172
      %p175 = scmp.ne.s32.totalorder %s160, %s174
      %p176 = scmp.eq.s32.totalorder %s19, 0
      %p177 = por %p175, %p176
      %s179 = sadd.s32 %s178, 1
      %p182 = scmp.eq.s32.totalorder %s13, 2
      %p183 = scmp.ne.s32.totalorder %s178, %s180
      %p184 = scmp.eq.s32.totalorder %s13, 0
      %p185 = por %p183, %p184
      %p186 = scmp.ne.s32.totalorder %s178, %s180
      %p187 = scmp.eq.s32.totalorder %s18, 2
      %p188 = por %p186, %p187
      %p189 = scmp.ne.s32.totalorder %s180, %s181
      %p190 = scmp.eq.s32.totalorder %s18, 0
      %p191 = por %p189, %p190
      %p192 = scmp.ne.s32.totalorder %s180, %s181
      %p193 = scmp.eq.s32.totalorder %s19, 2
      %p194 = por %p192, %p193
      %p196 = scmp.ne.s32.totalorder %s181, %s195
      %p197 = scmp.eq.s32.totalorder %s19, 0
      %p198 = por %p196, %p197
      %p199 = scmp.le.s32.totalorder 1, %s13
      %p200 = scmp.lt.s32.totalorder %s13, 4
      %p201 = pnand %p199, %p200
      %p202 = pneg %p201
      // Predicated region
      $region9: #{interactive_forward.10} parent=5 // pred_check
        _
      $region10: #{interactive_forward.10} parent=5 // pred_check_branch
        %204 = sbr.rel (%p201) target = $region12
      $region11: #{interactive_forward.10} parent=5 // pred_region
        %s205 = ssub.s32 %s13, 1
        // Predicated region
        $region13: #{interactive_forward.10} parent=11 // pred_check
          %p206 = pneg %p86
        $region14: #{interactive_forward.10} parent=11 // pred_check_branch
          %208 = sbr.rel (%p206) target = $region16
        $region15: #{interactive_forward.10} parent=11 // pred_region
          _
        $region16: #{interactive_forward.10} parent=11 // pred_fallthru
          _
        // Predicated region
        $region17: #{interactive_forward.10} parent=11 // pred_check
          %p209 = pneg %p107
        $region18: #{interactive_forward.10} parent=11 // pred_check_branch
          %211 = sbr.rel (%p209) target = $region20
        $region19: #{interactive_forward.10} parent=11 // pred_region
          _
        $region20: #{interactive_forward.10} parent=11 // pred_fallthru
          _
        // Predicated region
        $region21: #{interactive_forward.10} parent=11 // pred_check
          %p212 = pneg %p128
        $region22: #{interactive_forward.10} parent=11 // pred_check_branch
          %214 = sbr.rel (%p212) target = $region24
        $region23: #{interactive_forward.10} parent=11 // pred_region
          _
        $region24: #{interactive_forward.10} parent=11 // pred_fallthru
          _
        // Predicated region
        $region25: #{interactive_forward.10} parent=11 // pred_check
          %p215 = pneg %p149
        $region26: #{interactive_forward.10} parent=11 // pred_check_branch
          %217 = sbr.rel (%p215) target = $region28
        $region27: #{interactive_forward.10} parent=11 // pred_region
          _
        $region28: #{interactive_forward.10} parent=11 // pred_fallthru
          _
        // Predicated region
        $region29: #{interactive_forward.10} parent=11 // pred_check
          %p218 = pneg %p170
        $region30: #{interactive_forward.10} parent=11 // pred_check_branch
          %220 = sbr.rel (%p218) target = $region32
        $region31: #{interactive_forward.10} parent=11 // pred_region
          _
        $region32: #{interactive_forward.10} parent=11 // pred_fallthru
          _
      $region12: #{interactive_forward.10} parent=5 // pred_fallthru
        _
      %p221 = scmp.lt.s32.totalorder %s13, 3
      // Predicated region
      $region33: #{interactive_forward.10} parent=5 // pred_check
        %p222 = pneg %p221
      $region34: #{interactive_forward.10} parent=5 // pred_check_branch
        %224 = sbr.rel (%p222) target = $region36
      $region35: #{interactive_forward.10} parent=5 // pred_region
        // Predicated region
        $region37: #{interactive_forward.10} parent=35 // pred_check
          %p225 = pneg %p33
        $region38: #{interactive_forward.10} parent=35 // pred_check_branch
          %227 = sbr.rel (%p225) target = $region40
        $region39: #{interactive_forward.10} parent=35 // pred_region
          %s228 = sand.u32 %s23, 1
          %s229 = sand.u32 %s23, 1
          %s230 = smul.addr %s229, 64
          %s231 = scalar_lea.vmem [#allocation2], %s230
          %s232 = smul.addr %s13, 4
          %s233 = scalar_lea.vmem %s0, %s232
          // Predicated region
          $region41: #{interactive_forward.10} parent=39 // pred_check
            _
          $region42: #{interactive_forward.10} parent=39 // pred_check_branch
            %235 = sbr.rel (0) target = $region44
          $region43: #{interactive_forward.10} parent=39 // pred_region
            // Predicated region
            $region45: #{interactive_forward.10} parent=43 // pred_check
              _
            $region46: #{interactive_forward.10} parent=43 // pred_check_branch
              %237 = sbr.rel target = $region48
            $region47: #{interactive_forward.10} parent=43 // pred_region
              // Predicated region
              $region60: #{interactive_forward.10} parent=47 // pred_check
                _
              $region61: #{interactive_forward.10} parent=47 // pred_check_branch
                %283 = sbr.rel (0) target = $region63
              $region62: #{interactive_forward.10} parent=47 // pred_region
                loop: start=0, step=1, limit=1
                $region64: #{interactive_forward.10} parent=62 // loop_pre_header
                  _
                $region65: #{interactive_forward.10} parent=62 // loop_header
                  %s285 = sphi 0, %s289
                  %p286 = scmp.ge.s32.totalorder %s285, 1
                  %s290 = sphi %s233, %s233
                  %s291 = sphi %s231, %s231
                $region66: #{interactive_forward.10} parent=62 // loop_header_branch
                  %288 = sbr.rel (%p286) target = $region70
                $region67: #{interactive_forward.10} parent=62 // loop_body
                  _
                $region68: #{interactive_forward.10} parent=62 // loop_footer
                  %s289 = sadd.s32 1, %s285
                $region69: #{interactive_forward.10} parent=62 // loop_footer_branch
                  %284 = sbr.rel target = $region65
                $region70: #{interactive_forward.10} parent=62 // loop_exit
                  _
                %s293 = ssub.s32 16, 1
                loop: start=0, step=1, limit=1
                $region71: #{interactive_forward.10} parent=62 // loop_pre_header
                  _
                $region72: #{interactive_forward.10} parent=62 // loop_header
                  %s295 = sphi 0, %s299
                  %p296 = scmp.ge.s32.totalorder %s295, 1
                  %s300 = sphi %s233, %s233
                  %s301 = sphi %s231, %s231
                $region73: #{interactive_forward.10} parent=62 // loop_header_branch
                  %298 = sbr.rel (%p296) target = $region77
                $region74: #{interactive_forward.10} parent=62 // loop_body
                  %v302 = vld [vmem:[%s300] sm:%s293]
                  %303 = vst [vmem:[%s301] sm:%s293] %v302
                  %v304 = vld [vmem:[%s300 + $0xc] sm:%s293]
                  %305 = vst [vmem:[%s301 + $0x4] sm:%s293] %v304
                  %v306 = vld [vmem:[%s300 + $0x18] sm:%s293]
                  %307 = vst [vmem:[%s301 + $0x8] sm:%s293] %v306
                  %v308 = vld [vmem:[%s300 + $0x24] sm:%s293]
                  %309 = vst [vmem:[%s301 + $0xc] sm:%s293] %v308
                  %v310 = vld [vmem:[%s300 + $0x30] sm:%s293]
                  %311 = vst [vmem:[%s301 + $0x10] sm:%s293] %v310
                  %v312 = vld [vmem:[%s300 + $0x3c] sm:%s293]
                  %313 = vst [vmem:[%s301 + $0x14] sm:%s293] %v312
                  %v314 = vld [vmem:[%s300 + $0x48] sm:%s293]
                  %315 = vst [vmem:[%s301 + $0x18] sm:%s293] %v314
                  %v316 = vld [vmem:[%s300 + $0x54] sm:%s293]
                  %317 = vst [vmem:[%s301 + $0x1c] sm:%s293] %v316
                  %v318 = vld [vmem:[%s300 + $0x60] sm:%s293]
                  %319 = vst [vmem:[%s301 + $0x20] sm:%s293] %v318
                  %v320 = vld [vmem:[%s300 + $0x6c] sm:%s293]
                  %321 = vst [vmem:[%s301 + $0x24] sm:%s293] %v320
                  %v322 = vld [vmem:[%s300 + $0x78] sm:%s293]
                  %323 = vst [vmem:[%s301 + $0x28] sm:%s293] %v322
                  %v324 = vld [vmem:[%s300 + $0x84] sm:%s293]
                  %325 = vst [vmem:[%s301 + $0x2c] sm:%s293] %v324
                  %v326 = vld [vmem:[%s300 + $0x90] sm:%s293]
                  %327 = vst [vmem:[%s301 + $0x30] sm:%s293] %v326
                  %v328 = vld [vmem:[%s300 + $0x9c] sm:%s293]
                  %329 = vst [vmem:[%s301 + $0x34] sm:%s293] %v328
                  %v330 = vld [vmem:[%s300 + $0xa8] sm:%s293]
                  %331 = vst [vmem:[%s301 + $0x38] sm:%s293] %v330
                  %v332 = vld [vmem:[%s300 + $0xb4] sm:%s293]
                  %333 = vst [vmem:[%s301 + $0x3c] sm:%s293] %v332
                $region75: #{interactive_forward.10} parent=62 // loop_footer
                  %s299 = sadd.s32 1, %s295
                $region76: #{interactive_forward.10} parent=62 // loop_footer_branch
                  %294 = sbr.rel target = $region72
                $region77: #{interactive_forward.10} parent=62 // loop_exit
                  _
              $region63: #{interactive_forward.10} parent=47 // pred_fallthru
                _
            $region48: #{interactive_forward.10} parent=43 // pred_fallthru
              _
            // Predicated region
            $region49: #{interactive_forward.10} parent=43 // pred_check
              _
            $region50: #{interactive_forward.10} parent=43 // pred_check_branch
              %239 = sbr.rel (0) target = $region52
            $region51: #{interactive_forward.10} parent=43 // pred_region
              %s241 = ssub.s32 16, 1
              loop: start=0, step=1, limit=1
              $region53: #{interactive_forward.10} parent=51 // loop_pre_header
                _
              $region54: #{interactive_forward.10} parent=51 // loop_header
                %s243 = sphi 0, %s247
                %p244 = scmp.ge.s32.totalorder %s243, 1
                %s248 = sphi %s233, %s233
                %s249 = sphi %s231, %s231
              $region55: #{interactive_forward.10} parent=51 // loop_header_branch
                %246 = sbr.rel (%p244) target = $region59
              $region56: #{interactive_forward.10} parent=51 // loop_body
                %v250 = vld [vmem:[%s248] sm:%s241]
                %251 = vst [vmem:[%s249] sm:%s241] %v250
                %v252 = vld [vmem:[%s248 + $0xc] sm:%s241]
                %253 = vst [vmem:[%s249 + $0x4] sm:%s241] %v252
                %v254 = vld [vmem:[%s248 + $0x18] sm:%s241]
                %255 = vst [vmem:[%s249 + $0x8] sm:%s241] %v254
                %v256 = vld [vmem:[%s248 + $0x24] sm:%s241]
                %257 = vst [vmem:[%s249 + $0xc] sm:%s241] %v256
                %v258 = vld [vmem:[%s248 + $0x30] sm:%s241]
                %259 = vst [vmem:[%s249 + $0x10] sm:%s241] %v258
                %v260 = vld [vmem:[%s248 + $0x3c] sm:%s241]
                %261 = vst [vmem:[%s249 + $0x14] sm:%s241] %v260
                %v262 = vld [vmem:[%s248 + $0x48] sm:%s241]
                %263 = vst [vmem:[%s249 + $0x18] sm:%s241] %v262
                %v264 = vld [vmem:[%s248 + $0x54] sm:%s241]
                %265 = vst [vmem:[%s249 + $0x1c] sm:%s241] %v264
                %v266 = vld [vmem:[%s248 + $0x60] sm:%s241]
                %267 = vst [vmem:[%s249 + $0x20] sm:%s241] %v266
                %v268 = vld [vmem:[%s248 + $0x6c] sm:%s241]
                %269 = vst [vmem:[%s249 + $0x24] sm:%s241] %v268
                %v270 = vld [vmem:[%s248 + $0x78] sm:%s241]
                %271 = vst [vmem:[%s249 + $0x28] sm:%s241] %v270
                %v272 = vld [vmem:[%s248 + $0x84] sm:%s241]
                %273 = vst [vmem:[%s249 + $0x2c] sm:%s241] %v272
                %v274 = vld [vmem:[%s248 + $0x90] sm:%s241]
                %275 = vst [vmem:[%s249 + $0x30] sm:%s241] %v274
                %v276 = vld [vmem:[%s248 + $0x9c] sm:%s241]
                %277 = vst [vmem:[%s249 + $0x34] sm:%s241] %v276
                %v278 = vld [vmem:[%s248 + $0xa8] sm:%s241]
                %279 = vst [vmem:[%s249 + $0x38] sm:%s241] %v278
                %v280 = vld [vmem:[%s248 + $0xb4] sm:%s241]
                %281 = vst [vmem:[%s249 + $0x3c] sm:%s241] %v280
              $region57: #{interactive_forward.10} parent=51 // loop_footer
                %s247 = sadd.s32 1, %s243
              $region58: #{interactive_forward.10} parent=51 // loop_footer_branch
                %242 = sbr.rel target = $region54
              $region59: #{interactive_forward.10} parent=51 // loop_exit
                _
            $region52: #{interactive_forward.10} parent=43 // pred_fallthru
              _
          $region44: #{interactive_forward.10} parent=39 // pred_fallthru
            _
          %334 = vnop
        $region40: #{interactive_forward.10} parent=35 // pred_fallthru
          _
        // Predicated region
        $region78: #{interactive_forward.10} parent=35 // pred_check
          %p335 = pneg %p59
        $region79: #{interactive_forward.10} parent=35 // pred_check_branch
          %337 = sbr.rel (%p335) target = $region81
        $region80: #{interactive_forward.10} parent=35 // pred_region
          %s338 = smul.u32 16, %s13
          %p339 = scmp.lt.s32.totalorder %s338, 47
          %s340 = scalar_select %p339, %s338, 47
          %s341 = smul.addr %s340, 4
          %s342 = smul.addr %s341, 8
          %s343 = scalar_lea.vmem %s1, %s342
          %s344 = smul.u32 16, %s13
        $region81: #{interactive_forward.10} parent=35 // pred_fallthru
          _
      $region36: #{interactive_forward.10} parent=5 // pred_fallthru
        _
      %p345 = scmp.le.s32.totalorder 1, %s13
      %p346 = scmp.lt.s32.totalorder %s13, 4
      %p347 = pnand %p345, %p346
      %p348 = pneg %p347
      // Predicated region
      $region82: #{interactive_forward.10} parent=5 // pred_check
        _
      $region83: #{interactive_forward.10} parent=5 // pred_check_branch
        %350 = sbr.rel (%p347) target = $region85
      $region84: #{interactive_forward.10} parent=5 // pred_region
        %s351 = ssub.s32 %s13, 1
        %s352 = sand.u32 %s26, 1
        %s353 = sand.u32 %s26, 1
        %s354 = smul.addr %s353, 64
        %s355 = scalar_lea.vmem [#allocation2], %s354
        // Predicated region
        $region86: #{interactive_forward.10} parent=84 // pred_check
          %p356 = pneg %p39
        $region87: #{interactive_forward.10} parent=84 // pred_check_branch
          %358 = sbr.rel (%p356) target = $region89
        $region88: #{interactive_forward.10} parent=84 // pred_region
          _
        $region89: #{interactive_forward.10} parent=84 // pred_fallthru
          _
        %s359 = sand.u32 %s26, 1
        %s360 = sand.u32 %s26, 1
        %s361 = smul.addr %s360, 64
        %s362 = scalar_lea.vmem [#allocation2], %s361
        %p363 = pneg %p39
        %p364 = pneg %p36
        %s365 = smul.u32 16, %s18
        %p366 = scmp.lt.s32.totalorder %s365, 47
        %s367 = scalar_select %p366, %s365, 47
        %s368 = smul.addr %s367, 4
        %s369 = smul.addr %s368, 8
        %s370 = scalar_lea.vmem %s1, %s369
        %p371 = pneg %p65
        %p372 = pneg %p62
        %p373 = pneg %p86
        %p374 = pneg %p83
        %p375 = pneg %p107
        %p376 = pneg %p104
        %p377 = pneg %p128
        %p378 = pneg %p125
        %p379 = pneg %p149
        %p380 = pneg %p146
        %p381 = pneg %p170
        %p382 = pneg %p167
        %p383 = pneg %p191
        %p384 = pneg %p188
        %s385 = smul.u32 16, %s18
        %p386 = scmp.lt.s32.totalorder %s385, 47
        %s387 = scalar_select %p386, %s385, 47
        %s388 = smul.addr %s387, 4
        %s389 = smul.addr %s388, 8
        %s390 = scalar_lea.vmem %s1, %s389
        %s391 = smul.u32 16, %s18
        %p392 = scmp.eq.s32.totalorder %s18, 0
        // Predicated region
        $region90: #{interactive_forward.10} parent=84 // pred_check
          %p393 = pneg %p392
        $region91: #{interactive_forward.10} parent=84 // pred_check_branch
          %395 = sbr.rel (%p393) target = $region93
        $region92: #{interactive_forward.10} parent=84 // pred_region
          %396 = vst [vmem:[%s7] sm:$0xff] 0.0
          %397 = vst [vmem:[%s7 + $0x8] sm:$0xff] 0.0
          %398 = vst [vmem:[%s7 + $0x10] sm:$0xff] 0.0
          %399 = vst [vmem:[%s7 + $0x18] sm:$0xff] 0.0
          %400 = vst [vmem:[%s7 + $0x20] sm:$0xff] 0.0
          %401 = vst [vmem:[%s7 + $0x28] sm:$0xff] 0.0
          %402 = vst [vmem:[%s7 + $0x30] sm:$0xff] 0.0
          %403 = vst [vmem:[%s7 + $0x38] sm:$0xff] 0.0
          %404 = vst [vmem:[%s7 + $0x40] sm:$0xff] 0.0
          %405 = vst [vmem:[%s7 + $0x48] sm:$0xff] 0.0
          %406 = vst [vmem:[%s7 + $0x50] sm:$0xff] 0.0
          %407 = vst [vmem:[%s7 + $0x58] sm:$0xff] 0.0
          %408 = vst [vmem:[%s7 + $0x60] sm:$0xff] 0.0
          %409 = vst [vmem:[%s7 + $0x68] sm:$0xff] 0.0
          %410 = vst [vmem:[%s7 + $0x70] sm:$0xff] 0.0
          %411 = vst [vmem:[%s7 + $0x78] sm:$0xff] 0.0
        $region93: #{interactive_forward.10} parent=84 // pred_fallthru
          _
        %v412 = vld [vmem:[%s2] sm:$0xf]
        %v413 = vmul.f32 %v412, 0.0033333334
        %v414 = vld [vmem:[%s3] sm:$0xf]
        %v415 = vmul.f32 %v414, 0.0033333334
        %v416 = vmul.f32 %v413, %v413
        %v417 = vsub.f32 %v415, %v416
        %v418 = vld [vmem:[%s390] sm:$0xff]
        %v419 = vld [vmem:[%s390 + $0x8] sm:$0xff]
        %v420 = vld [vmem:[%s390 + $0x10] sm:$0xff]
        %v421 = vld [vmem:[%s390 + $0x18] sm:$0xff]
        %v422 = vld [vmem:[%s390 + $0x20] sm:$0xff]
        %v423 = vld [vmem:[%s390 + $0x28] sm:$0xff]
        %v424 = vld [vmem:[%s390 + $0x30] sm:$0xff]
        %v425 = vld [vmem:[%s390 + $0x38] sm:$0xff]
        %v426 = vld [vmem:[%s390 + $0x40] sm:$0xff]
        %v427 = vld [vmem:[%s390 + $0x48] sm:$0xff]
        %v428 = vld [vmem:[%s390 + $0x50] sm:$0xff]
        %v429 = vld [vmem:[%s390 + $0x58] sm:$0xff]
        %v430 = vld [vmem:[%s390 + $0x60] sm:$0xff]
        %v431 = vld [vmem:[%s390 + $0x68] sm:$0xff]
        %v432 = vld [vmem:[%s390 + $0x70] sm:$0xff]
        %v433 = vld [vmem:[%s390 + $0x78] sm:$0xff]
        %v434 = vld [vmem:[%s390 + $0x80] sm:$0xff]
        %v435 = vld [vmem:[%s390 + $0x88] sm:$0xff]
        %v436 = vld [vmem:[%s390 + $0x90] sm:$0xff]
        %v437 = vld [vmem:[%s390 + $0x98] sm:$0xff]
        %v438 = vld [vmem:[%s390 + $0xa0] sm:$0xff]
        %v439 = vld [vmem:[%s390 + $0xa8] sm:$0xff]
        %v440 = vld [vmem:[%s390 + $0xb0] sm:$0xff]
        %v441 = vld [vmem:[%s390 + $0xb8] sm:$0xff]
        %v442 = vld [vmem:[%s390 + $0xc0] sm:$0xff]
        %v443 = vld [vmem:[%s390 + $0xc8] sm:$0xff]
        %v444 = vld [vmem:[%s390 + $0xd0] sm:$0xff]
        %v445 = vld [vmem:[%s390 + $0xd8] sm:$0xff]
        %v446 = vld [vmem:[%s390 + $0xe0] sm:$0xff]
        %v447 = vld [vmem:[%s390 + $0xe8] sm:$0xff]
        %v448 = vld [vmem:[%s390 + $0xf0] sm:$0xff]
        %v449 = vld [vmem:[%s390 + $0xf8] sm:$0xff]
        %v450 = vld [vmem:[%s390 + $0x100] sm:$0xff]
        %v451 = vld [vmem:[%s390 + $0x108] sm:$0xff]
        %v452 = vld [vmem:[%s390 + $0x110] sm:$0xff]
        %v453 = vld [vmem:[%s390 + $0x118] sm:$0xff]
        %v454 = vld [vmem:[%s390 + $0x120] sm:$0xff]
        %v455 = vld [vmem:[%s390 + $0x128] sm:$0xff]
        %v456 = vld [vmem:[%s390 + $0x130] sm:$0xff]
        %v457 = vld [vmem:[%s390 + $0x138] sm:$0xff]
        %v458 = vld [vmem:[%s390 + $0x140] sm:$0xff]
        %v459 = vld [vmem:[%s390 + $0x148] sm:$0xff]
        %v460 = vld [vmem:[%s390 + $0x150] sm:$0xff]
        %v461 = vld [vmem:[%s390 + $0x158] sm:$0xff]
        %v462 = vld [vmem:[%s390 + $0x160] sm:$0xff]
        %v463 = vld [vmem:[%s390 + $0x168] sm:$0xff]
        %v464 = vld [vmem:[%s390 + $0x170] sm:$0xff]
        %v465 = vld [vmem:[%s390 + $0x178] sm:$0xff]
        %v466 = vld [vmem:[%s390 + $0x180] sm:$0xff]
        %v467 = vld [vmem:[%s390 + $0x188] sm:$0xff]
        %v468 = vld [vmem:[%s390 + $0x190] sm:$0xff]
        %v469 = vld [vmem:[%s390 + $0x198] sm:$0xff]
        %v470 = vld [vmem:[%s390 + $0x1a0] sm:$0xff]
        %v471 = vld [vmem:[%s390 + $0x1a8] sm:$0xff]
        %v472 = vld [vmem:[%s390 + $0x1b0] sm:$0xff]
        %v473 = vld [vmem:[%s390 + $0x1b8] sm:$0xff]
        %v474 = vld [vmem:[%s390 + $0x1c0] sm:$0xff]
        %v475 = vld [vmem:[%s390 + $0x1c8] sm:$0xff]
        %v476 = vld [vmem:[%s390 + $0x1d0] sm:$0xff]
        %v477 = vld [vmem:[%s390 + $0x1d8] sm:$0xff]
        %v478 = vld [vmem:[%s390 + $0x1e0] sm:$0xff]
        %v479 = vld [vmem:[%s390 + $0x1e8] sm:$0xff]
        %v480 = vld [vmem:[%s390 + $0x1f0] sm:$0xff]
        %v481 = vld [vmem:[%s390 + $0x1f8] sm:$0xff]
        %v483 = vperm.slane %v413, 0
        %v484 = vperm.slane %v413, 1
        %v485 = vperm.slane %v413, 2
        %v486 = vperm.slane %v413, 3
        %v491 = vsub.f32 %v418, %v483
        %v492 = vsub.f32 %v419, %v484
        %v493 = vsub.f32 %v420, %v485
        %v494 = vsub.f32 %v421, %v486
        %v495 = vsub.f32 %v422, %v483
        %v496 = vsub.f32 %v423, %v484
        %v497 = vsub.f32 %v424, %v485
        %v498 = vsub.f32 %v425, %v486
        %v499 = vsub.f32 %v426, %v483
        %v500 = vsub.f32 %v427, %v484
        %v501 = vsub.f32 %v428, %v485
        %v502 = vsub.f32 %v429, %v486
        %v503 = vsub.f32 %v430, %v483
        %v504 = vsub.f32 %v431, %v484
        %v505 = vsub.f32 %v432, %v485
        %v506 = vsub.f32 %v433, %v486
        %v507 = vsub.f32 %v434, %v483
        %v508 = vsub.f32 %v435, %v484
        %v509 = vsub.f32 %v436, %v485
        %v510 = vsub.f32 %v437, %v486
        %v511 = vsub.f32 %v438, %v483
        %v512 = vsub.f32 %v439, %v484
        %v513 = vsub.f32 %v440, %v485
        %v514 = vsub.f32 %v441, %v486
        %v515 = vsub.f32 %v442, %v483
        %v516 = vsub.f32 %v443, %v484
        %v517 = vsub.f32 %v444, %v485
        %v518 = vsub.f32 %v445, %v486
        %v519 = vsub.f32 %v446, %v483
        %v520 = vsub.f32 %v447, %v484
        %v521 = vsub.f32 %v448, %v485
        %v522 = vsub.f32 %v449, %v486
        %v523 = vsub.f32 %v450, %v483
        %v524 = vsub.f32 %v451, %v484
        %v525 = vsub.f32 %v452, %v485
        %v526 = vsub.f32 %v453, %v486
        %v527 = vsub.f32 %v454, %v483
        %v528 = vsub.f32 %v455, %v484
        %v529 = vsub.f32 %v456, %v485
        %v530 = vsub.f32 %v457, %v486
        %v531 = vsub.f32 %v458, %v483
        %v532 = vsub.f32 %v459, %v484
        %v533 = vsub.f32 %v460, %v485
        %v534 = vsub.f32 %v461, %v486
        %v535 = vsub.f32 %v462, %v483
        %v536 = vsub.f32 %v463, %v484
        %v537 = vsub.f32 %v464, %v485
        %v538 = vsub.f32 %v465, %v486
        %v539 = vsub.f32 %v466, %v483
        %v540 = vsub.f32 %v467, %v484
        %v541 = vsub.f32 %v468, %v485
        %v542 = vsub.f32 %v469, %v486
        %v543 = vsub.f32 %v470, %v483
        %v544 = vsub.f32 %v471, %v484
        %v545 = vsub.f32 %v472, %v485
        %v546 = vsub.f32 %v473, %v486
        %v547 = vsub.f32 %v474, %v483
        %v548 = vsub.f32 %v475, %v484
        %v549 = vsub.f32 %v476, %v485
        %v550 = vsub.f32 %v477, %v486
        %v551 = vsub.f32 %v478, %v483
        %v552 = vsub.f32 %v479, %v484
        %v553 = vsub.f32 %v480, %v485
        %v554 = vsub.f32 %v481, %v486
        %v555 = vadd.f32 %v417, 1e-05
        %v556 = vrsqrt.pop %v555
        %v557 = vmul.f32 %v556, %v555
        %v558 = vmul.f32 %v557, %v556
        %v559 = vmul.f32 0.5, %v558
        %v560 = vsub.f32 1.5, %v559
        %v561 = vmul.f32 %v556, %v560
        %vm562 = vweird.f32 %v555
        %vm563 = vweird.f32 %v556
        %vm564 = vmor %vm562, %vm563
        %v565 = vsel %vm564, %v556, %v561
        %v567 = vperm.slane %v565, 0
        %v568 = vperm.slane %v565, 1
        %v569 = vperm.slane %v565, 2
        %v570 = vperm.slane %v565, 3
        %v575 = vmul.f32 %v491, %v567
        %v576 = vmul.f32 %v492, %v568
        %v577 = vmul.f32 %v493, %v569
        %v578 = vmul.f32 %v494, %v570
        %v579 = vmul.f32 %v495, %v567
        %v580 = vmul.f32 %v496, %v568
        %v581 = vmul.f32 %v497, %v569
        %v582 = vmul.f32 %v498, %v570
        %v583 = vmul.f32 %v499, %v567
        %v584 = vmul.f32 %v500, %v568
        %v585 = vmul.f32 %v501, %v569
        %v586 = vmul.f32 %v502, %v570
        %v587 = vmul.f32 %v503, %v567
        %v588 = vmul.f32 %v504, %v568
        %v589 = vmul.f32 %v505, %v569
        %v590 = vmul.f32 %v506, %v570
        %v591 = vmul.f32 %v507, %v567
        %v592 = vmul.f32 %v508, %v568
        %v593 = vmul.f32 %v509, %v569
        %v594 = vmul.f32 %v510, %v570
        %v595 = vmul.f32 %v511, %v567
        %v596 = vmul.f32 %v512, %v568
        %v597 = vmul.f32 %v513, %v569
        %v598 = vmul.f32 %v514, %v570
        %v599 = vmul.f32 %v515, %v567
        %v600 = vmul.f32 %v516, %v568
        %v601 = vmul.f32 %v517, %v569
        %v602 = vmul.f32 %v518, %v570
        %v603 = vmul.f32 %v519, %v567
        %v604 = vmul.f32 %v520, %v568
        %v605 = vmul.f32 %v521, %v569
        %v606 = vmul.f32 %v522, %v570
        %v607 = vmul.f32 %v523, %v567
        %v608 = vmul.f32 %v524, %v568
        %v609 = vmul.f32 %v525, %v569
        %v610 = vmul.f32 %v526, %v570
        %v611 = vmul.f32 %v527, %v567
        %v612 = vmul.f32 %v528, %v568
        %v613 = vmul.f32 %v529, %v569
        %v614 = vmul.f32 %v530, %v570
        %v615 = vmul.f32 %v531, %v567
        %v616 = vmul.f32 %v532, %v568
        %v617 = vmul.f32 %v533, %v569
        %v618 = vmul.f32 %v534, %v570
        %v619 = vmul.f32 %v535, %v567
        %v620 = vmul.f32 %v536, %v568
        %v621 = vmul.f32 %v537, %v569
        %v622 = vmul.f32 %v538, %v570
        %v623 = vmul.f32 %v539, %v567
        %v624 = vmul.f32 %v540, %v568
        %v625 = vmul.f32 %v541, %v569
        %v626 = vmul.f32 %v542, %v570
        %v627 = vmul.f32 %v543, %v567
        %v628 = vmul.f32 %v544, %v568
        %v629 = vmul.f32 %v545, %v569
        %v630 = vmul.f32 %v546, %v570
        %v631 = vmul.f32 %v547, %v567
        %v632 = vmul.f32 %v548, %v568
        %v633 = vmul.f32 %v549, %v569
        %v634 = vmul.f32 %v550, %v570
        %v635 = vmul.f32 %v551, %v567
        %v636 = vmul.f32 %v552, %v568
        %v637 = vmul.f32 %v553, %v569
        %v638 = vmul.f32 %v554, %v570
        %v639 = vld [vmem:[%s4] sm:$0xf]
        %v641 = vperm.slane %v639, 0
        %v642 = vperm.slane %v639, 1
        %v643 = vperm.slane %v639, 2
        %v644 = vperm.slane %v639, 3
        %v649 = vmul.f32 %v575, %v641
        %v650 = vmul.f32 %v576, %v642
        %v651 = vmul.f32 %v577, %v643
        %v652 = vmul.f32 %v578, %v644
        %v653 = vmul.f32 %v579, %v641
        %v654 = vmul.f32 %v580, %v642
        %v655 = vmul.f32 %v581, %v643
        %v656 = vmul.f32 %v582, %v644
        %v657 = vmul.f32 %v583, %v641
        %v658 = vmul.f32 %v584, %v642
        %v659 = vmul.f32 %v585, %v643
        %v660 = vmul.f32 %v586, %v644
        %v661 = vmul.f32 %v587, %v641
        %v662 = vmul.f32 %v588, %v642
        %v663 = vmul.f32 %v589, %v643
        %v664 = vmul.f32 %v590, %v644
        %v665 = vmul.f32 %v591, %v641
        %v666 = vmul.f32 %v592, %v642
        %v667 = vmul.f32 %v593, %v643
        %v668 = vmul.f32 %v594, %v644
        %v669 = vmul.f32 %v595, %v641
        %v670 = vmul.f32 %v596, %v642
        %v671 = vmul.f32 %v597, %v643
        %v672 = vmul.f32 %v598, %v644
        %v673 = vmul.f32 %v599, %v641
        %v674 = vmul.f32 %v600, %v642
        %v675 = vmul.f32 %v601, %v643
        %v676 = vmul.f32 %v602, %v644
        %v677 = vmul.f32 %v603, %v641
        %v678 = vmul.f32 %v604, %v642
        %v679 = vmul.f32 %v605, %v643
        %v680 = vmul.f32 %v606, %v644
        %v681 = vmul.f32 %v607, %v641
        %v682 = vmul.f32 %v608, %v642
        %v683 = vmul.f32 %v609, %v643
        %v684 = vmul.f32 %v610, %v644
        %v685 = vmul.f32 %v611, %v641
        %v686 = vmul.f32 %v612, %v642
        %v687 = vmul.f32 %v613, %v643
        %v688 = vmul.f32 %v614, %v644
        %v689 = vmul.f32 %v615, %v641
        %v690 = vmul.f32 %v616, %v642
        %v691 = vmul.f32 %v617, %v643
        %v692 = vmul.f32 %v618, %v644
        %v693 = vmul.f32 %v619, %v641
        %v694 = vmul.f32 %v620, %v642
        %v695 = vmul.f32 %v621, %v643
        %v696 = vmul.f32 %v622, %v644
        %v697 = vmul.f32 %v623, %v641
        %v698 = vmul.f32 %v624, %v642
        %v699 = vmul.f32 %v625, %v643
        %v700 = vmul.f32 %v626, %v644
        %v701 = vmul.f32 %v627, %v641
        %v702 = vmul.f32 %v628, %v642
        %v703 = vmul.f32 %v629, %v643
        %v704 = vmul.f32 %v630, %v644
        %v705 = vmul.f32 %v631, %v641
        %v706 = vmul.f32 %v632, %v642
        %v707 = vmul.f32 %v633, %v643
        %v708 = vmul.f32 %v634, %v644
        %v709 = vmul.f32 %v635, %v641
        %v710 = vmul.f32 %v636, %v642
        %v711 = vmul.f32 %v637, %v643
        %v712 = vmul.f32 %v638, %v644
        %v713 = vld [vmem:[%s5] sm:$0xf]
        %v715 = vperm.slane %v713, 0
        %v716 = vperm.slane %v713, 1
        %v717 = vperm.slane %v713, 2
        %v718 = vperm.slane %v713, 3
        %v723 = vadd.f32 %v649, %v715
        %v724 = vadd.f32 %v650, %v716
        %v725 = vadd.f32 %v651, %v717
        %v726 = vadd.f32 %v652, %v718
        %v727 = vadd.f32 %v653, %v715
        %v728 = vadd.f32 %v654, %v716
        %v729 = vadd.f32 %v655, %v717
        %v730 = vadd.f32 %v656, %v718
        %v731 = vadd.f32 %v657, %v715
        %v732 = vadd.f32 %v658, %v716
        %v733 = vadd.f32 %v659, %v717
        %v734 = vadd.f32 %v660, %v718
        %v735 = vadd.f32 %v661, %v715
        %v736 = vadd.f32 %v662, %v716
        %v737 = vadd.f32 %v663, %v717
        %v738 = vadd.f32 %v664, %v718
        %v739 = vadd.f32 %v665, %v715
        %v740 = vadd.f32 %v666, %v716
        %v741 = vadd.f32 %v667, %v717
        %v742 = vadd.f32 %v668, %v718
        %v743 = vadd.f32 %v669, %v715
        %v744 = vadd.f32 %v670, %v716
        %v745 = vadd.f32 %v671, %v717
        %v746 = vadd.f32 %v672, %v718
        %v747 = vadd.f32 %v673, %v715
        %v748 = vadd.f32 %v674, %v716
        %v749 = vadd.f32 %v675, %v717
        %v750 = vadd.f32 %v676, %v718
        %v751 = vadd.f32 %v677, %v715
        %v752 = vadd.f32 %v678, %v716
        %v753 = vadd.f32 %v679, %v717
        %v754 = vadd.f32 %v680, %v718
        %v755 = vadd.f32 %v681, %v715
        %v756 = vadd.f32 %v682, %v716
        %v757 = vadd.f32 %v683, %v717
        %v758 = vadd.f32 %v684, %v718
        %v759 = vadd.f32 %v685, %v715
        %v760 = vadd.f32 %v686, %v716
        %v761 = vadd.f32 %v687, %v717
        %v762 = vadd.f32 %v688, %v718
        %v763 = vadd.f32 %v689, %v715
        %v764 = vadd.f32 %v690, %v716
        %v765 = vadd.f32 %v691, %v717
        %v766 = vadd.f32 %v692, %v718
        %v767 = vadd.f32 %v693, %v715
        %v768 = vadd.f32 %v694, %v716
        %v769 = vadd.f32 %v695, %v717
        %v770 = vadd.f32 %v696, %v718
        %v771 = vadd.f32 %v697, %v715
        %v772 = vadd.f32 %v698, %v716
        %v773 = vadd.f32 %v699, %v717
        %v774 = vadd.f32 %v700, %v718
        %v775 = vadd.f32 %v701, %v715
        %v776 = vadd.f32 %v702, %v716
        %v777 = vadd.f32 %v703, %v717
        %v778 = vadd.f32 %v704, %v718
        %v779 = vadd.f32 %v705, %v715
        %v780 = vadd.f32 %v706, %v716
        %v781 = vadd.f32 %v707, %v717
        %v782 = vadd.f32 %v708, %v718
        %v783 = vadd.f32 %v709, %v715
        %v784 = vadd.f32 %v710, %v716
        %v785 = vadd.f32 %v711, %v717
        %v786 = vadd.f32 %v712, %v718
        %v787 = vpack.c.bf16 %v727, %v723
        %v788 = vpack.c.bf16 %v728, %v724
        %v789 = vpack.c.bf16 %v729, %v725
        %v790 = vpack.c.bf16 %v730, %v726
        %v791 = vpack.c.bf16 %v735, %v731
        %v792 = vpack.c.bf16 %v736, %v732
        %v793 = vpack.c.bf16 %v737, %v733
        %v794 = vpack.c.bf16 %v738, %v734
        %v795 = vpack.c.bf16 %v743, %v739
        %v796 = vpack.c.bf16 %v744, %v740
        %v797 = vpack.c.bf16 %v745, %v741
        %v798 = vpack.c.bf16 %v746, %v742
        %v799 = vpack.c.bf16 %v751, %v747
        %v800 = vpack.c.bf16 %v752, %v748
        %v801 = vpack.c.bf16 %v753, %v749
        %v802 = vpack.c.bf16 %v754, %v750
        %v803 = vpack.c.bf16 %v759, %v755
        %v804 = vpack.c.bf16 %v760, %v756
        %v805 = vpack.c.bf16 %v761, %v757
        %v806 = vpack.c.bf16 %v762, %v758
        %v807 = vpack.c.bf16 %v767, %v763
        %v808 = vpack.c.bf16 %v768, %v764
        %v809 = vpack.c.bf16 %v769, %v765
        %v810 = vpack.c.bf16 %v770, %v766
        %v811 = vpack.c.bf16 %v775, %v771
        %v812 = vpack.c.bf16 %v776, %v772
        %v813 = vpack.c.bf16 %v777, %v773
        %v814 = vpack.c.bf16 %v778, %v774
        %v815 = vpack.c.bf16 %v783, %v779
        %v816 = vpack.c.bf16 %v784, %v780
        %v817 = vpack.c.bf16 %v785, %v781
        %v818 = vpack.c.bf16 %v786, %v782
        %v819 = vld [vmem:[%s6] sm:$0xf]
        %v820 = vld [vmem:[%s6 + $0x4] sm:$0xf]
        %v821 = vld [vmem:[%s6 + $0x8] sm:$0xf]
        %v822 = vld [vmem:[%s6 + $0xc] sm:$0xf]
        %v823 = vld [vmem:[%s6 + $0x10] sm:$0xf]
        %v824 = vld [vmem:[%s6 + $0x14] sm:$0xf]
        %v825 = vld [vmem:[%s6 + $0x18] sm:$0xf]
        %v826 = vld [vmem:[%s6 + $0x1c] sm:$0xf]
        %v827 = vld [vmem:[%s6 + $0x20] sm:$0xf]
        %v828 = vld [vmem:[%s6 + $0x24] sm:$0xf]
        %v829 = vld [vmem:[%s6 + $0x28] sm:$0xf]
        %v830 = vld [vmem:[%s6 + $0x2c] sm:$0xf]
        %v831 = vld [vmem:[%s6 + $0x30] sm:$0xf]
        %v832 = vld [vmem:[%s6 + $0x34] sm:$0xf]
        %v833 = vld [vmem:[%s6 + $0x38] sm:$0xf]
        %v834 = vld [vmem:[%s6 + $0x3c] sm:$0xf]
        %v835 = vld [vmem:[%s6 + $0x40] sm:$0xf]
        %v836 = vld [vmem:[%s6 + $0x44] sm:$0xf]
        %v837 = vld [vmem:[%s6 + $0x48] sm:$0xf]
        %v838 = vld [vmem:[%s6 + $0x4c] sm:$0xf]
        %v839 = vld [vmem:[%s6 + $0x50] sm:$0xf]
        %v840 = vld [vmem:[%s6 + $0x54] sm:$0xf]
        %v841 = vld [vmem:[%s6 + $0x58] sm:$0xf]
        %v842 = vld [vmem:[%s6 + $0x5c] sm:$0xf]
        %v843 = vld [vmem:[%s6 + $0x60] sm:$0xf]
        %v844 = vld [vmem:[%s6 + $0x64] sm:$0xf]
        %v845 = vld [vmem:[%s6 + $0x68] sm:$0xf]
        %v846 = vld [vmem:[%s6 + $0x6c] sm:$0xf]
        %v847 = vld [vmem:[%s6 + $0x70] sm:$0xf]
        %v848 = vld [vmem:[%s6 + $0x74] sm:$0xf]
        %v849 = vld [vmem:[%s6 + $0x78] sm:$0xf]
        %v850 = vld [vmem:[%s6 + $0x7c] sm:$0xf]
        %v851 = vld [vmem:[%s6 + $0x80] sm:$0xf]
        %v852 = vld [vmem:[%s6 + $0x84] sm:$0xf]
        %v853 = vld [vmem:[%s6 + $0x88] sm:$0xf]
        %v854 = vld [vmem:[%s6 + $0x8c] sm:$0xf]
        %v855 = vld [vmem:[%s6 + $0x90] sm:$0xf]
        %v856 = vld [vmem:[%s6 + $0x94] sm:$0xf]
        %v857 = vld [vmem:[%s6 + $0x98] sm:$0xf]
        %v858 = vld [vmem:[%s6 + $0x9c] sm:$0xf]
        %v859 = vld [vmem:[%s6 + $0xa0] sm:$0xf]
        %v860 = vld [vmem:[%s6 + $0xa4] sm:$0xf]
        %v861 = vld [vmem:[%s6 + $0xa8] sm:$0xf]
        %v862 = vld [vmem:[%s6 + $0xac] sm:$0xf]
        %v863 = vld [vmem:[%s6 + $0xb0] sm:$0xf]
        %v864 = vld [vmem:[%s6 + $0xb4] sm:$0xf]
        %v865 = vld [vmem:[%s6 + $0xb8] sm:$0xf]
        %v866 = vld [vmem:[%s6 + $0xbc] sm:$0xf]
        %v867 = vld [vmem:[%s6 + $0xc0] sm:$0xf]
        %v868 = vld [vmem:[%s6 + $0xc4] sm:$0xf]
        %v869 = vld [vmem:[%s6 + $0xc8] sm:$0xf]
        %v870 = vld [vmem:[%s6 + $0xcc] sm:$0xf]
        %v871 = vld [vmem:[%s6 + $0xd0] sm:$0xf]
        %v872 = vld [vmem:[%s6 + $0xd4] sm:$0xf]
        %v873 = vld [vmem:[%s6 + $0xd8] sm:$0xf]
        %v874 = vld [vmem:[%s6 + $0xdc] sm:$0xf]
        %v875 = vld [vmem:[%s6 + $0xe0] sm:$0xf]
        %v876 = vld [vmem:[%s6 + $0xe4] sm:$0xf]
        %v877 = vld [vmem:[%s6 + $0xe8] sm:$0xf]
        %v878 = vld [vmem:[%s6 + $0xec] sm:$0xf]
        %v879 = vld [vmem:[%s6 + $0xf0] sm:$0xf]
        %v880 = vld [vmem:[%s6 + $0xf4] sm:$0xf]
        %v881 = vld [vmem:[%s6 + $0xf8] sm:$0xf]
        %v882 = vld [vmem:[%s6 + $0xfc] sm:$0xf]
        %v947 = vunpack.c.l.b16 %v819
        %v948 = vunpack.c.l.b16 %v820
        %v949 = vunpack.c.l.b16 %v821
        %v950 = vunpack.c.l.b16 %v822
        %v951 = vunpack.c.l.b16 %v823
        %v952 = vunpack.c.l.b16 %v824
        %v953 = vunpack.c.l.b16 %v825
        %v954 = vunpack.c.l.b16 %v826
        %v955 = vunpack.c.l.b16 %v827
        %v956 = vunpack.c.l.b16 %v828
        %v957 = vunpack.c.l.b16 %v829
        %v958 = vunpack.c.l.b16 %v830
        %v959 = vunpack.c.l.b16 %v831
        %v960 = vunpack.c.l.b16 %v832
        %v961 = vunpack.c.l.b16 %v833
        %v962 = vunpack.c.l.b16 %v834
        %v963 = vunpack.c.l.b16 %v835
        %v964 = vunpack.c.l.b16 %v836
        %v965 = vunpack.c.l.b16 %v837
        %v966 = vunpack.c.l.b16 %v838
        %v967 = vunpack.c.l.b16 %v839
        %v968 = vunpack.c.l.b16 %v840
        %v969 = vunpack.c.l.b16 %v841
        %v970 = vunpack.c.l.b16 %v842
        %v971 = vunpack.c.l.b16 %v843
        %v972 = vunpack.c.l.b16 %v844
        %v973 = vunpack.c.l.b16 %v845
        %v974 = vunpack.c.l.b16 %v846
        %v975 = vunpack.c.l.b16 %v847
        %v976 = vunpack.c.l.b16 %v848
        %v977 = vunpack.c.l.b16 %v849
        %v978 = vunpack.c.l.b16 %v850
        %v979 = vunpack.c.l.b16 %v851
        %v980 = vunpack.c.l.b16 %v852
        %v981 = vunpack.c.l.b16 %v853
        %v982 = vunpack.c.l.b16 %v854
        %v983 = vunpack.c.l.b16 %v855
        %v984 = vunpack.c.l.b16 %v856
        %v985 = vunpack.c.l.b16 %v857
        %v986 = vunpack.c.l.b16 %v858
        %v987 = vunpack.c.l.b16 %v859
        %v988 = vunpack.c.l.b16 %v860
        %v989 = vunpack.c.l.b16 %v861
        %v990 = vunpack.c.l.b16 %v862
        %v991 = vunpack.c.l.b16 %v863
        %v992 = vunpack.c.l.b16 %v864
        %v993 = vunpack.c.l.b16 %v865
        %v994 = vunpack.c.l.b16 %v866
        %v995 = vunpack.c.l.b16 %v867
        %v996 = vunpack.c.l.b16 %v868
        %v997 = vunpack.c.l.b16 %v869
        %v998 = vunpack.c.l.b16 %v870
        %v999 = vunpack.c.l.b16 %v871
        %v1000 = vunpack.c.l.b16 %v872
        %v1001 = vunpack.c.l.b16 %v873
        %v1002 = vunpack.c.l.b16 %v874
        %v1003 = vunpack.c.l.b16 %v875
        %v1004 = vunpack.c.l.b16 %v876
        %v1005 = vunpack.c.l.b16 %v877
        %v1006 = vunpack.c.l.b16 %v878
        %v1007 = vunpack.c.l.b16 %v879
        %v1008 = vunpack.c.l.b16 %v880
        %v1009 = vunpack.c.l.b16 %v881
        %v1010 = vunpack.c.l.b16 %v882
        %v1011 = vpack.c.b16 %v948, %v947
        %v1012 = vpack.c.b16 %v950, %v949
        %v1013 = vpack.c.b16 %v952, %v951
        %v1014 = vpack.c.b16 %v954, %v953
        %v1015 = vpack.c.b16 %v956, %v955
        %v1016 = vpack.c.b16 %v958, %v957
        %v1017 = vpack.c.b16 %v960, %v959
        %v1018 = vpack.c.b16 %v962, %v961
        %v1019 = vpack.c.b16 %v964, %v963
        %v1020 = vpack.c.b16 %v966, %v965
        %v1021 = vpack.c.b16 %v968, %v967
        %v1022 = vpack.c.b16 %v970, %v969
        %v1023 = vpack.c.b16 %v972, %v971
        %v1024 = vpack.c.b16 %v974, %v973
        %v1025 = vpack.c.b16 %v976, %v975
        %v1026 = vpack.c.b16 %v978, %v977
        %v1027 = vpack.c.b16 %v980, %v979
        %v1028 = vpack.c.b16 %v982, %v981
        %v1029 = vpack.c.b16 %v984, %v983
        %v1030 = vpack.c.b16 %v986, %v985
        %v1031 = vpack.c.b16 %v988, %v987
        %v1032 = vpack.c.b16 %v990, %v989
        %v1033 = vpack.c.b16 %v992, %v991
        %v1034 = vpack.c.b16 %v994, %v993
        %v1035 = vpack.c.b16 %v996, %v995
        %v1036 = vpack.c.b16 %v998, %v997
        %v1037 = vpack.c.b16 %v1000, %v999
        %v1038 = vpack.c.b16 %v1002, %v1001
        %v1039 = vpack.c.b16 %v1004, %v1003
        %v1040 = vpack.c.b16 %v1006, %v1005
        %v1041 = vpack.c.b16 %v1008, %v1007
        %v1042 = vpack.c.b16 %v1010, %v1009
        %1075 = vmatpush.bf16.msra.mxu0 %v1018
        %1076 = vmatpush.bf16.msra.mxu0 %v1017
        %1077 = vmatpush.bf16.msra.mxu0 %v1016
        %1078 = vmatpush.bf16.msra.mxu0 %v1015
        %1079 = vmatpush.bf16.msra.mxu0 %v1014
        %1080 = vmatpush.bf16.msra.mxu0 %v1013
        %1081 = vmatpush.bf16.msra.mxu0 %v1012
        %1082 = vmatpush.bf16.msra.mxu0 %v1011
        %1083 = vmatmul.bf16.gmra.mxu0 %v787
        %v1084 = vpop.f32.mrf.mxu0
        %v1085 = vadd.f32 0.0, %v1084
        %v1086 = vpop.f32.mrf.mxu0
        %v1087 = vadd.f32 0.0, %v1086
        %1088 = vmatmul.bf16.gmra.mxu0 %v791
        %v1089 = vpop.f32.mrf.mxu0
        %v1090 = vadd.f32 0.0, %v1089
        %v1091 = vpop.f32.mrf.mxu0
        %v1092 = vadd.f32 0.0, %v1091
        %1093 = vmatmul.bf16.gmra.mxu0 %v795
        %v1094 = vpop.f32.mrf.mxu0
        %v1095 = vadd.f32 0.0, %v1094
        %v1096 = vpop.f32.mrf.mxu0
        %v1097 = vadd.f32 0.0, %v1096
        %1098 = vmatmul.bf16.gmra.mxu0 %v799
        %v1099 = vpop.f32.mrf.mxu0
        %v1100 = vadd.f32 0.0, %v1099
        %v1101 = vpop.f32.mrf.mxu0
        %v1102 = vadd.f32 0.0, %v1101
        %1103 = vmatmul.bf16.gmra.mxu0 %v803
        %v1104 = vpop.f32.mrf.mxu0
        %v1105 = vadd.f32 0.0, %v1104
        %v1106 = vpop.f32.mrf.mxu0
        %v1107 = vadd.f32 0.0, %v1106
        %1108 = vmatmul.bf16.gmra.mxu0 %v807
        %v1109 = vpop.f32.mrf.mxu0
        %v1110 = vadd.f32 0.0, %v1109
        %v1111 = vpop.f32.mrf.mxu0
        %v1112 = vadd.f32 0.0, %v1111
        %1113 = vmatmul.bf16.gmra.mxu0 %v811
        %v1114 = vpop.f32.mrf.mxu0
        %v1115 = vadd.f32 0.0, %v1114
        %v1116 = vpop.f32.mrf.mxu0
        %v1117 = vadd.f32 0.0, %v1116
        %1118 = vmatmul.bf16.gmra.mxu0 %v815
        %v1119 = vpop.f32.mrf.mxu0
        %v1120 = vadd.f32 0.0, %v1119
        %v1121 = vpop.f32.mrf.mxu0
        %v1122 = vadd.f32 0.0, %v1121
        %1123 = vdwg.mxu0
        %1124 = vmatpush.bf16.msra.mxu0 %v1026
        %1125 = vmatpush.bf16.msra.mxu0 %v1025
        %1126 = vmatpush.bf16.msra.mxu0 %v1024
        %1127 = vmatpush.bf16.msra.mxu0 %v1023
        %1128 = vmatpush.bf16.msra.mxu0 %v1022
        %1129 = vmatpush.bf16.msra.mxu0 %v1021
        %1130 = vmatpush.bf16.msra.mxu0 %v1020
        %1131 = vmatpush.bf16.msra.mxu0 %v1019
        %1132 = vmatmul.bf16.gmra.mxu0 %v788
        %v1133 = vpop.f32.mrf.mxu0
        %v1134 = vadd.f32 %v1085, %v1133
        %v1135 = vpop.f32.mrf.mxu0
        %v1136 = vadd.f32 %v1087, %v1135
        %1137 = vmatmul.bf16.gmra.mxu0 %v792
        %v1138 = vpop.f32.mrf.mxu0
        %v1139 = vadd.f32 %v1090, %v1138
        %v1140 = vpop.f32.mrf.mxu0
        %v1141 = vadd.f32 %v1092, %v1140
        %1142 = vmatmul.bf16.gmra.mxu0 %v796
        %v1143 = vpop.f32.mrf.mxu0
        %v1144 = vadd.f32 %v1095, %v1143
        %v1145 = vpop.f32.mrf.mxu0
        %v1146 = vadd.f32 %v1097, %v1145
        %1147 = vmatmul.bf16.gmra.mxu0 %v800
        %v1148 = vpop.f32.mrf.mxu0
        %v1149 = vadd.f32 %v1100, %v1148
        %v1150 = vpop.f32.mrf.mxu0
        %v1151 = vadd.f32 %v1102, %v1150
        %1152 = vmatmul.bf16.gmra.mxu0 %v804
        %v1153 = vpop.f32.mrf.mxu0
        %v1154 = vadd.f32 %v1105, %v1153
        %v1155 = vpop.f32.mrf.mxu0
        %v1156 = vadd.f32 %v1107, %v1155
        %1157 = vmatmul.bf16.gmra.mxu0 %v808
        %v1158 = vpop.f32.mrf.mxu0
        %v1159 = vadd.f32 %v1110, %v1158
        %v1160 = vpop.f32.mrf.mxu0
        %v1161 = vadd.f32 %v1112, %v1160
        %1162 = vmatmul.bf16.gmra.mxu0 %v812
        %v1163 = vpop.f32.mrf.mxu0
        %v1164 = vadd.f32 %v1115, %v1163
        %v1165 = vpop.f32.mrf.mxu0
        %v1166 = vadd.f32 %v1117, %v1165
        %1167 = vmatmul.bf16.gmra.mxu0 %v816
        %v1168 = vpop.f32.mrf.mxu0
        %v1169 = vadd.f32 %v1120, %v1168
        %v1170 = vpop.f32.mrf.mxu0
        %v1171 = vadd.f32 %v1122, %v1170
        %1172 = vdwg.mxu0
        %1173 = vmatpush.bf16.msra.mxu0 %v1034
        %1174 = vmatpush.bf16.msra.mxu0 %v1033
        %1175 = vmatpush.bf16.msra.mxu0 %v1032
        %1176 = vmatpush.bf16.msra.mxu0 %v1031
        %1177 = vmatpush.bf16.msra.mxu0 %v1030
        %1178 = vmatpush.bf16.msra.mxu0 %v1029
        %1179 = vmatpush.bf16.msra.mxu0 %v1028
        %1180 = vmatpush.bf16.msra.mxu0 %v1027
        %1181 = vmatmul.bf16.gmra.mxu0 %v789
        %v1182 = vpop.f32.mrf.mxu0
        %v1183 = vadd.f32 %v1134, %v1182
        %v1184 = vpop.f32.mrf.mxu0
        %v1185 = vadd.f32 %v1136, %v1184
        %1186 = vmatmul.bf16.gmra.mxu0 %v793
        %v1187 = vpop.f32.mrf.mxu0
        %v1188 = vadd.f32 %v1139, %v1187
        %v1189 = vpop.f32.mrf.mxu0
        %v1190 = vadd.f32 %v1141, %v1189
        %1191 = vmatmul.bf16.gmra.mxu0 %v797
        %v1192 = vpop.f32.mrf.mxu0
        %v1193 = vadd.f32 %v1144, %v1192
        %v1194 = vpop.f32.mrf.mxu0
        %v1195 = vadd.f32 %v1146, %v1194
        %1196 = vmatmul.bf16.gmra.mxu0 %v801
        %v1197 = vpop.f32.mrf.mxu0
        %v1198 = vadd.f32 %v1149, %v1197
        %v1199 = vpop.f32.mrf.mxu0
        %v1200 = vadd.f32 %v1151, %v1199
        %1201 = vmatmul.bf16.gmra.mxu0 %v805
        %v1202 = vpop.f32.mrf.mxu0
        %v1203 = vadd.f32 %v1154, %v1202
        %v1204 = vpop.f32.mrf.mxu0
        %v1205 = vadd.f32 %v1156, %v1204
        %1206 = vmatmul.bf16.gmra.mxu0 %v809
        %v1207 = vpop.f32.mrf.mxu0
        %v1208 = vadd.f32 %v1159, %v1207
        %v1209 = vpop.f32.mrf.mxu0
        %v1210 = vadd.f32 %v1161, %v1209
        %1211 = vmatmul.bf16.gmra.mxu0 %v813
        %v1212 = vpop.f32.mrf.mxu0
        %v1213 = vadd.f32 %v1164, %v1212
        %v1214 = vpop.f32.mrf.mxu0
        %v1215 = vadd.f32 %v1166, %v1214
        %1216 = vmatmul.bf16.gmra.mxu0 %v817
        %v1217 = vpop.f32.mrf.mxu0
        %v1218 = vadd.f32 %v1169, %v1217
        %v1219 = vpop.f32.mrf.mxu0
        %v1220 = vadd.f32 %v1171, %v1219
        %1221 = vdwg.mxu0
        %1222 = vmatpush.bf16.msra.mxu0 %v1042
        %1223 = vmatpush.bf16.msra.mxu0 %v1041
        %1224 = vmatpush.bf16.msra.mxu0 %v1040
        %1225 = vmatpush.bf16.msra.mxu0 %v1039
        %1226 = vmatpush.bf16.msra.mxu0 %v1038
        %1227 = vmatpush.bf16.msra.mxu0 %v1037
        %1228 = vmatpush.bf16.msra.mxu0 %v1036
        %1229 = vmatpush.bf16.msra.mxu0 %v1035
        %1230 = vmatmul.bf16.gmra.mxu0 %v790
        %v1231 = vpop.f32.mrf.mxu0
        %v1232 = vadd.f32 %v1183, %v1231
        %v1233 = vpop.f32.mrf.mxu0
        %v1234 = vadd.f32 %v1185, %v1233
        %1235 = vmatmul.bf16.gmra.mxu0 %v794
        %v1236 = vpop.f32.mrf.mxu0
        %v1237 = vadd.f32 %v1188, %v1236
        %v1238 = vpop.f32.mrf.mxu0
        %v1239 = vadd.f32 %v1190, %v1238
        %1240 = vmatmul.bf16.gmra.mxu0 %v798
        %v1241 = vpop.f32.mrf.mxu0
        %v1242 = vadd.f32 %v1193, %v1241
        %v1243 = vpop.f32.mrf.mxu0
        %v1244 = vadd.f32 %v1195, %v1243
        %1245 = vmatmul.bf16.gmra.mxu0 %v802
        %v1246 = vpop.f32.mrf.mxu0
        %v1247 = vadd.f32 %v1198, %v1246
        %v1248 = vpop.f32.mrf.mxu0
        %v1249 = vadd.f32 %v1200, %v1248
        %1250 = vmatmul.bf16.gmra.mxu0 %v806
        %v1251 = vpop.f32.mrf.mxu0
        %v1252 = vadd.f32 %v1203, %v1251
        %v1253 = vpop.f32.mrf.mxu0
        %v1254 = vadd.f32 %v1205, %v1253
        %1255 = vmatmul.bf16.gmra.mxu0 %v810
        %v1256 = vpop.f32.mrf.mxu0
        %v1257 = vadd.f32 %v1208, %v1256
        %v1258 = vpop.f32.mrf.mxu0
        %v1259 = vadd.f32 %v1210, %v1258
        %1260 = vmatmul.bf16.gmra.mxu0 %v814
        %v1261 = vpop.f32.mrf.mxu0
        %v1262 = vadd.f32 %v1213, %v1261
        %v1263 = vpop.f32.mrf.mxu0
        %v1264 = vadd.f32 %v1215, %v1263
        %1265 = vmatmul.bf16.gmra.mxu0 %v818
        %v1266 = vpop.f32.mrf.mxu0
        %v1267 = vadd.f32 %v1218, %v1266
        %v1268 = vpop.f32.mrf.mxu0
        %v1269 = vadd.f32 %v1220, %v1268
        %1270 = vdwg.mxu0
        %v1271 = vld [vmem:[%s7] sm:$0xff]
        %v1272 = vld [vmem:[%s7 + $0x8] sm:$0xff]
        %v1273 = vld [vmem:[%s7 + $0x10] sm:$0xff]
        %v1274 = vld [vmem:[%s7 + $0x18] sm:$0xff]
        %v1275 = vld [vmem:[%s7 + $0x20] sm:$0xff]
        %v1276 = vld [vmem:[%s7 + $0x28] sm:$0xff]
        %v1277 = vld [vmem:[%s7 + $0x30] sm:$0xff]
        %v1278 = vld [vmem:[%s7 + $0x38] sm:$0xff]
        %v1279 = vld [vmem:[%s7 + $0x40] sm:$0xff]
        %v1280 = vld [vmem:[%s7 + $0x48] sm:$0xff]
        %v1281 = vld [vmem:[%s7 + $0x50] sm:$0xff]
        %v1282 = vld [vmem:[%s7 + $0x58] sm:$0xff]
        %v1283 = vld [vmem:[%s7 + $0x60] sm:$0xff]
        %v1284 = vld [vmem:[%s7 + $0x68] sm:$0xff]
        %v1285 = vld [vmem:[%s7 + $0x70] sm:$0xff]
        %v1286 = vld [vmem:[%s7 + $0x78] sm:$0xff]
        %v1287 = vld [vmem:[%s355] sm:$0xf]
        %v1288 = vld [vmem:[%s355 + $0x4] sm:$0xf]
        %v1289 = vld [vmem:[%s355 + $0x8] sm:$0xf]
        %v1290 = vld [vmem:[%s355 + $0xc] sm:$0xf]
        %v1291 = vld [vmem:[%s355 + $0x10] sm:$0xf]
        %v1292 = vld [vmem:[%s355 + $0x14] sm:$0xf]
        %v1293 = vld [vmem:[%s355 + $0x18] sm:$0xf]
        %v1294 = vld [vmem:[%s355 + $0x1c] sm:$0xf]
        %v1295 = vld [vmem:[%s355 + $0x20] sm:$0xf]
        %v1296 = vld [vmem:[%s355 + $0x24] sm:$0xf]
        %v1297 = vld [vmem:[%s355 + $0x28] sm:$0xf]
        %v1298 = vld [vmem:[%s355 + $0x2c] sm:$0xf]
        %v1299 = vld [vmem:[%s355 + $0x30] sm:$0xf]
        %v1300 = vld [vmem:[%s355 + $0x34] sm:$0xf]
        %v1301 = vld [vmem:[%s355 + $0x38] sm:$0xf]
        %v1302 = vld [vmem:[%s355 + $0x3c] sm:$0xf]
        %v1303 = vpack.c.bf16 %v1234, %v1232
        %v1304 = vpack.c.bf16 %v1239, %v1237
        %v1305 = vpack.c.bf16 %v1244, %v1242
        %v1306 = vpack.c.bf16 %v1249, %v1247
        %v1307 = vpack.c.bf16 %v1254, %v1252
        %v1308 = vpack.c.bf16 %v1259, %v1257
        %v1309 = vpack.c.bf16 %v1264, %v1262
        %v1310 = vpack.c.bf16 %v1269, %v1267
        %v1327 = vunpack.c.l.b16 %v1287
        %v1328 = vunpack.c.l.b16 %v1288
        %v1329 = vunpack.c.l.b16 %v1289
        %v1330 = vunpack.c.l.b16 %v1290
        %v1331 = vunpack.c.l.b16 %v1291
        %v1332 = vunpack.c.l.b16 %v1292
        %v1333 = vunpack.c.l.b16 %v1293
        %v1334 = vunpack.c.l.b16 %v1294
        %v1335 = vunpack.c.l.b16 %v1295
        %v1336 = vunpack.c.l.b16 %v1296
        %v1337 = vunpack.c.l.b16 %v1297
        %v1338 = vunpack.c.l.b16 %v1298
        %v1339 = vunpack.c.l.b16 %v1299
        %v1340 = vunpack.c.l.b16 %v1300
        %v1341 = vunpack.c.l.b16 %v1301
        %v1342 = vunpack.c.l.b16 %v1302
        %v1343 = vpack.c.b16 %v1328, %v1327
        %v1344 = vpack.c.b16 %v1330, %v1329
        %v1345 = vpack.c.b16 %v1332, %v1331
        %v1346 = vpack.c.b16 %v1334, %v1333
        %v1347 = vpack.c.b16 %v1336, %v1335
        %v1348 = vpack.c.b16 %v1338, %v1337
        %v1349 = vpack.c.b16 %v1340, %v1339
        %v1350 = vpack.c.b16 %v1342, %v1341
        %1359 = vmatpush.bf16.msra.mxu0 %v1310
        %1360 = vmatpush.bf16.msra.mxu0 %v1309
        %1361 = vmatpush.bf16.msra.mxu0 %v1308
        %1362 = vmatpush.bf16.msra.mxu0 %v1307
        %1363 = vmatpush.bf16.msra.mxu0 %v1306
        %1364 = vmatpush.bf16.msra.mxu0 %v1305
        %1365 = vmatpush.bf16.msra.mxu0 %v1304
        %1366 = vmatpush.bf16.msra.mxu0 %v1303
        %1367 = vmatmul.bf16.gmra.mxu0 %v1343
        %v1368 = vpop.f32.mrf.mxu0
        %v1369 = vadd.f32 0.0, %v1368
        %v1370 = vpop.f32.mrf.mxu0
        %v1371 = vadd.f32 0.0, %v1370
        %1372 = vmatmul.bf16.gmra.mxu0 %v1344
        %v1373 = vpop.f32.mrf.mxu0
        %v1374 = vadd.f32 0.0, %v1373
        %v1375 = vpop.f32.mrf.mxu0
        %v1376 = vadd.f32 0.0, %v1375
        %1377 = vmatmul.bf16.gmra.mxu0 %v1345
        %v1378 = vpop.f32.mrf.mxu0
        %v1379 = vadd.f32 0.0, %v1378
        %v1380 = vpop.f32.mrf.mxu0
        %v1381 = vadd.f32 0.0, %v1380
        %1382 = vmatmul.bf16.gmra.mxu0 %v1346
        %v1383 = vpop.f32.mrf.mxu0
        %v1384 = vadd.f32 0.0, %v1383
        %v1385 = vpop.f32.mrf.mxu0
        %v1386 = vadd.f32 0.0, %v1385
        %1387 = vmatmul.bf16.gmra.mxu0 %v1347
        %v1388 = vpop.f32.mrf.mxu0
        %v1389 = vadd.f32 0.0, %v1388
        %v1390 = vpop.f32.mrf.mxu0
        %v1391 = vadd.f32 0.0, %v1390
        %1392 = vmatmul.bf16.gmra.mxu0 %v1348
        %v1393 = vpop.f32.mrf.mxu0
        %v1394 = vadd.f32 0.0, %v1393
        %v1395 = vpop.f32.mrf.mxu0
        %v1396 = vadd.f32 0.0, %v1395
        %1397 = vmatmul.bf16.gmra.mxu0 %v1349
        %v1398 = vpop.f32.mrf.mxu0
        %v1399 = vadd.f32 0.0, %v1398
        %v1400 = vpop.f32.mrf.mxu0
        %v1401 = vadd.f32 0.0, %v1400
        %1402 = vmatmul.bf16.gmra.mxu0 %v1350
        %v1403 = vpop.f32.mrf.mxu0
        %v1404 = vadd.f32 0.0, %v1403
        %v1405 = vpop.f32.mrf.mxu0
        %v1406 = vadd.f32 0.0, %v1405
        %1407 = vdwg.mxu0
        %v1408 = vadd.f32 %v1271, %v1369
        %v1409 = vadd.f32 %v1272, %v1371
        %v1410 = vadd.f32 %v1273, %v1374
        %v1411 = vadd.f32 %v1274, %v1376
        %v1412 = vadd.f32 %v1275, %v1379
        %v1413 = vadd.f32 %v1276, %v1381
        %v1414 = vadd.f32 %v1277, %v1384
        %v1415 = vadd.f32 %v1278, %v1386
        %v1416 = vadd.f32 %v1279, %v1389
        %v1417 = vadd.f32 %v1280, %v1391
        %v1418 = vadd.f32 %v1281, %v1394
        %v1419 = vadd.f32 %v1282, %v1396
        %v1420 = vadd.f32 %v1283, %v1399
        %v1421 = vadd.f32 %v1284, %v1401
        %v1422 = vadd.f32 %v1285, %v1404
        %v1423 = vadd.f32 %v1286, %v1406
        %1424 = vst [vmem:[%s7] sm:$0xff] %v1408
        %1425 = vst [vmem:[%s7 + $0x8] sm:$0xff] %v1409
        %1426 = vst [vmem:[%s7 + $0x10] sm:$0xff] %v1410
        %1427 = vst [vmem:[%s7 + $0x18] sm:$0xff] %v1411
        %1428 = vst [vmem:[%s7 + $0x20] sm:$0xff] %v1412
        %1429 = vst [vmem:[%s7 + $0x28] sm:$0xff] %v1413
        %1430 = vst [vmem:[%s7 + $0x30] sm:$0xff] %v1414
        %1431 = vst [vmem:[%s7 + $0x38] sm:$0xff] %v1415
        %1432 = vst [vmem:[%s7 + $0x40] sm:$0xff] %v1416
        %1433 = vst [vmem:[%s7 + $0x48] sm:$0xff] %v1417
        %1434 = vst [vmem:[%s7 + $0x50] sm:$0xff] %v1418
        %1435 = vst [vmem:[%s7 + $0x58] sm:$0xff] %v1419
        %1436 = vst [vmem:[%s7 + $0x60] sm:$0xff] %v1420
        %1437 = vst [vmem:[%s7 + $0x68] sm:$0xff] %v1421
        %1438 = vst [vmem:[%s7 + $0x70] sm:$0xff] %v1422
        %1439 = vst [vmem:[%s7 + $0x78] sm:$0xff] %v1423
        // Predicated region
        $region94: #{interactive_forward.10} parent=84 // pred_check
          %p1440 = pneg %p188
        $region95: #{interactive_forward.10} parent=84 // pred_check_branch
          %1442 = sbr.rel (%p1440) target = $region97
        $region96: #{interactive_forward.10} parent=84 // pred_region
          _
        $region97: #{interactive_forward.10} parent=84 // pred_fallthru
          _
        // Predicated region
        $region98: #{interactive_forward.10} parent=84 // pred_check
          %p1443 = pneg %p188
        $region99: #{interactive_forward.10} parent=84 // pred_check_branch
          %1445 = sbr.rel (%p1443) target = $region101
        $region100: #{interactive_forward.10} parent=84 // pred_region
          _
        $region101: #{interactive_forward.10} parent=84 // pred_fallthru
          _
      $region85: #{interactive_forward.10} parent=5 // pred_fallthru
        _
      %p1446 = scmp.le.s32.totalorder 2, %s13
      // Predicated region
      $region102: #{interactive_forward.10} parent=5 // pred_check
        %p1447 = pneg %p1446
      $region103: #{interactive_forward.10} parent=5 // pred_check_branch
        %1449 = sbr.rel (%p1447) target = $region105
      $region104: #{interactive_forward.10} parent=5 // pred_region
        %s1450 = ssub.s32 %s13, 2
      $region105: #{interactive_forward.10} parent=5 // pred_fallthru
        _
    $region6: #{interactive_forward.10} parent=1 // loop_footer
      %s17 = sadd.s32 1, %s13
    $region7: #{interactive_forward.10} parent=1 // loop_footer_branch
      %12 = sbr.rel target = $region3
    $region8: #{interactive_forward.10} parent=1 // loop_exit
      _

// kernel: interactive_forward.11
$region0: #{interactive_forward.11}
  #allocation0 [shape = 'u32[]', space=smem, size = 0x4, offset = 0x4, fixed_abs, tag = 'smem constant byte address 0x4 - core index']
  #allocation1 [shape = 'u32[72,128]{1,0:T(1,128)}', space=vmem, size = 0x9000, scoped, tag = 'internal scratch']
  %s0 = inlined_call_operand.vmem [shape: bf16[384,128], index: 0, kind: input, shape index: {}]
  %s1 = inlined_call_operand.vmem [shape: f32[384,1], index: 1, kind: input, shape index: {}]
  %s2 = inlined_call_operand.vmem [shape: f32[128,128], index: 2, kind: input, shape index: {}]
  %s3 = inlined_call_operand.vmem [shape: f32[1,128], index: 3, kind: input, shape index: {}]
  %s4 = inlined_call_operand.vmem [shape: f32[384,128], index: 4, kind: output, shape index: {}]
  %s5 = sld [smem:[#allocation0]]
  $region49: #{interactive_forward.11} parent=0
    _
  %s7 = ssub.s32 1, %s5
  %s8 = scalar_select 0, %s7, %s5
  loop: start=0, step=1, limit=5
  $region2: #{interactive_forward.11} parent=0 // loop_pre_header
    _
  $region3: #{interactive_forward.11} parent=0 // loop_header
    %s10 = sphi 0, %s14
    %p11 = scmp.ge.s32.totalorder %s10, 5
    %s20 = sphi 0, %s22
    %s23 = sphi 0, %s20
    %s24 = sphi 0, %s23
    %s40 = sphi 0, %s24
    %s46 = sphi 0, %s48
    %s49 = sphi 0, %s46
    %s50 = sphi 0, %s49
    %s66 = sphi 0, %s50
    %s70 = sphi 0, %s70
    %s72 = sphi 0, %s70
    %s73 = sphi 0, %s72
    %s87 = sphi 0, %s73
    %s91 = sphi 0, %s91
    %s93 = sphi 0, %s91
    %s94 = sphi 0, %s93
    %s108 = sphi 0, %s94
    %s114 = sphi 0, %s116
    %s117 = sphi 0, %s114
    %s118 = sphi 0, %s117
    %s134 = sphi 0, %s118
  $region4: #{interactive_forward.11} parent=0 // loop_header_branch
    %13 = sbr.rel (%p11) target = $region8
  $region5: #{interactive_forward.11} parent=0 // loop_body
    %s15 = ssub.s32 %s10, 1
    %s16 = ssub.s32 %s10, 2
    %s17 = sadd.s32 %s10, 1
    %s18 = ssub.s32 %s10, %s17
    %p19 = scmp.eq.s32.totalorder %s18, 0
    %s21 = sadd.s32 %s20, 1
    %s22 = scalar_select %p19, %s20, %s21
    %p25 = pneg %p19
    %p26 = scmp.eq.s32.totalorder %s10, 2
    %p27 = por %p25, %p26
    %p28 = scmp.ne.s32.totalorder %s20, %s23
    %p29 = scmp.eq.s32.totalorder %s10, 0
    %p30 = por %p28, %p29
    %p31 = scmp.ne.s32.totalorder %s20, %s23
    %p32 = scmp.eq.s32.totalorder %s15, 2
    %p33 = por %p31, %p32
    %p34 = scmp.ne.s32.totalorder %s23, %s24
    %p35 = scmp.eq.s32.totalorder %s15, 0
    %p36 = por %p34, %p35
    %p37 = scmp.ne.s32.totalorder %s23, %s24
    %p38 = scmp.eq.s32.totalorder %s16, 2
    %p39 = por %p37, %p38
    %p41 = scmp.ne.s32.totalorder %s24, %s40
    %p42 = scmp.eq.s32.totalorder %s16, 0
    %p43 = por %p41, %p42
    %s44 = ssub.s32 %s10, %s17
    %p45 = scmp.eq.s32.totalorder %s44, 0
    %s47 = sadd.s32 %s46, 1
    %s48 = scalar_select %p45, %s46, %s47
    %p51 = pneg %p45
    %p52 = scmp.eq.s32.totalorder %s10, 2
    %p53 = por %p51, %p52
    %p54 = scmp.ne.s32.totalorder %s46, %s49
    %p55 = scmp.eq.s32.totalorder %s10, 0
    %p56 = por %p54, %p55
    %p57 = scmp.ne.s32.totalorder %s46, %s49
    %p58 = scmp.eq.s32.totalorder %s15, 2
    %p59 = por %p57, %p58
    %p60 = scmp.ne.s32.totalorder %s49, %s50
    %p61 = scmp.eq.s32.totalorder %s15, 0
    %p62 = por %p60, %p61
    %p63 = scmp.ne.s32.totalorder %s49, %s50
    %p64 = scmp.eq.s32.totalorder %s16, 2
    %p65 = por %p63, %p64
    %p67 = scmp.ne.s32.totalorder %s50, %s66
    %p68 = scmp.eq.s32.totalorder %s16, 0
    %p69 = por %p67, %p68
    %s71 = sadd.s32 %s70, 1
    %p74 = scmp.eq.s32.totalorder %s10, 2
    %p75 = scmp.ne.s32.totalorder %s70, %s72
    %p76 = scmp.eq.s32.totalorder %s10, 0
    %p77 = por %p75, %p76
    %p78 = scmp.ne.s32.totalorder %s70, %s72
    %p79 = scmp.eq.s32.totalorder %s15, 2
    %p80 = por %p78, %p79
    %p81 = scmp.ne.s32.totalorder %s72, %s73
    %p82 = scmp.eq.s32.totalorder %s15, 0
    %p83 = por %p81, %p82
    %p84 = scmp.ne.s32.totalorder %s72, %s73
    %p85 = scmp.eq.s32.totalorder %s16, 2
    %p86 = por %p84, %p85
    %p88 = scmp.ne.s32.totalorder %s73, %s87
    %p89 = scmp.eq.s32.totalorder %s16, 0
    %p90 = por %p88, %p89
    %s92 = sadd.s32 %s91, 1
    %p95 = scmp.eq.s32.totalorder %s10, 2
    %p96 = scmp.ne.s32.totalorder %s91, %s93
    %p97 = scmp.eq.s32.totalorder %s10, 0
    %p98 = por %p96, %p97
    %p99 = scmp.ne.s32.totalorder %s91, %s93
    %p100 = scmp.eq.s32.totalorder %s15, 2
    %p101 = por %p99, %p100
    %p102 = scmp.ne.s32.totalorder %s93, %s94
    %p103 = scmp.eq.s32.totalorder %s15, 0
    %p104 = por %p102, %p103
    %p105 = scmp.ne.s32.totalorder %s93, %s94
    %p106 = scmp.eq.s32.totalorder %s16, 2
    %p107 = por %p105, %p106
    %p109 = scmp.ne.s32.totalorder %s94, %s108
    %p110 = scmp.eq.s32.totalorder %s16, 0
    %p111 = por %p109, %p110
    %s112 = ssub.s32 %s10, %s17
    %p113 = scmp.eq.s32.totalorder %s112, 0
    %s115 = sadd.s32 %s114, 1
    %s116 = scalar_select %p113, %s114, %s115
    %p119 = pneg %p113
    %p120 = scmp.eq.s32.totalorder %s10, 2
    %p121 = por %p119, %p120
    %p122 = scmp.ne.s32.totalorder %s114, %s117
    %p123 = scmp.eq.s32.totalorder %s10, 0
    %p124 = por %p122, %p123
    %p125 = scmp.ne.s32.totalorder %s114, %s117
    %p126 = scmp.eq.s32.totalorder %s15, 2
    %p127 = por %p125, %p126
    %p128 = scmp.ne.s32.totalorder %s117, %s118
    %p129 = scmp.eq.s32.totalorder %s15, 0
    %p130 = por %p128, %p129
    %p131 = scmp.ne.s32.totalorder %s117, %s118
    %p132 = scmp.eq.s32.totalorder %s16, 2
    %p133 = por %p131, %p132
    %p135 = scmp.ne.s32.totalorder %s118, %s134
    %p136 = scmp.eq.s32.totalorder %s16, 0
    %p137 = por %p135, %p136
    %p138 = scmp.le.s32.totalorder 1, %s10
    %p139 = scmp.lt.s32.totalorder %s10, 4
    %p140 = pnand %p138, %p139
    %p141 = pneg %p140
    // Predicated region
    $region9: #{interactive_forward.11} parent=5 // pred_check
      _
    $region10: #{interactive_forward.11} parent=5 // pred_check_branch
      %143 = sbr.rel (%p140) target = $region12
    $region11: #{interactive_forward.11} parent=5 // pred_region
      %s144 = ssub.s32 %s10, 1
      // Predicated region
      $region13: #{interactive_forward.11} parent=11 // pred_check
        %p145 = pneg %p83
      $region14: #{interactive_forward.11} parent=11 // pred_check_branch
        %147 = sbr.rel (%p145) target = $region16
      $region15: #{interactive_forward.11} parent=11 // pred_region
        _
      $region16: #{interactive_forward.11} parent=11 // pred_fallthru
        _
      // Predicated region
      $region17: #{interactive_forward.11} parent=11 // pred_check
        %p148 = pneg %p104
      $region18: #{interactive_forward.11} parent=11 // pred_check_branch
        %150 = sbr.rel (%p148) target = $region20
      $region19: #{interactive_forward.11} parent=11 // pred_region
        _
      $region20: #{interactive_forward.11} parent=11 // pred_fallthru
        _
    $region12: #{interactive_forward.11} parent=5 // pred_fallthru
      _
    %p151 = scmp.lt.s32.totalorder %s10, 3
    // Predicated region
    $region21: #{interactive_forward.11} parent=5 // pred_check
      %p152 = pneg %p151
    $region22: #{interactive_forward.11} parent=5 // pred_check_branch
      %154 = sbr.rel (%p152) target = $region24
    $region23: #{interactive_forward.11} parent=5 // pred_region
      // Predicated region
      $region25: #{interactive_forward.11} parent=23 // pred_check
        %p155 = pneg %p30
      $region26: #{interactive_forward.11} parent=23 // pred_check_branch
        %157 = sbr.rel (%p155) target = $region28
      $region27: #{interactive_forward.11} parent=23 // pred_region
        %s158 = smul.u32 16, %s10
        %p159 = scmp.lt.s32.totalorder %s158, 47
        %s160 = scalar_select %p159, %s158, 47
        %s161 = smul.addr %s160, 4
        %s162 = scalar_lea.vmem %s0, %s161
        %s163 = smul.u32 16, %s10
      $region28: #{interactive_forward.11} parent=23 // pred_fallthru
        _
      // Predicated region
      $region29: #{interactive_forward.11} parent=23 // pred_check
        %p164 = pneg %p56
      $region30: #{interactive_forward.11} parent=23 // pred_check_branch
        %166 = sbr.rel (%p164) target = $region32
      $region31: #{interactive_forward.11} parent=23 // pred_region
        %s167 = smul.u32 16, %s10
        %p168 = scmp.lt.s32.totalorder %s167, 47
        %s169 = scalar_select %p168, %s167, 47
        %s170 = smul.addr %s169, 8
        %s171 = scalar_lea.vmem %s1, %s170
        %s172 = smul.u32 16, %s10
      $region32: #{interactive_forward.11} parent=23 // pred_fallthru
        _
    $region24: #{interactive_forward.11} parent=5 // pred_fallthru
      _
    %p173 = scmp.le.s32.totalorder 1, %s10
    %p174 = scmp.lt.s32.totalorder %s10, 4
    %p175 = pnand %p173, %p174
    %p176 = pneg %p175
    // Predicated region
    $region33: #{interactive_forward.11} parent=5 // pred_check
      _
    $region34: #{interactive_forward.11} parent=5 // pred_check_branch
      %178 = sbr.rel (%p175) target = $region36
    $region35: #{interactive_forward.11} parent=5 // pred_region
      %s179 = ssub.s32 %s10, 1
      %s180 = smul.u32 16, %s15
      %p181 = scmp.lt.s32.totalorder %s180, 47
      %s182 = scalar_select %p181, %s180, 47
      %s183 = smul.addr %s182, 4
      %s184 = scalar_lea.vmem %s0, %s183
      %p185 = pneg %p36
      %p186 = pneg %p33
      %s187 = smul.u32 16, %s15
      %p188 = scmp.lt.s32.totalorder %s187, 47
      %s189 = scalar_select %p188, %s187, 47
      %s190 = smul.addr %s189, 8
      %s191 = scalar_lea.vmem %s1, %s190
      %p192 = pneg %p62
      %p193 = pneg %p59
      %p194 = pneg %p83
      %p195 = pneg %p80
      %p196 = pneg %p104
      %p197 = pneg %p101
      %p198 = pneg %p130
      %p199 = pneg %p127
      %s200 = smul.u32 16, %s15
      %p201 = scmp.lt.s32.totalorder %s200, 47
      %s202 = scalar_select %p201, %s200, 47
      %s203 = smul.addr %s202, 8
      %s204 = scalar_lea.vmem %s4, %s203
      %s205 = smul.u32 16, %s15
      %p206 = scmp.lt.s32.totalorder %s205, 47
      %s207 = scalar_select %p206, %s205, 47
      %s208 = smul.addr %s207, 4
      %s209 = scalar_lea.vmem %s0, %s208
      %s210 = smul.u32 16, %s15
      %s211 = smul.u32 16, %s15
      %p212 = scmp.lt.s32.totalorder %s211, 47
      %s213 = scalar_select %p212, %s211, 47
      %s214 = smul.addr %s213, 8
      %s215 = scalar_lea.vmem %s1, %s214
      %s216 = smul.u32 16, %s15
      %s217 = smul.u32 16, %s15
      %p218 = scmp.lt.s32.totalorder %s217, 47
      %s219 = scalar_select %p218, %s217, 47
      %s220 = smul.addr %s219, 8
      %s221 = scalar_lea.vmem %s4, %s220
      %s222 = smul.u32 16, %s15
      %v223 = vld [vmem:[%s209] sm:$0xf]
      %v224 = vld [vmem:[%s209 + $0x4] sm:$0xf]
      %v225 = vld [vmem:[%s209 + $0x8] sm:$0xf]
      %v226 = vld [vmem:[%s209 + $0xc] sm:$0xf]
      %v227 = vld [vmem:[%s209 + $0x10] sm:$0xf]
      %v228 = vld [vmem:[%s209 + $0x14] sm:$0xf]
      %v229 = vld [vmem:[%s209 + $0x18] sm:$0xf]
      %v230 = vld [vmem:[%s209 + $0x1c] sm:$0xf]
      %v231 = vld [vmem:[%s209 + $0x20] sm:$0xf]
      %v232 = vld [vmem:[%s209 + $0x24] sm:$0xf]
      %v233 = vld [vmem:[%s209 + $0x28] sm:$0xf]
      %v234 = vld [vmem:[%s209 + $0x2c] sm:$0xf]
      %v235 = vld [vmem:[%s209 + $0x30] sm:$0xf]
      %v236 = vld [vmem:[%s209 + $0x34] sm:$0xf]
      %v237 = vld [vmem:[%s209 + $0x38] sm:$0xf]
      %v238 = vld [vmem:[%s209 + $0x3c] sm:$0xf]
      %v239 = vld [vmem:[%s2] sm:$0xff]
      %v240 = vld [vmem:[%s2 + $0x8] sm:$0xff]
      %v241 = vld [vmem:[%s2 + $0x10] sm:$0xff]
      %v242 = vld [vmem:[%s2 + $0x18] sm:$0xff]
      %v243 = vld [vmem:[%s2 + $0x20] sm:$0xff]
      %v244 = vld [vmem:[%s2 + $0x28] sm:$0xff]
      %v245 = vld [vmem:[%s2 + $0x30] sm:$0xff]
      %v246 = vld [vmem:[%s2 + $0x38] sm:$0xff]
      %v247 = vld [vmem:[%s2 + $0x40] sm:$0xff]
      %v248 = vld [vmem:[%s2 + $0x48] sm:$0xff]
      %v249 = vld [vmem:[%s2 + $0x50] sm:$0xff]
      %v250 = vld [vmem:[%s2 + $0x58] sm:$0xff]
      %v251 = vld [vmem:[%s2 + $0x60] sm:$0xff]
      %v252 = vld [vmem:[%s2 + $0x68] sm:$0xff]
      %v253 = vld [vmem:[%s2 + $0x70] sm:$0xff]
      %v254 = vld [vmem:[%s2 + $0x78] sm:$0xff]
      %v255 = vpack.c.bf16 %v240, %v239
      %v256 = vpack.c.bf16 %v242, %v241
      %v257 = vpack.c.bf16 %v244, %v243
      %v258 = vpack.c.bf16 %v246, %v245
      %v259 = vpack.c.bf16 %v248, %v247
      %v260 = vpack.c.bf16 %v250, %v249
      %v261 = vpack.c.bf16 %v252, %v251
      %v262 = vpack.c.bf16 %v254, %v253
      %v279 = vunpack.c.l.b16 %v223
      %v280 = vunpack.c.l.b16 %v224
      %v281 = vunpack.c.l.b16 %v225
      %v282 = vunpack.c.l.b16 %v226
      %v283 = vunpack.c.l.b16 %v227
      %v284 = vunpack.c.l.b16 %v228
      %v285 = vunpack.c.l.b16 %v229
      %v286 = vunpack.c.l.b16 %v230
      %v287 = vunpack.c.l.b16 %v231
      %v288 = vunpack.c.l.b16 %v232
      %v289 = vunpack.c.l.b16 %v233
      %v290 = vunpack.c.l.b16 %v234
      %v291 = vunpack.c.l.b16 %v235
      %v292 = vunpack.c.l.b16 %v236
      %v293 = vunpack.c.l.b16 %v237
      %v294 = vunpack.c.l.b16 %v238
      %v295 = vpack.c.b16 %v280, %v279
      %v296 = vpack.c.b16 %v282, %v281
      %v297 = vpack.c.b16 %v284, %v283
      %v298 = vpack.c.b16 %v286, %v285
      %v299 = vpack.c.b16 %v288, %v287
      %v300 = vpack.c.b16 %v290, %v289
      %v301 = vpack.c.b16 %v292, %v291
      %v302 = vpack.c.b16 %v294, %v293
      %311 = vmatpush.bf16.msra.mxu0 %v262
      %312 = vmatpush.bf16.msra.mxu0 %v261
      %313 = vmatpush.bf16.msra.mxu0 %v260
      %314 = vmatpush.bf16.msra.mxu0 %v259
      %315 = vmatpush.bf16.msra.mxu0 %v258
      %316 = vmatpush.bf16.msra.mxu0 %v257
      %317 = vmatpush.bf16.msra.mxu0 %v256
      %318 = vmatpush.bf16.msra.mxu0 %v255
      %319 = vmatmul.bf16.gmra.mxu0 %v295
      %v320 = vpop.f32.mrf.mxu0
      %v321 = vadd.f32 0.0, %v320
      %v322 = vpop.f32.mrf.mxu0
      %v323 = vadd.f32 0.0, %v322
      %324 = vmatmul.bf16.gmra.mxu0 %v296
      %v325 = vpop.f32.mrf.mxu0
      %v326 = vadd.f32 0.0, %v325
      %v327 = vpop.f32.mrf.mxu0
      %v328 = vadd.f32 0.0, %v327
      %329 = vmatmul.bf16.gmra.mxu0 %v297
      %v330 = vpop.f32.mrf.mxu0
      %v331 = vadd.f32 0.0, %v330
      %v332 = vpop.f32.mrf.mxu0
      %v333 = vadd.f32 0.0, %v332
      %334 = vmatmul.bf16.gmra.mxu0 %v298
      %v335 = vpop.f32.mrf.mxu0
      %v336 = vadd.f32 0.0, %v335
      %v337 = vpop.f32.mrf.mxu0
      %v338 = vadd.f32 0.0, %v337
      %339 = vmatmul.bf16.gmra.mxu0 %v299
      %v340 = vpop.f32.mrf.mxu0
      %v341 = vadd.f32 0.0, %v340
      %v342 = vpop.f32.mrf.mxu0
      %v343 = vadd.f32 0.0, %v342
      %344 = vmatmul.bf16.gmra.mxu0 %v300
      %v345 = vpop.f32.mrf.mxu0
      %v346 = vadd.f32 0.0, %v345
      %v347 = vpop.f32.mrf.mxu0
      %v348 = vadd.f32 0.0, %v347
      %349 = vmatmul.bf16.gmra.mxu0 %v301
      %v350 = vpop.f32.mrf.mxu0
      %v351 = vadd.f32 0.0, %v350
      %v352 = vpop.f32.mrf.mxu0
      %v353 = vadd.f32 0.0, %v352
      %354 = vmatmul.bf16.gmra.mxu0 %v302
      %v355 = vpop.f32.mrf.mxu0
      %v356 = vadd.f32 0.0, %v355
      %v357 = vpop.f32.mrf.mxu0
      %v358 = vadd.f32 0.0, %v357
      %359 = vdwg.mxu0
      %v360 = vld [vmem:[%s215] sm:$0xff]
      %v361 = vld [vmem:[%s215 + $0x8] sm:$0xff]
      %v362 = vld [vmem:[%s215 + $0x10] sm:$0xff]
      %v363 = vld [vmem:[%s215 + $0x18] sm:$0xff]
      %v364 = vld [vmem:[%s215 + $0x20] sm:$0xff]
      %v365 = vld [vmem:[%s215 + $0x28] sm:$0xff]
      %v366 = vld [vmem:[%s215 + $0x30] sm:$0xff]
      %v367 = vld [vmem:[%s215 + $0x38] sm:$0xff]
      %v368 = vld [vmem:[%s215 + $0x40] sm:$0xff]
      %v369 = vld [vmem:[%s215 + $0x48] sm:$0xff]
      %v370 = vld [vmem:[%s215 + $0x50] sm:$0xff]
      %v371 = vld [vmem:[%s215 + $0x58] sm:$0xff]
      %v372 = vld [vmem:[%s215 + $0x60] sm:$0xff]
      %v373 = vld [vmem:[%s215 + $0x68] sm:$0xff]
      %v374 = vld [vmem:[%s215 + $0x70] sm:$0xff]
      %v375 = vld [vmem:[%s215 + $0x78] sm:$0xff]
      %377 = vset.pattern.permute.xlu0 0
      %378 = vperm.xlu0 %377, %v360
      %v379 = vpop.permute.xlu0 %378
      %382 = vset.pattern.permute.xlu0 0
      %383 = vperm.xlu0 %382, %v361
      %v384 = vpop.permute.xlu0 %383
      %387 = vset.pattern.permute.xlu0 0
      %388 = vperm.xlu0 %387, %v362
      %v389 = vpop.permute.xlu0 %388
      %392 = vset.pattern.permute.xlu0 0
      %393 = vperm.xlu0 %392, %v363
      %v394 = vpop.permute.xlu0 %393
      %397 = vset.pattern.permute.xlu0 0
      %398 = vperm.xlu0 %397, %v364
      %v399 = vpop.permute.xlu0 %398
      %402 = vset.pattern.permute.xlu0 0
      %403 = vperm.xlu0 %402, %v365
      %v404 = vpop.permute.xlu0 %403
      %407 = vset.pattern.permute.xlu0 0
      %408 = vperm.xlu0 %407, %v366
      %v409 = vpop.permute.xlu0 %408
      %412 = vset.pattern.permute.xlu0 0
      %413 = vperm.xlu0 %412, %v367
      %v414 = vpop.permute.xlu0 %413
      %417 = vset.pattern.permute.xlu0 0
      %418 = vperm.xlu0 %417, %v368
      %v419 = vpop.permute.xlu0 %418
      %422 = vset.pattern.permute.xlu0 0
      %423 = vperm.xlu0 %422, %v369
      %v424 = vpop.permute.xlu0 %423
      %427 = vset.pattern.permute.xlu0 0
      %428 = vperm.xlu0 %427, %v370
      %v429 = vpop.permute.xlu0 %428
      %432 = vset.pattern.permute.xlu0 0
      %433 = vperm.xlu0 %432, %v371
      %v434 = vpop.permute.xlu0 %433
      %437 = vset.pattern.permute.xlu0 0
      %438 = vperm.xlu0 %437, %v372
      %v439 = vpop.permute.xlu0 %438
      %442 = vset.pattern.permute.xlu0 0
      %443 = vperm.xlu0 %442, %v373
      %v444 = vpop.permute.xlu0 %443
      %447 = vset.pattern.permute.xlu0 0
      %448 = vperm.xlu0 %447, %v374
      %v449 = vpop.permute.xlu0 %448
      %452 = vset.pattern.permute.xlu0 0
      %453 = vperm.xlu0 %452, %v375
      %v454 = vpop.permute.xlu0 %453
      %v456 = vmul.f32 %v321, %v379
      %v457 = vmul.f32 %v323, %v384
      %v458 = vmul.f32 %v326, %v389
      %v459 = vmul.f32 %v328, %v394
      %v460 = vmul.f32 %v331, %v399
      %v461 = vmul.f32 %v333, %v404
      %v462 = vmul.f32 %v336, %v409
      %v463 = vmul.f32 %v338, %v414
      %v464 = vmul.f32 %v341, %v419
      %v465 = vmul.f32 %v343, %v424
      %v466 = vmul.f32 %v346, %v429
      %v467 = vmul.f32 %v348, %v434
      %v468 = vmul.f32 %v351, %v439
      %v469 = vmul.f32 %v353, %v444
      %v470 = vmul.f32 %v356, %v449
      %v471 = vmul.f32 %v358, %v454
      %v472 = vld [vmem:[%s3] sm:$0x1]
      %v474 = vperm.slane %v472, 0
      %v476 = vadd.f32 %v456, %v474
      %v477 = vadd.f32 %v457, %v474
      %v478 = vadd.f32 %v458, %v474
      %v479 = vadd.f32 %v459, %v474
      %v480 = vadd.f32 %v460, %v474
      %v481 = vadd.f32 %v461, %v474
      %v482 = vadd.f32 %v462, %v474
      %v483 = vadd.f32 %v463, %v474
      %v484 = vadd.f32 %v464, %v474
      %v485 = vadd.f32 %v465, %v474
      %v486 = vadd.f32 %v466, %v474
      %v487 = vadd.f32 %v467, %v474
      %v488 = vadd.f32 %v468, %v474
      %v489 = vadd.f32 %v469, %v474
      %v490 = vadd.f32 %v470, %v474
      %v491 = vadd.f32 %v471, %v474
      %vm492 = vcmp.ge.f32.partialorder %v476, 0.0
      %vm493 = vcmp.ge.f32.partialorder %v477, 0.0
      %vm494 = vcmp.ge.f32.partialorder %v478, 0.0
      %vm495 = vcmp.ge.f32.partialorder %v479, 0.0
      %vm496 = vcmp.ge.f32.partialorder %v480, 0.0
      %vm497 = vcmp.ge.f32.partialorder %v481, 0.0
      %vm498 = vcmp.ge.f32.partialorder %v482, 0.0
      %vm499 = vcmp.ge.f32.partialorder %v483, 0.0
      %vm500 = vcmp.ge.f32.partialorder %v484, 0.0
      %vm501 = vcmp.ge.f32.partialorder %v485, 0.0
      %vm502 = vcmp.ge.f32.partialorder %v486, 0.0
      %vm503 = vcmp.ge.f32.partialorder %v487, 0.0
      %vm504 = vcmp.ge.f32.partialorder %v488, 0.0
      %vm505 = vcmp.ge.f32.partialorder %v489, 0.0
      %vm506 = vcmp.ge.f32.partialorder %v490, 0.0
      %vm507 = vcmp.ge.f32.partialorder %v491, 0.0
      %v508 = vmul.f32 %v476, 0.2
      %v509 = vmul.f32 %v477, 0.2
      %v510 = vmul.f32 %v478, 0.2
      %v511 = vmul.f32 %v479, 0.2
      %v512 = vmul.f32 %v480, 0.2
      %v513 = vmul.f32 %v481, 0.2
      %v514 = vmul.f32 %v482, 0.2
      %v515 = vmul.f32 %v483, 0.2
      %v516 = vmul.f32 %v484, 0.2
      %v517 = vmul.f32 %v485, 0.2
      %v518 = vmul.f32 %v486, 0.2
      %v519 = vmul.f32 %v487, 0.2
      %v520 = vmul.f32 %v488, 0.2
      %v521 = vmul.f32 %v489, 0.2
      %v522 = vmul.f32 %v490, 0.2
      %v523 = vmul.f32 %v491, 0.2
      %v524 = vsel %vm492, %v476, %v508
      %v525 = vsel %vm493, %v477, %v509
      %v526 = vsel %vm494, %v478, %v510
      %v527 = vsel %vm495, %v479, %v511
      %v528 = vsel %vm496, %v480, %v512
      %v529 = vsel %vm497, %v481, %v513
      %v530 = vsel %vm498, %v482, %v514
      %v531 = vsel %vm499, %v483, %v515
      %v532 = vsel %vm500, %v484, %v516
      %v533 = vsel %vm501, %v485, %v517
      %v534 = vsel %vm502, %v486, %v518
      %v535 = vsel %vm503, %v487, %v519
      %v536 = vsel %vm504, %v488, %v520
      %v537 = vsel %vm505, %v489, %v521
      %v538 = vsel %vm506, %v490, %v522
      %v539 = vsel %vm507, %v491, %v523
      %540 = vst [vmem:[%s221] sm:$0xff] %v524
      %541 = vst [vmem:[%s221 + $0x8] sm:$0xff] %v525
      %542 = vst [vmem:[%s221 + $0x10] sm:$0xff] %v526
      %543 = vst [vmem:[%s221 + $0x18] sm:$0xff] %v527
      %544 = vst [vmem:[%s221 + $0x20] sm:$0xff] %v528
      %545 = vst [vmem:[%s221 + $0x28] sm:$0xff] %v529
      %546 = vst [vmem:[%s221 + $0x30] sm:$0xff] %v530
      %547 = vst [vmem:[%s221 + $0x38] sm:$0xff] %v531
      %548 = vst [vmem:[%s221 + $0x40] sm:$0xff] %v532
      %549 = vst [vmem:[%s221 + $0x48] sm:$0xff] %v533
      %550 = vst [vmem:[%s221 + $0x50] sm:$0xff] %v534
      %551 = vst [vmem:[%s221 + $0x58] sm:$0xff] %v535
      %552 = vst [vmem:[%s221 + $0x60] sm:$0xff] %v536
      %553 = vst [vmem:[%s221 + $0x68] sm:$0xff] %v537
      %554 = vst [vmem:[%s221 + $0x70] sm:$0xff] %v538
      %555 = vst [vmem:[%s221 + $0x78] sm:$0xff] %v539
      %s556 = smul.u32 16, %s15
      %p557 = scmp.lt.s32.totalorder %s556, 47
      %s558 = scalar_select %p557, %s556, 47
      %s559 = smul.addr %s558, 8
      %s560 = scalar_lea.vmem %s4, %s559
      // Predicated region
      $region37: #{interactive_forward.11} parent=35 // pred_check
        %p561 = pneg %p127
      $region38: #{interactive_forward.11} parent=35 // pred_check_branch
        %563 = sbr.rel (%p561) target = $region40
      $region39: #{interactive_forward.11} parent=35 // pred_region
        %s564 = smul.u32 16, %s15
      $region40: #{interactive_forward.11} parent=35 // pred_fallthru
        _
    $region36: #{interactive_forward.11} parent=5 // pred_fallthru
      _
    %p565 = scmp.le.s32.totalorder 2, %s10
    // Predicated region
    $region41: #{interactive_forward.11} parent=5 // pred_check
      %p566 = pneg %p565
    $region42: #{interactive_forward.11} parent=5 // pred_check_branch
      %568 = sbr.rel (%p566) target = $region44
    $region43: #{interactive_forward.11} parent=5 // pred_region
      %s569 = ssub.s32 %s10, 2
      // Predicated region
      $region45: #{interactive_forward.11} parent=43 // pred_check
        %p570 = pneg %p133
      $region46: #{interactive_forward.11} parent=43 // pred_check_branch
        %572 = sbr.rel (%p570) target = $region48
      $region47: #{interactive_forward.11} parent=43 // pred_region
        %s573 = smul.u32 16, %s16
        %p574 = scmp.lt.s32.totalorder %s573, 47
        %s575 = scalar_select %p574, %s573, 47
        %s576 = smul.addr %s575, 8
        %s577 = scalar_lea.vmem %s4, %s576
      $region48: #{interactive_forward.11} parent=43 // pred_fallthru
        _
    $region44: #{interactive_forward.11} parent=5 // pred_fallthru
      _
  $region6: #{interactive_forward.11} parent=0 // loop_footer
    %s14 = sadd.s32 1, %s10
  $region7: #{interactive_forward.11} parent=0 // loop_footer_branch
    %9 = sbr.rel target = $region3
  $region8: #{interactive_forward.11} parent=0 // loop_exit
    _

// kernel: interactive_forward.6
$region0: #{interactive_forward.6}
  #allocation0 [shape = 'u32[]', space=smem, size = 0x4, offset = 0x4, fixed_abs, tag = 'smem constant byte address 0x4 - core index']
  #allocation1 [shape = 'u32[72,128]{1,0:T(1,128)}', space=vmem, size = 0x9000, scoped, tag = 'internal scratch']
  #allocation2 [shape = 'f32[4,128,1]{2,1,0:T(8,128)}', space=vmem, size = 0x40000, scoped, tag = 'scratch operand']
  #allocation3 [shape = 'f32[4,128,1]{2,1,0:T(8,128)}', space=vmem, size = 0x40000, scoped, tag = 'scratch operand']
  #allocation4 [shape = 'f32[4,128,128]{2,1,0:T(8,128)}', space=vmem, size = 0x40000, scoped, tag = 'scratch operand']
  %s0 = inlined_call_operand.vmem [shape: f32[384,128], index: 0, kind: input, shape index: {}, may-alias: {0,1}]
  %s1 = inlined_call_operand.vmem [shape: f32[384,128], index: 1, kind: input, shape index: {}, may-alias: {0,1}]
  %s2 = inlined_call_operand.vmem [shape: bf16[128,128], index: 2, kind: input, shape index: {}]
  %s3 = inlined_call_operand.vmem [shape: bf16[128,128], index: 3, kind: input, shape index: {}]
  %s4 = inlined_call_operand.vmem [shape: bf16[128,512], index: 4, kind: input, shape index: {}]
  %s5 = inlined_call_operand.vmem [shape: f32[1,128], index: 5, kind: input, shape index: {}]
  %s6 = inlined_call_operand.vmem [shape: f32[1,128], index: 6, kind: input, shape index: {}]
  %s7 = inlined_call_operand.vmem [shape: f32[1,512], index: 7, kind: input, shape index: {}]
  %s8 = inlined_call_operand.vmem [shape: f32[1,128], index: 8, kind: input, shape index: {}]
  %s9 = inlined_call_operand.vmem [shape: f32[1,128], index: 9, kind: input, shape index: {}]
  %s10 = inlined_call_operand.vmem [shape: f32[1,128], index: 10, kind: input, shape index: {}]
  %s11 = inlined_call_operand.vmem [shape: f32[384,128], index: 11, kind: output, shape index: {}]
  %s12 = sld [smem:[#allocation0]]
  $region85: #{interactive_forward.6} parent=0
    _
  %s14 = ssub.s32 1, %s12
  %s15 = scalar_select 0, %s14, %s12
  loop: start=0, step=1, limit=11
  $region2: #{interactive_forward.6} parent=0 // loop_pre_header
    _
  $region3: #{interactive_forward.6} parent=0 // loop_header
    %s17 = sphi 0, %s21
    %p18 = scmp.ge.s32.totalorder %s17, 11
    %s24 = sphi 0, %s36
    %s25 = sphi 0, %s32
    %s26 = sphi 0, %s24
    %s27 = sphi 0, %s25
    %s28 = sphi 0, %s26
    %s29 = sphi 0, %s27
    %s39 = sphi 0, %s41
    %s42 = sphi 0, %s39
    %s43 = sphi 0, %s42
    %s59 = sphi 0, %s43
    %s65 = sphi 0, %s67
    %s68 = sphi 0, %s65
    %s69 = sphi 0, %s68
    %s85 = sphi 0, %s69
    %s89 = sphi 0, %s89
    %s91 = sphi 0, %s89
    %s92 = sphi 0, %s91
    %s106 = sphi 0, %s92
    %s110 = sphi 0, %s110
    %s112 = sphi 0, %s110
    %s113 = sphi 0, %s112
    %s127 = sphi 0, %s113
    %s131 = sphi 0, %s131
    %s133 = sphi 0, %s131
    %s134 = sphi 0, %s133
    %s148 = sphi 0, %s134
    %s152 = sphi 0, %s152
    %s154 = sphi 0, %s152
    %s155 = sphi 0, %s154
    %s169 = sphi 0, %s155
    %s173 = sphi 0, %s173
    %s175 = sphi 0, %s173
    %s176 = sphi 0, %s175
    %s190 = sphi 0, %s176
    %s194 = sphi 0, %s194
    %s196 = sphi 0, %s194
    %s197 = sphi 0, %s196
    %s211 = sphi 0, %s197
    %s215 = sphi 0, %s215
    %s217 = sphi 0, %s215
    %s218 = sphi 0, %s217
    %s232 = sphi 0, %s218
    %s236 = sphi 0, %s236
    %s238 = sphi 0, %s236
    %s239 = sphi 0, %s238
    %s253 = sphi 0, %s239
    %s257 = sphi 0, %s257
    %s259 = sphi 0, %s257
    %s260 = sphi 0, %s259
    %s274 = sphi 0, %s260
    %s280 = sphi 0, %s282
    %s283 = sphi 0, %s280
    %s284 = sphi 0, %s283
    %s300 = sphi 0, %s284
  $region4: #{interactive_forward.6} parent=0 // loop_header_branch
    %20 = sbr.rel (%p18) target = $region8
  $region5: #{interactive_forward.6} parent=0 // loop_body
    %s22 = ssub.s32 %s17, 1
    %s23 = ssub.s32 %s17, 2
    %s30 = sadd.s32 1, %s25
    %p31 = scmp.ge.s32.totalorder %s30, 3
    %s32 = scalar_select %p31, 0, %s30
    %s33 = sadd.s32 1, %s24
    %s34 = scalar_select %p31, %s33, %s24
    %p35 = scmp.ge.s32.totalorder %s34, 3
    %s36 = scalar_select %p35, 0, %s34
    %s37 = ssub.s32 %s24, %s36
    %p38 = scmp.eq.s32.totalorder %s37, 0
    %s40 = sadd.s32 %s39, 1
    %s41 = scalar_select %p38, %s39, %s40
    %p44 = pneg %p38
    %p45 = scmp.eq.s32.totalorder %s17, 8
    %p46 = por %p44, %p45
    %p47 = scmp.ne.s32.totalorder %s39, %s42
    %p48 = scmp.eq.s32.totalorder %s17, 0
    %p49 = por %p47, %p48
    %p50 = scmp.ne.s32.totalorder %s39, %s42
    %p51 = scmp.eq.s32.totalorder %s22, 8
    %p52 = por %p50, %p51
    %p53 = scmp.ne.s32.totalorder %s42, %s43
    %p54 = scmp.eq.s32.totalorder %s22, 0
    %p55 = por %p53, %p54
    %p56 = scmp.ne.s32.totalorder %s42, %s43
    %p57 = scmp.eq.s32.totalorder %s23, 8
    %p58 = por %p56, %p57
    %p60 = scmp.ne.s32.totalorder %s43, %s59
    %p61 = scmp.eq.s32.totalorder %s23, 0
    %p62 = por %p60, %p61
    %s63 = ssub.s32 %s25, %s32
    %p64 = scmp.eq.s32.totalorder %s63, 0
    %s66 = sadd.s32 %s65, 1
    %s67 = scalar_select %p64, %s65, %s66
    %p70 = pneg %p64
    %p71 = scmp.eq.s32.totalorder %s17, 8
    %p72 = por %p70, %p71
    %p73 = scmp.ne.s32.totalorder %s65, %s68
    %p74 = scmp.eq.s32.totalorder %s17, 0
    %p75 = por %p73, %p74
    %p76 = scmp.ne.s32.totalorder %s65, %s68
    %p77 = scmp.eq.s32.totalorder %s22, 8
    %p78 = por %p76, %p77
    %p79 = scmp.ne.s32.totalorder %s68, %s69
    %p80 = scmp.eq.s32.totalorder %s22, 0
    %p81 = por %p79, %p80
    %p82 = scmp.ne.s32.totalorder %s68, %s69
    %p83 = scmp.eq.s32.totalorder %s23, 8
    %p84 = por %p82, %p83
    %p86 = scmp.ne.s32.totalorder %s69, %s85
    %p87 = scmp.eq.s32.totalorder %s23, 0
    %p88 = por %p86, %p87
    %s90 = sadd.s32 %s89, 1
    %p93 = scmp.eq.s32.totalorder %s17, 8
    %p94 = scmp.ne.s32.totalorder %s89, %s91
    %p95 = scmp.eq.s32.totalorder %s17, 0
    %p96 = por %p94, %p95
    %p97 = scmp.ne.s32.totalorder %s89, %s91
    %p98 = scmp.eq.s32.totalorder %s22, 8
    %p99 = por %p97, %p98
    %p100 = scmp.ne.s32.totalorder %s91, %s92
    %p101 = scmp.eq.s32.totalorder %s22, 0
    %p102 = por %p100, %p101
    %p103 = scmp.ne.s32.totalorder %s91, %s92
    %p104 = scmp.eq.s32.totalorder %s23, 8
    %p105 = por %p103, %p104
    %p107 = scmp.ne.s32.totalorder %s92, %s106
    %p108 = scmp.eq.s32.totalorder %s23, 0
    %p109 = por %p107, %p108
    %s111 = sadd.s32 %s110, 1
    %p114 = scmp.eq.s32.totalorder %s17, 8
    %p115 = scmp.ne.s32.totalorder %s110, %s112
    %p116 = scmp.eq.s32.totalorder %s17, 0
    %p117 = por %p115, %p116
    %p118 = scmp.ne.s32.totalorder %s110, %s112
    %p119 = scmp.eq.s32.totalorder %s22, 8
    %p120 = por %p118, %p119
    %p121 = scmp.ne.s32.totalorder %s112, %s113
    %p122 = scmp.eq.s32.totalorder %s22, 0
    %p123 = por %p121, %p122
    %p124 = scmp.ne.s32.totalorder %s112, %s113
    %p125 = scmp.eq.s32.totalorder %s23, 8
    %p126 = por %p124, %p125
    %p128 = scmp.ne.s32.totalorder %s113, %s127
    %p129 = scmp.eq.s32.totalorder %s23, 0
    %p130 = por %p128, %p129
    %s132 = sadd.s32 %s131, 1
    %p135 = scmp.eq.s32.totalorder %s17, 8
    %p136 = scmp.ne.s32.totalorder %s131, %s133
    %p137 = scmp.eq.s32.totalorder %s17, 0
    %p138 = por %p136, %p137
    %p139 = scmp.ne.s32.totalorder %s131, %s133
    %p140 = scmp.eq.s32.totalorder %s22, 8
    %p141 = por %p139, %p140
    %p142 = scmp.ne.s32.totalorder %s133, %s134
    %p143 = scmp.eq.s32.totalorder %s22, 0
    %p144 = por %p142, %p143
    %p145 = scmp.ne.s32.totalorder %s133, %s134
    %p146 = scmp.eq.s32.totalorder %s23, 8
    %p147 = por %p145, %p146
    %p149 = scmp.ne.s32.totalorder %s134, %s148
    %p150 = scmp.eq.s32.totalorder %s23, 0
    %p151 = por %p149, %p150
    %s153 = sadd.s32 %s152, 1
    %p156 = scmp.eq.s32.totalorder %s17, 8
    %p157 = scmp.ne.s32.totalorder %s152, %s154
    %p158 = scmp.eq.s32.totalorder %s17, 0
    %p159 = por %p157, %p158
    %p160 = scmp.ne.s32.totalorder %s152, %s154
    %p161 = scmp.eq.s32.totalorder %s22, 8
    %p162 = por %p160, %p161
    %p163 = scmp.ne.s32.totalorder %s154, %s155
    %p164 = scmp.eq.s32.totalorder %s22, 0
    %p165 = por %p163, %p164
    %p166 = scmp.ne.s32.totalorder %s154, %s155
    %p167 = scmp.eq.s32.totalorder %s23, 8
    %p168 = por %p166, %p167
    %p170 = scmp.ne.s32.totalorder %s155, %s169
    %p171 = scmp.eq.s32.totalorder %s23, 0
    %p172 = por %p170, %p171
    %s174 = sadd.s32 %s173, 1
    %p177 = scmp.eq.s32.totalorder %s17, 8
    %p178 = scmp.ne.s32.totalorder %s173, %s175
    %p179 = scmp.eq.s32.totalorder %s17, 0
    %p180 = por %p178, %p179
    %p181 = scmp.ne.s32.totalorder %s173, %s175
    %p182 = scmp.eq.s32.totalorder %s22, 8
    %p183 = por %p181, %p182
    %p184 = scmp.ne.s32.totalorder %s175, %s176
    %p185 = scmp.eq.s32.totalorder %s22, 0
    %p186 = por %p184, %p185
    %p187 = scmp.ne.s32.totalorder %s175, %s176
    %p188 = scmp.eq.s32.totalorder %s23, 8
    %p189 = por %p187, %p188
    %p191 = scmp.ne.s32.totalorder %s176, %s190
    %p192 = scmp.eq.s32.totalorder %s23, 0
    %p193 = por %p191, %p192
    %s195 = sadd.s32 %s194, 1
    %p198 = scmp.eq.s32.totalorder %s17, 8
    %p199 = scmp.ne.s32.totalorder %s194, %s196
    %p200 = scmp.eq.s32.totalorder %s17, 0
    %p201 = por %p199, %p200
    %p202 = scmp.ne.s32.totalorder %s194, %s196
    %p203 = scmp.eq.s32.totalorder %s22, 8
    %p204 = por %p202, %p203
    %p205 = scmp.ne.s32.totalorder %s196, %s197
    %p206 = scmp.eq.s32.totalorder %s22, 0
    %p207 = por %p205, %p206
    %p208 = scmp.ne.s32.totalorder %s196, %s197
    %p209 = scmp.eq.s32.totalorder %s23, 8
    %p210 = por %p208, %p209
    %p212 = scmp.ne.s32.totalorder %s197, %s211
    %p213 = scmp.eq.s32.totalorder %s23, 0
    %p214 = por %p212, %p213
    %s216 = sadd.s32 %s215, 1
    %p219 = scmp.eq.s32.totalorder %s17, 8
    %p220 = scmp.ne.s32.totalorder %s215, %s217
    %p221 = scmp.eq.s32.totalorder %s17, 0
    %p222 = por %p220, %p221
    %p223 = scmp.ne.s32.totalorder %s215, %s217
    %p224 = scmp.eq.s32.totalorder %s22, 8
    %p225 = por %p223, %p224
    %p226 = scmp.ne.s32.totalorder %s217, %s218
    %p227 = scmp.eq.s32.totalorder %s22, 0
    %p228 = por %p226, %p227
    %p229 = scmp.ne.s32.totalorder %s217, %s218
    %p230 = scmp.eq.s32.totalorder %s23, 8
    %p231 = por %p229, %p230
    %p233 = scmp.ne.s32.totalorder %s218, %s232
    %p234 = scmp.eq.s32.totalorder %s23, 0
    %p235 = por %p233, %p234
    %s237 = sadd.s32 %s236, 1
    %p240 = scmp.eq.s32.totalorder %s17, 8
    %p241 = scmp.ne.s32.totalorder %s236, %s238
    %p242 = scmp.eq.s32.totalorder %s17, 0
    %p243 = por %p241, %p242
    %p244 = scmp.ne.s32.totalorder %s236, %s238
    %p245 = scmp.eq.s32.totalorder %s22, 8
    %p246 = por %p244, %p245
    %p247 = scmp.ne.s32.totalorder %s238, %s239
    %p248 = scmp.eq.s32.totalorder %s22, 0
    %p249 = por %p247, %p248
    %p250 = scmp.ne.s32.totalorder %s238, %s239
    %p251 = scmp.eq.s32.totalorder %s23, 8
    %p252 = por %p250, %p251
    %p254 = scmp.ne.s32.totalorder %s239, %s253
    %p255 = scmp.eq.s32.totalorder %s23, 0
    %p256 = por %p254, %p255
    %s258 = sadd.s32 %s257, 1
    %p261 = scmp.eq.s32.totalorder %s17, 8
    %p262 = scmp.ne.s32.totalorder %s257, %s259
    %p263 = scmp.eq.s32.totalorder %s17, 0
    %p264 = por %p262, %p263
    %p265 = scmp.ne.s32.totalorder %s257, %s259
    %p266 = scmp.eq.s32.totalorder %s22, 8
    %p267 = por %p265, %p266
    %p268 = scmp.ne.s32.totalorder %s259, %s260
    %p269 = scmp.eq.s32.totalorder %s22, 0
    %p270 = por %p268, %p269
    %p271 = scmp.ne.s32.totalorder %s259, %s260
    %p272 = scmp.eq.s32.totalorder %s23, 8
    %p273 = por %p271, %p272
    %p275 = scmp.ne.s32.totalorder %s260, %s274
    %p276 = scmp.eq.s32.totalorder %s23, 0
    %p277 = por %p275, %p276
    %s278 = ssub.s32 %s24, %s36
    %p279 = scmp.eq.s32.totalorder %s278, 0
    %s281 = sadd.s32 %s280, 1
    %s282 = scalar_select %p279, %s280, %s281
    %p285 = pneg %p279
    %p286 = scmp.eq.s32.totalorder %s17, 8
    %p287 = por %p285, %p286
    %p288 = scmp.ne.s32.totalorder %s280, %s283
    %p289 = scmp.eq.s32.totalorder %s17, 0
    %p290 = por %p288, %p289
    %p291 = scmp.ne.s32.totalorder %s280, %s283
    %p292 = scmp.eq.s32.totalorder %s22, 8
    %p293 = por %p291, %p292
    %p294 = scmp.ne.s32.totalorder %s283, %s284
    %p295 = scmp.eq.s32.totalorder %s22, 0
    %p296 = por %p294, %p295
    %p297 = scmp.ne.s32.totalorder %s283, %s284
    %p298 = scmp.eq.s32.totalorder %s23, 8
    %p299 = por %p297, %p298
    %p301 = scmp.ne.s32.totalorder %s284, %s300
    %p302 = scmp.eq.s32.totalorder %s23, 0
    %p303 = por %p301, %p302
    %p304 = scmp.le.s32.totalorder 1, %s17
    %p305 = scmp.lt.s32.totalorder %s17, 10
    %p306 = pnand %p304, %p305
    %p307 = pneg %p306
    // Predicated region
    $region9: #{interactive_forward.6} parent=5 // pred_check
      _
    $region10: #{interactive_forward.6} parent=5 // pred_check_branch
      %309 = sbr.rel (%p306) target = $region12
    $region11: #{interactive_forward.6} parent=5 // pred_region
      %s310 = ssub.s32 %s17, 1
      // Predicated region
      $region13: #{interactive_forward.6} parent=11 // pred_check
        %p311 = pneg %p102
      $region14: #{interactive_forward.6} parent=11 // pred_check_branch
        %313 = sbr.rel (%p311) target = $region16
      $region15: #{interactive_forward.6} parent=11 // pred_region
        _
      $region16: #{interactive_forward.6} parent=11 // pred_fallthru
        _
      // Predicated region
      $region17: #{interactive_forward.6} parent=11 // pred_check
        %p314 = pneg %p123
      $region18: #{interactive_forward.6} parent=11 // pred_check_branch
        %316 = sbr.rel (%p314) target = $region20
      $region19: #{interactive_forward.6} parent=11 // pred_region
        _
      $region20: #{interactive_forward.6} parent=11 // pred_fallthru
        _
      // Predicated region
      $region21: #{interactive_forward.6} parent=11 // pred_check
        %p317 = pneg %p144
      $region22: #{interactive_forward.6} parent=11 // pred_check_branch
        %319 = sbr.rel (%p317) target = $region24
      $region23: #{interactive_forward.6} parent=11 // pred_region
        _
      $region24: #{interactive_forward.6} parent=11 // pred_fallthru
        _
      // Predicated region
      $region25: #{interactive_forward.6} parent=11 // pred_check
        %p320 = pneg %p165
      $region26: #{interactive_forward.6} parent=11 // pred_check_branch
        %322 = sbr.rel (%p320) target = $region28
      $region27: #{interactive_forward.6} parent=11 // pred_region
        _
      $region28: #{interactive_forward.6} parent=11 // pred_fallthru
        _
      // Predicated region
      $region29: #{interactive_forward.6} parent=11 // pred_check
        %p323 = pneg %p186
      $region30: #{interactive_forward.6} parent=11 // pred_check_branch
        %325 = sbr.rel (%p323) target = $region32
      $region31: #{interactive_forward.6} parent=11 // pred_region
        _
      $region32: #{interactive_forward.6} parent=11 // pred_fallthru
        _
      // Predicated region
      $region33: #{interactive_forward.6} parent=11 // pred_check
        %p326 = pneg %p207
      $region34: #{interactive_forward.6} parent=11 // pred_check_branch
        %328 = sbr.rel (%p326) target = $region36
      $region35: #{interactive_forward.6} parent=11 // pred_region
        _
      $region36: #{interactive_forward.6} parent=11 // pred_fallthru
        _
      // Predicated region
      $region37: #{interactive_forward.6} parent=11 // pred_check
        %p329 = pneg %p228
      $region38: #{interactive_forward.6} parent=11 // pred_check_branch
        %331 = sbr.rel (%p329) target = $region40
      $region39: #{interactive_forward.6} parent=11 // pred_region
        _
      $region40: #{interactive_forward.6} parent=11 // pred_fallthru
        _
      // Predicated region
      $region41: #{interactive_forward.6} parent=11 // pred_check
        %p332 = pneg %p249
      $region42: #{interactive_forward.6} parent=11 // pred_check_branch
        %334 = sbr.rel (%p332) target = $region44
      $region43: #{interactive_forward.6} parent=11 // pred_region
        _
      $region44: #{interactive_forward.6} parent=11 // pred_fallthru
        _
      // Predicated region
      $region45: #{interactive_forward.6} parent=11 // pred_check
        %p335 = pneg %p270
      $region46: #{interactive_forward.6} parent=11 // pred_check_branch
        %337 = sbr.rel (%p335) target = $region48
      $region47: #{interactive_forward.6} parent=11 // pred_region
        _
      $region48: #{interactive_forward.6} parent=11 // pred_fallthru
        _
    $region12: #{interactive_forward.6} parent=5 // pred_fallthru
      _
    %p338 = scmp.lt.s32.totalorder %s17, 9
    // Predicated region
    $region49: #{interactive_forward.6} parent=5 // pred_check
      %p339 = pneg %p338
    $region50: #{interactive_forward.6} parent=5 // pred_check_branch
      %341 = sbr.rel (%p339) target = $region52
    $region51: #{interactive_forward.6} parent=5 // pred_region
      // Predicated region
      $region53: #{interactive_forward.6} parent=51 // pred_check
        %p342 = pneg %p49
      $region54: #{interactive_forward.6} parent=51 // pred_check_branch
        %344 = sbr.rel (%p342) target = $region56
      $region55: #{interactive_forward.6} parent=51 // pred_region
        %s345 = smul.u32 16, %s24
        %p346 = scmp.lt.s32.totalorder %s345, 47
        %s347 = scalar_select %p346, %s345, 47
        %s348 = smul.addr %s347, 8
        %s349 = scalar_lea.vmem %s0, %s348
        %s350 = smul.u32 16, %s24
      $region56: #{interactive_forward.6} parent=51 // pred_fallthru
        _
      // Predicated region
      $region57: #{interactive_forward.6} parent=51 // pred_check
        %p351 = pneg %p75
      $region58: #{interactive_forward.6} parent=51 // pred_check_branch
        %353 = sbr.rel (%p351) target = $region60
      $region59: #{interactive_forward.6} parent=51 // pred_region
        %s354 = smul.u32 16, %s25
        %p355 = scmp.lt.s32.totalorder %s354, 47
        %s356 = scalar_select %p355, %s354, 47
        %s357 = smul.addr %s356, 8
        %s358 = scalar_lea.vmem %s1, %s357
        %s359 = smul.u32 16, %s25
      $region60: #{interactive_forward.6} parent=51 // pred_fallthru
        _
    $region52: #{interactive_forward.6} parent=5 // pred_fallthru
      _
    %p360 = scmp.le.s32.totalorder 1, %s17
    %p361 = scmp.lt.s32.totalorder %s17, 10
    %p362 = pnand %p360, %p361
    %p363 = pneg %p362
    // Predicated region
    $region61: #{interactive_forward.6} parent=5 // pred_check
      _
    $region62: #{interactive_forward.6} parent=5 // pred_check_branch
      %365 = sbr.rel (%p362) target = $region64
    $region63: #{interactive_forward.6} parent=5 // pred_region
      %s366 = ssub.s32 %s17, 1
      %s367 = smul.u32 16, %s26
      %p368 = scmp.lt.s32.totalorder %s367, 47
      %s369 = scalar_select %p368, %s367, 47
      %s370 = smul.addr %s369, 8
      %s371 = scalar_lea.vmem %s0, %s370
      %p372 = pneg %p55
      %p373 = pneg %p52
      %s374 = smul.u32 16, %s27
      %p375 = scmp.lt.s32.totalorder %s374, 47
      %s376 = scalar_select %p375, %s374, 47
      %s377 = smul.addr %s376, 8
      %s378 = scalar_lea.vmem %s1, %s377
      %p379 = pneg %p81
      %p380 = pneg %p78
      %p381 = pneg %p102
      %p382 = pneg %p99
      %p383 = pneg %p123
      %p384 = pneg %p120
      %p385 = pneg %p144
      %p386 = pneg %p141
      %p387 = pneg %p165
      %p388 = pneg %p162
      %p389 = pneg %p186
      %p390 = pneg %p183
      %p391 = pneg %p207
      %p392 = pneg %p204
      %p393 = pneg %p228
      %p394 = pneg %p225
      %p395 = pneg %p249
      %p396 = pneg %p246
      %p397 = pneg %p270
      %p398 = pneg %p267
      %p399 = pneg %p296
      %p400 = pneg %p293
      %s401 = smul.u32 16, %s26
      %p402 = scmp.lt.s32.totalorder %s401, 47
      %s403 = scalar_select %p402, %s401, 47
      %s404 = smul.addr %s403, 8
      %s405 = scalar_lea.vmem %s11, %s404
      %s406 = smul.u32 16, %s26
      %p407 = scmp.lt.s32.totalorder %s406, 47
      %s408 = scalar_select %p407, %s406, 47
      %s409 = smul.addr %s408, 8
      %s410 = scalar_lea.vmem %s0, %s409
      %s411 = smul.u32 16, %s26
      %s412 = smul.u32 16, %s27
      %p413 = scmp.lt.s32.totalorder %s412, 47
      %s414 = scalar_select %p413, %s412, 47
      %s415 = smul.addr %s414, 8
      %s416 = scalar_lea.vmem %s1, %s415
      %s417 = smul.u32 16, %s27
      %s418 = smul.u32 16, %s26
      %p419 = scmp.lt.s32.totalorder %s418, 47
      %s420 = scalar_select %p419, %s418, 47
      %s421 = smul.addr %s420, 8
      %s422 = scalar_lea.vmem %s11, %s421
      %s423 = smul.u32 16, %s26
      %p424 = scmp.eq.s32.totalorder %s27, 0
      // Predicated region
      $region65: #{interactive_forward.6} parent=63 // pred_check
        %p425 = pneg %p424
      $region66: #{interactive_forward.6} parent=63 // pred_check_branch
        %427 = sbr.rel (%p425) target = $region68
      $region67: #{interactive_forward.6} parent=63 // pred_region
        %vm428 = vcmask 7168
        %429 = vst.msk [vmem:[#allocation2] sm:$0xff] %vm428, -1e+30
        %430 = vst.msk [vmem:[#allocation2 + $0x8] sm:$0xff] %vm428, -1e+30
        %431 = vst.msk [vmem:[#allocation2 + $0x10] sm:$0xff] %vm428, -1e+30
        %432 = vst.msk [vmem:[#allocation2 + $0x18] sm:$0xff] %vm428, -1e+30
        %433 = vst.msk [vmem:[#allocation2 + $0x20] sm:$0xff] %vm428, -1e+30
        %434 = vst.msk [vmem:[#allocation2 + $0x28] sm:$0xff] %vm428, -1e+30
        %435 = vst.msk [vmem:[#allocation2 + $0x30] sm:$0xff] %vm428, -1e+30
        %436 = vst.msk [vmem:[#allocation2 + $0x38] sm:$0xff] %vm428, -1e+30
        %437 = vst.msk [vmem:[#allocation2 + $0x40] sm:$0xff] %vm428, -1e+30
        %438 = vst.msk [vmem:[#allocation2 + $0x48] sm:$0xff] %vm428, -1e+30
        %439 = vst.msk [vmem:[#allocation2 + $0x50] sm:$0xff] %vm428, -1e+30
        %440 = vst.msk [vmem:[#allocation2 + $0x58] sm:$0xff] %vm428, -1e+30
        %441 = vst.msk [vmem:[#allocation2 + $0x60] sm:$0xff] %vm428, -1e+30
        %442 = vst.msk [vmem:[#allocation2 + $0x68] sm:$0xff] %vm428, -1e+30
        %443 = vst.msk [vmem:[#allocation2 + $0x70] sm:$0xff] %vm428, -1e+30
        %444 = vst.msk [vmem:[#allocation2 + $0x78] sm:$0xff] %vm428, -1e+30
        %445 = vst.msk [vmem:[#allocation2 + $0x80] sm:$0xff] %vm428, -1e+30
        %446 = vst.msk [vmem:[#allocation2 + $0x88] sm:$0xff] %vm428, -1e+30
        %447 = vst.msk [vmem:[#allocation2 + $0x90] sm:$0xff] %vm428, -1e+30
        %448 = vst.msk [vmem:[#allocation2 + $0x98] sm:$0xff] %vm428, -1e+30
        %449 = vst.msk [vmem:[#allocation2 + $0xa0] sm:$0xff] %vm428, -1e+30
        %450 = vst.msk [vmem:[#allocation2 + $0xa8] sm:$0xff] %vm428, -1e+30
        %451 = vst.msk [vmem:[#allocation2 + $0xb0] sm:$0xff] %vm428, -1e+30
        %452 = vst.msk [vmem:[#allocation2 + $0xb8] sm:$0xff] %vm428, -1e+30
        %453 = vst.msk [vmem:[#allocation2 + $0xc0] sm:$0xff] %vm428, -1e+30
        %454 = vst.msk [vmem:[#allocation2 + $0xc8] sm:$0xff] %vm428, -1e+30
        %455 = vst.msk [vmem:[#allocation2 + $0xd0] sm:$0xff] %vm428, -1e+30
        %456 = vst.msk [vmem:[#allocation2 + $0xd8] sm:$0xff] %vm428, -1e+30
        %457 = vst.msk [vmem:[#allocation2 + $0xe0] sm:$0xff] %vm428, -1e+30
        %458 = vst.msk [vmem:[#allocation2 + $0xe8] sm:$0xff] %vm428, -1e+30
        %459 = vst.msk [vmem:[#allocation2 + $0xf0] sm:$0xff] %vm428, -1e+30
        %460 = vst.msk [vmem:[#allocation2 + $0xf8] sm:$0xff] %vm428, -1e+30
        %461 = vst.msk [vmem:[#allocation2 + $0x100] sm:$0xff] %vm428, -1e+30
        %462 = vst.msk [vmem:[#allocation2 + $0x108] sm:$0xff] %vm428, -1e+30
        %463 = vst.msk [vmem:[#allocation2 + $0x110] sm:$0xff] %vm428, -1e+30
        %464 = vst.msk [vmem:[#allocation2 + $0x118] sm:$0xff] %vm428, -1e+30
        %465 = vst.msk [vmem:[#allocation2 + $0x120] sm:$0xff] %vm428, -1e+30
        %466 = vst.msk [vmem:[#allocation2 + $0x128] sm:$0xff] %vm428, -1e+30
        %467 = vst.msk [vmem:[#allocation2 + $0x130] sm:$0xff] %vm428, -1e+30
        %468 = vst.msk [vmem:[#allocation2 + $0x138] sm:$0xff] %vm428, -1e+30
        %469 = vst.msk [vmem:[#allocation2 + $0x140] sm:$0xff] %vm428, -1e+30
        %470 = vst.msk [vmem:[#allocation2 + $0x148] sm:$0xff] %vm428, -1e+30
        %471 = vst.msk [vmem:[#allocation2 + $0x150] sm:$0xff] %vm428, -1e+30
        %472 = vst.msk [vmem:[#allocation2 + $0x158] sm:$0xff] %vm428, -1e+30
        %473 = vst.msk [vmem:[#allocation2 + $0x160] sm:$0xff] %vm428, -1e+30
        %474 = vst.msk [vmem:[#allocation2 + $0x168] sm:$0xff] %vm428, -1e+30
        %475 = vst.msk [vmem:[#allocation2 + $0x170] sm:$0xff] %vm428, -1e+30
        %476 = vst.msk [vmem:[#allocation2 + $0x178] sm:$0xff] %vm428, -1e+30
        %477 = vst.msk [vmem:[#allocation2 + $0x180] sm:$0xff] %vm428, -1e+30
        %478 = vst.msk [vmem:[#allocation2 + $0x188] sm:$0xff] %vm428, -1e+30
        %479 = vst.msk [vmem:[#allocation2 + $0x190] sm:$0xff] %vm428, -1e+30
        %480 = vst.msk [vmem:[#allocation2 + $0x198] sm:$0xff] %vm428, -1e+30
        %481 = vst.msk [vmem:[#allocation2 + $0x1a0] sm:$0xff] %vm428, -1e+30
        %482 = vst.msk [vmem:[#allocation2 + $0x1a8] sm:$0xff] %vm428, -1e+30
        %483 = vst.msk [vmem:[#allocation2 + $0x1b0] sm:$0xff] %vm428, -1e+30
        %484 = vst.msk [vmem:[#allocation2 + $0x1b8] sm:$0xff] %vm428, -1e+30
        %485 = vst.msk [vmem:[#allocation2 + $0x1c0] sm:$0xff] %vm428, -1e+30
        %486 = vst.msk [vmem:[#allocation2 + $0x1c8] sm:$0xff] %vm428, -1e+30
        %487 = vst.msk [vmem:[#allocation2 + $0x1d0] sm:$0xff] %vm428, -1e+30
        %488 = vst.msk [vmem:[#allocation2 + $0x1d8] sm:$0xff] %vm428, -1e+30
        %489 = vst.msk [vmem:[#allocation2 + $0x1e0] sm:$0xff] %vm428, -1e+30
        %490 = vst.msk [vmem:[#allocation2 + $0x1e8] sm:$0xff] %vm428, -1e+30
        %491 = vst.msk [vmem:[#allocation2 + $0x1f0] sm:$0xff] %vm428, -1e+30
        %492 = vst.msk [vmem:[#allocation2 + $0x1f8] sm:$0xff] %vm428, -1e+30
        %493 = vst.msk [vmem:[#allocation3] sm:$0xff] %vm428, 0.0
        %494 = vst.msk [vmem:[#allocation3 + $0x8] sm:$0xff] %vm428, 0.0
        %495 = vst.msk [vmem:[#allocation3 + $0x10] sm:$0xff] %vm428, 0.0
        %496 = vst.msk [vmem:[#allocation3 + $0x18] sm:$0xff] %vm428, 0.0
        %497 = vst.msk [vmem:[#allocation3 + $0x20] sm:$0xff] %vm428, 0.0
        %498 = vst.msk [vmem:[#allocation3 + $0x28] sm:$0xff] %vm428, 0.0
        %499 = vst.msk [vmem:[#allocation3 + $0x30] sm:$0xff] %vm428, 0.0
        %500 = vst.msk [vmem:[#allocation3 + $0x38] sm:$0xff] %vm428, 0.0
        %501 = vst.msk [vmem:[#allocation3 + $0x40] sm:$0xff] %vm428, 0.0
        %502 = vst.msk [vmem:[#allocation3 + $0x48] sm:$0xff] %vm428, 0.0
        %503 = vst.msk [vmem:[#allocation3 + $0x50] sm:$0xff] %vm428, 0.0
        %504 = vst.msk [vmem:[#allocation3 + $0x58] sm:$0xff] %vm428, 0.0
        %505 = vst.msk [vmem:[#allocation3 + $0x60] sm:$0xff] %vm428, 0.0
        %506 = vst.msk [vmem:[#allocation3 + $0x68] sm:$0xff] %vm428, 0.0
        %507 = vst.msk [vmem:[#allocation3 + $0x70] sm:$0xff] %vm428, 0.0
        %508 = vst.msk [vmem:[#allocation3 + $0x78] sm:$0xff] %vm428, 0.0
        %509 = vst.msk [vmem:[#allocation3 + $0x80] sm:$0xff] %vm428, 0.0
        %510 = vst.msk [vmem:[#allocation3 + $0x88] sm:$0xff] %vm428, 0.0
        %511 = vst.msk [vmem:[#allocation3 + $0x90] sm:$0xff] %vm428, 0.0
        %512 = vst.msk [vmem:[#allocation3 + $0x98] sm:$0xff] %vm428, 0.0
        %513 = vst.msk [vmem:[#allocation3 + $0xa0] sm:$0xff] %vm428, 0.0
        %514 = vst.msk [vmem:[#allocation3 + $0xa8] sm:$0xff] %vm428, 0.0
        %515 = vst.msk [vmem:[#allocation3 + $0xb0] sm:$0xff] %vm428, 0.0
        %516 = vst.msk [vmem:[#allocation3 + $0xb8] sm:$0xff] %vm428, 0.0
        %517 = vst.msk [vmem:[#allocation3 + $0xc0] sm:$0xff] %vm428, 0.0
        %518 = vst.msk [vmem:[#allocation3 + $0xc8] sm:$0xff] %vm428, 0.0
        %519 = vst.msk [vmem:[#allocation3 + $0xd0] sm:$0xff] %vm428, 0.0
        %520 = vst.msk [vmem:[#allocation3 + $0xd8] sm:$0xff] %vm428, 0.0
        %521 = vst.msk [vmem:[#allocation3 + $0xe0] sm:$0xff] %vm428, 0.0
        %522 = vst.msk [vmem:[#allocation3 + $0xe8] sm:$0xff] %vm428, 0.0
        %523 = vst.msk [vmem:[#allocation3 + $0xf0] sm:$0xff] %vm428, 0.0
        %524 = vst.msk [vmem:[#allocation3 + $0xf8] sm:$0xff] %vm428, 0.0
        %525 = vst.msk [vmem:[#allocation3 + $0x100] sm:$0xff] %vm428, 0.0
        %526 = vst.msk [vmem:[#allocation3 + $0x108] sm:$0xff] %vm428, 0.0
        %527 = vst.msk [vmem:[#allocation3 + $0x110] sm:$0xff] %vm428, 0.0
        %528 = vst.msk [vmem:[#allocation3 + $0x118] sm:$0xff] %vm428, 0.0
        %529 = vst.msk [vmem:[#allocation3 + $0x120] sm:$0xff] %vm428, 0.0
        %530 = vst.msk [vmem:[#allocation3 + $0x128] sm:$0xff] %vm428, 0.0
        %531 = vst.msk [vmem:[#allocation3 + $0x130] sm:$0xff] %vm428, 0.0
        %532 = vst.msk [vmem:[#allocation3 + $0x138] sm:$0xff] %vm428, 0.0
        %533 = vst.msk [vmem:[#allocation3 + $0x140] sm:$0xff] %vm428, 0.0
        %534 = vst.msk [vmem:[#allocation3 + $0x148] sm:$0xff] %vm428, 0.0
        %535 = vst.msk [vmem:[#allocation3 + $0x150] sm:$0xff] %vm428, 0.0
        %536 = vst.msk [vmem:[#allocation3 + $0x158] sm:$0xff] %vm428, 0.0
        %537 = vst.msk [vmem:[#allocation3 + $0x160] sm:$0xff] %vm428, 0.0
        %538 = vst.msk [vmem:[#allocation3 + $0x168] sm:$0xff] %vm428, 0.0
        %539 = vst.msk [vmem:[#allocation3 + $0x170] sm:$0xff] %vm428, 0.0
        %540 = vst.msk [vmem:[#allocation3 + $0x178] sm:$0xff] %vm428, 0.0
        %541 = vst.msk [vmem:[#allocation3 + $0x180] sm:$0xff] %vm428, 0.0
        %542 = vst.msk [vmem:[#allocation3 + $0x188] sm:$0xff] %vm428, 0.0
        %543 = vst.msk [vmem:[#allocation3 + $0x190] sm:$0xff] %vm428, 0.0
        %544 = vst.msk [vmem:[#allocation3 + $0x198] sm:$0xff] %vm428, 0.0
        %545 = vst.msk [vmem:[#allocation3 + $0x1a0] sm:$0xff] %vm428, 0.0
        %546 = vst.msk [vmem:[#allocation3 + $0x1a8] sm:$0xff] %vm428, 0.0
        %547 = vst.msk [vmem:[#allocation3 + $0x1b0] sm:$0xff] %vm428, 0.0
        %548 = vst.msk [vmem:[#allocation3 + $0x1b8] sm:$0xff] %vm428, 0.0
        %549 = vst.msk [vmem:[#allocation3 + $0x1c0] sm:$0xff] %vm428, 0.0
        %550 = vst.msk [vmem:[#allocation3 + $0x1c8] sm:$0xff] %vm428, 0.0
        %551 = vst.msk [vmem:[#allocation3 + $0x1d0] sm:$0xff] %vm428, 0.0
        %552 = vst.msk [vmem:[#allocation3 + $0x1d8] sm:$0xff] %vm428, 0.0
        %553 = vst.msk [vmem:[#allocation3 + $0x1e0] sm:$0xff] %vm428, 0.0
        %554 = vst.msk [vmem:[#allocation3 + $0x1e8] sm:$0xff] %vm428, 0.0
        %555 = vst.msk [vmem:[#allocation3 + $0x1f0] sm:$0xff] %vm428, 0.0
        %556 = vst.msk [vmem:[#allocation3 + $0x1f8] sm:$0xff] %vm428, 0.0
        %557 = vst [vmem:[#allocation4] sm:$0xff] 0.0
        %558 = vst [vmem:[#allocation4 + $0x8] sm:$0xff] 0.0
        %559 = vst [vmem:[#allocation4 + $0x10] sm:$0xff] 0.0
        %560 = vst [vmem:[#allocation4 + $0x18] sm:$0xff] 0.0
        %561 = vst [vmem:[#allocation4 + $0x20] sm:$0xff] 0.0
        %562 = vst [vmem:[#allocation4 + $0x28] sm:$0xff] 0.0
        %563 = vst [vmem:[#allocation4 + $0x30] sm:$0xff] 0.0
        %564 = vst [vmem:[#allocation4 + $0x38] sm:$0xff] 0.0
        %565 = vst [vmem:[#allocation4 + $0x40] sm:$0xff] 0.0
        %566 = vst [vmem:[#allocation4 + $0x48] sm:$0xff] 0.0
        %567 = vst [vmem:[#allocation4 + $0x50] sm:$0xff] 0.0
        %568 = vst [vmem:[#allocation4 + $0x58] sm:$0xff] 0.0
        %569 = vst [vmem:[#allocation4 + $0x60] sm:$0xff] 0.0
        %570 = vst [vmem:[#allocation4 + $0x68] sm:$0xff] 0.0
        %571 = vst [vmem:[#allocation4 + $0x70] sm:$0xff] 0.0
        %572 = vst [vmem:[#allocation4 + $0x78] sm:$0xff] 0.0
        %573 = vst [vmem:[#allocation4 + $0x80] sm:$0xff] 0.0
        %574 = vst [vmem:[#allocation4 + $0x88] sm:$0xff] 0.0
        %575 = vst [vmem:[#allocation4 + $0x90] sm:$0xff] 0.0
        %576 = vst [vmem:[#allocation4 + $0x98] sm:$0xff] 0.0
        %577 = vst [vmem:[#allocation4 + $0xa0] sm:$0xff] 0.0
        %578 = vst [vmem:[#allocation4 + $0xa8] sm:$0xff] 0.0
        %579 = vst [vmem:[#allocation4 + $0xb0] sm:$0xff] 0.0
        %580 = vst [vmem:[#allocation4 + $0xb8] sm:$0xff] 0.0
        %581 = vst [vmem:[#allocation4 + $0xc0] sm:$0xff] 0.0
        %582 = vst [vmem:[#allocation4 + $0xc8] sm:$0xff] 0.0
        %583 = vst [vmem:[#allocation4 + $0xd0] sm:$0xff] 0.0
        %584 = vst [vmem:[#allocation4 + $0xd8] sm:$0xff] 0.0
        %585 = vst [vmem:[#allocation4 + $0xe0] sm:$0xff] 0.0
        %586 = vst [vmem:[#allocation4 + $0xe8] sm:$0xff] 0.0
        %587 = vst [vmem:[#allocation4 + $0xf0] sm:$0xff] 0.0
        %588 = vst [vmem:[#allocation4 + $0xf8] sm:$0xff] 0.0
        %589 = vst [vmem:[#allocation4 + $0x100] sm:$0xff] 0.0
        %590 = vst [vmem:[#allocation4 + $0x108] sm:$0xff] 0.0
        %591 = vst [vmem:[#allocation4 + $0x110] sm:$0xff] 0.0
        %592 = vst [vmem:[#allocation4 + $0x118] sm:$0xff] 0.0
        %593 = vst [vmem:[#allocation4 + $0x120] sm:$0xff] 0.0
        %594 = vst [vmem:[#allocation4 + $0x128] sm:$0xff] 0.0
        %595 = vst [vmem:[#allocation4 + $0x130] sm:$0xff] 0.0
        %596 = vst [vmem:[#allocation4 + $0x138] sm:$0xff] 0.0
        %597 = vst [vmem:[#allocation4 + $0x140] sm:$0xff] 0.0
        %598 = vst [vmem:[#allocation4 + $0x148] sm:$0xff] 0.0
        %599 = vst [vmem:[#allocation4 + $0x150] sm:$0xff] 0.0
        %600 = vst [vmem:[#allocation4 + $0x158] sm:$0xff] 0.0
        %601 = vst [vmem:[#allocation4 + $0x160] sm:$0xff] 0.0
        %602 = vst [vmem:[#allocation4 + $0x168] sm:$0xff] 0.0
        %603 = vst [vmem:[#allocation4 + $0x170] sm:$0xff] 0.0
        %604 = vst [vmem:[#allocation4 + $0x178] sm:$0xff] 0.0
        %605 = vst [vmem:[#allocation4 + $0x180] sm:$0xff] 0.0
        %606 = vst [vmem:[#allocation4 + $0x188] sm:$0xff] 0.0
        %607 = vst [vmem:[#allocation4 + $0x190] sm:$0xff] 0.0
        %608 = vst [vmem:[#allocation4 + $0x198] sm:$0xff] 0.0
        %609 = vst [vmem:[#allocation4 + $0x1a0] sm:$0xff] 0.0
        %610 = vst [vmem:[#allocation4 + $0x1a8] sm:$0xff] 0.0
        %611 = vst [vmem:[#allocation4 + $0x1b0] sm:$0xff] 0.0
        %612 = vst [vmem:[#allocation4 + $0x1b8] sm:$0xff] 0.0
        %613 = vst [vmem:[#allocation4 + $0x1c0] sm:$0xff] 0.0
        %614 = vst [vmem:[#allocation4 + $0x1c8] sm:$0xff] 0.0
        %615 = vst [vmem:[#allocation4 + $0x1d0] sm:$0xff] 0.0
        %616 = vst [vmem:[#allocation4 + $0x1d8] sm:$0xff] 0.0
        %617 = vst [vmem:[#allocation4 + $0x1e0] sm:$0xff] 0.0
        %618 = vst [vmem:[#allocation4 + $0x1e8] sm:$0xff] 0.0
        %619 = vst [vmem:[#allocation4 + $0x1f0] sm:$0xff] 0.0
        %620 = vst [vmem:[#allocation4 + $0x1f8] sm:$0xff] 0.0
      $region68: #{interactive_forward.6} parent=63 // pred_fallthru
        _
      %v621 = vld [vmem:[%s410] sm:$0xff]
      %v622 = vld [vmem:[%s410 + $0x8] sm:$0xff]
      %v623 = vld [vmem:[%s410 + $0x10] sm:$0xff]
      %v624 = vld [vmem:[%s410 + $0x18] sm:$0xff]
      %v625 = vld [vmem:[%s410 + $0x20] sm:$0xff]
      %v626 = vld [vmem:[%s410 + $0x28] sm:$0xff]
      %v627 = vld [vmem:[%s410 + $0x30] sm:$0xff]
      %v628 = vld [vmem:[%s410 + $0x38] sm:$0xff]
      %v629 = vld [vmem:[%s410 + $0x40] sm:$0xff]
      %v630 = vld [vmem:[%s410 + $0x48] sm:$0xff]
      %v631 = vld [vmem:[%s410 + $0x50] sm:$0xff]
      %v632 = vld [vmem:[%s410 + $0x58] sm:$0xff]
      %v633 = vld [vmem:[%s410 + $0x60] sm:$0xff]
      %v634 = vld [vmem:[%s410 + $0x68] sm:$0xff]
      %v635 = vld [vmem:[%s410 + $0x70] sm:$0xff]
      %v636 = vld [vmem:[%s410 + $0x78] sm:$0xff]
      %v637 = vld [vmem:[%s416] sm:$0xff]
      %v638 = vld [vmem:[%s416 + $0x8] sm:$0xff]
      %v639 = vld [vmem:[%s416 + $0x10] sm:$0xff]
      %v640 = vld [vmem:[%s416 + $0x18] sm:$0xff]
      %v641 = vld [vmem:[%s416 + $0x20] sm:$0xff]
      %v642 = vld [vmem:[%s416 + $0x28] sm:$0xff]
      %v643 = vld [vmem:[%s416 + $0x30] sm:$0xff]
      %v644 = vld [vmem:[%s416 + $0x38] sm:$0xff]
      %v645 = vld [vmem:[%s416 + $0x40] sm:$0xff]
      %v646 = vld [vmem:[%s416 + $0x48] sm:$0xff]
      %v647 = vld [vmem:[%s416 + $0x50] sm:$0xff]
      %v648 = vld [vmem:[%s416 + $0x58] sm:$0xff]
      %v649 = vld [vmem:[%s416 + $0x60] sm:$0xff]
      %v650 = vld [vmem:[%s416 + $0x68] sm:$0xff]
      %v651 = vld [vmem:[%s416 + $0x70] sm:$0xff]
      %v652 = vld [vmem:[%s416 + $0x78] sm:$0xff]
      %v653 = vpack.c.bf16 %v638, %v637
      %v654 = vpack.c.bf16 %v640, %v639
      %v655 = vpack.c.bf16 %v642, %v641
      %v656 = vpack.c.bf16 %v644, %v643
      %v657 = vpack.c.bf16 %v646, %v645
      %v658 = vpack.c.bf16 %v648, %v647
      %v659 = vpack.c.bf16 %v650, %v649
      %v660 = vpack.c.bf16 %v652, %v651
      %v661 = vpack.c.bf16 %v622, %v621
      %v662 = vpack.c.bf16 %v624, %v623
      %v663 = vpack.c.bf16 %v626, %v625
      %v664 = vpack.c.bf16 %v628, %v627
      %v665 = vpack.c.bf16 %v630, %v629
      %v666 = vpack.c.bf16 %v632, %v631
      %v667 = vpack.c.bf16 %v634, %v633
      %v668 = vpack.c.bf16 %v636, %v635
      %v669 = vld [vmem:[%s2] sm:$0xf]
      %v670 = vld [vmem:[%s2 + $0x4] sm:$0xf]
      %v671 = vld [vmem:[%s2 + $0x8] sm:$0xf]
      %v672 = vld [vmem:[%s2 + $0xc] sm:$0xf]
      %v673 = vld [vmem:[%s2 + $0x10] sm:$0xf]
      %v674 = vld [vmem:[%s2 + $0x14] sm:$0xf]
      %v675 = vld [vmem:[%s2 + $0x18] sm:$0xf]
      %v676 = vld [vmem:[%s2 + $0x1c] sm:$0xf]
      %v677 = vld [vmem:[%s2 + $0x20] sm:$0xf]
      %v678 = vld [vmem:[%s2 + $0x24] sm:$0xf]
      %v679 = vld [vmem:[%s2 + $0x28] sm:$0xf]
      %v680 = vld [vmem:[%s2 + $0x2c] sm:$0xf]
      %v681 = vld [vmem:[%s2 + $0x30] sm:$0xf]
      %v682 = vld [vmem:[%s2 + $0x34] sm:$0xf]
      %v683 = vld [vmem:[%s2 + $0x38] sm:$0xf]
      %v684 = vld [vmem:[%s2 + $0x3c] sm:$0xf]
      %v685 = vld [vmem:[%s5] sm:$0x1]
      %v687 = vperm.slane %v685, 0
      %v705 = vunpack.c.l.b16 %v669
      %v706 = vunpack.c.l.b16 %v670
      %v707 = vunpack.c.l.b16 %v671
      %v708 = vunpack.c.l.b16 %v672
      %v709 = vunpack.c.l.b16 %v673
      %v710 = vunpack.c.l.b16 %v674
      %v711 = vunpack.c.l.b16 %v675
      %v712 = vunpack.c.l.b16 %v676
      %v713 = vunpack.c.l.b16 %v677
      %v714 = vunpack.c.l.b16 %v678
      %v715 = vunpack.c.l.b16 %v679
      %v716 = vunpack.c.l.b16 %v680
      %v717 = vunpack.c.l.b16 %v681
      %v718 = vunpack.c.l.b16 %v682
      %v719 = vunpack.c.l.b16 %v683
      %v720 = vunpack.c.l.b16 %v684
      %v721 = vpack.c.b16 %v706, %v705
      %v722 = vpack.c.b16 %v708, %v707
      %v723 = vpack.c.b16 %v710, %v709
      %v724 = vpack.c.b16 %v712, %v711
      %v725 = vpack.c.b16 %v714, %v713
      %v726 = vpack.c.b16 %v716, %v715
      %v727 = vpack.c.b16 %v718, %v717
      %v728 = vpack.c.b16 %v720, %v719
      %737 = vmatpush.bf16.msra.mxu0 %v728
      %738 = vmatpush.bf16.msra.mxu0 %v727
      %739 = vmatpush.bf16.msra.mxu0 %v726
      %740 = vmatpush.bf16.msra.mxu0 %v725
      %741 = vmatpush.bf16.msra.mxu0 %v724
      %742 = vmatpush.bf16.msra.mxu0 %v723
      %743 = vmatpush.bf16.msra.mxu0 %v722
      %744 = vmatpush.bf16.msra.mxu0 %v721
      %745 = vmatmul.bf16.gmra.mxu0 %v661
      %v746 = vpop.f32.mrf.mxu0
      %v747 = vadd.f32 %v687, %v746
      %v748 = vpop.f32.mrf.mxu0
      %v749 = vadd.f32 %v687, %v748
      %750 = vmatmul.bf16.gmra.mxu0 %v662
      %v751 = vpop.f32.mrf.mxu0
      %v752 = vadd.f32 %v687, %v751
      %v753 = vpop.f32.mrf.mxu0
      %v754 = vadd.f32 %v687, %v753
      %755 = vmatmul.bf16.gmra.mxu0 %v663
      %v756 = vpop.f32.mrf.mxu0
      %v757 = vadd.f32 %v687, %v756
      %v758 = vpop.f32.mrf.mxu0
      %v759 = vadd.f32 %v687, %v758
      %760 = vmatmul.bf16.gmra.mxu0 %v664
      %v761 = vpop.f32.mrf.mxu0
      %v762 = vadd.f32 %v687, %v761
      %v763 = vpop.f32.mrf.mxu0
      %v764 = vadd.f32 %v687, %v763
      %765 = vmatmul.bf16.gmra.mxu0 %v665
      %v766 = vpop.f32.mrf.mxu0
      %v767 = vadd.f32 %v687, %v766
      %v768 = vpop.f32.mrf.mxu0
      %v769 = vadd.f32 %v687, %v768
      %770 = vmatmul.bf16.gmra.mxu0 %v666
      %v771 = vpop.f32.mrf.mxu0
      %v772 = vadd.f32 %v687, %v771
      %v773 = vpop.f32.mrf.mxu0
      %v774 = vadd.f32 %v687, %v773
      %775 = vmatmul.bf16.gmra.mxu0 %v667
      %v776 = vpop.f32.mrf.mxu0
      %v777 = vadd.f32 %v687, %v776
      %v778 = vpop.f32.mrf.mxu0
      %v779 = vadd.f32 %v687, %v778
      %780 = vmatmul.bf16.gmra.mxu0 %v668
      %v781 = vpop.f32.mrf.mxu0
      %v782 = vadd.f32 %v687, %v781
      %v783 = vpop.f32.mrf.mxu0
      %v784 = vadd.f32 %v687, %v783
      %785 = vdwg.mxu0
      %v786 = vld [vmem:[%s3] sm:$0xf]
      %v787 = vld [vmem:[%s3 + $0x4] sm:$0xf]
      %v788 = vld [vmem:[%s3 + $0x8] sm:$0xf]
      %v789 = vld [vmem:[%s3 + $0xc] sm:$0xf]
      %v790 = vld [vmem:[%s3 + $0x10] sm:$0xf]
      %v791 = vld [vmem:[%s3 + $0x14] sm:$0xf]
      %v792 = vld [vmem:[%s3 + $0x18] sm:$0xf]
      %v793 = vld [vmem:[%s3 + $0x1c] sm:$0xf]
      %v794 = vld [vmem:[%s3 + $0x20] sm:$0xf]
      %v795 = vld [vmem:[%s3 + $0x24] sm:$0xf]
      %v796 = vld [vmem:[%s3 + $0x28] sm:$0xf]
      %v797 = vld [vmem:[%s3 + $0x2c] sm:$0xf]
      %v798 = vld [vmem:[%s3 + $0x30] sm:$0xf]
      %v799 = vld [vmem:[%s3 + $0x34] sm:$0xf]
      %v800 = vld [vmem:[%s3 + $0x38] sm:$0xf]
      %v801 = vld [vmem:[%s3 + $0x3c] sm:$0xf]
      %v802 = vld [vmem:[%s6] sm:$0x1]
      %v804 = vperm.slane %v802, 0
      %v822 = vunpack.c.l.b16 %v786
      %v823 = vunpack.c.l.b16 %v787
      %v824 = vunpack.c.l.b16 %v788
      %v825 = vunpack.c.l.b16 %v789
      %v826 = vunpack.c.l.b16 %v790
      %v827 = vunpack.c.l.b16 %v791
      %v828 = vunpack.c.l.b16 %v792
      %v829 = vunpack.c.l.b16 %v793
      %v830 = vunpack.c.l.b16 %v794
      %v831 = vunpack.c.l.b16 %v795
      %v832 = vunpack.c.l.b16 %v796
      %v833 = vunpack.c.l.b16 %v797
      %v834 = vunpack.c.l.b16 %v798
      %v835 = vunpack.c.l.b16 %v799
      %v836 = vunpack.c.l.b16 %v800
      %v837 = vunpack.c.l.b16 %v801
      %v838 = vpack.c.b16 %v823, %v822
      %v839 = vpack.c.b16 %v825, %v824
      %v840 = vpack.c.b16 %v827, %v826
      %v841 = vpack.c.b16 %v829, %v828
      %v842 = vpack.c.b16 %v831, %v830
      %v843 = vpack.c.b16 %v833, %v832
      %v844 = vpack.c.b16 %v835, %v834
      %v845 = vpack.c.b16 %v837, %v836
      %854 = vmatpush.bf16.msra.mxu0 %v845
      %855 = vmatpush.bf16.msra.mxu0 %v844
      %856 = vmatpush.bf16.msra.mxu0 %v843
      %857 = vmatpush.bf16.msra.mxu0 %v842
      %858 = vmatpush.bf16.msra.mxu0 %v841
      %859 = vmatpush.bf16.msra.mxu0 %v840
      %860 = vmatpush.bf16.msra.mxu0 %v839
      %861 = vmatpush.bf16.msra.mxu0 %v838
      %862 = vmatmul.bf16.gmra.mxu0 %v653
      %v863 = vpop.f32.mrf.mxu0
      %v864 = vadd.f32 %v804, %v863
      %v865 = vpop.f32.mrf.mxu0
      %v866 = vadd.f32 %v804, %v865
      %867 = vmatmul.bf16.gmra.mxu0 %v654
      %v868 = vpop.f32.mrf.mxu0
      %v869 = vadd.f32 %v804, %v868
      %v870 = vpop.f32.mrf.mxu0
      %v871 = vadd.f32 %v804, %v870
      %872 = vmatmul.bf16.gmra.mxu0 %v655
      %v873 = vpop.f32.mrf.mxu0
      %v874 = vadd.f32 %v804, %v873
      %v875 = vpop.f32.mrf.mxu0
      %v876 = vadd.f32 %v804, %v875
      %877 = vmatmul.bf16.gmra.mxu0 %v656
      %v878 = vpop.f32.mrf.mxu0
      %v879 = vadd.f32 %v804, %v878
      %v880 = vpop.f32.mrf.mxu0
      %v881 = vadd.f32 %v804, %v880
      %882 = vmatmul.bf16.gmra.mxu0 %v657
      %v883 = vpop.f32.mrf.mxu0
      %v884 = vadd.f32 %v804, %v883
      %v885 = vpop.f32.mrf.mxu0
      %v886 = vadd.f32 %v804, %v885
      %887 = vmatmul.bf16.gmra.mxu0 %v658
      %v888 = vpop.f32.mrf.mxu0
      %v889 = vadd.f32 %v804, %v888
      %v890 = vpop.f32.mrf.mxu0
      %v891 = vadd.f32 %v804, %v890
      %892 = vmatmul.bf16.gmra.mxu0 %v659
      %v893 = vpop.f32.mrf.mxu0
      %v894 = vadd.f32 %v804, %v893
      %v895 = vpop.f32.mrf.mxu0
      %v896 = vadd.f32 %v804, %v895
      %897 = vmatmul.bf16.gmra.mxu0 %v660
      %v898 = vpop.f32.mrf.mxu0
      %v899 = vadd.f32 %v804, %v898
      %v900 = vpop.f32.mrf.mxu0
      %v901 = vadd.f32 %v804, %v900
      %902 = vdwg.mxu0
      %v903 = vld [vmem:[%s4] sm:$0xff]
      %v904 = vld [vmem:[%s4 + $0x8] sm:$0xff]
      %v905 = vld [vmem:[%s4 + $0x10] sm:$0xff]
      %v906 = vld [vmem:[%s4 + $0x18] sm:$0xff]
      %v907 = vld [vmem:[%s4 + $0x20] sm:$0xff]
      %v908 = vld [vmem:[%s4 + $0x28] sm:$0xff]
      %v909 = vld [vmem:[%s4 + $0x30] sm:$0xff]
      %v910 = vld [vmem:[%s4 + $0x38] sm:$0xff]
      %v911 = vld [vmem:[%s4 + $0x40] sm:$0xff]
      %v912 = vld [vmem:[%s4 + $0x48] sm:$0xff]
      %v913 = vld [vmem:[%s4 + $0x50] sm:$0xff]
      %v914 = vld [vmem:[%s4 + $0x58] sm:$0xff]
      %v915 = vld [vmem:[%s4 + $0x60] sm:$0xff]
      %v916 = vld [vmem:[%s4 + $0x68] sm:$0xff]
      %v917 = vld [vmem:[%s4 + $0x70] sm:$0xff]
      %v918 = vld [vmem:[%s4 + $0x78] sm:$0xff]
      %v919 = vld [vmem:[%s4 + $0x80] sm:$0xff]
      %v920 = vld [vmem:[%s4 + $0x88] sm:$0xff]
      %v921 = vld [vmem:[%s4 + $0x90] sm:$0xff]
      %v922 = vld [vmem:[%s4 + $0x98] sm:$0xff]
      %v923 = vld [vmem:[%s4 + $0xa0] sm:$0xff]
      %v924 = vld [vmem:[%s4 + $0xa8] sm:$0xff]
      %v925 = vld [vmem:[%s4 + $0xb0] sm:$0xff]
      %v926 = vld [vmem:[%s4 + $0xb8] sm:$0xff]
      %v927 = vld [vmem:[%s4 + $0xc0] sm:$0xff]
      %v928 = vld [vmem:[%s4 + $0xc8] sm:$0xff]
      %v929 = vld [vmem:[%s4 + $0xd0] sm:$0xff]
      %v930 = vld [vmem:[%s4 + $0xd8] sm:$0xff]
      %v931 = vld [vmem:[%s4 + $0xe0] sm:$0xff]
      %v932 = vld [vmem:[%s4 + $0xe8] sm:$0xff]
      %v933 = vld [vmem:[%s4 + $0xf0] sm:$0xff]
      %v934 = vld [vmem:[%s4 + $0xf8] sm:$0xff]
      %v935 = vld [vmem:[%s7] sm:$0xf]
      %v937 = vperm.slane %v935, 0
      %v938 = vperm.slane %v935, 1
      %v939 = vperm.slane %v935, 2
      %v940 = vperm.slane %v935, 3
      %v977 = vunpack.c.l.b16 %v903
      %v978 = vunpack.c.h.b16 %v903
      %v979 = vunpack.c.l.b16 %v904
      %v980 = vunpack.c.h.b16 %v904
      %v981 = vunpack.c.l.b16 %v905
      %v982 = vunpack.c.h.b16 %v905
      %v983 = vunpack.c.l.b16 %v906
      %v984 = vunpack.c.h.b16 %v906
      %v985 = vunpack.c.l.b16 %v907
      %v986 = vunpack.c.h.b16 %v907
      %v987 = vunpack.c.l.b16 %v908
      %v988 = vunpack.c.h.b16 %v908
      %v989 = vunpack.c.l.b16 %v909
      %v990 = vunpack.c.h.b16 %v909
      %v991 = vunpack.c.l.b16 %v910
      %v992 = vunpack.c.h.b16 %v910
      %v993 = vunpack.c.l.b16 %v911
      %v994 = vunpack.c.h.b16 %v911
      %v995 = vunpack.c.l.b16 %v912
      %v996 = vunpack.c.h.b16 %v912
      %v997 = vunpack.c.l.b16 %v913
      %v998 = vunpack.c.h.b16 %v913
      %v999 = vunpack.c.l.b16 %v914
      %v1000 = vunpack.c.h.b16 %v914
      %v1001 = vunpack.c.l.b16 %v915
      %v1002 = vunpack.c.h.b16 %v915
      %v1003 = vunpack.c.l.b16 %v916
      %v1004 = vunpack.c.h.b16 %v916
      %v1005 = vunpack.c.l.b16 %v917
      %v1006 = vunpack.c.h.b16 %v917
      %v1007 = vunpack.c.l.b16 %v918
      %v1008 = vunpack.c.h.b16 %v918
      %v1009 = vunpack.c.l.b16 %v919
      %v1010 = vunpack.c.h.b16 %v919
      %v1011 = vunpack.c.l.b16 %v920
      %v1012 = vunpack.c.h.b16 %v920
      %v1013 = vunpack.c.l.b16 %v921
      %v1014 = vunpack.c.h.b16 %v921
      %v1015 = vunpack.c.l.b16 %v922
      %v1016 = vunpack.c.h.b16 %v922
      %v1017 = vunpack.c.l.b16 %v923
      %v1018 = vunpack.c.h.b16 %v923
      %v1019 = vunpack.c.l.b16 %v924
      %v1020 = vunpack.c.h.b16 %v924
      %v1021 = vunpack.c.l.b16 %v925
      %v1022 = vunpack.c.h.b16 %v925
      %v1023 = vunpack.c.l.b16 %v926
      %v1024 = vunpack.c.h.b16 %v926
      %v1025 = vunpack.c.l.b16 %v927
      %v1026 = vunpack.c.h.b16 %v927
      %v1027 = vunpack.c.l.b16 %v928
      %v1028 = vunpack.c.h.b16 %v928
      %v1029 = vunpack.c.l.b16 %v929
      %v1030 = vunpack.c.h.b16 %v929
      %v1031 = vunpack.c.l.b16 %v930
      %v1032 = vunpack.c.h.b16 %v930
      %v1033 = vunpack.c.l.b16 %v931
      %v1034 = vunpack.c.h.b16 %v931
      %v1035 = vunpack.c.l.b16 %v932
      %v1036 = vunpack.c.h.b16 %v932
      %v1037 = vunpack.c.l.b16 %v933
      %v1038 = vunpack.c.h.b16 %v933
      %v1039 = vunpack.c.l.b16 %v934
      %v1040 = vunpack.c.h.b16 %v934
      %v1041 = vpack.c.b16 %v981, %v977
      %v1042 = vpack.c.b16 %v982, %v978
      %v1043 = vpack.c.b16 %v983, %v979
      %v1044 = vpack.c.b16 %v984, %v980
      %v1045 = vpack.c.b16 %v989, %v985
      %v1046 = vpack.c.b16 %v990, %v986
      %v1047 = vpack.c.b16 %v991, %v987
      %v1048 = vpack.c.b16 %v992, %v988
      %v1049 = vpack.c.b16 %v997, %v993
      %v1050 = vpack.c.b16 %v998, %v994
      %v1051 = vpack.c.b16 %v999, %v995
      %v1052 = vpack.c.b16 %v1000, %v996
      %v1053 = vpack.c.b16 %v1005, %v1001
      %v1054 = vpack.c.b16 %v1006, %v1002
      %v1055 = vpack.c.b16 %v1007, %v1003
      %v1056 = vpack.c.b16 %v1008, %v1004
      %v1057 = vpack.c.b16 %v1013, %v1009
      %v1058 = vpack.c.b16 %v1014, %v1010
      %v1059 = vpack.c.b16 %v1015, %v1011
      %v1060 = vpack.c.b16 %v1016, %v1012
      %v1061 = vpack.c.b16 %v1021, %v1017
      %v1062 = vpack.c.b16 %v1022, %v1018
      %v1063 = vpack.c.b16 %v1023, %v1019
      %v1064 = vpack.c.b16 %v1024, %v1020
      %v1065 = vpack.c.b16 %v1029, %v1025
      %v1066 = vpack.c.b16 %v1030, %v1026
      %v1067 = vpack.c.b16 %v1031, %v1027
      %v1068 = vpack.c.b16 %v1032, %v1028
      %v1069 = vpack.c.b16 %v1037, %v1033
      %v1070 = vpack.c.b16 %v1038, %v1034
      %v1071 = vpack.c.b16 %v1039, %v1035
      %v1072 = vpack.c.b16 %v1040, %v1036
      %1105 = vmatpush.bf16.msra.mxu0 %v1069
      %1106 = vmatpush.bf16.msra.mxu0 %v1065
      %1107 = vmatpush.bf16.msra.mxu0 %v1061
      %1108 = vmatpush.bf16.msra.mxu0 %v1057
      %1109 = vmatpush.bf16.msra.mxu0 %v1053
      %1110 = vmatpush.bf16.msra.mxu0 %v1049
      %1111 = vmatpush.bf16.msra.mxu0 %v1045
      %1112 = vmatpush.bf16.msra.mxu0 %v1041
      %1113 = vmatmul.bf16.gmra.mxu0 %v653
      %v1114 = vpop.f32.mrf.mxu0
      %v1115 = vadd.f32 %v937, %v1114
      %v1116 = vpop.f32.mrf.mxu0
      %v1117 = vadd.f32 %v937, %v1116
      %1118 = vmatmul.bf16.gmra.mxu0 %v654
      %v1119 = vpop.f32.mrf.mxu0
      %v1120 = vadd.f32 %v937, %v1119
      %v1121 = vpop.f32.mrf.mxu0
      %v1122 = vadd.f32 %v937, %v1121
      %1123 = vmatmul.bf16.gmra.mxu0 %v655
      %v1124 = vpop.f32.mrf.mxu0
      %v1125 = vadd.f32 %v937, %v1124
      %v1126 = vpop.f32.mrf.mxu0
      %v1127 = vadd.f32 %v937, %v1126
      %1128 = vmatmul.bf16.gmra.mxu0 %v656
      %v1129 = vpop.f32.mrf.mxu0
      %v1130 = vadd.f32 %v937, %v1129
      %v1131 = vpop.f32.mrf.mxu0
      %v1132 = vadd.f32 %v937, %v1131
      %1133 = vmatmul.bf16.gmra.mxu0 %v657
      %v1134 = vpop.f32.mrf.mxu0
      %v1135 = vadd.f32 %v937, %v1134
      %v1136 = vpop.f32.mrf.mxu0
      %v1137 = vadd.f32 %v937, %v1136
      %1138 = vmatmul.bf16.gmra.mxu0 %v658
      %v1139 = vpop.f32.mrf.mxu0
      %v1140 = vadd.f32 %v937, %v1139
      %v1141 = vpop.f32.mrf.mxu0
      %v1142 = vadd.f32 %v937, %v1141
      %1143 = vmatmul.bf16.gmra.mxu0 %v659
      %v1144 = vpop.f32.mrf.mxu0
      %v1145 = vadd.f32 %v937, %v1144
      %v1146 = vpop.f32.mrf.mxu0
      %v1147 = vadd.f32 %v937, %v1146
      %1148 = vmatmul.bf16.gmra.mxu0 %v660
      %v1149 = vpop.f32.mrf.mxu0
      %v1150 = vadd.f32 %v937, %v1149
      %v1151 = vpop.f32.mrf.mxu0
      %v1152 = vadd.f32 %v937, %v1151
      %1153 = vdwg.mxu0
      %1154 = vmatpush.bf16.msra.mxu0 %v1070
      %1155 = vmatpush.bf16.msra.mxu0 %v1066
      %1156 = vmatpush.bf16.msra.mxu0 %v1062
      %1157 = vmatpush.bf16.msra.mxu0 %v1058
      %1158 = vmatpush.bf16.msra.mxu0 %v1054
      %1159 = vmatpush.bf16.msra.mxu0 %v1050
      %1160 = vmatpush.bf16.msra.mxu0 %v1046
      %1161 = vmatpush.bf16.msra.mxu0 %v1042
      %1162 = vmatmul.bf16.gmra.mxu0 %v653
      %v1163 = vpop.f32.mrf.mxu0
      %v1164 = vadd.f32 %v938, %v1163
      %v1165 = vpop.f32.mrf.mxu0
      %v1166 = vadd.f32 %v938, %v1165
      %1167 = vmatmul.bf16.gmra.mxu0 %v654
      %v1168 = vpop.f32.mrf.mxu0
      %v1169 = vadd.f32 %v938, %v1168
      %v1170 = vpop.f32.mrf.mxu0
      %v1171 = vadd.f32 %v938, %v1170
      %1172 = vmatmul.bf16.gmra.mxu0 %v655
      %v1173 = vpop.f32.mrf.mxu0
      %v1174 = vadd.f32 %v938, %v1173
      %v1175 = vpop.f32.mrf.mxu0
      %v1176 = vadd.f32 %v938, %v1175
      %1177 = vmatmul.bf16.gmra.mxu0 %v656
      %v1178 = vpop.f32.mrf.mxu0
      %v1179 = vadd.f32 %v938, %v1178
      %v1180 = vpop.f32.mrf.mxu0
      %v1181 = vadd.f32 %v938, %v1180
      %1182 = vmatmul.bf16.gmra.mxu0 %v657
      %v1183 = vpop.f32.mrf.mxu0
      %v1184 = vadd.f32 %v938, %v1183
      %v1185 = vpop.f32.mrf.mxu0
      %v1186 = vadd.f32 %v938, %v1185
      %1187 = vmatmul.bf16.gmra.mxu0 %v658
      %v1188 = vpop.f32.mrf.mxu0
      %v1189 = vadd.f32 %v938, %v1188
      %v1190 = vpop.f32.mrf.mxu0
      %v1191 = vadd.f32 %v938, %v1190
      %1192 = vmatmul.bf16.gmra.mxu0 %v659
      %v1193 = vpop.f32.mrf.mxu0
      %v1194 = vadd.f32 %v938, %v1193
      %v1195 = vpop.f32.mrf.mxu0
      %v1196 = vadd.f32 %v938, %v1195
      %1197 = vmatmul.bf16.gmra.mxu0 %v660
      %v1198 = vpop.f32.mrf.mxu0
      %v1199 = vadd.f32 %v938, %v1198
      %v1200 = vpop.f32.mrf.mxu0
      %v1201 = vadd.f32 %v938, %v1200
      %1202 = vdwg.mxu0
      %1203 = vmatpush.bf16.msra.mxu0 %v1071
      %1204 = vmatpush.bf16.msra.mxu0 %v1067
      %1205 = vmatpush.bf16.msra.mxu0 %v1063
      %1206 = vmatpush.bf16.msra.mxu0 %v1059
      %1207 = vmatpush.bf16.msra.mxu0 %v1055
      %1208 = vmatpush.bf16.msra.mxu0 %v1051
      %1209 = vmatpush.bf16.msra.mxu0 %v1047
      %1210 = vmatpush.bf16.msra.mxu0 %v1043
      %1211 = vmatmul.bf16.gmra.mxu0 %v653
      %v1212 = vpop.f32.mrf.mxu0
      %v1213 = vadd.f32 %v939, %v1212
      %v1214 = vpop.f32.mrf.mxu0
      %v1215 = vadd.f32 %v939, %v1214
      %1216 = vmatmul.bf16.gmra.mxu0 %v654
      %v1217 = vpop.f32.mrf.mxu0
      %v1218 = vadd.f32 %v939, %v1217
      %v1219 = vpop.f32.mrf.mxu0
      %v1220 = vadd.f32 %v939, %v1219
      %1221 = vmatmul.bf16.gmra.mxu0 %v655
      %v1222 = vpop.f32.mrf.mxu0
      %v1223 = vadd.f32 %v939, %v1222
      %v1224 = vpop.f32.mrf.mxu0
      %v1225 = vadd.f32 %v939, %v1224
      %1226 = vmatmul.bf16.gmra.mxu0 %v656
      %v1227 = vpop.f32.mrf.mxu0
      %v1228 = vadd.f32 %v939, %v1227
      %v1229 = vpop.f32.mrf.mxu0
      %v1230 = vadd.f32 %v939, %v1229
      %1231 = vmatmul.bf16.gmra.mxu0 %v657
      %v1232 = vpop.f32.mrf.mxu0
      %v1233 = vadd.f32 %v939, %v1232
      %v1234 = vpop.f32.mrf.mxu0
      %v1235 = vadd.f32 %v939, %v1234
      %1236 = vmatmul.bf16.gmra.mxu0 %v658
      %v1237 = vpop.f32.mrf.mxu0
      %v1238 = vadd.f32 %v939, %v1237
      %v1239 = vpop.f32.mrf.mxu0
      %v1240 = vadd.f32 %v939, %v1239
      %1241 = vmatmul.bf16.gmra.mxu0 %v659
      %v1242 = vpop.f32.mrf.mxu0
      %v1243 = vadd.f32 %v939, %v1242
      %v1244 = vpop.f32.mrf.mxu0
      %v1245 = vadd.f32 %v939, %v1244
      %1246 = vmatmul.bf16.gmra.mxu0 %v660
      %v1247 = vpop.f32.mrf.mxu0
      %v1248 = vadd.f32 %v939, %v1247
      %v1249 = vpop.f32.mrf.mxu0
      %v1250 = vadd.f32 %v939, %v1249
      %1251 = vdwg.mxu0
      %1252 = vmatpush.bf16.msra.mxu0 %v1072
      %1253 = vmatpush.bf16.msra.mxu0 %v1068
      %1254 = vmatpush.bf16.msra.mxu0 %v1064
      %1255 = vmatpush.bf16.msra.mxu0 %v1060
      %1256 = vmatpush.bf16.msra.mxu0 %v1056
      %1257 = vmatpush.bf16.msra.mxu0 %v1052
      %1258 = vmatpush.bf16.msra.mxu0 %v1048
      %1259 = vmatpush.bf16.msra.mxu0 %v1044
      %1260 = vmatmul.bf16.gmra.mxu0 %v653
      %v1261 = vpop.f32.mrf.mxu0
      %v1262 = vadd.f32 %v940, %v1261
      %v1263 = vpop.f32.mrf.mxu0
      %v1264 = vadd.f32 %v940, %v1263
      %1265 = vmatmul.bf16.gmra.mxu0 %v654
      %v1266 = vpop.f32.mrf.mxu0
      %v1267 = vadd.f32 %v940, %v1266
      %v1268 = vpop.f32.mrf.mxu0
      %v1269 = vadd.f32 %v940, %v1268
      %1270 = vmatmul.bf16.gmra.mxu0 %v655
      %v1271 = vpop.f32.mrf.mxu0
      %v1272 = vadd.f32 %v940, %v1271
      %v1273 = vpop.f32.mrf.mxu0
      %v1274 = vadd.f32 %v940, %v1273
      %1275 = vmatmul.bf16.gmra.mxu0 %v656
      %v1276 = vpop.f32.mrf.mxu0
      %v1277 = vadd.f32 %v940, %v1276
      %v1278 = vpop.f32.mrf.mxu0
      %v1279 = vadd.f32 %v940, %v1278
      %1280 = vmatmul.bf16.gmra.mxu0 %v657
      %v1281 = vpop.f32.mrf.mxu0
      %v1282 = vadd.f32 %v940, %v1281
      %v1283 = vpop.f32.mrf.mxu0
      %v1284 = vadd.f32 %v940, %v1283
      %1285 = vmatmul.bf16.gmra.mxu0 %v658
      %v1286 = vpop.f32.mrf.mxu0
      %v1287 = vadd.f32 %v940, %v1286
      %v1288 = vpop.f32.mrf.mxu0
      %v1289 = vadd.f32 %v940, %v1288
      %1290 = vmatmul.bf16.gmra.mxu0 %v659
      %v1291 = vpop.f32.mrf.mxu0
      %v1292 = vadd.f32 %v940, %v1291
      %v1293 = vpop.f32.mrf.mxu0
      %v1294 = vadd.f32 %v940, %v1293
      %1295 = vmatmul.bf16.gmra.mxu0 %v660
      %v1296 = vpop.f32.mrf.mxu0
      %v1297 = vadd.f32 %v940, %v1296
      %v1298 = vpop.f32.mrf.mxu0
      %v1299 = vadd.f32 %v940, %v1298
      %1300 = vdwg.mxu0
      %v1301 = vpack.c.bf16 %v1164, %v1115
      %v1302 = vpack.c.bf16 %v1262, %v1213
      %v1303 = vpack.c.bf16 %v1166, %v1117
      %v1304 = vpack.c.bf16 %v1264, %v1215
      %v1305 = vpack.c.bf16 %v1169, %v1120
      %v1306 = vpack.c.bf16 %v1267, %v1218
      %v1307 = vpack.c.bf16 %v1171, %v1122
      %v1308 = vpack.c.bf16 %v1269, %v1220
      %v1309 = vpack.c.bf16 %v1174, %v1125
      %v1310 = vpack.c.bf16 %v1272, %v1223
      %v1311 = vpack.c.bf16 %v1176, %v1127
      %v1312 = vpack.c.bf16 %v1274, %v1225
      %v1313 = vpack.c.bf16 %v1179, %v1130
      %v1314 = vpack.c.bf16 %v1277, %v1228
      %v1315 = vpack.c.bf16 %v1181, %v1132
      %v1316 = vpack.c.bf16 %v1279, %v1230
      %v1317 = vpack.c.bf16 %v1184, %v1135
      %v1318 = vpack.c.bf16 %v1282, %v1233
      %v1319 = vpack.c.bf16 %v1186, %v1137
      %v1320 = vpack.c.bf16 %v1284, %v1235
      %v1321 = vpack.c.bf16 %v1189, %v1140
      %v1322 = vpack.c.bf16 %v1287, %v1238
      %v1323 = vpack.c.bf16 %v1191, %v1142
      %v1324 = vpack.c.bf16 %v1289, %v1240
      %v1325 = vpack.c.bf16 %v1194, %v1145
      %v1326 = vpack.c.bf16 %v1292, %v1243
      %v1327 = vpack.c.bf16 %v1196, %v1147
      %v1328 = vpack.c.bf16 %v1294, %v1245
      %v1329 = vpack.c.bf16 %v1199, %v1150
      %v1330 = vpack.c.bf16 %v1297, %v1248
      %v1331 = vpack.c.bf16 %v1201, %v1152
      %v1332 = vpack.c.bf16 %v1299, %v1250
      %s1333 = smul.u32 %s27, 128
      %v1334 = vlaneseq
      %v1335 = vand.u32 %v1334, 127
      %v1336 = vstv %s1333
      %v1337 = vadd.s32 %v1336, %v1335
      %vm1338 = vcmp.lt.s32.totalorder %v1337, 300
      %v1339 = vpack.c.bf16 %v749, %v747
      %v1340 = vpack.c.bf16 %v754, %v752
      %v1341 = vpack.c.bf16 %v759, %v757
      %v1342 = vpack.c.bf16 %v764, %v762
      %v1343 = vpack.c.bf16 %v769, %v767
      %v1344 = vpack.c.bf16 %v774, %v772
      %v1345 = vpack.c.bf16 %v779, %v777
      %v1346 = vpack.c.bf16 %v784, %v782
      %v1347 = vpack.c.bf16 %v866, %v864
      %v1348 = vpack.c.bf16 %v871, %v869
      %v1349 = vpack.c.bf16 %v876, %v874
      %v1350 = vpack.c.bf16 %v881, %v879
      %v1351 = vpack.c.bf16 %v886, %v884
      %v1352 = vpack.c.bf16 %v891, %v889
      %v1353 = vpack.c.bf16 %v896, %v894
      %v1354 = vpack.c.bf16 %v901, %v899
      %vm1355 = vcmask 261120
      %v1357 = vsel %vm1355, %v1339, 0
      %v1360 = vsel %vm1355, %v1340, 0
      %v1363 = vsel %vm1355, %v1341, 0
      %v1366 = vsel %vm1355, %v1342, 0
      %v1369 = vsel %vm1355, %v1343, 0
      %v1372 = vsel %vm1355, %v1344, 0
      %v1375 = vsel %vm1355, %v1345, 0
      %v1378 = vsel %vm1355, %v1346, 0
      %v1381 = vsel %vm1355, %v1347, 0
      %v1384 = vsel %vm1355, %v1348, 0
      %v1387 = vsel %vm1355, %v1349, 0
      %v1390 = vsel %vm1355, %v1350, 0
      %v1393 = vsel %vm1355, %v1351, 0
      %v1396 = vsel %vm1355, %v1352, 0
      %v1399 = vsel %vm1355, %v1353, 0
      %v1402 = vsel %vm1355, %v1354, 0
      %1404 = vmatpush.bf16.xpose.msra.mxu0 %v1402
      %1405 = vmatpush.bf16.xpose.msra.mxu0 %v1399
      %1406 = vmatpush.bf16.xpose.msra.mxu0 %v1396
      %1407 = vmatpush.bf16.xpose.msra.mxu0 %v1393
      %1408 = vmatpush.bf16.xpose.msra.mxu0 %v1390
      %1409 = vmatpush.bf16.xpose.msra.mxu0 %v1387
      %1410 = vmatpush.bf16.xpose.msra.mxu0 %v1384
      %1411 = vmatpush.bf16.xpose.msra.mxu0 %v1381
      %1412 = vmatmul.bf16.gmra.mxu0 %v1357
      %v1413 = vpop.f32.mrf.mxu0
      %v1414 = vadd.f32 0.0, %v1413
      %v1415 = vpop.f32.mrf.mxu0
      %v1416 = vadd.f32 0.0, %v1415
      %1417 = vmatmul.bf16.gmra.mxu0 %v1360
      %v1418 = vpop.f32.mrf.mxu0
      %v1419 = vadd.f32 0.0, %v1418
      %v1420 = vpop.f32.mrf.mxu0
      %v1421 = vadd.f32 0.0, %v1420
      %1422 = vmatmul.bf16.gmra.mxu0 %v1363
      %v1423 = vpop.f32.mrf.mxu0
      %v1424 = vadd.f32 0.0, %v1423
      %v1425 = vpop.f32.mrf.mxu0
      %v1426 = vadd.f32 0.0, %v1425
      %1427 = vmatmul.bf16.gmra.mxu0 %v1366
      %v1428 = vpop.f32.mrf.mxu0
      %v1429 = vadd.f32 0.0, %v1428
      %v1430 = vpop.f32.mrf.mxu0
      %v1431 = vadd.f32 0.0, %v1430
      %1432 = vmatmul.bf16.gmra.mxu0 %v1369
      %v1433 = vpop.f32.mrf.mxu0
      %v1434 = vadd.f32 0.0, %v1433
      %v1435 = vpop.f32.mrf.mxu0
      %v1436 = vadd.f32 0.0, %v1435
      %1437 = vmatmul.bf16.gmra.mxu0 %v1372
      %v1438 = vpop.f32.mrf.mxu0
      %v1439 = vadd.f32 0.0, %v1438
      %v1440 = vpop.f32.mrf.mxu0
      %v1441 = vadd.f32 0.0, %v1440
      %1442 = vmatmul.bf16.gmra.mxu0 %v1375
      %v1443 = vpop.f32.mrf.mxu0
      %v1444 = vadd.f32 0.0, %v1443
      %v1445 = vpop.f32.mrf.mxu0
      %v1446 = vadd.f32 0.0, %v1445
      %1447 = vmatmul.bf16.gmra.mxu0 %v1378
      %v1448 = vpop.f32.mrf.mxu0
      %v1449 = vadd.f32 0.0, %v1448
      %v1450 = vpop.f32.mrf.mxu0
      %v1451 = vadd.f32 0.0, %v1450
      %1452 = vdwg.mxu0
      %v1453 = vsel %vm1338, 1, 0
      %vm1454 = vcmp.eq.s32.totalorder %v1453, 1
      %v1455 = vsel %vm1454, %v1414, -1e+30
      %v1456 = vsel %vm1454, %v1416, -1e+30
      %v1457 = vsel %vm1454, %v1419, -1e+30
      %v1458 = vsel %vm1454, %v1421, -1e+30
      %v1459 = vsel %vm1454, %v1424, -1e+30
      %v1460 = vsel %vm1454, %v1426, -1e+30
      %v1461 = vsel %vm1454, %v1429, -1e+30
      %v1462 = vsel %vm1454, %v1431, -1e+30
      %v1463 = vsel %vm1454, %v1434, -1e+30
      %v1464 = vsel %vm1454, %v1436, -1e+30
      %v1465 = vsel %vm1454, %v1439, -1e+30
      %v1466 = vsel %vm1454, %v1441, -1e+30
      %v1467 = vsel %vm1454, %v1444, -1e+30
      %v1468 = vsel %vm1454, %v1446, -1e+30
      %v1469 = vsel %vm1454, %v1449, -1e+30
      %v1470 = vsel %vm1454, %v1451, -1e+30
      %v1471 = vld [vmem:[#allocation2] sm:$0xff]
      %v1472 = vld [vmem:[#allocation2 + $0x8] sm:$0xff]
      %v1473 = vld [vmem:[#allocation2 + $0x10] sm:$0xff]
      %v1474 = vld [vmem:[#allocation2 + $0x18] sm:$0xff]
      %v1475 = vld [vmem:[#allocation2 + $0x20] sm:$0xff]
      %v1476 = vld [vmem:[#allocation2 + $0x28] sm:$0xff]
      %v1477 = vld [vmem:[#allocation2 + $0x30] sm:$0xff]
      %v1478 = vld [vmem:[#allocation2 + $0x38] sm:$0xff]
      %v1479 = vld [vmem:[#allocation2 + $0x40] sm:$0xff]
      %v1480 = vld [vmem:[#allocation2 + $0x48] sm:$0xff]
      %v1481 = vld [vmem:[#allocation2 + $0x50] sm:$0xff]
      %v1482 = vld [vmem:[#allocation2 + $0x58] sm:$0xff]
      %v1483 = vld [vmem:[#allocation2 + $0x60] sm:$0xff]
      %v1484 = vld [vmem:[#allocation2 + $0x68] sm:$0xff]
      %v1485 = vld [vmem:[#allocation2 + $0x70] sm:$0xff]
      %v1486 = vld [vmem:[#allocation2 + $0x78] sm:$0xff]
      %1487 = vmax.xlane.f32.xlu0 %v1455
      %v1488 = vpop.xlane.xlu0 %1487
      %1489 = vmax.xlane.f32.xlu0 %v1456
      %v1490 = vpop.xlane.xlu0 %1489
      %1491 = vmax.xlane.f32.xlu0 %v1457
      %v1492 = vpop.xlane.xlu0 %1491
      %1493 = vmax.xlane.f32.xlu0 %v1458
      %v1494 = vpop.xlane.xlu0 %1493
      %1495 = vmax.xlane.f32.xlu0 %v1459
      %v1496 = vpop.xlane.xlu0 %1495
      %1497 = vmax.xlane.f32.xlu0 %v1460
      %v1498 = vpop.xlane.xlu0 %1497
      %1499 = vmax.xlane.f32.xlu0 %v1461
      %v1500 = vpop.xlane.xlu0 %1499
      %1501 = vmax.xlane.f32.xlu0 %v1462
      %v1502 = vpop.xlane.xlu0 %1501
      %1503 = vmax.xlane.f32.xlu0 %v1463
      %v1504 = vpop.xlane.xlu0 %1503
      %1505 = vmax.xlane.f32.xlu0 %v1464
      %v1506 = vpop.xlane.xlu0 %1505
      %1507 = vmax.xlane.f32.xlu0 %v1465
      %v1508 = vpop.xlane.xlu0 %1507
      %1509 = vmax.xlane.f32.xlu0 %v1466
      %v1510 = vpop.xlane.xlu0 %1509
      %1511 = vmax.xlane.f32.xlu0 %v1467
      %v1512 = vpop.xlane.xlu0 %1511
      %1513 = vmax.xlane.f32.xlu0 %v1468
      %v1514 = vpop.xlane.xlu0 %1513
      %1515 = vmax.xlane.f32.xlu0 %v1469
      %v1516 = vpop.xlane.xlu0 %1515
      %1517 = vmax.xlane.f32.xlu0 %v1470
      %v1518 = vpop.xlane.xlu0 %1517
      %v1519 = vmax.f32 %v1471, %v1488
      %v1520 = vmax.f32 %v1472, %v1490
      %v1521 = vmax.f32 %v1473, %v1492
      %v1522 = vmax.f32 %v1474, %v1494
      %v1523 = vmax.f32 %v1475, %v1496
      %v1524 = vmax.f32 %v1476, %v1498
      %v1525 = vmax.f32 %v1477, %v1500
      %v1526 = vmax.f32 %v1478, %v1502
      %v1527 = vmax.f32 %v1479, %v1504
      %v1528 = vmax.f32 %v1480, %v1506
      %v1529 = vmax.f32 %v1481, %v1508
      %v1530 = vmax.f32 %v1482, %v1510
      %v1531 = vmax.f32 %v1483, %v1512
      %v1532 = vmax.f32 %v1484, %v1514
      %v1533 = vmax.f32 %v1485, %v1516
      %v1534 = vmax.f32 %v1486, %v1518
      %v1535 = vsub.f32 %v1471, %v1519
      %v1536 = vsub.f32 %v1472, %v1520
      %v1537 = vsub.f32 %v1473, %v1521
      %v1538 = vsub.f32 %v1474, %v1522
      %v1539 = vsub.f32 %v1475, %v1523
      %v1540 = vsub.f32 %v1476, %v1524
      %v1541 = vsub.f32 %v1477, %v1525
      %v1542 = vsub.f32 %v1478, %v1526
      %v1543 = vsub.f32 %v1479, %v1527
      %v1544 = vsub.f32 %v1480, %v1528
      %v1545 = vsub.f32 %v1481, %v1529
      %v1546 = vsub.f32 %v1482, %v1530
      %v1547 = vsub.f32 %v1483, %v1531
      %v1548 = vsub.f32 %v1484, %v1532
      %v1549 = vsub.f32 %v1485, %v1533
      %v1550 = vsub.f32 %v1486, %v1534
      %v1551 = vmul.f32 %v1535, 1.442695
      %v1552 = vpow.pop %v1551
      %v1553 = vmul.f32 %v1536, 1.442695
      %v1554 = vpow.pop %v1553
      %v1555 = vmul.f32 %v1537, 1.442695
      %v1556 = vpow.pop %v1555
      %v1557 = vmul.f32 %v1538, 1.442695
      %v1558 = vpow.pop %v1557
      %v1559 = vmul.f32 %v1539, 1.442695
      %v1560 = vpow.pop %v1559
      %v1561 = vmul.f32 %v1540, 1.442695
      %v1562 = vpow.pop %v1561
      %v1563 = vmul.f32 %v1541, 1.442695
      %v1564 = vpow.pop %v1563
      %v1565 = vmul.f32 %v1542, 1.442695
      %v1566 = vpow.pop %v1565
      %v1567 = vmul.f32 %v1543, 1.442695
      %v1568 = vpow.pop %v1567
      %v1569 = vmul.f32 %v1544, 1.442695
      %v1570 = vpow.pop %v1569
      %v1571 = vmul.f32 %v1545, 1.442695
      %v1572 = vpow.pop %v1571
      %v1573 = vmul.f32 %v1546, 1.442695
      %v1574 = vpow.pop %v1573
      %v1575 = vmul.f32 %v1547, 1.442695
      %v1576 = vpow.pop %v1575
      %v1577 = vmul.f32 %v1548, 1.442695
      %v1578 = vpow.pop %v1577
      %v1579 = vmul.f32 %v1549, 1.442695
      %v1580 = vpow.pop %v1579
      %v1581 = vmul.f32 %v1550, 1.442695
      %v1582 = vpow.pop %v1581
      %1584 = vset.pattern.permute.xlu0 0
      %1585 = vperm.xlu0 %1584, %v1519
      %v1586 = vpop.permute.xlu0 %1585
      %1589 = vset.pattern.permute.xlu0 0
      %1590 = vperm.xlu0 %1589, %v1520
      %v1591 = vpop.permute.xlu0 %1590
      %1594 = vset.pattern.permute.xlu0 0
      %1595 = vperm.xlu0 %1594, %v1521
      %v1596 = vpop.permute.xlu0 %1595
      %1599 = vset.pattern.permute.xlu0 0
      %1600 = vperm.xlu0 %1599, %v1522
      %v1601 = vpop.permute.xlu0 %1600
      %1604 = vset.pattern.permute.xlu0 0
      %1605 = vperm.xlu0 %1604, %v1523
      %v1606 = vpop.permute.xlu0 %1605
      %1609 = vset.pattern.permute.xlu0 0
      %1610 = vperm.xlu0 %1609, %v1524
      %v1611 = vpop.permute.xlu0 %1610
      %1614 = vset.pattern.permute.xlu0 0
      %1615 = vperm.xlu0 %1614, %v1525
      %v1616 = vpop.permute.xlu0 %1615
      %1619 = vset.pattern.permute.xlu0 0
      %1620 = vperm.xlu0 %1619, %v1526
      %v1621 = vpop.permute.xlu0 %1620
      %1624 = vset.pattern.permute.xlu0 0
      %1625 = vperm.xlu0 %1624, %v1527
      %v1626 = vpop.permute.xlu0 %1625
      %1629 = vset.pattern.permute.xlu0 0
      %1630 = vperm.xlu0 %1629, %v1528
      %v1631 = vpop.permute.xlu0 %1630
      %1634 = vset.pattern.permute.xlu0 0
      %1635 = vperm.xlu0 %1634, %v1529
      %v1636 = vpop.permute.xlu0 %1635
      %1639 = vset.pattern.permute.xlu0 0
      %1640 = vperm.xlu0 %1639, %v1530
      %v1641 = vpop.permute.xlu0 %1640
      %1644 = vset.pattern.permute.xlu0 0
      %1645 = vperm.xlu0 %1644, %v1531
      %v1646 = vpop.permute.xlu0 %1645
      %1649 = vset.pattern.permute.xlu0 0
      %1650 = vperm.xlu0 %1649, %v1532
      %v1651 = vpop.permute.xlu0 %1650
      %1654 = vset.pattern.permute.xlu0 0
      %1655 = vperm.xlu0 %1654, %v1533
      %v1656 = vpop.permute.xlu0 %1655
      %1659 = vset.pattern.permute.xlu0 0
      %1660 = vperm.xlu0 %1659, %v1534
      %v1661 = vpop.permute.xlu0 %1660
      %v1663 = vsub.f32 %v1455, %v1586
      %v1664 = vsub.f32 %v1456, %v1591
      %v1665 = vsub.f32 %v1457, %v1596
      %v1666 = vsub.f32 %v1458, %v1601
      %v1667 = vsub.f32 %v1459, %v1606
      %v1668 = vsub.f32 %v1460, %v1611
      %v1669 = vsub.f32 %v1461, %v1616
      %v1670 = vsub.f32 %v1462, %v1621
      %v1671 = vsub.f32 %v1463, %v1626
      %v1672 = vsub.f32 %v1464, %v1631
      %v1673 = vsub.f32 %v1465, %v1636
      %v1674 = vsub.f32 %v1466, %v1641
      %v1675 = vsub.f32 %v1467, %v1646
      %v1676 = vsub.f32 %v1468, %v1651
      %v1677 = vsub.f32 %v1469, %v1656
      %v1678 = vsub.f32 %v1470, %v1661
      %v1679 = vpack.c.bf16 %v1664, %v1663
      %v1680 = vpack.c.bf16 %v1666, %v1665
      %v1681 = vpack.c.bf16 %v1668, %v1667
      %v1682 = vpack.c.bf16 %v1670, %v1669
      %v1683 = vpack.c.bf16 %v1672, %v1671
      %v1684 = vpack.c.bf16 %v1674, %v1673
      %v1685 = vpack.c.bf16 %v1676, %v1675
      %v1686 = vpack.c.bf16 %v1678, %v1677
      %v1687 = vunpack.c.l.bf16 %v1679
      %v1688 = vunpack.c.h.bf16 %v1679
      %v1689 = vunpack.c.l.bf16 %v1680
      %v1690 = vunpack.c.h.bf16 %v1680
      %v1691 = vunpack.c.l.bf16 %v1681
      %v1692 = vunpack.c.h.bf16 %v1681
      %v1693 = vunpack.c.l.bf16 %v1682
      %v1694 = vunpack.c.h.bf16 %v1682
      %v1695 = vunpack.c.l.bf16 %v1683
      %v1696 = vunpack.c.h.bf16 %v1683
      %v1697 = vunpack.c.l.bf16 %v1684
      %v1698 = vunpack.c.h.bf16 %v1684
      %v1699 = vunpack.c.l.bf16 %v1685
      %v1700 = vunpack.c.h.bf16 %v1685
      %v1701 = vunpack.c.l.bf16 %v1686
      %v1702 = vunpack.c.h.bf16 %v1686
      %v1703 = vmul.f32 %v1687, 1.442695
      %v1704 = vpow.pop %v1703
      %v1705 = vmul.f32 %v1688, 1.442695
      %v1706 = vpow.pop %v1705
      %v1707 = vmul.f32 %v1689, 1.442695
      %v1708 = vpow.pop %v1707
      %v1709 = vmul.f32 %v1690, 1.442695
      %v1710 = vpow.pop %v1709
      %v1711 = vmul.f32 %v1691, 1.442695
      %v1712 = vpow.pop %v1711
      %v1713 = vmul.f32 %v1692, 1.442695
      %v1714 = vpow.pop %v1713
      %v1715 = vmul.f32 %v1693, 1.442695
      %v1716 = vpow.pop %v1715
      %v1717 = vmul.f32 %v1694, 1.442695
      %v1718 = vpow.pop %v1717
      %v1719 = vmul.f32 %v1695, 1.442695
      %v1720 = vpow.pop %v1719
      %v1721 = vmul.f32 %v1696, 1.442695
      %v1722 = vpow.pop %v1721
      %v1723 = vmul.f32 %v1697, 1.442695
      %v1724 = vpow.pop %v1723
      %v1725 = vmul.f32 %v1698, 1.442695
      %v1726 = vpow.pop %v1725
      %v1727 = vmul.f32 %v1699, 1.442695
      %v1728 = vpow.pop %v1727
      %v1729 = vmul.f32 %v1700, 1.442695
      %v1730 = vpow.pop %v1729
      %v1731 = vmul.f32 %v1701, 1.442695
      %v1732 = vpow.pop %v1731
      %v1733 = vmul.f32 %v1702, 1.442695
      %v1734 = vpow.pop %v1733
      %v1735 = vpack.c.bf16 %v1706, %v1704
      %v1736 = vpack.c.bf16 %v1710, %v1708
      %v1737 = vpack.c.bf16 %v1714, %v1712
      %v1738 = vpack.c.bf16 %v1718, %v1716
      %v1739 = vpack.c.bf16 %v1722, %v1720
      %v1740 = vpack.c.bf16 %v1726, %v1724
      %v1741 = vpack.c.bf16 %v1730, %v1728
      %v1742 = vpack.c.bf16 %v1734, %v1732
      %v1743 = vld [vmem:[#allocation3] sm:$0xff]
      %v1744 = vld [vmem:[#allocation3 + $0x8] sm:$0xff]
      %v1745 = vld [vmem:[#allocation3 + $0x10] sm:$0xff]
      %v1746 = vld [vmem:[#allocation3 + $0x18] sm:$0xff]
      %v1747 = vld [vmem:[#allocation3 + $0x20] sm:$0xff]
      %v1748 = vld [vmem:[#allocation3 + $0x28] sm:$0xff]
      %v1749 = vld [vmem:[#allocation3 + $0x30] sm:$0xff]
      %v1750 = vld [vmem:[#allocation3 + $0x38] sm:$0xff]
      %v1751 = vld [vmem:[#allocation3 + $0x40] sm:$0xff]
      %v1752 = vld [vmem:[#allocation3 + $0x48] sm:$0xff]
      %v1753 = vld [vmem:[#allocation3 + $0x50] sm:$0xff]
      %v1754 = vld [vmem:[#allocation3 + $0x58] sm:$0xff]
      %v1755 = vld [vmem:[#allocation3 + $0x60] sm:$0xff]
      %v1756 = vld [vmem:[#allocation3 + $0x68] sm:$0xff]
      %v1757 = vld [vmem:[#allocation3 + $0x70] sm:$0xff]
      %v1758 = vld [vmem:[#allocation3 + $0x78] sm:$0xff]
      %v1759 = vmul.f32 %v1552, %v1743
      %v1760 = vmul.f32 %v1554, %v1744
      %v1761 = vmul.f32 %v1556, %v1745
      %v1762 = vmul.f32 %v1558, %v1746
      %v1763 = vmul.f32 %v1560, %v1747
      %v1764 = vmul.f32 %v1562, %v1748
      %v1765 = vmul.f32 %v1564, %v1749
      %v1766 = vmul.f32 %v1566, %v1750
      %v1767 = vmul.f32 %v1568, %v1751
      %v1768 = vmul.f32 %v1570, %v1752
      %v1769 = vmul.f32 %v1572, %v1753
      %v1770 = vmul.f32 %v1574, %v1754
      %v1771 = vmul.f32 %v1576, %v1755
      %v1772 = vmul.f32 %v1578, %v1756
      %v1773 = vmul.f32 %v1580, %v1757
      %v1774 = vmul.f32 %v1582, %v1758
      %v1775 = vunpack.c.l.bf16 %v1735
      %v1776 = vunpack.c.h.bf16 %v1735
      %v1777 = vunpack.c.l.bf16 %v1736
      %v1778 = vunpack.c.h.bf16 %v1736
      %v1779 = vunpack.c.l.bf16 %v1737
      %v1780 = vunpack.c.h.bf16 %v1737
      %v1781 = vunpack.c.l.bf16 %v1738
      %v1782 = vunpack.c.h.bf16 %v1738
      %v1783 = vunpack.c.l.bf16 %v1739
      %v1784 = vunpack.c.h.bf16 %v1739
      %v1785 = vunpack.c.l.bf16 %v1740
      %v1786 = vunpack.c.h.bf16 %v1740
      %v1787 = vunpack.c.l.bf16 %v1741
      %v1788 = vunpack.c.h.bf16 %v1741
      %v1789 = vunpack.c.l.bf16 %v1742
      %v1790 = vunpack.c.h.bf16 %v1742
      %1791 = vadd.xlane.f32.xlu0 %v1775
      %v1792 = vpop.xlane.xlu0 %1791
      %1793 = vadd.xlane.f32.xlu0 %v1776
      %v1794 = vpop.xlane.xlu0 %1793
      %1795 = vadd.xlane.f32.xlu0 %v1777
      %v1796 = vpop.xlane.xlu0 %1795
      %1797 = vadd.xlane.f32.xlu0 %v1778
      %v1798 = vpop.xlane.xlu0 %1797
      %1799 = vadd.xlane.f32.xlu0 %v1779
      %v1800 = vpop.xlane.xlu0 %1799
      %1801 = vadd.xlane.f32.xlu0 %v1780
      %v1802 = vpop.xlane.xlu0 %1801
      %1803 = vadd.xlane.f32.xlu0 %v1781
      %v1804 = vpop.xlane.xlu0 %1803
      %1805 = vadd.xlane.f32.xlu0 %v1782
      %v1806 = vpop.xlane.xlu0 %1805
      %1807 = vadd.xlane.f32.xlu0 %v1783
      %v1808 = vpop.xlane.xlu0 %1807
      %1809 = vadd.xlane.f32.xlu0 %v1784
      %v1810 = vpop.xlane.xlu0 %1809
      %1811 = vadd.xlane.f32.xlu0 %v1785
      %v1812 = vpop.xlane.xlu0 %1811
      %1813 = vadd.xlane.f32.xlu0 %v1786
      %v1814 = vpop.xlane.xlu0 %1813
      %1815 = vadd.xlane.f32.xlu0 %v1787
      %v1816 = vpop.xlane.xlu0 %1815
      %1817 = vadd.xlane.f32.xlu0 %v1788
      %v1818 = vpop.xlane.xlu0 %1817
      %1819 = vadd.xlane.f32.xlu0 %v1789
      %v1820 = vpop.xlane.xlu0 %1819
      %1821 = vadd.xlane.f32.xlu0 %v1790
      %v1822 = vpop.xlane.xlu0 %1821
      %v1823 = vadd.f32 %v1759, %v1792
      %v1824 = vadd.f32 %v1760, %v1794
      %v1825 = vadd.f32 %v1761, %v1796
      %v1826 = vadd.f32 %v1762, %v1798
      %v1827 = vadd.f32 %v1763, %v1800
      %v1828 = vadd.f32 %v1764, %v1802
      %v1829 = vadd.f32 %v1765, %v1804
      %v1830 = vadd.f32 %v1766, %v1806
      %v1831 = vadd.f32 %v1767, %v1808
      %v1832 = vadd.f32 %v1768, %v1810
      %v1833 = vadd.f32 %v1769, %v1812
      %v1834 = vadd.f32 %v1770, %v1814
      %v1835 = vadd.f32 %v1771, %v1816
      %v1836 = vadd.f32 %v1772, %v1818
      %v1837 = vadd.f32 %v1773, %v1820
      %v1838 = vadd.f32 %v1774, %v1822
      %vm1839 = vcmask 7168
      %1840 = vst.msk [vmem:[#allocation3] sm:$0xff] %vm1839, %v1823
      %1841 = vst.msk [vmem:[#allocation3 + $0x8] sm:$0xff] %vm1839, %v1824
      %1842 = vst.msk [vmem:[#allocation3 + $0x10] sm:$0xff] %vm1839, %v1825
      %1843 = vst.msk [vmem:[#allocation3 + $0x18] sm:$0xff] %vm1839, %v1826
      %1844 = vst.msk [vmem:[#allocation3 + $0x20] sm:$0xff] %vm1839, %v1827
      %1845 = vst.msk [vmem:[#allocation3 + $0x28] sm:$0xff] %vm1839, %v1828
      %1846 = vst.msk [vmem:[#allocation3 + $0x30] sm:$0xff] %vm1839, %v1829
      %1847 = vst.msk [vmem:[#allocation3 + $0x38] sm:$0xff] %vm1839, %v1830
      %1848 = vst.msk [vmem:[#allocation3 + $0x40] sm:$0xff] %vm1839, %v1831
      %1849 = vst.msk [vmem:[#allocation3 + $0x48] sm:$0xff] %vm1839, %v1832
      %1850 = vst.msk [vmem:[#allocation3 + $0x50] sm:$0xff] %vm1839, %v1833
      %1851 = vst.msk [vmem:[#allocation3 + $0x58] sm:$0xff] %vm1839, %v1834
      %1852 = vst.msk [vmem:[#allocation3 + $0x60] sm:$0xff] %vm1839, %v1835
      %1853 = vst.msk [vmem:[#allocation3 + $0x68] sm:$0xff] %vm1839, %v1836
      %1854 = vst.msk [vmem:[#allocation3 + $0x70] sm:$0xff] %vm1839, %v1837
      %1855 = vst.msk [vmem:[#allocation3 + $0x78] sm:$0xff] %vm1839, %v1838
      %v1856 = vld [vmem:[#allocation4] sm:$0xff]
      %v1857 = vld [vmem:[#allocation4 + $0x8] sm:$0xff]
      %v1858 = vld [vmem:[#allocation4 + $0x10] sm:$0xff]
      %v1859 = vld [vmem:[#allocation4 + $0x18] sm:$0xff]
      %v1860 = vld [vmem:[#allocation4 + $0x20] sm:$0xff]
      %v1861 = vld [vmem:[#allocation4 + $0x28] sm:$0xff]
      %v1862 = vld [vmem:[#allocation4 + $0x30] sm:$0xff]
      %v1863 = vld [vmem:[#allocation4 + $0x38] sm:$0xff]
      %v1864 = vld [vmem:[#allocation4 + $0x40] sm:$0xff]
      %v1865 = vld [vmem:[#allocation4 + $0x48] sm:$0xff]
      %v1866 = vld [vmem:[#allocation4 + $0x50] sm:$0xff]
      %v1867 = vld [vmem:[#allocation4 + $0x58] sm:$0xff]
      %v1868 = vld [vmem:[#allocation4 + $0x60] sm:$0xff]
      %v1869 = vld [vmem:[#allocation4 + $0x68] sm:$0xff]
      %v1870 = vld [vmem:[#allocation4 + $0x70] sm:$0xff]
      %v1871 = vld [vmem:[#allocation4 + $0x78] sm:$0xff]
      %1873 = vset.pattern.permute.xlu0 0
      %1874 = vperm.xlu0 %1873, %v1552
      %v1875 = vpop.permute.xlu0 %1874
      %1878 = vset.pattern.permute.xlu0 0
      %1879 = vperm.xlu0 %1878, %v1554
      %v1880 = vpop.permute.xlu0 %1879
      %1883 = vset.pattern.permute.xlu0 0
      %1884 = vperm.xlu0 %1883, %v1556
      %v1885 = vpop.permute.xlu0 %1884
      %1888 = vset.pattern.permute.xlu0 0
      %1889 = vperm.xlu0 %1888, %v1558
      %v1890 = vpop.permute.xlu0 %1889
      %1893 = vset.pattern.permute.xlu0 0
      %1894 = vperm.xlu0 %1893, %v1560
      %v1895 = vpop.permute.xlu0 %1894
      %1898 = vset.pattern.permute.xlu0 0
      %1899 = vperm.xlu0 %1898, %v1562
      %v1900 = vpop.permute.xlu0 %1899
      %1903 = vset.pattern.permute.xlu0 0
      %1904 = vperm.xlu0 %1903, %v1564
      %v1905 = vpop.permute.xlu0 %1904
      %1908 = vset.pattern.permute.xlu0 0
      %1909 = vperm.xlu0 %1908, %v1566
      %v1910 = vpop.permute.xlu0 %1909
      %1913 = vset.pattern.permute.xlu0 0
      %1914 = vperm.xlu0 %1913, %v1568
      %v1915 = vpop.permute.xlu0 %1914
      %1918 = vset.pattern.permute.xlu0 0
      %1919 = vperm.xlu0 %1918, %v1570
      %v1920 = vpop.permute.xlu0 %1919
      %1923 = vset.pattern.permute.xlu0 0
      %1924 = vperm.xlu0 %1923, %v1572
      %v1925 = vpop.permute.xlu0 %1924
      %1928 = vset.pattern.permute.xlu0 0
      %1929 = vperm.xlu0 %1928, %v1574
      %v1930 = vpop.permute.xlu0 %1929
      %1933 = vset.pattern.permute.xlu0 0
      %1934 = vperm.xlu0 %1933, %v1576
      %v1935 = vpop.permute.xlu0 %1934
      %1938 = vset.pattern.permute.xlu0 0
      %1939 = vperm.xlu0 %1938, %v1578
      %v1940 = vpop.permute.xlu0 %1939
      %1943 = vset.pattern.permute.xlu0 0
      %1944 = vperm.xlu0 %1943, %v1580
      %v1945 = vpop.permute.xlu0 %1944
      %1948 = vset.pattern.permute.xlu0 0
      %1949 = vperm.xlu0 %1948, %v1582
      %v1950 = vpop.permute.xlu0 %1949
      %v1952 = vmul.f32 %v1875, %v1856
      %v1953 = vmul.f32 %v1880, %v1857
      %v1954 = vmul.f32 %v1885, %v1858
      %v1955 = vmul.f32 %v1890, %v1859
      %v1956 = vmul.f32 %v1895, %v1860
      %v1957 = vmul.f32 %v1900, %v1861
      %v1958 = vmul.f32 %v1905, %v1862
      %v1959 = vmul.f32 %v1910, %v1863
      %v1960 = vmul.f32 %v1915, %v1864
      %v1961 = vmul.f32 %v1920, %v1865
      %v1962 = vmul.f32 %v1925, %v1866
      %v1963 = vmul.f32 %v1930, %v1867
      %v1964 = vmul.f32 %v1935, %v1868
      %v1965 = vmul.f32 %v1940, %v1869
      %v1966 = vmul.f32 %v1945, %v1870
      %v1967 = vmul.f32 %v1950, %v1871
      %v1984 = vunpack.c.l.b16 %v1301
      %v1985 = vunpack.c.l.b16 %v1303
      %v1986 = vunpack.c.l.b16 %v1305
      %v1987 = vunpack.c.l.b16 %v1307
      %v1988 = vunpack.c.l.b16 %v1309
      %v1989 = vunpack.c.l.b16 %v1311
      %v1990 = vunpack.c.l.b16 %v1313
      %v1991 = vunpack.c.l.b16 %v1315
      %v1992 = vunpack.c.l.b16 %v1317
      %v1993 = vunpack.c.l.b16 %v1319
      %v1994 = vunpack.c.l.b16 %v1321
      %v1995 = vunpack.c.l.b16 %v1323
      %v1996 = vunpack.c.l.b16 %v1325
      %v1997 = vunpack.c.l.b16 %v1327
      %v1998 = vunpack.c.l.b16 %v1329
      %v1999 = vunpack.c.l.b16 %v1331
      %v2000 = vpack.c.b16 %v1985, %v1984
      %v2001 = vpack.c.b16 %v1987, %v1986
      %v2002 = vpack.c.b16 %v1989, %v1988
      %v2003 = vpack.c.b16 %v1991, %v1990
      %v2004 = vpack.c.b16 %v1993, %v1992
      %v2005 = vpack.c.b16 %v1995, %v1994
      %v2006 = vpack.c.b16 %v1997, %v1996
      %v2007 = vpack.c.b16 %v1999, %v1998
      %2016 = vmatpush.bf16.msra.mxu0 %v2007
      %2017 = vmatpush.bf16.msra.mxu0 %v2006
      %2018 = vmatpush.bf16.msra.mxu0 %v2005
      %2019 = vmatpush.bf16.msra.mxu0 %v2004
      %2020 = vmatpush.bf16.msra.mxu0 %v2003
      %2021 = vmatpush.bf16.msra.mxu0 %v2002
      %2022 = vmatpush.bf16.msra.mxu0 %v2001
      %2023 = vmatpush.bf16.msra.mxu0 %v2000
      %2024 = vmatmul.bf16.gmra.mxu0 %v1735
      %v2025 = vpop.f32.mrf.mxu0
      %v2026 = vadd.f32 0.0, %v2025
      %v2027 = vpop.f32.mrf.mxu0
      %v2028 = vadd.f32 0.0, %v2027
      %2029 = vmatmul.bf16.gmra.mxu0 %v1736
      %v2030 = vpop.f32.mrf.mxu0
      %v2031 = vadd.f32 0.0, %v2030
      %v2032 = vpop.f32.mrf.mxu0
      %v2033 = vadd.f32 0.0, %v2032
      %2034 = vmatmul.bf16.gmra.mxu0 %v1737
      %v2035 = vpop.f32.mrf.mxu0
      %v2036 = vadd.f32 0.0, %v2035
      %v2037 = vpop.f32.mrf.mxu0
      %v2038 = vadd.f32 0.0, %v2037
      %2039 = vmatmul.bf16.gmra.mxu0 %v1738
      %v2040 = vpop.f32.mrf.mxu0
      %v2041 = vadd.f32 0.0, %v2040
      %v2042 = vpop.f32.mrf.mxu0
      %v2043 = vadd.f32 0.0, %v2042
      %2044 = vmatmul.bf16.gmra.mxu0 %v1739
      %v2045 = vpop.f32.mrf.mxu0
      %v2046 = vadd.f32 0.0, %v2045
      %v2047 = vpop.f32.mrf.mxu0
      %v2048 = vadd.f32 0.0, %v2047
      %2049 = vmatmul.bf16.gmra.mxu0 %v1740
      %v2050 = vpop.f32.mrf.mxu0
      %v2051 = vadd.f32 0.0, %v2050
      %v2052 = vpop.f32.mrf.mxu0
      %v2053 = vadd.f32 0.0, %v2052
      %2054 = vmatmul.bf16.gmra.mxu0 %v1741
      %v2055 = vpop.f32.mrf.mxu0
      %v2056 = vadd.f32 0.0, %v2055
      %v2057 = vpop.f32.mrf.mxu0
      %v2058 = vadd.f32 0.0, %v2057
      %2059 = vmatmul.bf16.gmra.mxu0 %v1742
      %v2060 = vpop.f32.mrf.mxu0
      %v2061 = vadd.f32 0.0, %v2060
      %v2062 = vpop.f32.mrf.mxu0
      %v2063 = vadd.f32 0.0, %v2062
      %2064 = vdwg.mxu0
      %v2065 = vadd.f32 %v1952, %v2026
      %v2066 = vadd.f32 %v1953, %v2028
      %v2067 = vadd.f32 %v1954, %v2031
      %v2068 = vadd.f32 %v1955, %v2033
      %v2069 = vadd.f32 %v1956, %v2036
      %v2070 = vadd.f32 %v1957, %v2038
      %v2071 = vadd.f32 %v1958, %v2041
      %v2072 = vadd.f32 %v1959, %v2043
      %v2073 = vadd.f32 %v1960, %v2046
      %v2074 = vadd.f32 %v1961, %v2048
      %v2075 = vadd.f32 %v1962, %v2051
      %v2076 = vadd.f32 %v1963, %v2053
      %v2077 = vadd.f32 %v1964, %v2056
      %v2078 = vadd.f32 %v1965, %v2058
      %v2079 = vadd.f32 %v1966, %v2061
      %v2080 = vadd.f32 %v1967, %v2063
      %2081 = vst [vmem:[#allocation4] sm:$0xff] %v2065
      %2082 = vst [vmem:[#allocation4 + $0x8] sm:$0xff] %v2066
      %2083 = vst [vmem:[#allocation4 + $0x10] sm:$0xff] %v2067
      %2084 = vst [vmem:[#allocation4 + $0x18] sm:$0xff] %v2068
      %2085 = vst [vmem:[#allocation4 + $0x20] sm:$0xff] %v2069
      %2086 = vst [vmem:[#allocation4 + $0x28] sm:$0xff] %v2070
      %2087 = vst [vmem:[#allocation4 + $0x30] sm:$0xff] %v2071
      %2088 = vst [vmem:[#allocation4 + $0x38] sm:$0xff] %v2072
      %2089 = vst [vmem:[#allocation4 + $0x40] sm:$0xff] %v2073
      %2090 = vst [vmem:[#allocation4 + $0x48] sm:$0xff] %v2074
      %2091 = vst [vmem:[#allocation4 + $0x50] sm:$0xff] %v2075
      %2092 = vst [vmem:[#allocation4 + $0x58] sm:$0xff] %v2076
      %2093 = vst [vmem:[#allocation4 + $0x60] sm:$0xff] %v2077
      %2094 = vst [vmem:[#allocation4 + $0x68] sm:$0xff] %v2078
      %2095 = vst [vmem:[#allocation4 + $0x70] sm:$0xff] %v2079
      %2096 = vst [vmem:[#allocation4 + $0x78] sm:$0xff] %v2080
      %2097 = vst.msk [vmem:[#allocation2] sm:$0xff] %vm1839, %v1519
      %2098 = vst.msk [vmem:[#allocation2 + $0x8] sm:$0xff] %vm1839, %v1520
      %2099 = vst.msk [vmem:[#allocation2 + $0x10] sm:$0xff] %vm1839, %v1521
      %2100 = vst.msk [vmem:[#allocation2 + $0x18] sm:$0xff] %vm1839, %v1522
      %2101 = vst.msk [vmem:[#allocation2 + $0x20] sm:$0xff] %vm1839, %v1523
      %2102 = vst.msk [vmem:[#allocation2 + $0x28] sm:$0xff] %vm1839, %v1524
      %2103 = vst.msk [vmem:[#allocation2 + $0x30] sm:$0xff] %vm1839, %v1525
      %2104 = vst.msk [vmem:[#allocation2 + $0x38] sm:$0xff] %vm1839, %v1526
      %2105 = vst.msk [vmem:[#allocation2 + $0x40] sm:$0xff] %vm1839, %v1527
      %2106 = vst.msk [vmem:[#allocation2 + $0x48] sm:$0xff] %vm1839, %v1528
      %2107 = vst.msk [vmem:[#allocation2 + $0x50] sm:$0xff] %vm1839, %v1529
      %2108 = vst.msk [vmem:[#allocation2 + $0x58] sm:$0xff] %vm1839, %v1530
      %2109 = vst.msk [vmem:[#allocation2 + $0x60] sm:$0xff] %vm1839, %v1531
      %2110 = vst.msk [vmem:[#allocation2 + $0x68] sm:$0xff] %vm1839, %v1532
      %2111 = vst.msk [vmem:[#allocation2 + $0x70] sm:$0xff] %vm1839, %v1533
      %2112 = vst.msk [vmem:[#allocation2 + $0x78] sm:$0xff] %vm1839, %v1534
      %2121 = vrot.lane.b32.xlu0 %v1339, 96
      %v2122 = vpop.permute.xlu0 %2121
      %2123 = vrot.lane.b32.xlu0 %v1340, 96
      %v2124 = vpop.permute.xlu0 %2123
      %2125 = vrot.lane.b32.xlu0 %v1341, 96
      %v2126 = vpop.permute.xlu0 %2125
      %2127 = vrot.lane.b32.xlu0 %v1342, 96
      %v2128 = vpop.permute.xlu0 %2127
      %2129 = vrot.lane.b32.xlu0 %v1343, 96
      %v2130 = vpop.permute.xlu0 %2129
      %2131 = vrot.lane.b32.xlu0 %v1344, 96
      %v2132 = vpop.permute.xlu0 %2131
      %2133 = vrot.lane.b32.xlu0 %v1345, 96
      %v2134 = vpop.permute.xlu0 %2133
      %2135 = vrot.lane.b32.xlu0 %v1346, 96
      %v2136 = vpop.permute.xlu0 %2135
      %2145 = vrot.lane.b32.xlu0 %v1347, 96
      %v2146 = vpop.permute.xlu0 %2145
      %2147 = vrot.lane.b32.xlu0 %v1348, 96
      %v2148 = vpop.permute.xlu0 %2147
      %2149 = vrot.lane.b32.xlu0 %v1349, 96
      %v2150 = vpop.permute.xlu0 %2149
      %2151 = vrot.lane.b32.xlu0 %v1350, 96
      %v2152 = vpop.permute.xlu0 %2151
      %2153 = vrot.lane.b32.xlu0 %v1351, 96
      %v2154 = vpop.permute.xlu0 %2153
      %2155 = vrot.lane.b32.xlu0 %v1352, 96
      %v2156 = vpop.permute.xlu0 %2155
      %2157 = vrot.lane.b32.xlu0 %v1353, 96
      %v2158 = vpop.permute.xlu0 %2157
      %2159 = vrot.lane.b32.xlu0 %v1354, 96
      %v2160 = vpop.permute.xlu0 %2159
      %v2162 = vsel %vm1355, %v2122, 0
      %v2165 = vsel %vm1355, %v2124, 0
      %v2168 = vsel %vm1355, %v2126, 0
      %v2171 = vsel %vm1355, %v2128, 0
      %v2174 = vsel %vm1355, %v2130, 0
      %v2177 = vsel %vm1355, %v2132, 0
      %v2180 = vsel %vm1355, %v2134, 0
      %v2183 = vsel %vm1355, %v2136, 0
      %v2186 = vsel %vm1355, %v2146, 0
      %v2189 = vsel %vm1355, %v2148, 0
      %v2192 = vsel %vm1355, %v2150, 0
      %v2195 = vsel %vm1355, %v2152, 0
      %v2198 = vsel %vm1355, %v2154, 0
      %v2201 = vsel %vm1355, %v2156, 0
      %v2204 = vsel %vm1355, %v2158, 0
      %v2207 = vsel %vm1355, %v2160, 0
      %2209 = vmatpush.bf16.xpose.msra.mxu0 %v2207
      %2210 = vmatpush.bf16.xpose.msra.mxu0 %v2204
      %2211 = vmatpush.bf16.xpose.msra.mxu0 %v2201
      %2212 = vmatpush.bf16.xpose.msra.mxu0 %v2198
      %2213 = vmatpush.bf16.xpose.msra.mxu0 %v2195
      %2214 = vmatpush.bf16.xpose.msra.mxu0 %v2192
      %2215 = vmatpush.bf16.xpose.msra.mxu0 %v2189
      %2216 = vmatpush.bf16.xpose.msra.mxu0 %v2186
      %2217 = vmatmul.bf16.gmra.mxu0 %v2162
      %v2218 = vpop.f32.mrf.mxu0
      %v2219 = vadd.f32 0.0, %v2218
      %v2220 = vpop.f32.mrf.mxu0
      %v2221 = vadd.f32 0.0, %v2220
      %2222 = vmatmul.bf16.gmra.mxu0 %v2165
      %v2223 = vpop.f32.mrf.mxu0
      %v2224 = vadd.f32 0.0, %v2223
      %v2225 = vpop.f32.mrf.mxu0
      %v2226 = vadd.f32 0.0, %v2225
      %2227 = vmatmul.bf16.gmra.mxu0 %v2168
      %v2228 = vpop.f32.mrf.mxu0
      %v2229 = vadd.f32 0.0, %v2228
      %v2230 = vpop.f32.mrf.mxu0
      %v2231 = vadd.f32 0.0, %v2230
      %2232 = vmatmul.bf16.gmra.mxu0 %v2171
      %v2233 = vpop.f32.mrf.mxu0
      %v2234 = vadd.f32 0.0, %v2233
      %v2235 = vpop.f32.mrf.mxu0
      %v2236 = vadd.f32 0.0, %v2235
      %2237 = vmatmul.bf16.gmra.mxu0 %v2174
      %v2238 = vpop.f32.mrf.mxu0
      %v2239 = vadd.f32 0.0, %v2238
      %v2240 = vpop.f32.mrf.mxu0
      %v2241 = vadd.f32 0.0, %v2240
      %2242 = vmatmul.bf16.gmra.mxu0 %v2177
      %v2243 = vpop.f32.mrf.mxu0
      %v2244 = vadd.f32 0.0, %v2243
      %v2245 = vpop.f32.mrf.mxu0
      %v2246 = vadd.f32 0.0, %v2245
      %2247 = vmatmul.bf16.gmra.mxu0 %v2180
      %v2248 = vpop.f32.mrf.mxu0
      %v2249 = vadd.f32 0.0, %v2248
      %v2250 = vpop.f32.mrf.mxu0
      %v2251 = vadd.f32 0.0, %v2250
      %2252 = vmatmul.bf16.gmra.mxu0 %v2183
      %v2253 = vpop.f32.mrf.mxu0
      %v2254 = vadd.f32 0.0, %v2253
      %v2255 = vpop.f32.mrf.mxu0
      %v2256 = vadd.f32 0.0, %v2255
      %2257 = vdwg.mxu0
      %v2258 = vsel %vm1454, %v2219, -1e+30
      %v2259 = vsel %vm1454, %v2221, -1e+30
      %v2260 = vsel %vm1454, %v2224, -1e+30
      %v2261 = vsel %vm1454, %v2226, -1e+30
      %v2262 = vsel %vm1454, %v2229, -1e+30
      %v2263 = vsel %vm1454, %v2231, -1e+30
      %v2264 = vsel %vm1454, %v2234, -1e+30
      %v2265 = vsel %vm1454, %v2236, -1e+30
      %v2266 = vsel %vm1454, %v2239, -1e+30
      %v2267 = vsel %vm1454, %v2241, -1e+30
      %v2268 = vsel %vm1454, %v2244, -1e+30
      %v2269 = vsel %vm1454, %v2246, -1e+30
      %v2270 = vsel %vm1454, %v2249, -1e+30
      %v2271 = vsel %vm1454, %v2251, -1e+30
      %v2272 = vsel %vm1454, %v2254, -1e+30
      %v2273 = vsel %vm1454, %v2256, -1e+30
      %s2274 = scalar_lea.vmem [#allocation2], 128
      %v2275 = vld [vmem:[%s2274] sm:$0xff]
      %v2276 = vld [vmem:[%s2274 + $0x8] sm:$0xff]
      %v2277 = vld [vmem:[%s2274 + $0x10] sm:$0xff]
      %v2278 = vld [vmem:[%s2274 + $0x18] sm:$0xff]
      %v2279 = vld [vmem:[%s2274 + $0x20] sm:$0xff]
      %v2280 = vld [vmem:[%s2274 + $0x28] sm:$0xff]
      %v2281 = vld [vmem:[%s2274 + $0x30] sm:$0xff]
      %v2282 = vld [vmem:[%s2274 + $0x38] sm:$0xff]
      %v2283 = vld [vmem:[%s2274 + $0x40] sm:$0xff]
      %v2284 = vld [vmem:[%s2274 + $0x48] sm:$0xff]
      %v2285 = vld [vmem:[%s2274 + $0x50] sm:$0xff]
      %v2286 = vld [vmem:[%s2274 + $0x58] sm:$0xff]
      %v2287 = vld [vmem:[%s2274 + $0x60] sm:$0xff]
      %v2288 = vld [vmem:[%s2274 + $0x68] sm:$0xff]
      %v2289 = vld [vmem:[%s2274 + $0x70] sm:$0xff]
      %v2290 = vld [vmem:[%s2274 + $0x78] sm:$0xff]
      %2291 = vmax.xlane.f32.xlu0 %v2258
      %v2292 = vpop.xlane.xlu0 %2291
      %2293 = vmax.xlane.f32.xlu0 %v2259
      %v2294 = vpop.xlane.xlu0 %2293
      %2295 = vmax.xlane.f32.xlu0 %v2260
      %v2296 = vpop.xlane.xlu0 %2295
      %2297 = vmax.xlane.f32.xlu0 %v2261
      %v2298 = vpop.xlane.xlu0 %2297
      %2299 = vmax.xlane.f32.xlu0 %v2262
      %v2300 = vpop.xlane.xlu0 %2299
      %2301 = vmax.xlane.f32.xlu0 %v2263
      %v2302 = vpop.xlane.xlu0 %2301
      %2303 = vmax.xlane.f32.xlu0 %v2264
      %v2304 = vpop.xlane.xlu0 %2303
      %2305 = vmax.xlane.f32.xlu0 %v2265
      %v2306 = vpop.xlane.xlu0 %2305
      %2307 = vmax.xlane.f32.xlu0 %v2266
      %v2308 = vpop.xlane.xlu0 %2307
      %2309 = vmax.xlane.f32.xlu0 %v2267
      %v2310 = vpop.xlane.xlu0 %2309
      %2311 = vmax.xlane.f32.xlu0 %v2268
      %v2312 = vpop.xlane.xlu0 %2311
      %2313 = vmax.xlane.f32.xlu0 %v2269
      %v2314 = vpop.xlane.xlu0 %2313
      %2315 = vmax.xlane.f32.xlu0 %v2270
      %v2316 = vpop.xlane.xlu0 %2315
      %2317 = vmax.xlane.f32.xlu0 %v2271
      %v2318 = vpop.xlane.xlu0 %2317
      %2319 = vmax.xlane.f32.xlu0 %v2272
      %v2320 = vpop.xlane.xlu0 %2319
      %2321 = vmax.xlane.f32.xlu0 %v2273
      %v2322 = vpop.xlane.xlu0 %2321
      %v2323 = vmax.f32 %v2275, %v2292
      %v2324 = vmax.f32 %v2276, %v2294
      %v2325 = vmax.f32 %v2277, %v2296
      %v2326 = vmax.f32 %v2278, %v2298
      %v2327 = vmax.f32 %v2279, %v2300
      %v2328 = vmax.f32 %v2280, %v2302
      %v2329 = vmax.f32 %v2281, %v2304
      %v2330 = vmax.f32 %v2282, %v2306
      %v2331 = vmax.f32 %v2283, %v2308
      %v2332 = vmax.f32 %v2284, %v2310
      %v2333 = vmax.f32 %v2285, %v2312
      %v2334 = vmax.f32 %v2286, %v2314
      %v2335 = vmax.f32 %v2287, %v2316
      %v2336 = vmax.f32 %v2288, %v2318
      %v2337 = vmax.f32 %v2289, %v2320
      %v2338 = vmax.f32 %v2290, %v2322
      %v2339 = vsub.f32 %v2275, %v2323
      %v2340 = vsub.f32 %v2276, %v2324
      %v2341 = vsub.f32 %v2277, %v2325
      %v2342 = vsub.f32 %v2278, %v2326
      %v2343 = vsub.f32 %v2279, %v2327
      %v2344 = vsub.f32 %v2280, %v2328
      %v2345 = vsub.f32 %v2281, %v2329
      %v2346 = vsub.f32 %v2282, %v2330
      %v2347 = vsub.f32 %v2283, %v2331
      %v2348 = vsub.f32 %v2284, %v2332
      %v2349 = vsub.f32 %v2285, %v2333
      %v2350 = vsub.f32 %v2286, %v2334
      %v2351 = vsub.f32 %v2287, %v2335
      %v2352 = vsub.f32 %v2288, %v2336
      %v2353 = vsub.f32 %v2289, %v2337
      %v2354 = vsub.f32 %v2290, %v2338
      %v2355 = vmul.f32 %v2339, 1.442695
      %v2356 = vpow.pop %v2355
      %v2357 = vmul.f32 %v2340, 1.442695
      %v2358 = vpow.pop %v2357
      %v2359 = vmul.f32 %v2341, 1.442695
      %v2360 = vpow.pop %v2359
      %v2361 = vmul.f32 %v2342, 1.442695
      %v2362 = vpow.pop %v2361
      %v2363 = vmul.f32 %v2343, 1.442695
      %v2364 = vpow.pop %v2363
      %v2365 = vmul.f32 %v2344, 1.442695
      %v2366 = vpow.pop %v2365
      %v2367 = vmul.f32 %v2345, 1.442695
      %v2368 = vpow.pop %v2367
      %v2369 = vmul.f32 %v2346, 1.442695
      %v2370 = vpow.pop %v2369
      %v2371 = vmul.f32 %v2347, 1.442695
      %v2372 = vpow.pop %v2371
      %v2373 = vmul.f32 %v2348, 1.442695
      %v2374 = vpow.pop %v2373
      %v2375 = vmul.f32 %v2349, 1.442695
      %v2376 = vpow.pop %v2375
      %v2377 = vmul.f32 %v2350, 1.442695
      %v2378 = vpow.pop %v2377
      %v2379 = vmul.f32 %v2351, 1.442695
      %v2380 = vpow.pop %v2379
      %v2381 = vmul.f32 %v2352, 1.442695
      %v2382 = vpow.pop %v2381
      %v2383 = vmul.f32 %v2353, 1.442695
      %v2384 = vpow.pop %v2383
      %v2385 = vmul.f32 %v2354, 1.442695
      %v2386 = vpow.pop %v2385
      %2388 = vset.pattern.permute.xlu0 0
      %2389 = vperm.xlu0 %2388, %v2323
      %v2390 = vpop.permute.xlu0 %2389
      %2393 = vset.pattern.permute.xlu0 0
      %2394 = vperm.xlu0 %2393, %v2324
      %v2395 = vpop.permute.xlu0 %2394
      %2398 = vset.pattern.permute.xlu0 0
      %2399 = vperm.xlu0 %2398, %v2325
      %v2400 = vpop.permute.xlu0 %2399
      %2403 = vset.pattern.permute.xlu0 0
      %2404 = vperm.xlu0 %2403, %v2326
      %v2405 = vpop.permute.xlu0 %2404
      %2408 = vset.pattern.permute.xlu0 0
      %2409 = vperm.xlu0 %2408, %v2327
      %v2410 = vpop.permute.xlu0 %2409
      %2413 = vset.pattern.permute.xlu0 0
      %2414 = vperm.xlu0 %2413, %v2328
      %v2415 = vpop.permute.xlu0 %2414
      %2418 = vset.pattern.permute.xlu0 0
      %2419 = vperm.xlu0 %2418, %v2329
      %v2420 = vpop.permute.xlu0 %2419
      %2423 = vset.pattern.permute.xlu0 0
      %2424 = vperm.xlu0 %2423, %v2330
      %v2425 = vpop.permute.xlu0 %2424
      %2428 = vset.pattern.permute.xlu0 0
      %2429 = vperm.xlu0 %2428, %v2331
      %v2430 = vpop.permute.xlu0 %2429
      %2433 = vset.pattern.permute.xlu0 0
      %2434 = vperm.xlu0 %2433, %v2332
      %v2435 = vpop.permute.xlu0 %2434
      %2438 = vset.pattern.permute.xlu0 0
      %2439 = vperm.xlu0 %2438, %v2333
      %v2440 = vpop.permute.xlu0 %2439
      %2443 = vset.pattern.permute.xlu0 0
      %2444 = vperm.xlu0 %2443, %v2334
      %v2445 = vpop.permute.xlu0 %2444
      %2448 = vset.pattern.permute.xlu0 0
      %2449 = vperm.xlu0 %2448, %v2335
      %v2450 = vpop.permute.xlu0 %2449
      %2453 = vset.pattern.permute.xlu0 0
      %2454 = vperm.xlu0 %2453, %v2336
      %v2455 = vpop.permute.xlu0 %2454
      %2458 = vset.pattern.permute.xlu0 0
      %2459 = vperm.xlu0 %2458, %v2337
      %v2460 = vpop.permute.xlu0 %2459
      %2463 = vset.pattern.permute.xlu0 0
      %2464 = vperm.xlu0 %2463, %v2338
      %v2465 = vpop.permute.xlu0 %2464
      %v2467 = vsub.f32 %v2258, %v2390
      %v2468 = vsub.f32 %v2259, %v2395
      %v2469 = vsub.f32 %v2260, %v2400
      %v2470 = vsub.f32 %v2261, %v2405
      %v2471 = vsub.f32 %v2262, %v2410
      %v2472 = vsub.f32 %v2263, %v2415
      %v2473 = vsub.f32 %v2264, %v2420
      %v2474 = vsub.f32 %v2265, %v2425
      %v2475 = vsub.f32 %v2266, %v2430
      %v2476 = vsub.f32 %v2267, %v2435
      %v2477 = vsub.f32 %v2268, %v2440
      %v2478 = vsub.f32 %v2269, %v2445
      %v2479 = vsub.f32 %v2270, %v2450
      %v2480 = vsub.f32 %v2271, %v2455
      %v2481 = vsub.f32 %v2272, %v2460
      %v2482 = vsub.f32 %v2273, %v2465
      %v2483 = vpack.c.bf16 %v2468, %v2467
      %v2484 = vpack.c.bf16 %v2470, %v2469
      %v2485 = vpack.c.bf16 %v2472, %v2471
      %v2486 = vpack.c.bf16 %v2474, %v2473
      %v2487 = vpack.c.bf16 %v2476, %v2475
      %v2488 = vpack.c.bf16 %v2478, %v2477
      %v2489 = vpack.c.bf16 %v2480, %v2479
      %v2490 = vpack.c.bf16 %v2482, %v2481
      %v2491 = vunpack.c.l.bf16 %v2483
      %v2492 = vunpack.c.h.bf16 %v2483
      %v2493 = vunpack.c.l.bf16 %v2484
      %v2494 = vunpack.c.h.bf16 %v2484
      %v2495 = vunpack.c.l.bf16 %v2485
      %v2496 = vunpack.c.h.bf16 %v2485
      %v2497 = vunpack.c.l.bf16 %v2486
      %v2498 = vunpack.c.h.bf16 %v2486
      %v2499 = vunpack.c.l.bf16 %v2487
      %v2500 = vunpack.c.h.bf16 %v2487
      %v2501 = vunpack.c.l.bf16 %v2488
      %v2502 = vunpack.c.h.bf16 %v2488
      %v2503 = vunpack.c.l.bf16 %v2489
      %v2504 = vunpack.c.h.bf16 %v2489
      %v2505 = vunpack.c.l.bf16 %v2490
      %v2506 = vunpack.c.h.bf16 %v2490
      %v2507 = vmul.f32 %v2491, 1.442695
      %v2508 = vpow.pop %v2507
      %v2509 = vmul.f32 %v2492, 1.442695
      %v2510 = vpow.pop %v2509
      %v2511 = vmul.f32 %v2493, 1.442695
      %v2512 = vpow.pop %v2511
      %v2513 = vmul.f32 %v2494, 1.442695
      %v2514 = vpow.pop %v2513
      %v2515 = vmul.f32 %v2495, 1.442695
      %v2516 = vpow.pop %v2515
      %v2517 = vmul.f32 %v2496, 1.442695
      %v2518 = vpow.pop %v2517
      %v2519 = vmul.f32 %v2497, 1.442695
      %v2520 = vpow.pop %v2519
      %v2521 = vmul.f32 %v2498, 1.442695
      %v2522 = vpow.pop %v2521
      %v2523 = vmul.f32 %v2499, 1.442695
      %v2524 = vpow.pop %v2523
      %v2525 = vmul.f32 %v2500, 1.442695
      %v2526 = vpow.pop %v2525
      %v2527 = vmul.f32 %v2501, 1.442695
      %v2528 = vpow.pop %v2527
      %v2529 = vmul.f32 %v2502, 1.442695
      %v2530 = vpow.pop %v2529
      %v2531 = vmul.f32 %v2503, 1.442695
      %v2532 = vpow.pop %v2531
      %v2533 = vmul.f32 %v2504, 1.442695
      %v2534 = vpow.pop %v2533
      %v2535 = vmul.f32 %v2505, 1.442695
      %v2536 = vpow.pop %v2535
      %v2537 = vmul.f32 %v2506, 1.442695
      %v2538 = vpow.pop %v2537
      %v2539 = vpack.c.bf16 %v2510, %v2508
      %v2540 = vpack.c.bf16 %v2514, %v2512
      %v2541 = vpack.c.bf16 %v2518, %v2516
      %v2542 = vpack.c.bf16 %v2522, %v2520
      %v2543 = vpack.c.bf16 %v2526, %v2524
      %v2544 = vpack.c.bf16 %v2530, %v2528
      %v2545 = vpack.c.bf16 %v2534, %v2532
      %v2546 = vpack.c.bf16 %v2538, %v2536
      %s2547 = scalar_lea.vmem [#allocation3], 128
      %v2548 = vld [vmem:[%s2547] sm:$0xff]
      %v2549 = vld [vmem:[%s2547 + $0x8] sm:$0xff]
      %v2550 = vld [vmem:[%s2547 + $0x10] sm:$0xff]
      %v2551 = vld [vmem:[%s2547 + $0x18] sm:$0xff]
      %v2552 = vld [vmem:[%s2547 + $0x20] sm:$0xff]
      %v2553 = vld [vmem:[%s2547 + $0x28] sm:$0xff]
      %v2554 = vld [vmem:[%s2547 + $0x30] sm:$0xff]
      %v2555 = vld [vmem:[%s2547 + $0x38] sm:$0xff]
      %v2556 = vld [vmem:[%s2547 + $0x40] sm:$0xff]
      %v2557 = vld [vmem:[%s2547 + $0x48] sm:$0xff]
      %v2558 = vld [vmem:[%s2547 + $0x50] sm:$0xff]
      %v2559 = vld [vmem:[%s2547 + $0x58] sm:$0xff]
      %v2560 = vld [vmem:[%s2547 + $0x60] sm:$0xff]
      %v2561 = vld [vmem:[%s2547 + $0x68] sm:$0xff]
      %v2562 = vld [vmem:[%s2547 + $0x70] sm:$0xff]
      %v2563 = vld [vmem:[%s2547 + $0x78] sm:$0xff]
      %v2564 = vmul.f32 %v2356, %v2548
      %v2565 = vmul.f32 %v2358, %v2549
      %v2566 = vmul.f32 %v2360, %v2550
      %v2567 = vmul.f32 %v2362, %v2551
      %v2568 = vmul.f32 %v2364, %v2552
      %v2569 = vmul.f32 %v2366, %v2553
      %v2570 = vmul.f32 %v2368, %v2554
      %v2571 = vmul.f32 %v2370, %v2555
      %v2572 = vmul.f32 %v2372, %v2556
      %v2573 = vmul.f32 %v2374, %v2557
      %v2574 = vmul.f32 %v2376, %v2558
      %v2575 = vmul.f32 %v2378, %v2559
      %v2576 = vmul.f32 %v2380, %v2560
      %v2577 = vmul.f32 %v2382, %v2561
      %v2578 = vmul.f32 %v2384, %v2562
      %v2579 = vmul.f32 %v2386, %v2563
      %v2580 = vunpack.c.l.bf16 %v2539
      %v2581 = vunpack.c.h.bf16 %v2539
      %v2582 = vunpack.c.l.bf16 %v2540
      %v2583 = vunpack.c.h.bf16 %v2540
      %v2584 = vunpack.c.l.bf16 %v2541
      %v2585 = vunpack.c.h.bf16 %v2541
      %v2586 = vunpack.c.l.bf16 %v2542
      %v2587 = vunpack.c.h.bf16 %v2542
      %v2588 = vunpack.c.l.bf16 %v2543
      %v2589 = vunpack.c.h.bf16 %v2543
      %v2590 = vunpack.c.l.bf16 %v2544
      %v2591 = vunpack.c.h.bf16 %v2544
      %v2592 = vunpack.c.l.bf16 %v2545
      %v2593 = vunpack.c.h.bf16 %v2545
      %v2594 = vunpack.c.l.bf16 %v2546
      %v2595 = vunpack.c.h.bf16 %v2546
      %2596 = vadd.xlane.f32.xlu0 %v2580
      %v2597 = vpop.xlane.xlu0 %2596
      %2598 = vadd.xlane.f32.xlu0 %v2581
      %v2599 = vpop.xlane.xlu0 %2598
      %2600 = vadd.xlane.f32.xlu0 %v2582
      %v2601 = vpop.xlane.xlu0 %2600
      %2602 = vadd.xlane.f32.xlu0 %v2583
      %v2603 = vpop.xlane.xlu0 %2602
      %2604 = vadd.xlane.f32.xlu0 %v2584
      %v2605 = vpop.xlane.xlu0 %2604
      %2606 = vadd.xlane.f32.xlu0 %v2585
      %v2607 = vpop.xlane.xlu0 %2606
      %2608 = vadd.xlane.f32.xlu0 %v2586
      %v2609 = vpop.xlane.xlu0 %2608
      %2610 = vadd.xlane.f32.xlu0 %v2587
      %v2611 = vpop.xlane.xlu0 %2610
      %2612 = vadd.xlane.f32.xlu0 %v2588
      %v2613 = vpop.xlane.xlu0 %2612
      %2614 = vadd.xlane.f32.xlu0 %v2589
      %v2615 = vpop.xlane.xlu0 %2614
      %2616 = vadd.xlane.f32.xlu0 %v2590
      %v2617 = vpop.xlane.xlu0 %2616
      %2618 = vadd.xlane.f32.xlu0 %v2591
      %v2619 = vpop.xlane.xlu0 %2618
      %2620 = vadd.xlane.f32.xlu0 %v2592
      %v2621 = vpop.xlane.xlu0 %2620
      %2622 = vadd.xlane.f32.xlu0 %v2593
      %v2623 = vpop.xlane.xlu0 %2622
      %2624 = vadd.xlane.f32.xlu0 %v2594
      %v2625 = vpop.xlane.xlu0 %2624
      %2626 = vadd.xlane.f32.xlu0 %v2595
      %v2627 = vpop.xlane.xlu0 %2626
      %v2628 = vadd.f32 %v2564, %v2597
      %v2629 = vadd.f32 %v2565, %v2599
      %v2630 = vadd.f32 %v2566, %v2601
      %v2631 = vadd.f32 %v2567, %v2603
      %v2632 = vadd.f32 %v2568, %v2605
      %v2633 = vadd.f32 %v2569, %v2607
      %v2634 = vadd.f32 %v2570, %v2609
      %v2635 = vadd.f32 %v2571, %v2611
      %v2636 = vadd.f32 %v2572, %v2613
      %v2637 = vadd.f32 %v2573, %v2615
      %v2638 = vadd.f32 %v2574, %v2617
      %v2639 = vadd.f32 %v2575, %v2619
      %v2640 = vadd.f32 %v2576, %v2621
      %v2641 = vadd.f32 %v2577, %v2623
      %v2642 = vadd.f32 %v2578, %v2625
      %v2643 = vadd.f32 %v2579, %v2627
      %2644 = vst.msk [vmem:[%s2547] sm:$0xff] %vm1839, %v2628
      %2645 = vst.msk [vmem:[%s2547 + $0x8] sm:$0xff] %vm1839, %v2629
      %2646 = vst.msk [vmem:[%s2547 + $0x10] sm:$0xff] %vm1839, %v2630
      %2647 = vst.msk [vmem:[%s2547 + $0x18] sm:$0xff] %vm1839, %v2631
      %2648 = vst.msk [vmem:[%s2547 + $0x20] sm:$0xff] %vm1839, %v2632
      %2649 = vst.msk [vmem:[%s2547 + $0x28] sm:$0xff] %vm1839, %v2633
      %2650 = vst.msk [vmem:[%s2547 + $0x30] sm:$0xff] %vm1839, %v2634
      %2651 = vst.msk [vmem:[%s2547 + $0x38] sm:$0xff] %vm1839, %v2635
      %2652 = vst.msk [vmem:[%s2547 + $0x40] sm:$0xff] %vm1839, %v2636
      %2653 = vst.msk [vmem:[%s2547 + $0x48] sm:$0xff] %vm1839, %v2637
      %2654 = vst.msk [vmem:[%s2547 + $0x50] sm:$0xff] %vm1839, %v2638
      %2655 = vst.msk [vmem:[%s2547 + $0x58] sm:$0xff] %vm1839, %v2639
      %2656 = vst.msk [vmem:[%s2547 + $0x60] sm:$0xff] %vm1839, %v2640
      %2657 = vst.msk [vmem:[%s2547 + $0x68] sm:$0xff] %vm1839, %v2641
      %2658 = vst.msk [vmem:[%s2547 + $0x70] sm:$0xff] %vm1839, %v2642
      %2659 = vst.msk [vmem:[%s2547 + $0x78] sm:$0xff] %vm1839, %v2643
      %s2660 = scalar_lea.vmem [#allocation4], 128
      %v2661 = vld [vmem:[%s2660] sm:$0xff]
      %v2662 = vld [vmem:[%s2660 + $0x8] sm:$0xff]
      %v2663 = vld [vmem:[%s2660 + $0x10] sm:$0xff]
      %v2664 = vld [vmem:[%s2660 + $0x18] sm:$0xff]
      %v2665 = vld [vmem:[%s2660 + $0x20] sm:$0xff]
      %v2666 = vld [vmem:[%s2660 + $0x28] sm:$0xff]
      %v2667 = vld [vmem:[%s2660 + $0x30] sm:$0xff]
      %v2668 = vld [vmem:[%s2660 + $0x38] sm:$0xff]
      %v2669 = vld [vmem:[%s2660 + $0x40] sm:$0xff]
      %v2670 = vld [vmem:[%s2660 + $0x48] sm:$0xff]
      %v2671 = vld [vmem:[%s2660 + $0x50] sm:$0xff]
      %v2672 = vld [vmem:[%s2660 + $0x58] sm:$0xff]
      %v2673 = vld [vmem:[%s2660 + $0x60] sm:$0xff]
      %v2674 = vld [vmem:[%s2660 + $0x68] sm:$0xff]
      %v2675 = vld [vmem:[%s2660 + $0x70] sm:$0xff]
      %v2676 = vld [vmem:[%s2660 + $0x78] sm:$0xff]
      %2678 = vset.pattern.permute.xlu0 0
      %2679 = vperm.xlu0 %2678, %v2356
      %v2680 = vpop.permute.xlu0 %2679
      %2683 = vset.pattern.permute.xlu0 0
      %2684 = vperm.xlu0 %2683, %v2358
      %v2685 = vpop.permute.xlu0 %2684
      %2688 = vset.pattern.permute.xlu0 0
      %2689 = vperm.xlu0 %2688, %v2360
      %v2690 = vpop.permute.xlu0 %2689
      %2693 = vset.pattern.permute.xlu0 0
      %2694 = vperm.xlu0 %2693, %v2362
      %v2695 = vpop.permute.xlu0 %2694
      %2698 = vset.pattern.permute.xlu0 0
      %2699 = vperm.xlu0 %2698, %v2364
      %v2700 = vpop.permute.xlu0 %2699
      %2703 = vset.pattern.permute.xlu0 0
      %2704 = vperm.xlu0 %2703, %v2366
      %v2705 = vpop.permute.xlu0 %2704
      %2708 = vset.pattern.permute.xlu0 0
      %2709 = vperm.xlu0 %2708, %v2368
      %v2710 = vpop.permute.xlu0 %2709
      %2713 = vset.pattern.permute.xlu0 0
      %2714 = vperm.xlu0 %2713, %v2370
      %v2715 = vpop.permute.xlu0 %2714
      %2718 = vset.pattern.permute.xlu0 0
      %2719 = vperm.xlu0 %2718, %v2372
      %v2720 = vpop.permute.xlu0 %2719
      %2723 = vset.pattern.permute.xlu0 0
      %2724 = vperm.xlu0 %2723, %v2374
      %v2725 = vpop.permute.xlu0 %2724
      %2728 = vset.pattern.permute.xlu0 0
      %2729 = vperm.xlu0 %2728, %v2376
      %v2730 = vpop.permute.xlu0 %2729
      %2733 = vset.pattern.permute.xlu0 0
      %2734 = vperm.xlu0 %2733, %v2378
      %v2735 = vpop.permute.xlu0 %2734
      %2738 = vset.pattern.permute.xlu0 0
      %2739 = vperm.xlu0 %2738, %v2380
      %v2740 = vpop.permute.xlu0 %2739
      %2743 = vset.pattern.permute.xlu0 0
      %2744 = vperm.xlu0 %2743, %v2382
      %v2745 = vpop.permute.xlu0 %2744
      %2748 = vset.pattern.permute.xlu0 0
      %2749 = vperm.xlu0 %2748, %v2384
      %v2750 = vpop.permute.xlu0 %2749
      %2753 = vset.pattern.permute.xlu0 0
      %2754 = vperm.xlu0 %2753, %v2386
      %v2755 = vpop.permute.xlu0 %2754
      %v2757 = vmul.f32 %v2680, %v2661
      %v2758 = vmul.f32 %v2685, %v2662
      %v2759 = vmul.f32 %v2690, %v2663
      %v2760 = vmul.f32 %v2695, %v2664
      %v2761 = vmul.f32 %v2700, %v2665
      %v2762 = vmul.f32 %v2705, %v2666
      %v2763 = vmul.f32 %v2710, %v2667
      %v2764 = vmul.f32 %v2715, %v2668
      %v2765 = vmul.f32 %v2720, %v2669
      %v2766 = vmul.f32 %v2725, %v2670
      %v2767 = vmul.f32 %v2730, %v2671
      %v2768 = vmul.f32 %v2735, %v2672
      %v2769 = vmul.f32 %v2740, %v2673
      %v2770 = vmul.f32 %v2745, %v2674
      %v2771 = vmul.f32 %v2750, %v2675
      %v2772 = vmul.f32 %v2755, %v2676
      %v2773 = vunpack.c.h.b16 %v1301
      %v2774 = vunpack.c.h.b16 %v1303
      %v2775 = vunpack.c.h.b16 %v1305
      %v2776 = vunpack.c.h.b16 %v1307
      %v2777 = vunpack.c.h.b16 %v1309
      %v2778 = vunpack.c.h.b16 %v1311
      %v2779 = vunpack.c.h.b16 %v1313
      %v2780 = vunpack.c.h.b16 %v1315
      %v2781 = vunpack.c.h.b16 %v1317
      %v2782 = vunpack.c.h.b16 %v1319
      %v2783 = vunpack.c.h.b16 %v1321
      %v2784 = vunpack.c.h.b16 %v1323
      %v2785 = vunpack.c.h.b16 %v1325
      %v2786 = vunpack.c.h.b16 %v1327
      %v2787 = vunpack.c.h.b16 %v1329
      %v2788 = vunpack.c.h.b16 %v1331
      %v2789 = vpack.c.b16 %v2774, %v2773
      %v2790 = vpack.c.b16 %v2776, %v2775
      %v2791 = vpack.c.b16 %v2778, %v2777
      %v2792 = vpack.c.b16 %v2780, %v2779
      %v2793 = vpack.c.b16 %v2782, %v2781
      %v2794 = vpack.c.b16 %v2784, %v2783
      %v2795 = vpack.c.b16 %v2786, %v2785
      %v2796 = vpack.c.b16 %v2788, %v2787
      %2805 = vmatpush.bf16.msra.mxu0 %v2796
      %2806 = vmatpush.bf16.msra.mxu0 %v2795
      %2807 = vmatpush.bf16.msra.mxu0 %v2794
      %2808 = vmatpush.bf16.msra.mxu0 %v2793
      %2809 = vmatpush.bf16.msra.mxu0 %v2792
      %2810 = vmatpush.bf16.msra.mxu0 %v2791
      %2811 = vmatpush.bf16.msra.mxu0 %v2790
      %2812 = vmatpush.bf16.msra.mxu0 %v2789
      %2813 = vmatmul.bf16.gmra.mxu0 %v2539
      %v2814 = vpop.f32.mrf.mxu0
      %v2815 = vadd.f32 0.0, %v2814
      %v2816 = vpop.f32.mrf.mxu0
      %v2817 = vadd.f32 0.0, %v2816
      %2818 = vmatmul.bf16.gmra.mxu0 %v2540
      %v2819 = vpop.f32.mrf.mxu0
      %v2820 = vadd.f32 0.0, %v2819
      %v2821 = vpop.f32.mrf.mxu0
      %v2822 = vadd.f32 0.0, %v2821
      %2823 = vmatmul.bf16.gmra.mxu0 %v2541
      %v2824 = vpop.f32.mrf.mxu0
      %v2825 = vadd.f32 0.0, %v2824
      %v2826 = vpop.f32.mrf.mxu0
      %v2827 = vadd.f32 0.0, %v2826
      %2828 = vmatmul.bf16.gmra.mxu0 %v2542
      %v2829 = vpop.f32.mrf.mxu0
      %v2830 = vadd.f32 0.0, %v2829
      %v2831 = vpop.f32.mrf.mxu0
      %v2832 = vadd.f32 0.0, %v2831
      %2833 = vmatmul.bf16.gmra.mxu0 %v2543
      %v2834 = vpop.f32.mrf.mxu0
      %v2835 = vadd.f32 0.0, %v2834
      %v2836 = vpop.f32.mrf.mxu0
      %v2837 = vadd.f32 0.0, %v2836
      %2838 = vmatmul.bf16.gmra.mxu0 %v2544
      %v2839 = vpop.f32.mrf.mxu0
      %v2840 = vadd.f32 0.0, %v2839
      %v2841 = vpop.f32.mrf.mxu0
      %v2842 = vadd.f32 0.0, %v2841
      %2843 = vmatmul.bf16.gmra.mxu0 %v2545
      %v2844 = vpop.f32.mrf.mxu0
      %v2845 = vadd.f32 0.0, %v2844
      %v2846 = vpop.f32.mrf.mxu0
      %v2847 = vadd.f32 0.0, %v2846
      %2848 = vmatmul.bf16.gmra.mxu0 %v2546
      %v2849 = vpop.f32.mrf.mxu0
      %v2850 = vadd.f32 0.0, %v2849
      %v2851 = vpop.f32.mrf.mxu0
      %v2852 = vadd.f32 0.0, %v2851
      %2853 = vdwg.mxu0
      %v2854 = vadd.f32 %v2757, %v2815
      %v2855 = vadd.f32 %v2758, %v2817
      %v2856 = vadd.f32 %v2759, %v2820
      %v2857 = vadd.f32 %v2760, %v2822
      %v2858 = vadd.f32 %v2761, %v2825
      %v2859 = vadd.f32 %v2762, %v2827
      %v2860 = vadd.f32 %v2763, %v2830
      %v2861 = vadd.f32 %v2764, %v2832
      %v2862 = vadd.f32 %v2765, %v2835
      %v2863 = vadd.f32 %v2766, %v2837
      %v2864 = vadd.f32 %v2767, %v2840
      %v2865 = vadd.f32 %v2768, %v2842
      %v2866 = vadd.f32 %v2769, %v2845
      %v2867 = vadd.f32 %v2770, %v2847
      %v2868 = vadd.f32 %v2771, %v2850
      %v2869 = vadd.f32 %v2772, %v2852
      %2870 = vst [vmem:[%s2660] sm:$0xff] %v2854
      %2871 = vst [vmem:[%s2660 + $0x8] sm:$0xff] %v2855
      %2872 = vst [vmem:[%s2660 + $0x10] sm:$0xff] %v2856
      %2873 = vst [vmem:[%s2660 + $0x18] sm:$0xff] %v2857
      %2874 = vst [vmem:[%s2660 + $0x20] sm:$0xff] %v2858
      %2875 = vst [vmem:[%s2660 + $0x28] sm:$0xff] %v2859
      %2876 = vst [vmem:[%s2660 + $0x30] sm:$0xff] %v2860
      %2877 = vst [vmem:[%s2660 + $0x38] sm:$0xff] %v2861
      %2878 = vst [vmem:[%s2660 + $0x40] sm:$0xff] %v2862
      %2879 = vst [vmem:[%s2660 + $0x48] sm:$0xff] %v2863
      %2880 = vst [vmem:[%s2660 + $0x50] sm:$0xff] %v2864
      %2881 = vst [vmem:[%s2660 + $0x58] sm:$0xff] %v2865
      %2882 = vst [vmem:[%s2660 + $0x60] sm:$0xff] %v2866
      %2883 = vst [vmem:[%s2660 + $0x68] sm:$0xff] %v2867
      %2884 = vst [vmem:[%s2660 + $0x70] sm:$0xff] %v2868
      %2885 = vst [vmem:[%s2660 + $0x78] sm:$0xff] %v2869
      %2886 = vst.msk [vmem:[%s2274] sm:$0xff] %vm1839, %v2323
      %2887 = vst.msk [vmem:[%s2274 + $0x8] sm:$0xff] %vm1839, %v2324
      %2888 = vst.msk [vmem:[%s2274 + $0x10] sm:$0xff] %vm1839, %v2325
      %2889 = vst.msk [vmem:[%s2274 + $0x18] sm:$0xff] %vm1839, %v2326
      %2890 = vst.msk [vmem:[%s2274 + $0x20] sm:$0xff] %vm1839, %v2327
      %2891 = vst.msk [vmem:[%s2274 + $0x28] sm:$0xff] %vm1839, %v2328
      %2892 = vst.msk [vmem:[%s2274 + $0x30] sm:$0xff] %vm1839, %v2329
      %2893 = vst.msk [vmem:[%s2274 + $0x38] sm:$0xff] %vm1839, %v2330
      %2894 = vst.msk [vmem:[%s2274 + $0x40] sm:$0xff] %vm1839, %v2331
      %2895 = vst.msk [vmem:[%s2274 + $0x48] sm:$0xff] %vm1839, %v2332
      %2896 = vst.msk [vmem:[%s2274 + $0x50] sm:$0xff] %vm1839, %v2333
      %2897 = vst.msk [vmem:[%s2274 + $0x58] sm:$0xff] %vm1839, %v2334
      %2898 = vst.msk [vmem:[%s2274 + $0x60] sm:$0xff] %vm1839, %v2335
      %2899 = vst.msk [vmem:[%s2274 + $0x68] sm:$0xff] %vm1839, %v2336
      %2900 = vst.msk [vmem:[%s2274 + $0x70] sm:$0xff] %vm1839, %v2337
      %2901 = vst.msk [vmem:[%s2274 + $0x78] sm:$0xff] %vm1839, %v2338
      %2902 = vrot.lane.b32.xlu0 %v1339, 64
      %v2903 = vpop.permute.xlu0 %2902
      %2904 = vrot.lane.b32.xlu0 %v1340, 64
      %v2905 = vpop.permute.xlu0 %2904
      %2906 = vrot.lane.b32.xlu0 %v1341, 64
      %v2907 = vpop.permute.xlu0 %2906
      %2908 = vrot.lane.b32.xlu0 %v1342, 64
      %v2909 = vpop.permute.xlu0 %2908
      %2910 = vrot.lane.b32.xlu0 %v1343, 64
      %v2911 = vpop.permute.xlu0 %2910
      %2912 = vrot.lane.b32.xlu0 %v1344, 64
      %v2913 = vpop.permute.xlu0 %2912
      %2914 = vrot.lane.b32.xlu0 %v1345, 64
      %v2915 = vpop.permute.xlu0 %2914
      %2916 = vrot.lane.b32.xlu0 %v1346, 64
      %v2917 = vpop.permute.xlu0 %2916
      %2918 = vrot.lane.b32.xlu0 %v1347, 64
      %v2919 = vpop.permute.xlu0 %2918
      %2920 = vrot.lane.b32.xlu0 %v1348, 64
      %v2921 = vpop.permute.xlu0 %2920
      %2922 = vrot.lane.b32.xlu0 %v1349, 64
      %v2923 = vpop.permute.xlu0 %2922
      %2924 = vrot.lane.b32.xlu0 %v1350, 64
      %v2925 = vpop.permute.xlu0 %2924
      %2926 = vrot.lane.b32.xlu0 %v1351, 64
      %v2927 = vpop.permute.xlu0 %2926
      %2928 = vrot.lane.b32.xlu0 %v1352, 64
      %v2929 = vpop.permute.xlu0 %2928
      %2930 = vrot.lane.b32.xlu0 %v1353, 64
      %v2931 = vpop.permute.xlu0 %2930
      %2932 = vrot.lane.b32.xlu0 %v1354, 64
      %v2933 = vpop.permute.xlu0 %2932
      %v2935 = vsel %vm1355, %v2903, 0
      %v2938 = vsel %vm1355, %v2905, 0
      %v2941 = vsel %vm1355, %v2907, 0
      %v2944 = vsel %vm1355, %v2909, 0
      %v2947 = vsel %vm1355, %v2911, 0
      %v2950 = vsel %vm1355, %v2913, 0
      %v2953 = vsel %vm1355, %v2915, 0
      %v2956 = vsel %vm1355, %v2917, 0
      %v2959 = vsel %vm1355, %v2919, 0
      %v2962 = vsel %vm1355, %v2921, 0
      %v2965 = vsel %vm1355, %v2923, 0
      %v2968 = vsel %vm1355, %v2925, 0
      %v2971 = vsel %vm1355, %v2927, 0
      %v2974 = vsel %vm1355, %v2929, 0
      %v2977 = vsel %vm1355, %v2931, 0
      %v2980 = vsel %vm1355, %v2933, 0
      %2982 = vmatpush.bf16.xpose.msra.mxu0 %v2980
      %2983 = vmatpush.bf16.xpose.msra.mxu0 %v2977
      %2984 = vmatpush.bf16.xpose.msra.mxu0 %v2974
      %2985 = vmatpush.bf16.xpose.msra.mxu0 %v2971
      %2986 = vmatpush.bf16.xpose.msra.mxu0 %v2968
      %2987 = vmatpush.bf16.xpose.msra.mxu0 %v2965
      %2988 = vmatpush.bf16.xpose.msra.mxu0 %v2962
      %2989 = vmatpush.bf16.xpose.msra.mxu0 %v2959
      %2990 = vmatmul.bf16.gmra.mxu0 %v2935
      %v2991 = vpop.f32.mrf.mxu0
      %v2992 = vadd.f32 0.0, %v2991
      %v2993 = vpop.f32.mrf.mxu0
      %v2994 = vadd.f32 0.0, %v2993
      %2995 = vmatmul.bf16.gmra.mxu0 %v2938
      %v2996 = vpop.f32.mrf.mxu0
      %v2997 = vadd.f32 0.0, %v2996
      %v2998 = vpop.f32.mrf.mxu0
      %v2999 = vadd.f32 0.0, %v2998
      %3000 = vmatmul.bf16.gmra.mxu0 %v2941
      %v3001 = vpop.f32.mrf.mxu0
      %v3002 = vadd.f32 0.0, %v3001
      %v3003 = vpop.f32.mrf.mxu0
      %v3004 = vadd.f32 0.0, %v3003
      %3005 = vmatmul.bf16.gmra.mxu0 %v2944
      %v3006 = vpop.f32.mrf.mxu0
      %v3007 = vadd.f32 0.0, %v3006
      %v3008 = vpop.f32.mrf.mxu0
      %v3009 = vadd.f32 0.0, %v3008
      %3010 = vmatmul.bf16.gmra.mxu0 %v2947
      %v3011 = vpop.f32.mrf.mxu0
      %v3012 = vadd.f32 0.0, %v3011
      %v3013 = vpop.f32.mrf.mxu0
      %v3014 = vadd.f32 0.0, %v3013
      %3015 = vmatmul.bf16.gmra.mxu0 %v2950
      %v3016 = vpop.f32.mrf.mxu0
      %v3017 = vadd.f32 0.0, %v3016
      %v3018 = vpop.f32.mrf.mxu0
      %v3019 = vadd.f32 0.0, %v3018
      %3020 = vmatmul.bf16.gmra.mxu0 %v2953
      %v3021 = vpop.f32.mrf.mxu0
      %v3022 = vadd.f32 0.0, %v3021
      %v3023 = vpop.f32.mrf.mxu0
      %v3024 = vadd.f32 0.0, %v3023
      %3025 = vmatmul.bf16.gmra.mxu0 %v2956
      %v3026 = vpop.f32.mrf.mxu0
      %v3027 = vadd.f32 0.0, %v3026
      %v3028 = vpop.f32.mrf.mxu0
      %v3029 = vadd.f32 0.0, %v3028
      %3030 = vdwg.mxu0
      %v3031 = vsel %vm1454, %v2992, -1e+30
      %v3032 = vsel %vm1454, %v2994, -1e+30
      %v3033 = vsel %vm1454, %v2997, -1e+30
      %v3034 = vsel %vm1454, %v2999, -1e+30
      %v3035 = vsel %vm1454, %v3002, -1e+30
      %v3036 = vsel %vm1454, %v3004, -1e+30
      %v3037 = vsel %vm1454, %v3007, -1e+30
      %v3038 = vsel %vm1454, %v3009, -1e+30
      %v3039 = vsel %vm1454, %v3012, -1e+30
      %v3040 = vsel %vm1454, %v3014, -1e+30
      %v3041 = vsel %vm1454, %v3017, -1e+30
      %v3042 = vsel %vm1454, %v3019, -1e+30
      %v3043 = vsel %vm1454, %v3022, -1e+30
      %v3044 = vsel %vm1454, %v3024, -1e+30
      %v3045 = vsel %vm1454, %v3027, -1e+30
      %v3046 = vsel %vm1454, %v3029, -1e+30
      %s3047 = scalar_lea.vmem [#allocation2], 256
      %v3048 = vld [vmem:[%s3047] sm:$0xff]
      %v3049 = vld [vmem:[%s3047 + $0x8] sm:$0xff]
      %v3050 = vld [vmem:[%s3047 + $0x10] sm:$0xff]
      %v3051 = vld [vmem:[%s3047 + $0x18] sm:$0xff]
      %v3052 = vld [vmem:[%s3047 + $0x20] sm:$0xff]
      %v3053 = vld [vmem:[%s3047 + $0x28] sm:$0xff]
      %v3054 = vld [vmem:[%s3047 + $0x30] sm:$0xff]
      %v3055 = vld [vmem:[%s3047 + $0x38] sm:$0xff]
      %v3056 = vld [vmem:[%s3047 + $0x40] sm:$0xff]
      %v3057 = vld [vmem:[%s3047 + $0x48] sm:$0xff]
      %v3058 = vld [vmem:[%s3047 + $0x50] sm:$0xff]
      %v3059 = vld [vmem:[%s3047 + $0x58] sm:$0xff]
      %v3060 = vld [vmem:[%s3047 + $0x60] sm:$0xff]
      %v3061 = vld [vmem:[%s3047 + $0x68] sm:$0xff]
      %v3062 = vld [vmem:[%s3047 + $0x70] sm:$0xff]
      %v3063 = vld [vmem:[%s3047 + $0x78] sm:$0xff]
      %3064 = vmax.xlane.f32.xlu0 %v3031
      %v3065 = vpop.xlane.xlu0 %3064
      %3066 = vmax.xlane.f32.xlu0 %v3032
      %v3067 = vpop.xlane.xlu0 %3066
      %3068 = vmax.xlane.f32.xlu0 %v3033
      %v3069 = vpop.xlane.xlu0 %3068
      %3070 = vmax.xlane.f32.xlu0 %v3034
      %v3071 = vpop.xlane.xlu0 %3070
      %3072 = vmax.xlane.f32.xlu0 %v3035
      %v3073 = vpop.xlane.xlu0 %3072
      %3074 = vmax.xlane.f32.xlu0 %v3036
      %v3075 = vpop.xlane.xlu0 %3074
      %3076 = vmax.xlane.f32.xlu0 %v3037
      %v3077 = vpop.xlane.xlu0 %3076
      %3078 = vmax.xlane.f32.xlu0 %v3038
      %v3079 = vpop.xlane.xlu0 %3078
      %3080 = vmax.xlane.f32.xlu0 %v3039
      %v3081 = vpop.xlane.xlu0 %3080
      %3082 = vmax.xlane.f32.xlu0 %v3040
      %v3083 = vpop.xlane.xlu0 %3082
      %3084 = vmax.xlane.f32.xlu0 %v3041
      %v3085 = vpop.xlane.xlu0 %3084
      %3086 = vmax.xlane.f32.xlu0 %v3042
      %v3087 = vpop.xlane.xlu0 %3086
      %3088 = vmax.xlane.f32.xlu0 %v3043
      %v3089 = vpop.xlane.xlu0 %3088
      %3090 = vmax.xlane.f32.xlu0 %v3044
      %v3091 = vpop.xlane.xlu0 %3090
      %3092 = vmax.xlane.f32.xlu0 %v3045
      %v3093 = vpop.xlane.xlu0 %3092
      %3094 = vmax.xlane.f32.xlu0 %v3046
      %v3095 = vpop.xlane.xlu0 %3094
      %v3096 = vmax.f32 %v3048, %v3065
      %v3097 = vmax.f32 %v3049, %v3067
      %v3098 = vmax.f32 %v3050, %v3069
      %v3099 = vmax.f32 %v3051, %v3071
      %v3100 = vmax.f32 %v3052, %v3073
      %v3101 = vmax.f32 %v3053, %v3075
      %v3102 = vmax.f32 %v3054, %v3077
      %v3103 = vmax.f32 %v3055, %v3079
      %v3104 = vmax.f32 %v3056, %v3081
      %v3105 = vmax.f32 %v3057, %v3083
      %v3106 = vmax.f32 %v3058, %v3085
      %v3107 = vmax.f32 %v3059, %v3087
      %v3108 = vmax.f32 %v3060, %v3089
      %v3109 = vmax.f32 %v3061, %v3091
      %v3110 = vmax.f32 %v3062, %v3093
      %v3111 = vmax.f32 %v3063, %v3095
      %v3112 = vsub.f32 %v3048, %v3096
      %v3113 = vsub.f32 %v3049, %v3097
      %v3114 = vsub.f32 %v3050, %v3098
      %v3115 = vsub.f32 %v3051, %v3099
      %v3116 = vsub.f32 %v3052, %v3100
      %v3117 = vsub.f32 %v3053, %v3101
      %v3118 = vsub.f32 %v3054, %v3102
      %v3119 = vsub.f32 %v3055, %v3103
      %v3120 = vsub.f32 %v3056, %v3104
      %v3121 = vsub.f32 %v3057, %v3105
      %v3122 = vsub.f32 %v3058, %v3106
      %v3123 = vsub.f32 %v3059, %v3107
      %v3124 = vsub.f32 %v3060, %v3108
      %v3125 = vsub.f32 %v3061, %v3109
      %v3126 = vsub.f32 %v3062, %v3110
      %v3127 = vsub.f32 %v3063, %v3111
      %v3128 = vmul.f32 %v3112, 1.442695
      %v3129 = vpow.pop %v3128
      %v3130 = vmul.f32 %v3113, 1.442695
      %v3131 = vpow.pop %v3130
      %v3132 = vmul.f32 %v3114, 1.442695
      %v3133 = vpow.pop %v3132
      %v3134 = vmul.f32 %v3115, 1.442695
      %v3135 = vpow.pop %v3134
      %v3136 = vmul.f32 %v3116, 1.442695
      %v3137 = vpow.pop %v3136
      %v3138 = vmul.f32 %v3117, 1.442695
      %v3139 = vpow.pop %v3138
      %v3140 = vmul.f32 %v3118, 1.442695
      %v3141 = vpow.pop %v3140
      %v3142 = vmul.f32 %v3119, 1.442695
      %v3143 = vpow.pop %v3142
      %v3144 = vmul.f32 %v3120, 1.442695
      %v3145 = vpow.pop %v3144
      %v3146 = vmul.f32 %v3121, 1.442695
      %v3147 = vpow.pop %v3146
      %v3148 = vmul.f32 %v3122, 1.442695
      %v3149 = vpow.pop %v3148
      %v3150 = vmul.f32 %v3123, 1.442695
      %v3151 = vpow.pop %v3150
      %v3152 = vmul.f32 %v3124, 1.442695
      %v3153 = vpow.pop %v3152
      %v3154 = vmul.f32 %v3125, 1.442695
      %v3155 = vpow.pop %v3154
      %v3156 = vmul.f32 %v3126, 1.442695
      %v3157 = vpow.pop %v3156
      %v3158 = vmul.f32 %v3127, 1.442695
      %v3159 = vpow.pop %v3158
      %3161 = vset.pattern.permute.xlu0 0
      %3162 = vperm.xlu0 %3161, %v3096
      %v3163 = vpop.permute.xlu0 %3162
      %3166 = vset.pattern.permute.xlu0 0
      %3167 = vperm.xlu0 %3166, %v3097
      %v3168 = vpop.permute.xlu0 %3167
      %3171 = vset.pattern.permute.xlu0 0
      %3172 = vperm.xlu0 %3171, %v3098
      %v3173 = vpop.permute.xlu0 %3172
      %3176 = vset.pattern.permute.xlu0 0
      %3177 = vperm.xlu0 %3176, %v3099
      %v3178 = vpop.permute.xlu0 %3177
      %3181 = vset.pattern.permute.xlu0 0
      %3182 = vperm.xlu0 %3181, %v3100
      %v3183 = vpop.permute.xlu0 %3182
      %3186 = vset.pattern.permute.xlu0 0
      %3187 = vperm.xlu0 %3186, %v3101
      %v3188 = vpop.permute.xlu0 %3187
      %3191 = vset.pattern.permute.xlu0 0
      %3192 = vperm.xlu0 %3191, %v3102
      %v3193 = vpop.permute.xlu0 %3192
      %3196 = vset.pattern.permute.xlu0 0
      %3197 = vperm.xlu0 %3196, %v3103
      %v3198 = vpop.permute.xlu0 %3197
      %3201 = vset.pattern.permute.xlu0 0
      %3202 = vperm.xlu0 %3201, %v3104
      %v3203 = vpop.permute.xlu0 %3202
      %3206 = vset.pattern.permute.xlu0 0
      %3207 = vperm.xlu0 %3206, %v3105
      %v3208 = vpop.permute.xlu0 %3207
      %3211 = vset.pattern.permute.xlu0 0
      %3212 = vperm.xlu0 %3211, %v3106
      %v3213 = vpop.permute.xlu0 %3212
      %3216 = vset.pattern.permute.xlu0 0
      %3217 = vperm.xlu0 %3216, %v3107
      %v3218 = vpop.permute.xlu0 %3217
      %3221 = vset.pattern.permute.xlu0 0
      %3222 = vperm.xlu0 %3221, %v3108
      %v3223 = vpop.permute.xlu0 %3222
      %3226 = vset.pattern.permute.xlu0 0
      %3227 = vperm.xlu0 %3226, %v3109
      %v3228 = vpop.permute.xlu0 %3227
      %3231 = vset.pattern.permute.xlu0 0
      %3232 = vperm.xlu0 %3231, %v3110
      %v3233 = vpop.permute.xlu0 %3232
      %3236 = vset.pattern.permute.xlu0 0
      %3237 = vperm.xlu0 %3236, %v3111
      %v3238 = vpop.permute.xlu0 %3237
      %v3240 = vsub.f32 %v3031, %v3163
      %v3241 = vsub.f32 %v3032, %v3168
      %v3242 = vsub.f32 %v3033, %v3173
      %v3243 = vsub.f32 %v3034, %v3178
      %v3244 = vsub.f32 %v3035, %v3183
      %v3245 = vsub.f32 %v3036, %v3188
      %v3246 = vsub.f32 %v3037, %v3193
      %v3247 = vsub.f32 %v3038, %v3198
      %v3248 = vsub.f32 %v3039, %v3203
      %v3249 = vsub.f32 %v3040, %v3208
      %v3250 = vsub.f32 %v3041, %v3213
      %v3251 = vsub.f32 %v3042, %v3218
      %v3252 = vsub.f32 %v3043, %v3223
      %v3253 = vsub.f32 %v3044, %v3228
      %v3254 = vsub.f32 %v3045, %v3233
      %v3255 = vsub.f32 %v3046, %v3238
      %v3256 = vpack.c.bf16 %v3241, %v3240
      %v3257 = vpack.c.bf16 %v3243, %v3242
      %v3258 = vpack.c.bf16 %v3245, %v3244
      %v3259 = vpack.c.bf16 %v3247, %v3246
      %v3260 = vpack.c.bf16 %v3249, %v3248
      %v3261 = vpack.c.bf16 %v3251, %v3250
      %v3262 = vpack.c.bf16 %v3253, %v3252
      %v3263 = vpack.c.bf16 %v3255, %v3254
      %v3264 = vunpack.c.l.bf16 %v3256
      %v3265 = vunpack.c.h.bf16 %v3256
      %v3266 = vunpack.c.l.bf16 %v3257
      %v3267 = vunpack.c.h.bf16 %v3257
      %v3268 = vunpack.c.l.bf16 %v3258
      %v3269 = vunpack.c.h.bf16 %v3258
      %v3270 = vunpack.c.l.bf16 %v3259
      %v3271 = vunpack.c.h.bf16 %v3259
      %v3272 = vunpack.c.l.bf16 %v3260
      %v3273 = vunpack.c.h.bf16 %v3260
      %v3274 = vunpack.c.l.bf16 %v3261
      %v3275 = vunpack.c.h.bf16 %v3261
      %v3276 = vunpack.c.l.bf16 %v3262
      %v3277 = vunpack.c.h.bf16 %v3262
      %v3278 = vunpack.c.l.bf16 %v3263
      %v3279 = vunpack.c.h.bf16 %v3263
      %v3280 = vmul.f32 %v3264, 1.442695
      %v3281 = vpow.pop %v3280
      %v3282 = vmul.f32 %v3265, 1.442695
      %v3283 = vpow.pop %v3282
      %v3284 = vmul.f32 %v3266, 1.442695
      %v3285 = vpow.pop %v3284
      %v3286 = vmul.f32 %v3267, 1.442695
      %v3287 = vpow.pop %v3286
      %v3288 = vmul.f32 %v3268, 1.442695
      %v3289 = vpow.pop %v3288
      %v3290 = vmul.f32 %v3269, 1.442695
      %v3291 = vpow.pop %v3290
      %v3292 = vmul.f32 %v3270, 1.442695
      %v3293 = vpow.pop %v3292
      %v3294 = vmul.f32 %v3271, 1.442695
      %v3295 = vpow.pop %v3294
      %v3296 = vmul.f32 %v3272, 1.442695
      %v3297 = vpow.pop %v3296
      %v3298 = vmul.f32 %v3273, 1.442695
      %v3299 = vpow.pop %v3298
      %v3300 = vmul.f32 %v3274, 1.442695
      %v3301 = vpow.pop %v3300
      %v3302 = vmul.f32 %v3275, 1.442695
      %v3303 = vpow.pop %v3302
      %v3304 = vmul.f32 %v3276, 1.442695
      %v3305 = vpow.pop %v3304
      %v3306 = vmul.f32 %v3277, 1.442695
      %v3307 = vpow.pop %v3306
      %v3308 = vmul.f32 %v3278, 1.442695
      %v3309 = vpow.pop %v3308
      %v3310 = vmul.f32 %v3279, 1.442695
      %v3311 = vpow.pop %v3310
      %v3312 = vpack.c.bf16 %v3283, %v3281
      %v3313 = vpack.c.bf16 %v3287, %v3285
      %v3314 = vpack.c.bf16 %v3291, %v3289
      %v3315 = vpack.c.bf16 %v3295, %v3293
      %v3316 = vpack.c.bf16 %v3299, %v3297
      %v3317 = vpack.c.bf16 %v3303, %v3301
      %v3318 = vpack.c.bf16 %v3307, %v3305
      %v3319 = vpack.c.bf16 %v3311, %v3309
      %s3320 = scalar_lea.vmem [#allocation3], 256
      %v3321 = vld [vmem:[%s3320] sm:$0xff]
      %v3322 = vld [vmem:[%s3320 + $0x8] sm:$0xff]
      %v3323 = vld [vmem:[%s3320 + $0x10] sm:$0xff]
      %v3324 = vld [vmem:[%s3320 + $0x18] sm:$0xff]
      %v3325 = vld [vmem:[%s3320 + $0x20] sm:$0xff]
      %v3326 = vld [vmem:[%s3320 + $0x28] sm:$0xff]
      %v3327 = vld [vmem:[%s3320 + $0x30] sm:$0xff]
      %v3328 = vld [vmem:[%s3320 + $0x38] sm:$0xff]
      %v3329 = vld [vmem:[%s3320 + $0x40] sm:$0xff]
      %v3330 = vld [vmem:[%s3320 + $0x48] sm:$0xff]
      %v3331 = vld [vmem:[%s3320 + $0x50] sm:$0xff]
      %v3332 = vld [vmem:[%s3320 + $0x58] sm:$0xff]
      %v3333 = vld [vmem:[%s3320 + $0x60] sm:$0xff]
      %v3334 = vld [vmem:[%s3320 + $0x68] sm:$0xff]
      %v3335 = vld [vmem:[%s3320 + $0x70] sm:$0xff]
      %v3336 = vld [vmem:[%s3320 + $0x78] sm:$0xff]
      %v3337 = vmul.f32 %v3129, %v3321
      %v3338 = vmul.f32 %v3131, %v3322
      %v3339 = vmul.f32 %v3133, %v3323
      %v3340 = vmul.f32 %v3135, %v3324
      %v3341 = vmul.f32 %v3137, %v3325
      %v3342 = vmul.f32 %v3139, %v3326
      %v3343 = vmul.f32 %v3141, %v3327
      %v3344 = vmul.f32 %v3143, %v3328
      %v3345 = vmul.f32 %v3145, %v3329
      %v3346 = vmul.f32 %v3147, %v3330
      %v3347 = vmul.f32 %v3149, %v3331
      %v3348 = vmul.f32 %v3151, %v3332
      %v3349 = vmul.f32 %v3153, %v3333
      %v3350 = vmul.f32 %v3155, %v3334
      %v3351 = vmul.f32 %v3157, %v3335
      %v3352 = vmul.f32 %v3159, %v3336
      %v3353 = vunpack.c.l.bf16 %v3312
      %v3354 = vunpack.c.h.bf16 %v3312
      %v3355 = vunpack.c.l.bf16 %v3313
      %v3356 = vunpack.c.h.bf16 %v3313
      %v3357 = vunpack.c.l.bf16 %v3314
      %v3358 = vunpack.c.h.bf16 %v3314
      %v3359 = vunpack.c.l.bf16 %v3315
      %v3360 = vunpack.c.h.bf16 %v3315
      %v3361 = vunpack.c.l.bf16 %v3316
      %v3362 = vunpack.c.h.bf16 %v3316
      %v3363 = vunpack.c.l.bf16 %v3317
      %v3364 = vunpack.c.h.bf16 %v3317
      %v3365 = vunpack.c.l.bf16 %v3318
      %v3366 = vunpack.c.h.bf16 %v3318
      %v3367 = vunpack.c.l.bf16 %v3319
      %v3368 = vunpack.c.h.bf16 %v3319
      %3369 = vadd.xlane.f32.xlu0 %v3353
      %v3370 = vpop.xlane.xlu0 %3369
      %3371 = vadd.xlane.f32.xlu0 %v3354
      %v3372 = vpop.xlane.xlu0 %3371
      %3373 = vadd.xlane.f32.xlu0 %v3355
      %v3374 = vpop.xlane.xlu0 %3373
      %3375 = vadd.xlane.f32.xlu0 %v3356
      %v3376 = vpop.xlane.xlu0 %3375
      %3377 = vadd.xlane.f32.xlu0 %v3357
      %v3378 = vpop.xlane.xlu0 %3377
      %3379 = vadd.xlane.f32.xlu0 %v3358
      %v3380 = vpop.xlane.xlu0 %3379
      %3381 = vadd.xlane.f32.xlu0 %v3359
      %v3382 = vpop.xlane.xlu0 %3381
      %3383 = vadd.xlane.f32.xlu0 %v3360
      %v3384 = vpop.xlane.xlu0 %3383
      %3385 = vadd.xlane.f32.xlu0 %v3361
      %v3386 = vpop.xlane.xlu0 %3385
      %3387 = vadd.xlane.f32.xlu0 %v3362
      %v3388 = vpop.xlane.xlu0 %3387
      %3389 = vadd.xlane.f32.xlu0 %v3363
      %v3390 = vpop.xlane.xlu0 %3389
      %3391 = vadd.xlane.f32.xlu0 %v3364
      %v3392 = vpop.xlane.xlu0 %3391
      %3393 = vadd.xlane.f32.xlu0 %v3365
      %v3394 = vpop.xlane.xlu0 %3393
      %3395 = vadd.xlane.f32.xlu0 %v3366
      %v3396 = vpop.xlane.xlu0 %3395
      %3397 = vadd.xlane.f32.xlu0 %v3367
      %v3398 = vpop.xlane.xlu0 %3397
      %3399 = vadd.xlane.f32.xlu0 %v3368
      %v3400 = vpop.xlane.xlu0 %3399
      %v3401 = vadd.f32 %v3337, %v3370
      %v3402 = vadd.f32 %v3338, %v3372
      %v3403 = vadd.f32 %v3339, %v3374
      %v3404 = vadd.f32 %v3340, %v3376
      %v3405 = vadd.f32 %v3341, %v3378
      %v3406 = vadd.f32 %v3342, %v3380
      %v3407 = vadd.f32 %v3343, %v3382
      %v3408 = vadd.f32 %v3344, %v3384
      %v3409 = vadd.f32 %v3345, %v3386
      %v3410 = vadd.f32 %v3346, %v3388
      %v3411 = vadd.f32 %v3347, %v3390
      %v3412 = vadd.f32 %v3348, %v3392
      %v3413 = vadd.f32 %v3349, %v3394
      %v3414 = vadd.f32 %v3350, %v3396
      %v3415 = vadd.f32 %v3351, %v3398
      %v3416 = vadd.f32 %v3352, %v3400
      %3417 = vst.msk [vmem:[%s3320] sm:$0xff] %vm1839, %v3401
      %3418 = vst.msk [vmem:[%s3320 + $0x8] sm:$0xff] %vm1839, %v3402
      %3419 = vst.msk [vmem:[%s3320 + $0x10] sm:$0xff] %vm1839, %v3403
      %3420 = vst.msk [vmem:[%s3320 + $0x18] sm:$0xff] %vm1839, %v3404
      %3421 = vst.msk [vmem:[%s3320 + $0x20] sm:$0xff] %vm1839, %v3405
      %3422 = vst.msk [vmem:[%s3320 + $0x28] sm:$0xff] %vm1839, %v3406
      %3423 = vst.msk [vmem:[%s3320 + $0x30] sm:$0xff] %vm1839, %v3407
      %3424 = vst.msk [vmem:[%s3320 + $0x38] sm:$0xff] %vm1839, %v3408
      %3425 = vst.msk [vmem:[%s3320 + $0x40] sm:$0xff] %vm1839, %v3409
      %3426 = vst.msk [vmem:[%s3320 + $0x48] sm:$0xff] %vm1839, %v3410
      %3427 = vst.msk [vmem:[%s3320 + $0x50] sm:$0xff] %vm1839, %v3411
      %3428 = vst.msk [vmem:[%s3320 + $0x58] sm:$0xff] %vm1839, %v3412
      %3429 = vst.msk [vmem:[%s3320 + $0x60] sm:$0xff] %vm1839, %v3413
      %3430 = vst.msk [vmem:[%s3320 + $0x68] sm:$0xff] %vm1839, %v3414
      %3431 = vst.msk [vmem:[%s3320 + $0x70] sm:$0xff] %vm1839, %v3415
      %3432 = vst.msk [vmem:[%s3320 + $0x78] sm:$0xff] %vm1839, %v3416
      %s3433 = scalar_lea.vmem [#allocation4], 256
      %v3434 = vld [vmem:[%s3433] sm:$0xff]
      %v3435 = vld [vmem:[%s3433 + $0x8] sm:$0xff]
      %v3436 = vld [vmem:[%s3433 + $0x10] sm:$0xff]
      %v3437 = vld [vmem:[%s3433 + $0x18] sm:$0xff]
      %v3438 = vld [vmem:[%s3433 + $0x20] sm:$0xff]
      %v3439 = vld [vmem:[%s3433 + $0x28] sm:$0xff]
      %v3440 = vld [vmem:[%s3433 + $0x30] sm:$0xff]
      %v3441 = vld [vmem:[%s3433 + $0x38] sm:$0xff]
      %v3442 = vld [vmem:[%s3433 + $0x40] sm:$0xff]
      %v3443 = vld [vmem:[%s3433 + $0x48] sm:$0xff]
      %v3444 = vld [vmem:[%s3433 + $0x50] sm:$0xff]
      %v3445 = vld [vmem:[%s3433 + $0x58] sm:$0xff]
      %v3446 = vld [vmem:[%s3433 + $0x60] sm:$0xff]
      %v3447 = vld [vmem:[%s3433 + $0x68] sm:$0xff]
      %v3448 = vld [vmem:[%s3433 + $0x70] sm:$0xff]
      %v3449 = vld [vmem:[%s3433 + $0x78] sm:$0xff]
      %3451 = vset.pattern.permute.xlu0 0
      %3452 = vperm.xlu0 %3451, %v3129
      %v3453 = vpop.permute.xlu0 %3452
      %3456 = vset.pattern.permute.xlu0 0
      %3457 = vperm.xlu0 %3456, %v3131
      %v3458 = vpop.permute.xlu0 %3457
      %3461 = vset.pattern.permute.xlu0 0
      %3462 = vperm.xlu0 %3461, %v3133
      %v3463 = vpop.permute.xlu0 %3462
      %3466 = vset.pattern.permute.xlu0 0
      %3467 = vperm.xlu0 %3466, %v3135
      %v3468 = vpop.permute.xlu0 %3467
      %3471 = vset.pattern.permute.xlu0 0
      %3472 = vperm.xlu0 %3471, %v3137
      %v3473 = vpop.permute.xlu0 %3472
      %3476 = vset.pattern.permute.xlu0 0
      %3477 = vperm.xlu0 %3476, %v3139
      %v3478 = vpop.permute.xlu0 %3477
      %3481 = vset.pattern.permute.xlu0 0
      %3482 = vperm.xlu0 %3481, %v3141
      %v3483 = vpop.permute.xlu0 %3482
      %3486 = vset.pattern.permute.xlu0 0
      %3487 = vperm.xlu0 %3486, %v3143
      %v3488 = vpop.permute.xlu0 %3487
      %3491 = vset.pattern.permute.xlu0 0
      %3492 = vperm.xlu0 %3491, %v3145
      %v3493 = vpop.permute.xlu0 %3492
      %3496 = vset.pattern.permute.xlu0 0
      %3497 = vperm.xlu0 %3496, %v3147
      %v3498 = vpop.permute.xlu0 %3497
      %3501 = vset.pattern.permute.xlu0 0
      %3502 = vperm.xlu0 %3501, %v3149
      %v3503 = vpop.permute.xlu0 %3502
      %3506 = vset.pattern.permute.xlu0 0
      %3507 = vperm.xlu0 %3506, %v3151
      %v3508 = vpop.permute.xlu0 %3507
      %3511 = vset.pattern.permute.xlu0 0
      %3512 = vperm.xlu0 %3511, %v3153
      %v3513 = vpop.permute.xlu0 %3512
      %3516 = vset.pattern.permute.xlu0 0
      %3517 = vperm.xlu0 %3516, %v3155
      %v3518 = vpop.permute.xlu0 %3517
      %3521 = vset.pattern.permute.xlu0 0
      %3522 = vperm.xlu0 %3521, %v3157
      %v3523 = vpop.permute.xlu0 %3522
      %3526 = vset.pattern.permute.xlu0 0
      %3527 = vperm.xlu0 %3526, %v3159
      %v3528 = vpop.permute.xlu0 %3527
      %v3530 = vmul.f32 %v3453, %v3434
      %v3531 = vmul.f32 %v3458, %v3435
      %v3532 = vmul.f32 %v3463, %v3436
      %v3533 = vmul.f32 %v3468, %v3437
      %v3534 = vmul.f32 %v3473, %v3438
      %v3535 = vmul.f32 %v3478, %v3439
      %v3536 = vmul.f32 %v3483, %v3440
      %v3537 = vmul.f32 %v3488, %v3441
      %v3538 = vmul.f32 %v3493, %v3442
      %v3539 = vmul.f32 %v3498, %v3443
      %v3540 = vmul.f32 %v3503, %v3444
      %v3541 = vmul.f32 %v3508, %v3445
      %v3542 = vmul.f32 %v3513, %v3446
      %v3543 = vmul.f32 %v3518, %v3447
      %v3544 = vmul.f32 %v3523, %v3448
      %v3545 = vmul.f32 %v3528, %v3449
      %v3562 = vunpack.c.l.b16 %v1302
      %v3563 = vunpack.c.l.b16 %v1304
      %v3564 = vunpack.c.l.b16 %v1306
      %v3565 = vunpack.c.l.b16 %v1308
      %v3566 = vunpack.c.l.b16 %v1310
      %v3567 = vunpack.c.l.b16 %v1312
      %v3568 = vunpack.c.l.b16 %v1314
      %v3569 = vunpack.c.l.b16 %v1316
      %v3570 = vunpack.c.l.b16 %v1318
      %v3571 = vunpack.c.l.b16 %v1320
      %v3572 = vunpack.c.l.b16 %v1322
      %v3573 = vunpack.c.l.b16 %v1324
      %v3574 = vunpack.c.l.b16 %v1326
      %v3575 = vunpack.c.l.b16 %v1328
      %v3576 = vunpack.c.l.b16 %v1330
      %v3577 = vunpack.c.l.b16 %v1332
      %v3578 = vpack.c.b16 %v3563, %v3562
      %v3579 = vpack.c.b16 %v3565, %v3564
      %v3580 = vpack.c.b16 %v3567, %v3566
      %v3581 = vpack.c.b16 %v3569, %v3568
      %v3582 = vpack.c.b16 %v3571, %v3570
      %v3583 = vpack.c.b16 %v3573, %v3572
      %v3584 = vpack.c.b16 %v3575, %v3574
      %v3585 = vpack.c.b16 %v3577, %v3576
      %3594 = vmatpush.bf16.msra.mxu0 %v3585
      %3595 = vmatpush.bf16.msra.mxu0 %v3584
      %3596 = vmatpush.bf16.msra.mxu0 %v3583
      %3597 = vmatpush.bf16.msra.mxu0 %v3582
      %3598 = vmatpush.bf16.msra.mxu0 %v3581
      %3599 = vmatpush.bf16.msra.mxu0 %v3580
      %3600 = vmatpush.bf16.msra.mxu0 %v3579
      %3601 = vmatpush.bf16.msra.mxu0 %v3578
      %3602 = vmatmul.bf16.gmra.mxu0 %v3312
      %v3603 = vpop.f32.mrf.mxu0
      %v3604 = vadd.f32 0.0, %v3603
      %v3605 = vpop.f32.mrf.mxu0
      %v3606 = vadd.f32 0.0, %v3605
      %3607 = vmatmul.bf16.gmra.mxu0 %v3313
      %v3608 = vpop.f32.mrf.mxu0
      %v3609 = vadd.f32 0.0, %v3608
      %v3610 = vpop.f32.mrf.mxu0
      %v3611 = vadd.f32 0.0, %v3610
      %3612 = vmatmul.bf16.gmra.mxu0 %v3314
      %v3613 = vpop.f32.mrf.mxu0
      %v3614 = vadd.f32 0.0, %v3613
      %v3615 = vpop.f32.mrf.mxu0
      %v3616 = vadd.f32 0.0, %v3615
      %3617 = vmatmul.bf16.gmra.mxu0 %v3315
      %v3618 = vpop.f32.mrf.mxu0
      %v3619 = vadd.f32 0.0, %v3618
      %v3620 = vpop.f32.mrf.mxu0
      %v3621 = vadd.f32 0.0, %v3620
      %3622 = vmatmul.bf16.gmra.mxu0 %v3316
      %v3623 = vpop.f32.mrf.mxu0
      %v3624 = vadd.f32 0.0, %v3623
      %v3625 = vpop.f32.mrf.mxu0
      %v3626 = vadd.f32 0.0, %v3625
      %3627 = vmatmul.bf16.gmra.mxu0 %v3317
      %v3628 = vpop.f32.mrf.mxu0
      %v3629 = vadd.f32 0.0, %v3628
      %v3630 = vpop.f32.mrf.mxu0
      %v3631 = vadd.f32 0.0, %v3630
      %3632 = vmatmul.bf16.gmra.mxu0 %v3318
      %v3633 = vpop.f32.mrf.mxu0
      %v3634 = vadd.f32 0.0, %v3633
      %v3635 = vpop.f32.mrf.mxu0
      %v3636 = vadd.f32 0.0, %v3635
      %3637 = vmatmul.bf16.gmra.mxu0 %v3319
      %v3638 = vpop.f32.mrf.mxu0
      %v3639 = vadd.f32 0.0, %v3638
      %v3640 = vpop.f32.mrf.mxu0
      %v3641 = vadd.f32 0.0, %v3640
      %3642 = vdwg.mxu0
      %v3643 = vadd.f32 %v3530, %v3604
      %v3644 = vadd.f32 %v3531, %v3606
      %v3645 = vadd.f32 %v3532, %v3609
      %v3646 = vadd.f32 %v3533, %v3611
      %v3647 = vadd.f32 %v3534, %v3614
      %v3648 = vadd.f32 %v3535, %v3616
      %v3649 = vadd.f32 %v3536, %v3619
      %v3650 = vadd.f32 %v3537, %v3621
      %v3651 = vadd.f32 %v3538, %v3624
      %v3652 = vadd.f32 %v3539, %v3626
      %v3653 = vadd.f32 %v3540, %v3629
      %v3654 = vadd.f32 %v3541, %v3631
      %v3655 = vadd.f32 %v3542, %v3634
      %v3656 = vadd.f32 %v3543, %v3636
      %v3657 = vadd.f32 %v3544, %v3639
      %v3658 = vadd.f32 %v3545, %v3641
      %3659 = vst [vmem:[%s3433] sm:$0xff] %v3643
      %3660 = vst [vmem:[%s3433 + $0x8] sm:$0xff] %v3644
      %3661 = vst [vmem:[%s3433 + $0x10] sm:$0xff] %v3645
      %3662 = vst [vmem:[%s3433 + $0x18] sm:$0xff] %v3646
      %3663 = vst [vmem:[%s3433 + $0x20] sm:$0xff] %v3647
      %3664 = vst [vmem:[%s3433 + $0x28] sm:$0xff] %v3648
      %3665 = vst [vmem:[%s3433 + $0x30] sm:$0xff] %v3649
      %3666 = vst [vmem:[%s3433 + $0x38] sm:$0xff] %v3650
      %3667 = vst [vmem:[%s3433 + $0x40] sm:$0xff] %v3651
      %3668 = vst [vmem:[%s3433 + $0x48] sm:$0xff] %v3652
      %3669 = vst [vmem:[%s3433 + $0x50] sm:$0xff] %v3653
      %3670 = vst [vmem:[%s3433 + $0x58] sm:$0xff] %v3654
      %3671 = vst [vmem:[%s3433 + $0x60] sm:$0xff] %v3655
      %3672 = vst [vmem:[%s3433 + $0x68] sm:$0xff] %v3656
      %3673 = vst [vmem:[%s3433 + $0x70] sm:$0xff] %v3657
      %3674 = vst [vmem:[%s3433 + $0x78] sm:$0xff] %v3658
      %3675 = vst.msk [vmem:[%s3047] sm:$0xff] %vm1839, %v3096
      %3676 = vst.msk [vmem:[%s3047 + $0x8] sm:$0xff] %vm1839, %v3097
      %3677 = vst.msk [vmem:[%s3047 + $0x10] sm:$0xff] %vm1839, %v3098
      %3678 = vst.msk [vmem:[%s3047 + $0x18] sm:$0xff] %vm1839, %v3099
      %3679 = vst.msk [vmem:[%s3047 + $0x20] sm:$0xff] %vm1839, %v3100
      %3680 = vst.msk [vmem:[%s3047 + $0x28] sm:$0xff] %vm1839, %v3101
      %3681 = vst.msk [vmem:[%s3047 + $0x30] sm:$0xff] %vm1839, %v3102
      %3682 = vst.msk [vmem:[%s3047 + $0x38] sm:$0xff] %vm1839, %v3103
      %3683 = vst.msk [vmem:[%s3047 + $0x40] sm:$0xff] %vm1839, %v3104
      %3684 = vst.msk [vmem:[%s3047 + $0x48] sm:$0xff] %vm1839, %v3105
      %3685 = vst.msk [vmem:[%s3047 + $0x50] sm:$0xff] %vm1839, %v3106
      %3686 = vst.msk [vmem:[%s3047 + $0x58] sm:$0xff] %vm1839, %v3107
      %3687 = vst.msk [vmem:[%s3047 + $0x60] sm:$0xff] %vm1839, %v3108
      %3688 = vst.msk [vmem:[%s3047 + $0x68] sm:$0xff] %vm1839, %v3109
      %3689 = vst.msk [vmem:[%s3047 + $0x70] sm:$0xff] %vm1839, %v3110
      %3690 = vst.msk [vmem:[%s3047 + $0x78] sm:$0xff] %vm1839, %v3111
      %3691 = vrot.lane.b32.xlu0 %v1339, 32
      %v3692 = vpop.permute.xlu0 %3691
      %3693 = vrot.lane.b32.xlu0 %v1340, 32
      %v3694 = vpop.permute.xlu0 %3693
      %3695 = vrot.lane.b32.xlu0 %v1341, 32
      %v3696 = vpop.permute.xlu0 %3695
      %3697 = vrot.lane.b32.xlu0 %v1342, 32
      %v3698 = vpop.permute.xlu0 %3697
      %3699 = vrot.lane.b32.xlu0 %v1343, 32
      %v3700 = vpop.permute.xlu0 %3699
      %3701 = vrot.lane.b32.xlu0 %v1344, 32
      %v3702 = vpop.permute.xlu0 %3701
      %3703 = vrot.lane.b32.xlu0 %v1345, 32
      %v3704 = vpop.permute.xlu0 %3703
      %3705 = vrot.lane.b32.xlu0 %v1346, 32
      %v3706 = vpop.permute.xlu0 %3705
      %3707 = vrot.lane.b32.xlu0 %v1347, 32
      %v3708 = vpop.permute.xlu0 %3707
      %3709 = vrot.lane.b32.xlu0 %v1348, 32
      %v3710 = vpop.permute.xlu0 %3709
      %3711 = vrot.lane.b32.xlu0 %v1349, 32
      %v3712 = vpop.permute.xlu0 %3711
      %3713 = vrot.lane.b32.xlu0 %v1350, 32
      %v3714 = vpop.permute.xlu0 %3713
      %3715 = vrot.lane.b32.xlu0 %v1351, 32
      %v3716 = vpop.permute.xlu0 %3715
      %3717 = vrot.lane.b32.xlu0 %v1352, 32
      %v3718 = vpop.permute.xlu0 %3717
      %3719 = vrot.lane.b32.xlu0 %v1353, 32
      %v3720 = vpop.permute.xlu0 %3719
      %3721 = vrot.lane.b32.xlu0 %v1354, 32
      %v3722 = vpop.permute.xlu0 %3721
      %v3724 = vsel %vm1355, %v3692, 0
      %v3727 = vsel %vm1355, %v3694, 0
      %v3730 = vsel %vm1355, %v3696, 0
      %v3733 = vsel %vm1355, %v3698, 0
      %v3736 = vsel %vm1355, %v3700, 0
      %v3739 = vsel %vm1355, %v3702, 0
      %v3742 = vsel %vm1355, %v3704, 0
      %v3745 = vsel %vm1355, %v3706, 0
      %v3748 = vsel %vm1355, %v3708, 0
      %v3751 = vsel %vm1355, %v3710, 0
      %v3754 = vsel %vm1355, %v3712, 0
      %v3757 = vsel %vm1355, %v3714, 0
      %v3760 = vsel %vm1355, %v3716, 0
      %v3763 = vsel %vm1355, %v3718, 0
      %v3766 = vsel %vm1355, %v3720, 0
      %v3769 = vsel %vm1355, %v3722, 0
      %3771 = vmatpush.bf16.xpose.msra.mxu0 %v3769
      %3772 = vmatpush.bf16.xpose.msra.mxu0 %v3766
      %3773 = vmatpush.bf16.xpose.msra.mxu0 %v3763
      %3774 = vmatpush.bf16.xpose.msra.mxu0 %v3760
      %3775 = vmatpush.bf16.xpose.msra.mxu0 %v3757
      %3776 = vmatpush.bf16.xpose.msra.mxu0 %v3754
      %3777 = vmatpush.bf16.xpose.msra.mxu0 %v3751
      %3778 = vmatpush.bf16.xpose.msra.mxu0 %v3748
      %3779 = vmatmul.bf16.gmra.mxu0 %v3724
      %v3780 = vpop.f32.mrf.mxu0
      %v3781 = vadd.f32 0.0, %v3780
      %v3782 = vpop.f32.mrf.mxu0
      %v3783 = vadd.f32 0.0, %v3782
      %3784 = vmatmul.bf16.gmra.mxu0 %v3727
      %v3785 = vpop.f32.mrf.mxu0
      %v3786 = vadd.f32 0.0, %v3785
      %v3787 = vpop.f32.mrf.mxu0
      %v3788 = vadd.f32 0.0, %v3787
      %3789 = vmatmul.bf16.gmra.mxu0 %v3730
      %v3790 = vpop.f32.mrf.mxu0
      %v3791 = vadd.f32 0.0, %v3790
      %v3792 = vpop.f32.mrf.mxu0
      %v3793 = vadd.f32 0.0, %v3792
      %3794 = vmatmul.bf16.gmra.mxu0 %v3733
      %v3795 = vpop.f32.mrf.mxu0
      %v3796 = vadd.f32 0.0, %v3795
      %v3797 = vpop.f32.mrf.mxu0
      %v3798 = vadd.f32 0.0, %v3797
      %3799 = vmatmul.bf16.gmra.mxu0 %v3736
      %v3800 = vpop.f32.mrf.mxu0
      %v3801 = vadd.f32 0.0, %v3800
      %v3802 = vpop.f32.mrf.mxu0
      %v3803 = vadd.f32 0.0, %v3802
      %3804 = vmatmul.bf16.gmra.mxu0 %v3739
      %v3805 = vpop.f32.mrf.mxu0
      %v3806 = vadd.f32 0.0, %v3805
      %v3807 = vpop.f32.mrf.mxu0
      %v3808 = vadd.f32 0.0, %v3807
      %3809 = vmatmul.bf16.gmra.mxu0 %v3742
      %v3810 = vpop.f32.mrf.mxu0
      %v3811 = vadd.f32 0.0, %v3810
      %v3812 = vpop.f32.mrf.mxu0
      %v3813 = vadd.f32 0.0, %v3812
      %3814 = vmatmul.bf16.gmra.mxu0 %v3745
      %v3815 = vpop.f32.mrf.mxu0
      %v3816 = vadd.f32 0.0, %v3815
      %v3817 = vpop.f32.mrf.mxu0
      %v3818 = vadd.f32 0.0, %v3817
      %3819 = vdwg.mxu0
      %v3820 = vsel %vm1454, %v3781, -1e+30
      %v3821 = vsel %vm1454, %v3783, -1e+30
      %v3822 = vsel %vm1454, %v3786, -1e+30
      %v3823 = vsel %vm1454, %v3788, -1e+30
      %v3824 = vsel %vm1454, %v3791, -1e+30
      %v3825 = vsel %vm1454, %v3793, -1e+30
      %v3826 = vsel %vm1454, %v3796, -1e+30
      %v3827 = vsel %vm1454, %v3798, -1e+30
      %v3828 = vsel %vm1454, %v3801, -1e+30
      %v3829 = vsel %vm1454, %v3803, -1e+30
      %v3830 = vsel %vm1454, %v3806, -1e+30
      %v3831 = vsel %vm1454, %v3808, -1e+30
      %v3832 = vsel %vm1454, %v3811, -1e+30
      %v3833 = vsel %vm1454, %v3813, -1e+30
      %v3834 = vsel %vm1454, %v3816, -1e+30
      %v3835 = vsel %vm1454, %v3818, -1e+30
      %s3836 = scalar_lea.vmem [#allocation2], 384
      %v3837 = vld [vmem:[%s3836] sm:$0xff]
      %v3838 = vld [vmem:[%s3836 + $0x8] sm:$0xff]
      %v3839 = vld [vmem:[%s3836 + $0x10] sm:$0xff]
      %v3840 = vld [vmem:[%s3836 + $0x18] sm:$0xff]
      %v3841 = vld [vmem:[%s3836 + $0x20] sm:$0xff]
      %v3842 = vld [vmem:[%s3836 + $0x28] sm:$0xff]
      %v3843 = vld [vmem:[%s3836 + $0x30] sm:$0xff]
      %v3844 = vld [vmem:[%s3836 + $0x38] sm:$0xff]
      %v3845 = vld [vmem:[%s3836 + $0x40] sm:$0xff]
      %v3846 = vld [vmem:[%s3836 + $0x48] sm:$0xff]
      %v3847 = vld [vmem:[%s3836 + $0x50] sm:$0xff]
      %v3848 = vld [vmem:[%s3836 + $0x58] sm:$0xff]
      %v3849 = vld [vmem:[%s3836 + $0x60] sm:$0xff]
      %v3850 = vld [vmem:[%s3836 + $0x68] sm:$0xff]
      %v3851 = vld [vmem:[%s3836 + $0x70] sm:$0xff]
      %v3852 = vld [vmem:[%s3836 + $0x78] sm:$0xff]
      %3853 = vmax.xlane.f32.xlu0 %v3820
      %v3854 = vpop.xlane.xlu0 %3853
      %3855 = vmax.xlane.f32.xlu0 %v3821
      %v3856 = vpop.xlane.xlu0 %3855
      %3857 = vmax.xlane.f32.xlu0 %v3822
      %v3858 = vpop.xlane.xlu0 %3857
      %3859 = vmax.xlane.f32.xlu0 %v3823
      %v3860 = vpop.xlane.xlu0 %3859
      %3861 = vmax.xlane.f32.xlu0 %v3824
      %v3862 = vpop.xlane.xlu0 %3861
      %3863 = vmax.xlane.f32.xlu0 %v3825
      %v3864 = vpop.xlane.xlu0 %3863
      %3865 = vmax.xlane.f32.xlu0 %v3826
      %v3866 = vpop.xlane.xlu0 %3865
      %3867 = vmax.xlane.f32.xlu0 %v3827
      %v3868 = vpop.xlane.xlu0 %3867
      %3869 = vmax.xlane.f32.xlu0 %v3828
      %v3870 = vpop.xlane.xlu0 %3869
      %3871 = vmax.xlane.f32.xlu0 %v3829
      %v3872 = vpop.xlane.xlu0 %3871
      %3873 = vmax.xlane.f32.xlu0 %v3830
      %v3874 = vpop.xlane.xlu0 %3873
      %3875 = vmax.xlane.f32.xlu0 %v3831
      %v3876 = vpop.xlane.xlu0 %3875
      %3877 = vmax.xlane.f32.xlu0 %v3832
      %v3878 = vpop.xlane.xlu0 %3877
      %3879 = vmax.xlane.f32.xlu0 %v3833
      %v3880 = vpop.xlane.xlu0 %3879
      %3881 = vmax.xlane.f32.xlu0 %v3834
      %v3882 = vpop.xlane.xlu0 %3881
      %3883 = vmax.xlane.f32.xlu0 %v3835
      %v3884 = vpop.xlane.xlu0 %3883
      %v3885 = vmax.f32 %v3837, %v3854
      %v3886 = vmax.f32 %v3838, %v3856
      %v3887 = vmax.f32 %v3839, %v3858
      %v3888 = vmax.f32 %v3840, %v3860
      %v3889 = vmax.f32 %v3841, %v3862
      %v3890 = vmax.f32 %v3842, %v3864
      %v3891 = vmax.f32 %v3843, %v3866
      %v3892 = vmax.f32 %v3844, %v3868
      %v3893 = vmax.f32 %v3845, %v3870
      %v3894 = vmax.f32 %v3846, %v3872
      %v3895 = vmax.f32 %v3847, %v3874
      %v3896 = vmax.f32 %v3848, %v3876
      %v3897 = vmax.f32 %v3849, %v3878
      %v3898 = vmax.f32 %v3850, %v3880
      %v3899 = vmax.f32 %v3851, %v3882
      %v3900 = vmax.f32 %v3852, %v3884
      %v3901 = vsub.f32 %v3837, %v3885
      %v3902 = vsub.f32 %v3838, %v3886
      %v3903 = vsub.f32 %v3839, %v3887
      %v3904 = vsub.f32 %v3840, %v3888
      %v3905 = vsub.f32 %v3841, %v3889
      %v3906 = vsub.f32 %v3842, %v3890
      %v3907 = vsub.f32 %v3843, %v3891
      %v3908 = vsub.f32 %v3844, %v3892
      %v3909 = vsub.f32 %v3845, %v3893
      %v3910 = vsub.f32 %v3846, %v3894
      %v3911 = vsub.f32 %v3847, %v3895
      %v3912 = vsub.f32 %v3848, %v3896
      %v3913 = vsub.f32 %v3849, %v3897
      %v3914 = vsub.f32 %v3850, %v3898
      %v3915 = vsub.f32 %v3851, %v3899
      %v3916 = vsub.f32 %v3852, %v3900
      %v3917 = vmul.f32 %v3901, 1.442695
      %v3918 = vpow.pop %v3917
      %v3919 = vmul.f32 %v3902, 1.442695
      %v3920 = vpow.pop %v3919
      %v3921 = vmul.f32 %v3903, 1.442695
      %v3922 = vpow.pop %v3921
      %v3923 = vmul.f32 %v3904, 1.442695
      %v3924 = vpow.pop %v3923
      %v3925 = vmul.f32 %v3905, 1.442695
      %v3926 = vpow.pop %v3925
      %v3927 = vmul.f32 %v3906, 1.442695
      %v3928 = vpow.pop %v3927
      %v3929 = vmul.f32 %v3907, 1.442695
      %v3930 = vpow.pop %v3929
      %v3931 = vmul.f32 %v3908, 1.442695
      %v3932 = vpow.pop %v3931
      %v3933 = vmul.f32 %v3909, 1.442695
      %v3934 = vpow.pop %v3933
      %v3935 = vmul.f32 %v3910, 1.442695
      %v3936 = vpow.pop %v3935
      %v3937 = vmul.f32 %v3911, 1.442695
      %v3938 = vpow.pop %v3937
      %v3939 = vmul.f32 %v3912, 1.442695
      %v3940 = vpow.pop %v3939
      %v3941 = vmul.f32 %v3913, 1.442695
      %v3942 = vpow.pop %v3941
      %v3943 = vmul.f32 %v3914, 1.442695
      %v3944 = vpow.pop %v3943
      %v3945 = vmul.f32 %v3915, 1.442695
      %v3946 = vpow.pop %v3945
      %v3947 = vmul.f32 %v3916, 1.442695
      %v3948 = vpow.pop %v3947
      %3950 = vset.pattern.permute.xlu0 0
      %3951 = vperm.xlu0 %3950, %v3885
      %v3952 = vpop.permute.xlu0 %3951
      %3955 = vset.pattern.permute.xlu0 0
      %3956 = vperm.xlu0 %3955, %v3886
      %v3957 = vpop.permute.xlu0 %3956
      %3960 = vset.pattern.permute.xlu0 0
      %3961 = vperm.xlu0 %3960, %v3887
      %v3962 = vpop.permute.xlu0 %3961
      %3965 = vset.pattern.permute.xlu0 0
      %3966 = vperm.xlu0 %3965, %v3888
      %v3967 = vpop.permute.xlu0 %3966
      %3970 = vset.pattern.permute.xlu0 0
      %3971 = vperm.xlu0 %3970, %v3889
      %v3972 = vpop.permute.xlu0 %3971
      %3975 = vset.pattern.permute.xlu0 0
      %3976 = vperm.xlu0 %3975, %v3890
      %v3977 = vpop.permute.xlu0 %3976
      %3980 = vset.pattern.permute.xlu0 0
      %3981 = vperm.xlu0 %3980, %v3891
      %v3982 = vpop.permute.xlu0 %3981
      %3985 = vset.pattern.permute.xlu0 0
      %3986 = vperm.xlu0 %3985, %v3892
      %v3987 = vpop.permute.xlu0 %3986
      %3990 = vset.pattern.permute.xlu0 0
      %3991 = vperm.xlu0 %3990, %v3893
      %v3992 = vpop.permute.xlu0 %3991
      %3995 = vset.pattern.permute.xlu0 0
      %3996 = vperm.xlu0 %3995, %v3894
      %v3997 = vpop.permute.xlu0 %3996
      %4000 = vset.pattern.permute.xlu0 0
      %4001 = vperm.xlu0 %4000, %v3895
      %v4002 = vpop.permute.xlu0 %4001
      %4005 = vset.pattern.permute.xlu0 0
      %4006 = vperm.xlu0 %4005, %v3896
      %v4007 = vpop.permute.xlu0 %4006
      %4010 = vset.pattern.permute.xlu0 0
      %4011 = vperm.xlu0 %4010, %v3897
      %v4012 = vpop.permute.xlu0 %4011
      %4015 = vset.pattern.permute.xlu0 0
      %4016 = vperm.xlu0 %4015, %v3898
      %v4017 = vpop.permute.xlu0 %4016
      %4020 = vset.pattern.permute.xlu0 0
      %4021 = vperm.xlu0 %4020, %v3899
      %v4022 = vpop.permute.xlu0 %4021
      %4025 = vset.pattern.permute.xlu0 0
      %4026 = vperm.xlu0 %4025, %v3900
      %v4027 = vpop.permute.xlu0 %4026
      %v4029 = vsub.f32 %v3820, %v3952
      %v4030 = vsub.f32 %v3821, %v3957
      %v4031 = vsub.f32 %v3822, %v3962
      %v4032 = vsub.f32 %v3823, %v3967
      %v4033 = vsub.f32 %v3824, %v3972
      %v4034 = vsub.f32 %v3825, %v3977
      %v4035 = vsub.f32 %v3826, %v3982
      %v4036 = vsub.f32 %v3827, %v3987
      %v4037 = vsub.f32 %v3828, %v3992
      %v4038 = vsub.f32 %v3829, %v3997
      %v4039 = vsub.f32 %v3830, %v4002
      %v4040 = vsub.f32 %v3831, %v4007
      %v4041 = vsub.f32 %v3832, %v4012
      %v4042 = vsub.f32 %v3833, %v4017
      %v4043 = vsub.f32 %v3834, %v4022
      %v4044 = vsub.f32 %v3835, %v4027
      %v4045 = vpack.c.bf16 %v4030, %v4029
      %v4046 = vpack.c.bf16 %v4032, %v4031
      %v4047 = vpack.c.bf16 %v4034, %v4033
      %v4048 = vpack.c.bf16 %v4036, %v4035
      %v4049 = vpack.c.bf16 %v4038, %v4037
      %v4050 = vpack.c.bf16 %v4040, %v4039
      %v4051 = vpack.c.bf16 %v4042, %v4041
      %v4052 = vpack.c.bf16 %v4044, %v4043
      %v4053 = vunpack.c.l.bf16 %v4045
      %v4054 = vunpack.c.h.bf16 %v4045
      %v4055 = vunpack.c.l.bf16 %v4046
      %v4056 = vunpack.c.h.bf16 %v4046
      %v4057 = vunpack.c.l.bf16 %v4047
      %v4058 = vunpack.c.h.bf16 %v4047
      %v4059 = vunpack.c.l.bf16 %v4048
      %v4060 = vunpack.c.h.bf16 %v4048
      %v4061 = vunpack.c.l.bf16 %v4049
      %v4062 = vunpack.c.h.bf16 %v4049
      %v4063 = vunpack.c.l.bf16 %v4050
      %v4064 = vunpack.c.h.bf16 %v4050
      %v4065 = vunpack.c.l.bf16 %v4051
      %v4066 = vunpack.c.h.bf16 %v4051
      %v4067 = vunpack.c.l.bf16 %v4052
      %v4068 = vunpack.c.h.bf16 %v4052
      %v4069 = vmul.f32 %v4053, 1.442695
      %v4070 = vpow.pop %v4069
      %v4071 = vmul.f32 %v4054, 1.442695
      %v4072 = vpow.pop %v4071
      %v4073 = vmul.f32 %v4055, 1.442695
      %v4074 = vpow.pop %v4073
      %v4075 = vmul.f32 %v4056, 1.442695
      %v4076 = vpow.pop %v4075
      %v4077 = vmul.f32 %v4057, 1.442695
      %v4078 = vpow.pop %v4077
      %v4079 = vmul.f32 %v4058, 1.442695
      %v4080 = vpow.pop %v4079
      %v4081 = vmul.f32 %v4059, 1.442695
      %v4082 = vpow.pop %v4081
      %v4083 = vmul.f32 %v4060, 1.442695
      %v4084 = vpow.pop %v4083
      %v4085 = vmul.f32 %v4061, 1.442695
      %v4086 = vpow.pop %v4085
      %v4087 = vmul.f32 %v4062, 1.442695
      %v4088 = vpow.pop %v4087
      %v4089 = vmul.f32 %v4063, 1.442695
      %v4090 = vpow.pop %v4089
      %v4091 = vmul.f32 %v4064, 1.442695
      %v4092 = vpow.pop %v4091
      %v4093 = vmul.f32 %v4065, 1.442695
      %v4094 = vpow.pop %v4093
      %v4095 = vmul.f32 %v4066, 1.442695
      %v4096 = vpow.pop %v4095
      %v4097 = vmul.f32 %v4067, 1.442695
      %v4098 = vpow.pop %v4097
      %v4099 = vmul.f32 %v4068, 1.442695
      %v4100 = vpow.pop %v4099
      %v4101 = vpack.c.bf16 %v4072, %v4070
      %v4102 = vpack.c.bf16 %v4076, %v4074
      %v4103 = vpack.c.bf16 %v4080, %v4078
      %v4104 = vpack.c.bf16 %v4084, %v4082
      %v4105 = vpack.c.bf16 %v4088, %v4086
      %v4106 = vpack.c.bf16 %v4092, %v4090
      %v4107 = vpack.c.bf16 %v4096, %v4094
      %v4108 = vpack.c.bf16 %v4100, %v4098
      %s4109 = scalar_lea.vmem [#allocation3], 384
      %v4110 = vld [vmem:[%s4109] sm:$0xff]
      %v4111 = vld [vmem:[%s4109 + $0x8] sm:$0xff]
      %v4112 = vld [vmem:[%s4109 + $0x10] sm:$0xff]
      %v4113 = vld [vmem:[%s4109 + $0x18] sm:$0xff]
      %v4114 = vld [vmem:[%s4109 + $0x20] sm:$0xff]
      %v4115 = vld [vmem:[%s4109 + $0x28] sm:$0xff]
      %v4116 = vld [vmem:[%s4109 + $0x30] sm:$0xff]
      %v4117 = vld [vmem:[%s4109 + $0x38] sm:$0xff]
      %v4118 = vld [vmem:[%s4109 + $0x40] sm:$0xff]
      %v4119 = vld [vmem:[%s4109 + $0x48] sm:$0xff]
      %v4120 = vld [vmem:[%s4109 + $0x50] sm:$0xff]
      %v4121 = vld [vmem:[%s4109 + $0x58] sm:$0xff]
      %v4122 = vld [vmem:[%s4109 + $0x60] sm:$0xff]
      %v4123 = vld [vmem:[%s4109 + $0x68] sm:$0xff]
      %v4124 = vld [vmem:[%s4109 + $0x70] sm:$0xff]
      %v4125 = vld [vmem:[%s4109 + $0x78] sm:$0xff]
      %v4126 = vmul.f32 %v3918, %v4110
      %v4127 = vmul.f32 %v3920, %v4111
      %v4128 = vmul.f32 %v3922, %v4112
      %v4129 = vmul.f32 %v3924, %v4113
      %v4130 = vmul.f32 %v3926, %v4114
      %v4131 = vmul.f32 %v3928, %v4115
      %v4132 = vmul.f32 %v3930, %v4116
      %v4133 = vmul.f32 %v3932, %v4117
      %v4134 = vmul.f32 %v3934, %v4118
      %v4135 = vmul.f32 %v3936, %v4119
      %v4136 = vmul.f32 %v3938, %v4120
      %v4137 = vmul.f32 %v3940, %v4121
      %v4138 = vmul.f32 %v3942, %v4122
      %v4139 = vmul.f32 %v3944, %v4123
      %v4140 = vmul.f32 %v3946, %v4124
      %v4141 = vmul.f32 %v3948, %v4125
      %v4142 = vunpack.c.l.bf16 %v4101
      %v4143 = vunpack.c.h.bf16 %v4101
      %v4144 = vunpack.c.l.bf16 %v4102
      %v4145 = vunpack.c.h.bf16 %v4102
      %v4146 = vunpack.c.l.bf16 %v4103
      %v4147 = vunpack.c.h.bf16 %v4103
      %v4148 = vunpack.c.l.bf16 %v4104
      %v4149 = vunpack.c.h.bf16 %v4104
      %v4150 = vunpack.c.l.bf16 %v4105
      %v4151 = vunpack.c.h.bf16 %v4105
      %v4152 = vunpack.c.l.bf16 %v4106
      %v4153 = vunpack.c.h.bf16 %v4106
      %v4154 = vunpack.c.l.bf16 %v4107
      %v4155 = vunpack.c.h.bf16 %v4107
      %v4156 = vunpack.c.l.bf16 %v4108
      %v4157 = vunpack.c.h.bf16 %v4108
      %4158 = vadd.xlane.f32.xlu0 %v4142
      %v4159 = vpop.xlane.xlu0 %4158
      %4160 = vadd.xlane.f32.xlu0 %v4143
      %v4161 = vpop.xlane.xlu0 %4160
      %4162 = vadd.xlane.f32.xlu0 %v4144
      %v4163 = vpop.xlane.xlu0 %4162
      %4164 = vadd.xlane.f32.xlu0 %v4145
      %v4165 = vpop.xlane.xlu0 %4164
      %4166 = vadd.xlane.f32.xlu0 %v4146
      %v4167 = vpop.xlane.xlu0 %4166
      %4168 = vadd.xlane.f32.xlu0 %v4147
      %v4169 = vpop.xlane.xlu0 %4168
      %4170 = vadd.xlane.f32.xlu0 %v4148
      %v4171 = vpop.xlane.xlu0 %4170
      %4172 = vadd.xlane.f32.xlu0 %v4149
      %v4173 = vpop.xlane.xlu0 %4172
      %4174 = vadd.xlane.f32.xlu0 %v4150
      %v4175 = vpop.xlane.xlu0 %4174
      %4176 = vadd.xlane.f32.xlu0 %v4151
      %v4177 = vpop.xlane.xlu0 %4176
      %4178 = vadd.xlane.f32.xlu0 %v4152
      %v4179 = vpop.xlane.xlu0 %4178
      %4180 = vadd.xlane.f32.xlu0 %v4153
      %v4181 = vpop.xlane.xlu0 %4180
      %4182 = vadd.xlane.f32.xlu0 %v4154
      %v4183 = vpop.xlane.xlu0 %4182
      %4184 = vadd.xlane.f32.xlu0 %v4155
      %v4185 = vpop.xlane.xlu0 %4184
      %4186 = vadd.xlane.f32.xlu0 %v4156
      %v4187 = vpop.xlane.xlu0 %4186
      %4188 = vadd.xlane.f32.xlu0 %v4157
      %v4189 = vpop.xlane.xlu0 %4188
      %v4190 = vadd.f32 %v4126, %v4159
      %v4191 = vadd.f32 %v4127, %v4161
      %v4192 = vadd.f32 %v4128, %v4163
      %v4193 = vadd.f32 %v4129, %v4165
      %v4194 = vadd.f32 %v4130, %v4167
      %v4195 = vadd.f32 %v4131, %v4169
      %v4196 = vadd.f32 %v4132, %v4171
      %v4197 = vadd.f32 %v4133, %v4173
      %v4198 = vadd.f32 %v4134, %v4175
      %v4199 = vadd.f32 %v4135, %v4177
      %v4200 = vadd.f32 %v4136, %v4179
      %v4201 = vadd.f32 %v4137, %v4181
      %v4202 = vadd.f32 %v4138, %v4183
      %v4203 = vadd.f32 %v4139, %v4185
      %v4204 = vadd.f32 %v4140, %v4187
      %v4205 = vadd.f32 %v4141, %v4189
      %4206 = vst.msk [vmem:[%s4109] sm:$0xff] %vm1839, %v4190
      %4207 = vst.msk [vmem:[%s4109 + $0x8] sm:$0xff] %vm1839, %v4191
      %4208 = vst.msk [vmem:[%s4109 + $0x10] sm:$0xff] %vm1839, %v4192
      %4209 = vst.msk [vmem:[%s4109 + $0x18] sm:$0xff] %vm1839, %v4193
      %4210 = vst.msk [vmem:[%s4109 + $0x20] sm:$0xff] %vm1839, %v4194
      %4211 = vst.msk [vmem:[%s4109 + $0x28] sm:$0xff] %vm1839, %v4195
      %4212 = vst.msk [vmem:[%s4109 + $0x30] sm:$0xff] %vm1839, %v4196
      %4213 = vst.msk [vmem:[%s4109 + $0x38] sm:$0xff] %vm1839, %v4197
      %4214 = vst.msk [vmem:[%s4109 + $0x40] sm:$0xff] %vm1839, %v4198
      %4215 = vst.msk [vmem:[%s4109 + $0x48] sm:$0xff] %vm1839, %v4199
      %4216 = vst.msk [vmem:[%s4109 + $0x50] sm:$0xff] %vm1839, %v4200
      %4217 = vst.msk [vmem:[%s4109 + $0x58] sm:$0xff] %vm1839, %v4201
      %4218 = vst.msk [vmem:[%s4109 + $0x60] sm:$0xff] %vm1839, %v4202
      %4219 = vst.msk [vmem:[%s4109 + $0x68] sm:$0xff] %vm1839, %v4203
      %4220 = vst.msk [vmem:[%s4109 + $0x70] sm:$0xff] %vm1839, %v4204
      %4221 = vst.msk [vmem:[%s4109 + $0x78] sm:$0xff] %vm1839, %v4205
      %s4222 = scalar_lea.vmem [#allocation4], 384
      %v4223 = vld [vmem:[%s4222] sm:$0xff]
      %v4224 = vld [vmem:[%s4222 + $0x8] sm:$0xff]
      %v4225 = vld [vmem:[%s4222 + $0x10] sm:$0xff]
      %v4226 = vld [vmem:[%s4222 + $0x18] sm:$0xff]
      %v4227 = vld [vmem:[%s4222 + $0x20] sm:$0xff]
      %v4228 = vld [vmem:[%s4222 + $0x28] sm:$0xff]
      %v4229 = vld [vmem:[%s4222 + $0x30] sm:$0xff]
      %v4230 = vld [vmem:[%s4222 + $0x38] sm:$0xff]
      %v4231 = vld [vmem:[%s4222 + $0x40] sm:$0xff]
      %v4232 = vld [vmem:[%s4222 + $0x48] sm:$0xff]
      %v4233 = vld [vmem:[%s4222 + $0x50] sm:$0xff]
      %v4234 = vld [vmem:[%s4222 + $0x58] sm:$0xff]
      %v4235 = vld [vmem:[%s4222 + $0x60] sm:$0xff]
      %v4236 = vld [vmem:[%s4222 + $0x68] sm:$0xff]
      %v4237 = vld [vmem:[%s4222 + $0x70] sm:$0xff]
      %v4238 = vld [vmem:[%s4222 + $0x78] sm:$0xff]
      %4240 = vset.pattern.permute.xlu0 0
      %4241 = vperm.xlu0 %4240, %v3918
      %v4242 = vpop.permute.xlu0 %4241
      %4245 = vset.pattern.permute.xlu0 0
      %4246 = vperm.xlu0 %4245, %v3920
      %v4247 = vpop.permute.xlu0 %4246
      %4250 = vset.pattern.permute.xlu0 0
      %4251 = vperm.xlu0 %4250, %v3922
      %v4252 = vpop.permute.xlu0 %4251
      %4255 = vset.pattern.permute.xlu0 0
      %4256 = vperm.xlu0 %4255, %v3924
      %v4257 = vpop.permute.xlu0 %4256
      %4260 = vset.pattern.permute.xlu0 0
      %4261 = vperm.xlu0 %4260, %v3926
      %v4262 = vpop.permute.xlu0 %4261
      %4265 = vset.pattern.permute.xlu0 0
      %4266 = vperm.xlu0 %4265, %v3928
      %v4267 = vpop.permute.xlu0 %4266
      %4270 = vset.pattern.permute.xlu0 0
      %4271 = vperm.xlu0 %4270, %v3930
      %v4272 = vpop.permute.xlu0 %4271
      %4275 = vset.pattern.permute.xlu0 0
      %4276 = vperm.xlu0 %4275, %v3932
      %v4277 = vpop.permute.xlu0 %4276
      %4280 = vset.pattern.permute.xlu0 0
      %4281 = vperm.xlu0 %4280, %v3934
      %v4282 = vpop.permute.xlu0 %4281
      %4285 = vset.pattern.permute.xlu0 0
      %4286 = vperm.xlu0 %4285, %v3936
      %v4287 = vpop.permute.xlu0 %4286
      %4290 = vset.pattern.permute.xlu0 0
      %4291 = vperm.xlu0 %4290, %v3938
      %v4292 = vpop.permute.xlu0 %4291
      %4295 = vset.pattern.permute.xlu0 0
      %4296 = vperm.xlu0 %4295, %v3940
      %v4297 = vpop.permute.xlu0 %4296
      %4300 = vset.pattern.permute.xlu0 0
      %4301 = vperm.xlu0 %4300, %v3942
      %v4302 = vpop.permute.xlu0 %4301
      %4305 = vset.pattern.permute.xlu0 0
      %4306 = vperm.xlu0 %4305, %v3944
      %v4307 = vpop.permute.xlu0 %4306
      %4310 = vset.pattern.permute.xlu0 0
      %4311 = vperm.xlu0 %4310, %v3946
      %v4312 = vpop.permute.xlu0 %4311
      %4315 = vset.pattern.permute.xlu0 0
      %4316 = vperm.xlu0 %4315, %v3948
      %v4317 = vpop.permute.xlu0 %4316
      %v4319 = vmul.f32 %v4242, %v4223
      %v4320 = vmul.f32 %v4247, %v4224
      %v4321 = vmul.f32 %v4252, %v4225
      %v4322 = vmul.f32 %v4257, %v4226
      %v4323 = vmul.f32 %v4262, %v4227
      %v4324 = vmul.f32 %v4267, %v4228
      %v4325 = vmul.f32 %v4272, %v4229
      %v4326 = vmul.f32 %v4277, %v4230
      %v4327 = vmul.f32 %v4282, %v4231
      %v4328 = vmul.f32 %v4287, %v4232
      %v4329 = vmul.f32 %v4292, %v4233
      %v4330 = vmul.f32 %v4297, %v4234
      %v4331 = vmul.f32 %v4302, %v4235
      %v4332 = vmul.f32 %v4307, %v4236
      %v4333 = vmul.f32 %v4312, %v4237
      %v4334 = vmul.f32 %v4317, %v4238
      %v4335 = vunpack.c.h.b16 %v1302
      %v4336 = vunpack.c.h.b16 %v1304
      %v4337 = vunpack.c.h.b16 %v1306
      %v4338 = vunpack.c.h.b16 %v1308
      %v4339 = vunpack.c.h.b16 %v1310
      %v4340 = vunpack.c.h.b16 %v1312
      %v4341 = vunpack.c.h.b16 %v1314
      %v4342 = vunpack.c.h.b16 %v1316
      %v4343 = vunpack.c.h.b16 %v1318
      %v4344 = vunpack.c.h.b16 %v1320
      %v4345 = vunpack.c.h.b16 %v1322
      %v4346 = vunpack.c.h.b16 %v1324
      %v4347 = vunpack.c.h.b16 %v1326
      %v4348 = vunpack.c.h.b16 %v1328
      %v4349 = vunpack.c.h.b16 %v1330
      %v4350 = vunpack.c.h.b16 %v1332
      %v4351 = vpack.c.b16 %v4336, %v4335
      %v4352 = vpack.c.b16 %v4338, %v4337
      %v4353 = vpack.c.b16 %v4340, %v4339
      %v4354 = vpack.c.b16 %v4342, %v4341
      %v4355 = vpack.c.b16 %v4344, %v4343
      %v4356 = vpack.c.b16 %v4346, %v4345
      %v4357 = vpack.c.b16 %v4348, %v4347
      %v4358 = vpack.c.b16 %v4350, %v4349
      %4367 = vmatpush.bf16.msra.mxu0 %v4358
      %4368 = vmatpush.bf16.msra.mxu0 %v4357
      %4369 = vmatpush.bf16.msra.mxu0 %v4356
      %4370 = vmatpush.bf16.msra.mxu0 %v4355
      %4371 = vmatpush.bf16.msra.mxu0 %v4354
      %4372 = vmatpush.bf16.msra.mxu0 %v4353
      %4373 = vmatpush.bf16.msra.mxu0 %v4352
      %4374 = vmatpush.bf16.msra.mxu0 %v4351
      %4375 = vmatmul.bf16.gmra.mxu0 %v4101
      %v4376 = vpop.f32.mrf.mxu0
      %v4377 = vadd.f32 0.0, %v4376
      %v4378 = vpop.f32.mrf.mxu0
      %v4379 = vadd.f32 0.0, %v4378
      %4380 = vmatmul.bf16.gmra.mxu0 %v4102
      %v4381 = vpop.f32.mrf.mxu0
      %v4382 = vadd.f32 0.0, %v4381
      %v4383 = vpop.f32.mrf.mxu0
      %v4384 = vadd.f32 0.0, %v4383
      %4385 = vmatmul.bf16.gmra.mxu0 %v4103
      %v4386 = vpop.f32.mrf.mxu0
      %v4387 = vadd.f32 0.0, %v4386
      %v4388 = vpop.f32.mrf.mxu0
      %v4389 = vadd.f32 0.0, %v4388
      %4390 = vmatmul.bf16.gmra.mxu0 %v4104
      %v4391 = vpop.f32.mrf.mxu0
      %v4392 = vadd.f32 0.0, %v4391
      %v4393 = vpop.f32.mrf.mxu0
      %v4394 = vadd.f32 0.0, %v4393
      %4395 = vmatmul.bf16.gmra.mxu0 %v4105
      %v4396 = vpop.f32.mrf.mxu0
      %v4397 = vadd.f32 0.0, %v4396
      %v4398 = vpop.f32.mrf.mxu0
      %v4399 = vadd.f32 0.0, %v4398
      %4400 = vmatmul.bf16.gmra.mxu0 %v4106
      %v4401 = vpop.f32.mrf.mxu0
      %v4402 = vadd.f32 0.0, %v4401
      %v4403 = vpop.f32.mrf.mxu0
      %v4404 = vadd.f32 0.0, %v4403
      %4405 = vmatmul.bf16.gmra.mxu0 %v4107
      %v4406 = vpop.f32.mrf.mxu0
      %v4407 = vadd.f32 0.0, %v4406
      %v4408 = vpop.f32.mrf.mxu0
      %v4409 = vadd.f32 0.0, %v4408
      %4410 = vmatmul.bf16.gmra.mxu0 %v4108
      %v4411 = vpop.f32.mrf.mxu0
      %v4412 = vadd.f32 0.0, %v4411
      %v4413 = vpop.f32.mrf.mxu0
      %v4414 = vadd.f32 0.0, %v4413
      %4415 = vdwg.mxu0
      %v4416 = vadd.f32 %v4319, %v4377
      %v4417 = vadd.f32 %v4320, %v4379
      %v4418 = vadd.f32 %v4321, %v4382
      %v4419 = vadd.f32 %v4322, %v4384
      %v4420 = vadd.f32 %v4323, %v4387
      %v4421 = vadd.f32 %v4324, %v4389
      %v4422 = vadd.f32 %v4325, %v4392
      %v4423 = vadd.f32 %v4326, %v4394
      %v4424 = vadd.f32 %v4327, %v4397
      %v4425 = vadd.f32 %v4328, %v4399
      %v4426 = vadd.f32 %v4329, %v4402
      %v4427 = vadd.f32 %v4330, %v4404
      %v4428 = vadd.f32 %v4331, %v4407
      %v4429 = vadd.f32 %v4332, %v4409
      %v4430 = vadd.f32 %v4333, %v4412
      %v4431 = vadd.f32 %v4334, %v4414
      %4432 = vst [vmem:[%s4222] sm:$0xff] %v4416
      %4433 = vst [vmem:[%s4222 + $0x8] sm:$0xff] %v4417
      %4434 = vst [vmem:[%s4222 + $0x10] sm:$0xff] %v4418
      %4435 = vst [vmem:[%s4222 + $0x18] sm:$0xff] %v4419
      %4436 = vst [vmem:[%s4222 + $0x20] sm:$0xff] %v4420
      %4437 = vst [vmem:[%s4222 + $0x28] sm:$0xff] %v4421
      %4438 = vst [vmem:[%s4222 + $0x30] sm:$0xff] %v4422
      %4439 = vst [vmem:[%s4222 + $0x38] sm:$0xff] %v4423
      %4440 = vst [vmem:[%s4222 + $0x40] sm:$0xff] %v4424
      %4441 = vst [vmem:[%s4222 + $0x48] sm:$0xff] %v4425
      %4442 = vst [vmem:[%s4222 + $0x50] sm:$0xff] %v4426
      %4443 = vst [vmem:[%s4222 + $0x58] sm:$0xff] %v4427
      %4444 = vst [vmem:[%s4222 + $0x60] sm:$0xff] %v4428
      %4445 = vst [vmem:[%s4222 + $0x68] sm:$0xff] %v4429
      %4446 = vst [vmem:[%s4222 + $0x70] sm:$0xff] %v4430
      %4447 = vst [vmem:[%s4222 + $0x78] sm:$0xff] %v4431
      %4448 = vst.msk [vmem:[%s3836] sm:$0xff] %vm1839, %v3885
      %4449 = vst.msk [vmem:[%s3836 + $0x8] sm:$0xff] %vm1839, %v3886
      %4450 = vst.msk [vmem:[%s3836 + $0x10] sm:$0xff] %vm1839, %v3887
      %4451 = vst.msk [vmem:[%s3836 + $0x18] sm:$0xff] %vm1839, %v3888
      %4452 = vst.msk [vmem:[%s3836 + $0x20] sm:$0xff] %vm1839, %v3889
      %4453 = vst.msk [vmem:[%s3836 + $0x28] sm:$0xff] %vm1839, %v3890
      %4454 = vst.msk [vmem:[%s3836 + $0x30] sm:$0xff] %vm1839, %v3891
      %4455 = vst.msk [vmem:[%s3836 + $0x38] sm:$0xff] %vm1839, %v3892
      %4456 = vst.msk [vmem:[%s3836 + $0x40] sm:$0xff] %vm1839, %v3893
      %4457 = vst.msk [vmem:[%s3836 + $0x48] sm:$0xff] %vm1839, %v3894
      %4458 = vst.msk [vmem:[%s3836 + $0x50] sm:$0xff] %vm1839, %v3895
      %4459 = vst.msk [vmem:[%s3836 + $0x58] sm:$0xff] %vm1839, %v3896
      %4460 = vst.msk [vmem:[%s3836 + $0x60] sm:$0xff] %vm1839, %v3897
      %4461 = vst.msk [vmem:[%s3836 + $0x68] sm:$0xff] %vm1839, %v3898
      %4462 = vst.msk [vmem:[%s3836 + $0x70] sm:$0xff] %vm1839, %v3899
      %4463 = vst.msk [vmem:[%s3836 + $0x78] sm:$0xff] %vm1839, %v3900
      %p4464 = scmp.eq.s32.totalorder %s27, 2
      // Predicated region
      $region69: #{interactive_forward.6} parent=63 // pred_check
        %p4465 = pneg %p4464
      $region70: #{interactive_forward.6} parent=63 // pred_check_branch
        %4467 = sbr.rel (%p4465) target = $region72
      $region71: #{interactive_forward.6} parent=63 // pred_region
        %v4468 = vld [vmem:[#allocation4] sm:$0xff]
        %v4469 = vld [vmem:[#allocation4 + $0x8] sm:$0xff]
        %v4470 = vld [vmem:[#allocation4 + $0x10] sm:$0xff]
        %v4471 = vld [vmem:[#allocation4 + $0x18] sm:$0xff]
        %v4472 = vld [vmem:[#allocation4 + $0x20] sm:$0xff]
        %v4473 = vld [vmem:[#allocation4 + $0x28] sm:$0xff]
        %v4474 = vld [vmem:[#allocation4 + $0x30] sm:$0xff]
        %v4475 = vld [vmem:[#allocation4 + $0x38] sm:$0xff]
        %v4476 = vld [vmem:[#allocation4 + $0x40] sm:$0xff]
        %v4477 = vld [vmem:[#allocation4 + $0x48] sm:$0xff]
        %v4478 = vld [vmem:[#allocation4 + $0x50] sm:$0xff]
        %v4479 = vld [vmem:[#allocation4 + $0x58] sm:$0xff]
        %v4480 = vld [vmem:[#allocation4 + $0x60] sm:$0xff]
        %v4481 = vld [vmem:[#allocation4 + $0x68] sm:$0xff]
        %v4482 = vld [vmem:[#allocation4 + $0x70] sm:$0xff]
        %v4483 = vld [vmem:[#allocation4 + $0x78] sm:$0xff]
        %v4484 = vld [vmem:[#allocation3] sm:$0xff]
        %v4485 = vld [vmem:[#allocation3 + $0x8] sm:$0xff]
        %v4486 = vld [vmem:[#allocation3 + $0x10] sm:$0xff]
        %v4487 = vld [vmem:[#allocation3 + $0x18] sm:$0xff]
        %v4488 = vld [vmem:[#allocation3 + $0x20] sm:$0xff]
        %v4489 = vld [vmem:[#allocation3 + $0x28] sm:$0xff]
        %v4490 = vld [vmem:[#allocation3 + $0x30] sm:$0xff]
        %v4491 = vld [vmem:[#allocation3 + $0x38] sm:$0xff]
        %v4492 = vld [vmem:[#allocation3 + $0x40] sm:$0xff]
        %v4493 = vld [vmem:[#allocation3 + $0x48] sm:$0xff]
        %v4494 = vld [vmem:[#allocation3 + $0x50] sm:$0xff]
        %v4495 = vld [vmem:[#allocation3 + $0x58] sm:$0xff]
        %v4496 = vld [vmem:[#allocation3 + $0x60] sm:$0xff]
        %v4497 = vld [vmem:[#allocation3 + $0x68] sm:$0xff]
        %v4498 = vld [vmem:[#allocation3 + $0x70] sm:$0xff]
        %v4499 = vld [vmem:[#allocation3 + $0x78] sm:$0xff]
        %v4500 = vrcp.pop %v4484
        %v4501 = vrcp.pop %v4485
        %v4502 = vrcp.pop %v4486
        %v4503 = vrcp.pop %v4487
        %v4504 = vrcp.pop %v4488
        %v4505 = vrcp.pop %v4489
        %v4506 = vrcp.pop %v4490
        %v4507 = vrcp.pop %v4491
        %v4508 = vrcp.pop %v4492
        %v4509 = vrcp.pop %v4493
        %v4510 = vrcp.pop %v4494
        %v4511 = vrcp.pop %v4495
        %v4512 = vrcp.pop %v4496
        %v4513 = vrcp.pop %v4497
        %v4514 = vrcp.pop %v4498
        %v4515 = vrcp.pop %v4499
        %4517 = vset.pattern.permute.xlu0 0
        %4518 = vperm.xlu0 %4517, %v4500
        %v4519 = vpop.permute.xlu0 %4518
        %4522 = vset.pattern.permute.xlu0 0
        %4523 = vperm.xlu0 %4522, %v4501
        %v4524 = vpop.permute.xlu0 %4523
        %4527 = vset.pattern.permute.xlu0 0
        %4528 = vperm.xlu0 %4527, %v4502
        %v4529 = vpop.permute.xlu0 %4528
        %4532 = vset.pattern.permute.xlu0 0
        %4533 = vperm.xlu0 %4532, %v4503
        %v4534 = vpop.permute.xlu0 %4533
        %4537 = vset.pattern.permute.xlu0 0
        %4538 = vperm.xlu0 %4537, %v4504
        %v4539 = vpop.permute.xlu0 %4538
        %4542 = vset.pattern.permute.xlu0 0
        %4543 = vperm.xlu0 %4542, %v4505
        %v4544 = vpop.permute.xlu0 %4543
        %4547 = vset.pattern.permute.xlu0 0
        %4548 = vperm.xlu0 %4547, %v4506
        %v4549 = vpop.permute.xlu0 %4548
        %4552 = vset.pattern.permute.xlu0 0
        %4553 = vperm.xlu0 %4552, %v4507
        %v4554 = vpop.permute.xlu0 %4553
        %4557 = vset.pattern.permute.xlu0 0
        %4558 = vperm.xlu0 %4557, %v4508
        %v4559 = vpop.permute.xlu0 %4558
        %4562 = vset.pattern.permute.xlu0 0
        %4563 = vperm.xlu0 %4562, %v4509
        %v4564 = vpop.permute.xlu0 %4563
        %4567 = vset.pattern.permute.xlu0 0
        %4568 = vperm.xlu0 %4567, %v4510
        %v4569 = vpop.permute.xlu0 %4568
        %4572 = vset.pattern.permute.xlu0 0
        %4573 = vperm.xlu0 %4572, %v4511
        %v4574 = vpop.permute.xlu0 %4573
        %4577 = vset.pattern.permute.xlu0 0
        %4578 = vperm.xlu0 %4577, %v4512
        %v4579 = vpop.permute.xlu0 %4578
        %4582 = vset.pattern.permute.xlu0 0
        %4583 = vperm.xlu0 %4582, %v4513
        %v4584 = vpop.permute.xlu0 %4583
        %4587 = vset.pattern.permute.xlu0 0
        %4588 = vperm.xlu0 %4587, %v4514
        %v4589 = vpop.permute.xlu0 %4588
        %4592 = vset.pattern.permute.xlu0 0
        %4593 = vperm.xlu0 %4592, %v4515
        %v4594 = vpop.permute.xlu0 %4593
        %v4596 = vmul.f32 %v4468, %v4519
        %v4597 = vmul.f32 %v4469, %v4524
        %v4598 = vmul.f32 %v4470, %v4529
        %v4599 = vmul.f32 %v4471, %v4534
        %v4600 = vmul.f32 %v4472, %v4539
        %v4601 = vmul.f32 %v4473, %v4544
        %v4602 = vmul.f32 %v4474, %v4549
        %v4603 = vmul.f32 %v4475, %v4554
        %v4604 = vmul.f32 %v4476, %v4559
        %v4605 = vmul.f32 %v4477, %v4564
        %v4606 = vmul.f32 %v4478, %v4569
        %v4607 = vmul.f32 %v4479, %v4574
        %v4608 = vmul.f32 %v4480, %v4579
        %v4609 = vmul.f32 %v4481, %v4584
        %v4610 = vmul.f32 %v4482, %v4589
        %v4611 = vmul.f32 %v4483, %v4594
        %v4612 = vadd.f32 %v4596, 0.0
        %v4613 = vadd.f32 %v4597, 0.0
        %v4614 = vadd.f32 %v4598, 0.0
        %v4615 = vadd.f32 %v4599, 0.0
        %v4616 = vadd.f32 %v4600, 0.0
        %v4617 = vadd.f32 %v4601, 0.0
        %v4618 = vadd.f32 %v4602, 0.0
        %v4619 = vadd.f32 %v4603, 0.0
        %v4620 = vadd.f32 %v4604, 0.0
        %v4621 = vadd.f32 %v4605, 0.0
        %v4622 = vadd.f32 %v4606, 0.0
        %v4623 = vadd.f32 %v4607, 0.0
        %v4624 = vadd.f32 %v4608, 0.0
        %v4625 = vadd.f32 %v4609, 0.0
        %v4626 = vadd.f32 %v4610, 0.0
        %v4627 = vadd.f32 %v4611, 0.0
        %v4628 = vld [vmem:[%s2660] sm:$0xff]
        %v4629 = vld [vmem:[%s2660 + $0x8] sm:$0xff]
        %v4630 = vld [vmem:[%s2660 + $0x10] sm:$0xff]
        %v4631 = vld [vmem:[%s2660 + $0x18] sm:$0xff]
        %v4632 = vld [vmem:[%s2660 + $0x20] sm:$0xff]
        %v4633 = vld [vmem:[%s2660 + $0x28] sm:$0xff]
        %v4634 = vld [vmem:[%s2660 + $0x30] sm:$0xff]
        %v4635 = vld [vmem:[%s2660 + $0x38] sm:$0xff]
        %v4636 = vld [vmem:[%s2660 + $0x40] sm:$0xff]
        %v4637 = vld [vmem:[%s2660 + $0x48] sm:$0xff]
        %v4638 = vld [vmem:[%s2660 + $0x50] sm:$0xff]
        %v4639 = vld [vmem:[%s2660 + $0x58] sm:$0xff]
        %v4640 = vld [vmem:[%s2660 + $0x60] sm:$0xff]
        %v4641 = vld [vmem:[%s2660 + $0x68] sm:$0xff]
        %v4642 = vld [vmem:[%s2660 + $0x70] sm:$0xff]
        %v4643 = vld [vmem:[%s2660 + $0x78] sm:$0xff]
        %v4644 = vld [vmem:[%s2547] sm:$0xff]
        %v4645 = vld [vmem:[%s2547 + $0x8] sm:$0xff]
        %v4646 = vld [vmem:[%s2547 + $0x10] sm:$0xff]
        %v4647 = vld [vmem:[%s2547 + $0x18] sm:$0xff]
        %v4648 = vld [vmem:[%s2547 + $0x20] sm:$0xff]
        %v4649 = vld [vmem:[%s2547 + $0x28] sm:$0xff]
        %v4650 = vld [vmem:[%s2547 + $0x30] sm:$0xff]
        %v4651 = vld [vmem:[%s2547 + $0x38] sm:$0xff]
        %v4652 = vld [vmem:[%s2547 + $0x40] sm:$0xff]
        %v4653 = vld [vmem:[%s2547 + $0x48] sm:$0xff]
        %v4654 = vld [vmem:[%s2547 + $0x50] sm:$0xff]
        %v4655 = vld [vmem:[%s2547 + $0x58] sm:$0xff]
        %v4656 = vld [vmem:[%s2547 + $0x60] sm:$0xff]
        %v4657 = vld [vmem:[%s2547 + $0x68] sm:$0xff]
        %v4658 = vld [vmem:[%s2547 + $0x70] sm:$0xff]
        %v4659 = vld [vmem:[%s2547 + $0x78] sm:$0xff]
        %v4660 = vrcp.pop %v4644
        %v4661 = vrcp.pop %v4645
        %v4662 = vrcp.pop %v4646
        %v4663 = vrcp.pop %v4647
        %v4664 = vrcp.pop %v4648
        %v4665 = vrcp.pop %v4649
        %v4666 = vrcp.pop %v4650
        %v4667 = vrcp.pop %v4651
        %v4668 = vrcp.pop %v4652
        %v4669 = vrcp.pop %v4653
        %v4670 = vrcp.pop %v4654
        %v4671 = vrcp.pop %v4655
        %v4672 = vrcp.pop %v4656
        %v4673 = vrcp.pop %v4657
        %v4674 = vrcp.pop %v4658
        %v4675 = vrcp.pop %v4659
        %4677 = vset.pattern.permute.xlu0 0
        %4678 = vperm.xlu0 %4677, %v4660
        %v4679 = vpop.permute.xlu0 %4678
        %4682 = vset.pattern.permute.xlu0 0
        %4683 = vperm.xlu0 %4682, %v4661
        %v4684 = vpop.permute.xlu0 %4683
        %4687 = vset.pattern.permute.xlu0 0
        %4688 = vperm.xlu0 %4687, %v4662
        %v4689 = vpop.permute.xlu0 %4688
        %4692 = vset.pattern.permute.xlu0 0
        %4693 = vperm.xlu0 %4692, %v4663
        %v4694 = vpop.permute.xlu0 %4693
        %4697 = vset.pattern.permute.xlu0 0
        %4698 = vperm.xlu0 %4697, %v4664
        %v4699 = vpop.permute.xlu0 %4698
        %4702 = vset.pattern.permute.xlu0 0
        %4703 = vperm.xlu0 %4702, %v4665
        %v4704 = vpop.permute.xlu0 %4703
        %4707 = vset.pattern.permute.xlu0 0
        %4708 = vperm.xlu0 %4707, %v4666
        %v4709 = vpop.permute.xlu0 %4708
        %4712 = vset.pattern.permute.xlu0 0
        %4713 = vperm.xlu0 %4712, %v4667
        %v4714 = vpop.permute.xlu0 %4713
        %4717 = vset.pattern.permute.xlu0 0
        %4718 = vperm.xlu0 %4717, %v4668
        %v4719 = vpop.permute.xlu0 %4718
        %4722 = vset.pattern.permute.xlu0 0
        %4723 = vperm.xlu0 %4722, %v4669
        %v4724 = vpop.permute.xlu0 %4723
        %4727 = vset.pattern.permute.xlu0 0
        %4728 = vperm.xlu0 %4727, %v4670
        %v4729 = vpop.permute.xlu0 %4728
        %4732 = vset.pattern.permute.xlu0 0
        %4733 = vperm.xlu0 %4732, %v4671
        %v4734 = vpop.permute.xlu0 %4733
        %4737 = vset.pattern.permute.xlu0 0
        %4738 = vperm.xlu0 %4737, %v4672
        %v4739 = vpop.permute.xlu0 %4738
        %4742 = vset.pattern.permute.xlu0 0
        %4743 = vperm.xlu0 %4742, %v4673
        %v4744 = vpop.permute.xlu0 %4743
        %4747 = vset.pattern.permute.xlu0 0
        %4748 = vperm.xlu0 %4747, %v4674
        %v4749 = vpop.permute.xlu0 %4748
        %4752 = vset.pattern.permute.xlu0 0
        %4753 = vperm.xlu0 %4752, %v4675
        %v4754 = vpop.permute.xlu0 %4753
        %v4756 = vmul.f32 %v4628, %v4679
        %v4757 = vmul.f32 %v4629, %v4684
        %v4758 = vmul.f32 %v4630, %v4689
        %v4759 = vmul.f32 %v4631, %v4694
        %v4760 = vmul.f32 %v4632, %v4699
        %v4761 = vmul.f32 %v4633, %v4704
        %v4762 = vmul.f32 %v4634, %v4709
        %v4763 = vmul.f32 %v4635, %v4714
        %v4764 = vmul.f32 %v4636, %v4719
        %v4765 = vmul.f32 %v4637, %v4724
        %v4766 = vmul.f32 %v4638, %v4729
        %v4767 = vmul.f32 %v4639, %v4734
        %v4768 = vmul.f32 %v4640, %v4739
        %v4769 = vmul.f32 %v4641, %v4744
        %v4770 = vmul.f32 %v4642, %v4749
        %v4771 = vmul.f32 %v4643, %v4754
        %v4772 = vadd.f32 %v4612, %v4756
        %v4773 = vadd.f32 %v4613, %v4757
        %v4774 = vadd.f32 %v4614, %v4758
        %v4775 = vadd.f32 %v4615, %v4759
        %v4776 = vadd.f32 %v4616, %v4760
        %v4777 = vadd.f32 %v4617, %v4761
        %v4778 = vadd.f32 %v4618, %v4762
        %v4779 = vadd.f32 %v4619, %v4763
        %v4780 = vadd.f32 %v4620, %v4764
        %v4781 = vadd.f32 %v4621, %v4765
        %v4782 = vadd.f32 %v4622, %v4766
        %v4783 = vadd.f32 %v4623, %v4767
        %v4784 = vadd.f32 %v4624, %v4768
        %v4785 = vadd.f32 %v4625, %v4769
        %v4786 = vadd.f32 %v4626, %v4770
        %v4787 = vadd.f32 %v4627, %v4771
        %v4788 = vld [vmem:[%s3433] sm:$0xff]
        %v4789 = vld [vmem:[%s3433 + $0x8] sm:$0xff]
        %v4790 = vld [vmem:[%s3433 + $0x10] sm:$0xff]
        %v4791 = vld [vmem:[%s3433 + $0x18] sm:$0xff]
        %v4792 = vld [vmem:[%s3433 + $0x20] sm:$0xff]
        %v4793 = vld [vmem:[%s3433 + $0x28] sm:$0xff]
        %v4794 = vld [vmem:[%s3433 + $0x30] sm:$0xff]
        %v4795 = vld [vmem:[%s3433 + $0x38] sm:$0xff]
        %v4796 = vld [vmem:[%s3433 + $0x40] sm:$0xff]
        %v4797 = vld [vmem:[%s3433 + $0x48] sm:$0xff]
        %v4798 = vld [vmem:[%s3433 + $0x50] sm:$0xff]
        %v4799 = vld [vmem:[%s3433 + $0x58] sm:$0xff]
        %v4800 = vld [vmem:[%s3433 + $0x60] sm:$0xff]
        %v4801 = vld [vmem:[%s3433 + $0x68] sm:$0xff]
        %v4802 = vld [vmem:[%s3433 + $0x70] sm:$0xff]
        %v4803 = vld [vmem:[%s3433 + $0x78] sm:$0xff]
        %v4804 = vld [vmem:[%s3320] sm:$0xff]
        %v4805 = vld [vmem:[%s3320 + $0x8] sm:$0xff]
        %v4806 = vld [vmem:[%s3320 + $0x10] sm:$0xff]
        %v4807 = vld [vmem:[%s3320 + $0x18] sm:$0xff]
        %v4808 = vld [vmem:[%s3320 + $0x20] sm:$0xff]
        %v4809 = vld [vmem:[%s3320 + $0x28] sm:$0xff]
        %v4810 = vld [vmem:[%s3320 + $0x30] sm:$0xff]
        %v4811 = vld [vmem:[%s3320 + $0x38] sm:$0xff]
        %v4812 = vld [vmem:[%s3320 + $0x40] sm:$0xff]
        %v4813 = vld [vmem:[%s3320 + $0x48] sm:$0xff]
        %v4814 = vld [vmem:[%s3320 + $0x50] sm:$0xff]
        %v4815 = vld [vmem:[%s3320 + $0x58] sm:$0xff]
        %v4816 = vld [vmem:[%s3320 + $0x60] sm:$0xff]
        %v4817 = vld [vmem:[%s3320 + $0x68] sm:$0xff]
        %v4818 = vld [vmem:[%s3320 + $0x70] sm:$0xff]
        %v4819 = vld [vmem:[%s3320 + $0x78] sm:$0xff]
        %v4820 = vrcp.pop %v4804
        %v4821 = vrcp.pop %v4805
        %v4822 = vrcp.pop %v4806
        %v4823 = vrcp.pop %v4807
        %v4824 = vrcp.pop %v4808
        %v4825 = vrcp.pop %v4809
        %v4826 = vrcp.pop %v4810
        %v4827 = vrcp.pop %v4811
        %v4828 = vrcp.pop %v4812
        %v4829 = vrcp.pop %v4813
        %v4830 = vrcp.pop %v4814
        %v4831 = vrcp.pop %v4815
        %v4832 = vrcp.pop %v4816
        %v4833 = vrcp.pop %v4817
        %v4834 = vrcp.pop %v4818
        %v4835 = vrcp.pop %v4819
        %4837 = vset.pattern.permute.xlu0 0
        %4838 = vperm.xlu0 %4837, %v4820
        %v4839 = vpop.permute.xlu0 %4838
        %4842 = vset.pattern.permute.xlu0 0
        %4843 = vperm.xlu0 %4842, %v4821
        %v4844 = vpop.permute.xlu0 %4843
        %4847 = vset.pattern.permute.xlu0 0
        %4848 = vperm.xlu0 %4847, %v4822
        %v4849 = vpop.permute.xlu0 %4848
        %4852 = vset.pattern.permute.xlu0 0
        %4853 = vperm.xlu0 %4852, %v4823
        %v4854 = vpop.permute.xlu0 %4853
        %4857 = vset.pattern.permute.xlu0 0
        %4858 = vperm.xlu0 %4857, %v4824
        %v4859 = vpop.permute.xlu0 %4858
        %4862 = vset.pattern.permute.xlu0 0
        %4863 = vperm.xlu0 %4862, %v4825
        %v4864 = vpop.permute.xlu0 %4863
        %4867 = vset.pattern.permute.xlu0 0
        %4868 = vperm.xlu0 %4867, %v4826
        %v4869 = vpop.permute.xlu0 %4868
        %4872 = vset.pattern.permute.xlu0 0
        %4873 = vperm.xlu0 %4872, %v4827
        %v4874 = vpop.permute.xlu0 %4873
        %4877 = vset.pattern.permute.xlu0 0
        %4878 = vperm.xlu0 %4877, %v4828
        %v4879 = vpop.permute.xlu0 %4878
        %4882 = vset.pattern.permute.xlu0 0
        %4883 = vperm.xlu0 %4882, %v4829
        %v4884 = vpop.permute.xlu0 %4883
        %4887 = vset.pattern.permute.xlu0 0
        %4888 = vperm.xlu0 %4887, %v4830
        %v4889 = vpop.permute.xlu0 %4888
        %4892 = vset.pattern.permute.xlu0 0
        %4893 = vperm.xlu0 %4892, %v4831
        %v4894 = vpop.permute.xlu0 %4893
        %4897 = vset.pattern.permute.xlu0 0
        %4898 = vperm.xlu0 %4897, %v4832
        %v4899 = vpop.permute.xlu0 %4898
        %4902 = vset.pattern.permute.xlu0 0
        %4903 = vperm.xlu0 %4902, %v4833
        %v4904 = vpop.permute.xlu0 %4903
        %4907 = vset.pattern.permute.xlu0 0
        %4908 = vperm.xlu0 %4907, %v4834
        %v4909 = vpop.permute.xlu0 %4908
        %4912 = vset.pattern.permute.xlu0 0
        %4913 = vperm.xlu0 %4912, %v4835
        %v4914 = vpop.permute.xlu0 %4913
        %v4916 = vmul.f32 %v4788, %v4839
        %v4917 = vmul.f32 %v4789, %v4844
        %v4918 = vmul.f32 %v4790, %v4849
        %v4919 = vmul.f32 %v4791, %v4854
        %v4920 = vmul.f32 %v4792, %v4859
        %v4921 = vmul.f32 %v4793, %v4864
        %v4922 = vmul.f32 %v4794, %v4869
        %v4923 = vmul.f32 %v4795, %v4874
        %v4924 = vmul.f32 %v4796, %v4879
        %v4925 = vmul.f32 %v4797, %v4884
        %v4926 = vmul.f32 %v4798, %v4889
        %v4927 = vmul.f32 %v4799, %v4894
        %v4928 = vmul.f32 %v4800, %v4899
        %v4929 = vmul.f32 %v4801, %v4904
        %v4930 = vmul.f32 %v4802, %v4909
        %v4931 = vmul.f32 %v4803, %v4914
        %v4932 = vadd.f32 %v4772, %v4916
        %v4933 = vadd.f32 %v4773, %v4917
        %v4934 = vadd.f32 %v4774, %v4918
        %v4935 = vadd.f32 %v4775, %v4919
        %v4936 = vadd.f32 %v4776, %v4920
        %v4937 = vadd.f32 %v4777, %v4921
        %v4938 = vadd.f32 %v4778, %v4922
        %v4939 = vadd.f32 %v4779, %v4923
        %v4940 = vadd.f32 %v4780, %v4924
        %v4941 = vadd.f32 %v4781, %v4925
        %v4942 = vadd.f32 %v4782, %v4926
        %v4943 = vadd.f32 %v4783, %v4927
        %v4944 = vadd.f32 %v4784, %v4928
        %v4945 = vadd.f32 %v4785, %v4929
        %v4946 = vadd.f32 %v4786, %v4930
        %v4947 = vadd.f32 %v4787, %v4931
        %v4948 = vld [vmem:[%s4222] sm:$0xff]
        %v4949 = vld [vmem:[%s4222 + $0x8] sm:$0xff]
        %v4950 = vld [vmem:[%s4222 + $0x10] sm:$0xff]
        %v4951 = vld [vmem:[%s4222 + $0x18] sm:$0xff]
        %v4952 = vld [vmem:[%s4222 + $0x20] sm:$0xff]
        %v4953 = vld [vmem:[%s4222 + $0x28] sm:$0xff]
        %v4954 = vld [vmem:[%s4222 + $0x30] sm:$0xff]
        %v4955 = vld [vmem:[%s4222 + $0x38] sm:$0xff]
        %v4956 = vld [vmem:[%s4222 + $0x40] sm:$0xff]
        %v4957 = vld [vmem:[%s4222 + $0x48] sm:$0xff]
        %v4958 = vld [vmem:[%s4222 + $0x50] sm:$0xff]
        %v4959 = vld [vmem:[%s4222 + $0x58] sm:$0xff]
        %v4960 = vld [vmem:[%s4222 + $0x60] sm:$0xff]
        %v4961 = vld [vmem:[%s4222 + $0x68] sm:$0xff]
        %v4962 = vld [vmem:[%s4222 + $0x70] sm:$0xff]
        %v4963 = vld [vmem:[%s4222 + $0x78] sm:$0xff]
        %v4964 = vld [vmem:[%s4109] sm:$0xff]
        %v4965 = vld [vmem:[%s4109 + $0x8] sm:$0xff]
        %v4966 = vld [vmem:[%s4109 + $0x10] sm:$0xff]
        %v4967 = vld [vmem:[%s4109 + $0x18] sm:$0xff]
        %v4968 = vld [vmem:[%s4109 + $0x20] sm:$0xff]
        %v4969 = vld [vmem:[%s4109 + $0x28] sm:$0xff]
        %v4970 = vld [vmem:[%s4109 + $0x30] sm:$0xff]
        %v4971 = vld [vmem:[%s4109 + $0x38] sm:$0xff]
        %v4972 = vld [vmem:[%s4109 + $0x40] sm:$0xff]
        %v4973 = vld [vmem:[%s4109 + $0x48] sm:$0xff]
        %v4974 = vld [vmem:[%s4109 + $0x50] sm:$0xff]
        %v4975 = vld [vmem:[%s4109 + $0x58] sm:$0xff]
        %v4976 = vld [vmem:[%s4109 + $0x60] sm:$0xff]
        %v4977 = vld [vmem:[%s4109 + $0x68] sm:$0xff]
        %v4978 = vld [vmem:[%s4109 + $0x70] sm:$0xff]
        %v4979 = vld [vmem:[%s4109 + $0x78] sm:$0xff]
        %v4980 = vrcp.pop %v4964
        %v4981 = vrcp.pop %v4965
        %v4982 = vrcp.pop %v4966
        %v4983 = vrcp.pop %v4967
        %v4984 = vrcp.pop %v4968
        %v4985 = vrcp.pop %v4969
        %v4986 = vrcp.pop %v4970
        %v4987 = vrcp.pop %v4971
        %v4988 = vrcp.pop %v4972
        %v4989 = vrcp.pop %v4973
        %v4990 = vrcp.pop %v4974
        %v4991 = vrcp.pop %v4975
        %v4992 = vrcp.pop %v4976
        %v4993 = vrcp.pop %v4977
        %v4994 = vrcp.pop %v4978
        %v4995 = vrcp.pop %v4979
        %4997 = vset.pattern.permute.xlu0 0
        %4998 = vperm.xlu0 %4997, %v4980
        %v4999 = vpop.permute.xlu0 %4998
        %5002 = vset.pattern.permute.xlu0 0
        %5003 = vperm.xlu0 %5002, %v4981
        %v5004 = vpop.permute.xlu0 %5003
        %5007 = vset.pattern.permute.xlu0 0
        %5008 = vperm.xlu0 %5007, %v4982
        %v5009 = vpop.permute.xlu0 %5008
        %5012 = vset.pattern.permute.xlu0 0
        %5013 = vperm.xlu0 %5012, %v4983
        %v5014 = vpop.permute.xlu0 %5013
        %5017 = vset.pattern.permute.xlu0 0
        %5018 = vperm.xlu0 %5017, %v4984
        %v5019 = vpop.permute.xlu0 %5018
        %5022 = vset.pattern.permute.xlu0 0
        %5023 = vperm.xlu0 %5022, %v4985
        %v5024 = vpop.permute.xlu0 %5023
        %5027 = vset.pattern.permute.xlu0 0
        %5028 = vperm.xlu0 %5027, %v4986
        %v5029 = vpop.permute.xlu0 %5028
        %5032 = vset.pattern.permute.xlu0 0
        %5033 = vperm.xlu0 %5032, %v4987
        %v5034 = vpop.permute.xlu0 %5033
        %5037 = vset.pattern.permute.xlu0 0
        %5038 = vperm.xlu0 %5037, %v4988
        %v5039 = vpop.permute.xlu0 %5038
        %5042 = vset.pattern.permute.xlu0 0
        %5043 = vperm.xlu0 %5042, %v4989
        %v5044 = vpop.permute.xlu0 %5043
        %5047 = vset.pattern.permute.xlu0 0
        %5048 = vperm.xlu0 %5047, %v4990
        %v5049 = vpop.permute.xlu0 %5048
        %5052 = vset.pattern.permute.xlu0 0
        %5053 = vperm.xlu0 %5052, %v4991
        %v5054 = vpop.permute.xlu0 %5053
        %5057 = vset.pattern.permute.xlu0 0
        %5058 = vperm.xlu0 %5057, %v4992
        %v5059 = vpop.permute.xlu0 %5058
        %5062 = vset.pattern.permute.xlu0 0
        %5063 = vperm.xlu0 %5062, %v4993
        %v5064 = vpop.permute.xlu0 %5063
        %5067 = vset.pattern.permute.xlu0 0
        %5068 = vperm.xlu0 %5067, %v4994
        %v5069 = vpop.permute.xlu0 %5068
        %5072 = vset.pattern.permute.xlu0 0
        %5073 = vperm.xlu0 %5072, %v4995
        %v5074 = vpop.permute.xlu0 %5073
        %v5076 = vmul.f32 %v4948, %v4999
        %v5077 = vmul.f32 %v4949, %v5004
        %v5078 = vmul.f32 %v4950, %v5009
        %v5079 = vmul.f32 %v4951, %v5014
        %v5080 = vmul.f32 %v4952, %v5019
        %v5081 = vmul.f32 %v4953, %v5024
        %v5082 = vmul.f32 %v4954, %v5029
        %v5083 = vmul.f32 %v4955, %v5034
        %v5084 = vmul.f32 %v4956, %v5039
        %v5085 = vmul.f32 %v4957, %v5044
        %v5086 = vmul.f32 %v4958, %v5049
        %v5087 = vmul.f32 %v4959, %v5054
        %v5088 = vmul.f32 %v4960, %v5059
        %v5089 = vmul.f32 %v4961, %v5064
        %v5090 = vmul.f32 %v4962, %v5069
        %v5091 = vmul.f32 %v4963, %v5074
        %v5092 = vadd.f32 %v4932, %v5076
        %v5093 = vadd.f32 %v4933, %v5077
        %v5094 = vadd.f32 %v4934, %v5078
        %v5095 = vadd.f32 %v4935, %v5079
        %v5096 = vadd.f32 %v4936, %v5080
        %v5097 = vadd.f32 %v4937, %v5081
        %v5098 = vadd.f32 %v4938, %v5082
        %v5099 = vadd.f32 %v4939, %v5083
        %v5100 = vadd.f32 %v4940, %v5084
        %v5101 = vadd.f32 %v4941, %v5085
        %v5102 = vadd.f32 %v4942, %v5086
        %v5103 = vadd.f32 %v4943, %v5087
        %v5104 = vadd.f32 %v4944, %v5088
        %v5105 = vadd.f32 %v4945, %v5089
        %v5106 = vadd.f32 %v4946, %v5090
        %v5107 = vadd.f32 %v4947, %v5091
        %v5108 = vadd.f32 %v621, %v5092
        %v5109 = vadd.f32 %v622, %v5093
        %v5110 = vadd.f32 %v623, %v5094
        %v5111 = vadd.f32 %v624, %v5095
        %v5112 = vadd.f32 %v625, %v5096
        %v5113 = vadd.f32 %v626, %v5097
        %v5114 = vadd.f32 %v627, %v5098
        %v5115 = vadd.f32 %v628, %v5099
        %v5116 = vadd.f32 %v629, %v5100
        %v5117 = vadd.f32 %v630, %v5101
        %v5118 = vadd.f32 %v631, %v5102
        %v5119 = vadd.f32 %v632, %v5103
        %v5120 = vadd.f32 %v633, %v5104
        %v5121 = vadd.f32 %v634, %v5105
        %v5122 = vadd.f32 %v635, %v5106
        %v5123 = vadd.f32 %v636, %v5107
        %v5124 = vld [vmem:[%s8] sm:$0x1]
        %v5126 = vperm.slane %v5124, 0
        %v5128 = vadd.f32 %v5108, %v5126
        %v5129 = vadd.f32 %v5109, %v5126
        %v5130 = vadd.f32 %v5110, %v5126
        %v5131 = vadd.f32 %v5111, %v5126
        %v5132 = vadd.f32 %v5112, %v5126
        %v5133 = vadd.f32 %v5113, %v5126
        %v5134 = vadd.f32 %v5114, %v5126
        %v5135 = vadd.f32 %v5115, %v5126
        %v5136 = vadd.f32 %v5116, %v5126
        %v5137 = vadd.f32 %v5117, %v5126
        %v5138 = vadd.f32 %v5118, %v5126
        %v5139 = vadd.f32 %v5119, %v5126
        %v5140 = vadd.f32 %v5120, %v5126
        %v5141 = vadd.f32 %v5121, %v5126
        %v5142 = vadd.f32 %v5122, %v5126
        %v5143 = vadd.f32 %v5123, %v5126
        %vm5144 = vcmp.lt.s32.totalorder %v1335, 100
        %v5145 = vsel %vm5144, 1, 0
        %v5146 = vcvt.s32.f32 %v5145
        %5147 = vadd.xlane.f32.xlu0 %v5128
        %v5148 = vpop.xlane.xlu0 %5147
        %5149 = vadd.xlane.f32.xlu0 %v5129
        %v5150 = vpop.xlane.xlu0 %5149
        %5151 = vadd.xlane.f32.xlu0 %v5130
        %v5152 = vpop.xlane.xlu0 %5151
        %5153 = vadd.xlane.f32.xlu0 %v5131
        %v5154 = vpop.xlane.xlu0 %5153
        %5155 = vadd.xlane.f32.xlu0 %v5132
        %v5156 = vpop.xlane.xlu0 %5155
        %5157 = vadd.xlane.f32.xlu0 %v5133
        %v5158 = vpop.xlane.xlu0 %5157
        %5159 = vadd.xlane.f32.xlu0 %v5134
        %v5160 = vpop.xlane.xlu0 %5159
        %5161 = vadd.xlane.f32.xlu0 %v5135
        %v5162 = vpop.xlane.xlu0 %5161
        %5163 = vadd.xlane.f32.xlu0 %v5136
        %v5164 = vpop.xlane.xlu0 %5163
        %5165 = vadd.xlane.f32.xlu0 %v5137
        %v5166 = vpop.xlane.xlu0 %5165
        %5167 = vadd.xlane.f32.xlu0 %v5138
        %v5168 = vpop.xlane.xlu0 %5167
        %5169 = vadd.xlane.f32.xlu0 %v5139
        %v5170 = vpop.xlane.xlu0 %5169
        %5171 = vadd.xlane.f32.xlu0 %v5140
        %v5172 = vpop.xlane.xlu0 %5171
        %5173 = vadd.xlane.f32.xlu0 %v5141
        %v5174 = vpop.xlane.xlu0 %5173
        %5175 = vadd.xlane.f32.xlu0 %v5142
        %v5176 = vpop.xlane.xlu0 %5175
        %5177 = vadd.xlane.f32.xlu0 %v5143
        %v5178 = vpop.xlane.xlu0 %5177
        %v5179 = vmul.f32 %v5148, 0.01
        %v5180 = vmul.f32 %v5150, 0.01
        %v5181 = vmul.f32 %v5152, 0.01
        %v5182 = vmul.f32 %v5154, 0.01
        %v5183 = vmul.f32 %v5156, 0.01
        %v5184 = vmul.f32 %v5158, 0.01
        %v5185 = vmul.f32 %v5160, 0.01
        %v5186 = vmul.f32 %v5162, 0.01
        %v5187 = vmul.f32 %v5164, 0.01
        %v5188 = vmul.f32 %v5166, 0.01
        %v5189 = vmul.f32 %v5168, 0.01
        %v5190 = vmul.f32 %v5170, 0.01
        %v5191 = vmul.f32 %v5172, 0.01
        %v5192 = vmul.f32 %v5174, 0.01
        %v5193 = vmul.f32 %v5176, 0.01
        %v5194 = vmul.f32 %v5178, 0.01
        %v5195 = vsub.f32 %v5128, %v5179
        %v5196 = vsub.f32 %v5129, %v5180
        %v5197 = vsub.f32 %v5130, %v5181
        %v5198 = vsub.f32 %v5131, %v5182
        %v5199 = vsub.f32 %v5132, %v5183
        %v5200 = vsub.f32 %v5133, %v5184
        %v5201 = vsub.f32 %v5134, %v5185
        %v5202 = vsub.f32 %v5135, %v5186
        %v5203 = vsub.f32 %v5136, %v5187
        %v5204 = vsub.f32 %v5137, %v5188
        %v5205 = vsub.f32 %v5138, %v5189
        %v5206 = vsub.f32 %v5139, %v5190
        %v5207 = vsub.f32 %v5140, %v5191
        %v5208 = vsub.f32 %v5141, %v5192
        %v5209 = vsub.f32 %v5142, %v5193
        %v5210 = vsub.f32 %v5143, %v5194
        %v5211 = vmul.f32 %v5195, %v5146
        %v5212 = vmul.f32 %v5196, %v5146
        %v5213 = vmul.f32 %v5197, %v5146
        %v5214 = vmul.f32 %v5198, %v5146
        %v5215 = vmul.f32 %v5199, %v5146
        %v5216 = vmul.f32 %v5200, %v5146
        %v5217 = vmul.f32 %v5201, %v5146
        %v5218 = vmul.f32 %v5202, %v5146
        %v5219 = vmul.f32 %v5203, %v5146
        %v5220 = vmul.f32 %v5204, %v5146
        %v5221 = vmul.f32 %v5205, %v5146
        %v5222 = vmul.f32 %v5206, %v5146
        %v5223 = vmul.f32 %v5207, %v5146
        %v5224 = vmul.f32 %v5208, %v5146
        %v5225 = vmul.f32 %v5209, %v5146
        %v5226 = vmul.f32 %v5210, %v5146
        %v5227 = vmul.f32 %v5211, %v5211
        %v5228 = vmul.f32 %v5212, %v5212
        %v5229 = vmul.f32 %v5213, %v5213
        %v5230 = vmul.f32 %v5214, %v5214
        %v5231 = vmul.f32 %v5215, %v5215
        %v5232 = vmul.f32 %v5216, %v5216
        %v5233 = vmul.f32 %v5217, %v5217
        %v5234 = vmul.f32 %v5218, %v5218
        %v5235 = vmul.f32 %v5219, %v5219
        %v5236 = vmul.f32 %v5220, %v5220
        %v5237 = vmul.f32 %v5221, %v5221
        %v5238 = vmul.f32 %v5222, %v5222
        %v5239 = vmul.f32 %v5223, %v5223
        %v5240 = vmul.f32 %v5224, %v5224
        %v5241 = vmul.f32 %v5225, %v5225
        %v5242 = vmul.f32 %v5226, %v5226
        %5243 = vadd.xlane.f32.xlu0 %v5227
        %v5244 = vpop.xlane.xlu0 %5243
        %5245 = vadd.xlane.f32.xlu0 %v5228
        %v5246 = vpop.xlane.xlu0 %5245
        %5247 = vadd.xlane.f32.xlu0 %v5229
        %v5248 = vpop.xlane.xlu0 %5247
        %5249 = vadd.xlane.f32.xlu0 %v5230
        %v5250 = vpop.xlane.xlu0 %5249
        %5251 = vadd.xlane.f32.xlu0 %v5231
        %v5252 = vpop.xlane.xlu0 %5251
        %5253 = vadd.xlane.f32.xlu0 %v5232
        %v5254 = vpop.xlane.xlu0 %5253
        %5255 = vadd.xlane.f32.xlu0 %v5233
        %v5256 = vpop.xlane.xlu0 %5255
        %5257 = vadd.xlane.f32.xlu0 %v5234
        %v5258 = vpop.xlane.xlu0 %5257
        %5259 = vadd.xlane.f32.xlu0 %v5235
        %v5260 = vpop.xlane.xlu0 %5259
        %5261 = vadd.xlane.f32.xlu0 %v5236
        %v5262 = vpop.xlane.xlu0 %5261
        %5263 = vadd.xlane.f32.xlu0 %v5237
        %v5264 = vpop.xlane.xlu0 %5263
        %5265 = vadd.xlane.f32.xlu0 %v5238
        %v5266 = vpop.xlane.xlu0 %5265
        %5267 = vadd.xlane.f32.xlu0 %v5239
        %v5268 = vpop.xlane.xlu0 %5267
        %5269 = vadd.xlane.f32.xlu0 %v5240
        %v5270 = vpop.xlane.xlu0 %5269
        %5271 = vadd.xlane.f32.xlu0 %v5241
        %v5272 = vpop.xlane.xlu0 %5271
        %5273 = vadd.xlane.f32.xlu0 %v5242
        %v5274 = vpop.xlane.xlu0 %5273
        %v5275 = vmul.f32 %v5244, 0.01
        %v5276 = vmul.f32 %v5246, 0.01
        %v5277 = vmul.f32 %v5248, 0.01
        %v5278 = vmul.f32 %v5250, 0.01
        %v5279 = vmul.f32 %v5252, 0.01
        %v5280 = vmul.f32 %v5254, 0.01
        %v5281 = vmul.f32 %v5256, 0.01
        %v5282 = vmul.f32 %v5258, 0.01
        %v5283 = vmul.f32 %v5260, 0.01
        %v5284 = vmul.f32 %v5262, 0.01
        %v5285 = vmul.f32 %v5264, 0.01
        %v5286 = vmul.f32 %v5266, 0.01
        %v5287 = vmul.f32 %v5268, 0.01
        %v5288 = vmul.f32 %v5270, 0.01
        %v5289 = vmul.f32 %v5272, 0.01
        %v5290 = vmul.f32 %v5274, 0.01
        %v5291 = vadd.f32 %v5275, 1e-05
        %v5292 = vadd.f32 %v5276, 1e-05
        %v5293 = vadd.f32 %v5277, 1e-05
        %v5294 = vadd.f32 %v5278, 1e-05
        %v5295 = vadd.f32 %v5279, 1e-05
        %v5296 = vadd.f32 %v5280, 1e-05
        %v5297 = vadd.f32 %v5281, 1e-05
        %v5298 = vadd.f32 %v5282, 1e-05
        %v5299 = vadd.f32 %v5283, 1e-05
        %v5300 = vadd.f32 %v5284, 1e-05
        %v5301 = vadd.f32 %v5285, 1e-05
        %v5302 = vadd.f32 %v5286, 1e-05
        %v5303 = vadd.f32 %v5287, 1e-05
        %v5304 = vadd.f32 %v5288, 1e-05
        %v5305 = vadd.f32 %v5289, 1e-05
        %v5306 = vadd.f32 %v5290, 1e-05
        %v5307 = vrsqrt.pop %v5291
        %v5308 = vmul.f32 %v5307, %v5291
        %v5309 = vmul.f32 %v5308, %v5307
        %v5310 = vmul.f32 0.5, %v5309
        %v5311 = vsub.f32 1.5, %v5310
        %v5312 = vmul.f32 %v5307, %v5311
        %vm5313 = vweird.f32 %v5291
        %vm5314 = vweird.f32 %v5307
        %vm5315 = vmor %vm5313, %vm5314
        %v5316 = vsel %vm5315, %v5307, %v5312
        %v5317 = vrsqrt.pop %v5292
        %v5318 = vmul.f32 %v5317, %v5292
        %v5319 = vmul.f32 %v5318, %v5317
        %v5320 = vmul.f32 0.5, %v5319
        %v5321 = vsub.f32 1.5, %v5320
        %v5322 = vmul.f32 %v5317, %v5321
        %vm5323 = vweird.f32 %v5292
        %vm5324 = vweird.f32 %v5317
        %vm5325 = vmor %vm5323, %vm5324
        %v5326 = vsel %vm5325, %v5317, %v5322
        %v5327 = vrsqrt.pop %v5293
        %v5328 = vmul.f32 %v5327, %v5293
        %v5329 = vmul.f32 %v5328, %v5327
        %v5330 = vmul.f32 0.5, %v5329
        %v5331 = vsub.f32 1.5, %v5330
        %v5332 = vmul.f32 %v5327, %v5331
        %vm5333 = vweird.f32 %v5293
        %vm5334 = vweird.f32 %v5327
        %vm5335 = vmor %vm5333, %vm5334
        %v5336 = vsel %vm5335, %v5327, %v5332
        %v5337 = vrsqrt.pop %v5294
        %v5338 = vmul.f32 %v5337, %v5294
        %v5339 = vmul.f32 %v5338, %v5337
        %v5340 = vmul.f32 0.5, %v5339
        %v5341 = vsub.f32 1.5, %v5340
        %v5342 = vmul.f32 %v5337, %v5341
        %vm5343 = vweird.f32 %v5294
        %vm5344 = vweird.f32 %v5337
        %vm5345 = vmor %vm5343, %vm5344
        %v5346 = vsel %vm5345, %v5337, %v5342
        %v5347 = vrsqrt.pop %v5295
        %v5348 = vmul.f32 %v5347, %v5295
        %v5349 = vmul.f32 %v5348, %v5347
        %v5350 = vmul.f32 0.5, %v5349
        %v5351 = vsub.f32 1.5, %v5350
        %v5352 = vmul.f32 %v5347, %v5351
        %vm5353 = vweird.f32 %v5295
        %vm5354 = vweird.f32 %v5347
        %vm5355 = vmor %vm5353, %vm5354
        %v5356 = vsel %vm5355, %v5347, %v5352
        %v5357 = vrsqrt.pop %v5296
        %v5358 = vmul.f32 %v5357, %v5296
        %v5359 = vmul.f32 %v5358, %v5357
        %v5360 = vmul.f32 0.5, %v5359
        %v5361 = vsub.f32 1.5, %v5360
        %v5362 = vmul.f32 %v5357, %v5361
        %vm5363 = vweird.f32 %v5296
        %vm5364 = vweird.f32 %v5357
        %vm5365 = vmor %vm5363, %vm5364
        %v5366 = vsel %vm5365, %v5357, %v5362
        %v5367 = vrsqrt.pop %v5297
        %v5368 = vmul.f32 %v5367, %v5297
        %v5369 = vmul.f32 %v5368, %v5367
        %v5370 = vmul.f32 0.5, %v5369
        %v5371 = vsub.f32 1.5, %v5370
        %v5372 = vmul.f32 %v5367, %v5371
        %vm5373 = vweird.f32 %v5297
        %vm5374 = vweird.f32 %v5367
        %vm5375 = vmor %vm5373, %vm5374
        %v5376 = vsel %vm5375, %v5367, %v5372
        %v5377 = vrsqrt.pop %v5298
        %v5378 = vmul.f32 %v5377, %v5298
        %v5379 = vmul.f32 %v5378, %v5377
        %v5380 = vmul.f32 0.5, %v5379
        %v5381 = vsub.f32 1.5, %v5380
        %v5382 = vmul.f32 %v5377, %v5381
        %vm5383 = vweird.f32 %v5298
        %vm5384 = vweird.f32 %v5377
        %vm5385 = vmor %vm5383, %vm5384
        %v5386 = vsel %vm5385, %v5377, %v5382
        %v5387 = vrsqrt.pop %v5299
        %v5388 = vmul.f32 %v5387, %v5299
        %v5389 = vmul.f32 %v5388, %v5387
        %v5390 = vmul.f32 0.5, %v5389
        %v5391 = vsub.f32 1.5, %v5390
        %v5392 = vmul.f32 %v5387, %v5391
        %vm5393 = vweird.f32 %v5299
        %vm5394 = vweird.f32 %v5387
        %vm5395 = vmor %vm5393, %vm5394
        %v5396 = vsel %vm5395, %v5387, %v5392
        %v5397 = vrsqrt.pop %v5300
        %v5398 = vmul.f32 %v5397, %v5300
        %v5399 = vmul.f32 %v5398, %v5397
        %v5400 = vmul.f32 0.5, %v5399
        %v5401 = vsub.f32 1.5, %v5400
        %v5402 = vmul.f32 %v5397, %v5401
        %vm5403 = vweird.f32 %v5300
        %vm5404 = vweird.f32 %v5397
        %vm5405 = vmor %vm5403, %vm5404
        %v5406 = vsel %vm5405, %v5397, %v5402
        %v5407 = vrsqrt.pop %v5301
        %v5408 = vmul.f32 %v5407, %v5301
        %v5409 = vmul.f32 %v5408, %v5407
        %v5410 = vmul.f32 0.5, %v5409
        %v5411 = vsub.f32 1.5, %v5410
        %v5412 = vmul.f32 %v5407, %v5411
        %vm5413 = vweird.f32 %v5301
        %vm5414 = vweird.f32 %v5407
        %vm5415 = vmor %vm5413, %vm5414
        %v5416 = vsel %vm5415, %v5407, %v5412
        %v5417 = vrsqrt.pop %v5302
        %v5418 = vmul.f32 %v5417, %v5302
        %v5419 = vmul.f32 %v5418, %v5417
        %v5420 = vmul.f32 0.5, %v5419
        %v5421 = vsub.f32 1.5, %v5420
        %v5422 = vmul.f32 %v5417, %v5421
        %vm5423 = vweird.f32 %v5302
        %vm5424 = vweird.f32 %v5417
        %vm5425 = vmor %vm5423, %vm5424
        %v5426 = vsel %vm5425, %v5417, %v5422
        %v5427 = vrsqrt.pop %v5303
        %v5428 = vmul.f32 %v5427, %v5303
        %v5429 = vmul.f32 %v5428, %v5427
        %v5430 = vmul.f32 0.5, %v5429
        %v5431 = vsub.f32 1.5, %v5430
        %v5432 = vmul.f32 %v5427, %v5431
        %vm5433 = vweird.f32 %v5303
        %vm5434 = vweird.f32 %v5427
        %vm5435 = vmor %vm5433, %vm5434
        %v5436 = vsel %vm5435, %v5427, %v5432
        %v5437 = vrsqrt.pop %v5304
        %v5438 = vmul.f32 %v5437, %v5304
        %v5439 = vmul.f32 %v5438, %v5437
        %v5440 = vmul.f32 0.5, %v5439
        %v5441 = vsub.f32 1.5, %v5440
        %v5442 = vmul.f32 %v5437, %v5441
        %vm5443 = vweird.f32 %v5304
        %vm5444 = vweird.f32 %v5437
        %vm5445 = vmor %vm5443, %vm5444
        %v5446 = vsel %vm5445, %v5437, %v5442
        %v5447 = vrsqrt.pop %v5305
        %v5448 = vmul.f32 %v5447, %v5305
        %v5449 = vmul.f32 %v5448, %v5447
        %v5450 = vmul.f32 0.5, %v5449
        %v5451 = vsub.f32 1.5, %v5450
        %v5452 = vmul.f32 %v5447, %v5451
        %vm5453 = vweird.f32 %v5305
        %vm5454 = vweird.f32 %v5447
        %vm5455 = vmor %vm5453, %vm5454
        %v5456 = vsel %vm5455, %v5447, %v5452
        %v5457 = vrsqrt.pop %v5306
        %v5458 = vmul.f32 %v5457, %v5306
        %v5459 = vmul.f32 %v5458, %v5457
        %v5460 = vmul.f32 0.5, %v5459
        %v5461 = vsub.f32 1.5, %v5460
        %v5462 = vmul.f32 %v5457, %v5461
        %vm5463 = vweird.f32 %v5306
        %vm5464 = vweird.f32 %v5457
        %vm5465 = vmor %vm5463, %vm5464
        %v5466 = vsel %vm5465, %v5457, %v5462
        %v5467 = vmul.f32 %v5211, %v5316
        %v5468 = vmul.f32 %v5212, %v5326
        %v5469 = vmul.f32 %v5213, %v5336
        %v5470 = vmul.f32 %v5214, %v5346
        %v5471 = vmul.f32 %v5215, %v5356
        %v5472 = vmul.f32 %v5216, %v5366
        %v5473 = vmul.f32 %v5217, %v5376
        %v5474 = vmul.f32 %v5218, %v5386
        %v5475 = vmul.f32 %v5219, %v5396
        %v5476 = vmul.f32 %v5220, %v5406
        %v5477 = vmul.f32 %v5221, %v5416
        %v5478 = vmul.f32 %v5222, %v5426
        %v5479 = vmul.f32 %v5223, %v5436
        %v5480 = vmul.f32 %v5224, %v5446
        %v5481 = vmul.f32 %v5225, %v5456
        %v5482 = vmul.f32 %v5226, %v5466
        %v5483 = vld [vmem:[%s9] sm:$0x1]
        %v5485 = vperm.slane %v5483, 0
        %v5487 = vmul.f32 %v5467, %v5485
        %v5488 = vmul.f32 %v5468, %v5485
        %v5489 = vmul.f32 %v5469, %v5485
        %v5490 = vmul.f32 %v5470, %v5485
        %v5491 = vmul.f32 %v5471, %v5485
        %v5492 = vmul.f32 %v5472, %v5485
        %v5493 = vmul.f32 %v5473, %v5485
        %v5494 = vmul.f32 %v5474, %v5485
        %v5495 = vmul.f32 %v5475, %v5485
        %v5496 = vmul.f32 %v5476, %v5485
        %v5497 = vmul.f32 %v5477, %v5485
        %v5498 = vmul.f32 %v5478, %v5485
        %v5499 = vmul.f32 %v5479, %v5485
        %v5500 = vmul.f32 %v5480, %v5485
        %v5501 = vmul.f32 %v5481, %v5485
        %v5502 = vmul.f32 %v5482, %v5485
        %v5503 = vld [vmem:[%s10] sm:$0x1]
        %v5505 = vperm.slane %v5503, 0
        %v5507 = vadd.f32 %v5487, %v5505
        %v5508 = vadd.f32 %v5488, %v5505
        %v5509 = vadd.f32 %v5489, %v5505
        %v5510 = vadd.f32 %v5490, %v5505
        %v5511 = vadd.f32 %v5491, %v5505
        %v5512 = vadd.f32 %v5492, %v5505
        %v5513 = vadd.f32 %v5493, %v5505
        %v5514 = vadd.f32 %v5494, %v5505
        %v5515 = vadd.f32 %v5495, %v5505
        %v5516 = vadd.f32 %v5496, %v5505
        %v5517 = vadd.f32 %v5497, %v5505
        %v5518 = vadd.f32 %v5498, %v5505
        %v5519 = vadd.f32 %v5499, %v5505
        %v5520 = vadd.f32 %v5500, %v5505
        %v5521 = vadd.f32 %v5501, %v5505
        %v5522 = vadd.f32 %v5502, %v5505
        %5523 = vst [vmem:[%s422] sm:$0xff] %v5507
        %5524 = vst [vmem:[%s422 + $0x8] sm:$0xff] %v5508
        %5525 = vst [vmem:[%s422 + $0x10] sm:$0xff] %v5509
        %5526 = vst [vmem:[%s422 + $0x18] sm:$0xff] %v5510
        %5527 = vst [vmem:[%s422 + $0x20] sm:$0xff] %v5511
        %5528 = vst [vmem:[%s422 + $0x28] sm:$0xff] %v5512
        %5529 = vst [vmem:[%s422 + $0x30] sm:$0xff] %v5513
        %5530 = vst [vmem:[%s422 + $0x38] sm:$0xff] %v5514
        %5531 = vst [vmem:[%s422 + $0x40] sm:$0xff] %v5515
        %5532 = vst [vmem:[%s422 + $0x48] sm:$0xff] %v5516
        %5533 = vst [vmem:[%s422 + $0x50] sm:$0xff] %v5517
        %5534 = vst [vmem:[%s422 + $0x58] sm:$0xff] %v5518
        %5535 = vst [vmem:[%s422 + $0x60] sm:$0xff] %v5519
        %5536 = vst [vmem:[%s422 + $0x68] sm:$0xff] %v5520
        %5537 = vst [vmem:[%s422 + $0x70] sm:$0xff] %v5521
        %5538 = vst [vmem:[%s422 + $0x78] sm:$0xff] %v5522
      $region72: #{interactive_forward.6} parent=63 // pred_fallthru
        _
      %s5539 = smul.u32 16, %s26
      %p5540 = scmp.lt.s32.totalorder %s5539, 47
      %s5541 = scalar_select %p5540, %s5539, 47
      %s5542 = smul.addr %s5541, 8
      %s5543 = scalar_lea.vmem %s11, %s5542
      // Predicated region
      $region73: #{interactive_forward.6} parent=63 // pred_check
        %p5544 = pneg %p293
      $region74: #{interactive_forward.6} parent=63 // pred_check_branch
        %5546 = sbr.rel (%p5544) target = $region76
      $region75: #{interactive_forward.6} parent=63 // pred_region
        %s5547 = smul.u32 16, %s26
      $region76: #{interactive_forward.6} parent=63 // pred_fallthru
        _
    $region64: #{interactive_forward.6} parent=5 // pred_fallthru
      _
    %p5548 = scmp.le.s32.totalorder 2, %s17
    // Predicated region
    $region77: #{interactive_forward.6} parent=5 // pred_check
      %p5549 = pneg %p5548
    $region78: #{interactive_forward.6} parent=5 // pred_check_branch
      %5551 = sbr.rel (%p5549) target = $region80
    $region79: #{interactive_forward.6} parent=5 // pred_region
      %s5552 = ssub.s32 %s17, 2
      // Predicated region
      $region81: #{interactive_forward.6} parent=79 // pred_check
        %p5553 = pneg %p299
      $region82: #{interactive_forward.6} parent=79 // pred_check_branch
        %5555 = sbr.rel (%p5553) target = $region84
      $region83: #{interactive_forward.6} parent=79 // pred_region
        %s5556 = smul.u32 16, %s28
        %p5557 = scmp.lt.s32.totalorder %s5556, 47
        %s5558 = scalar_select %p5557, %s5556, 47
        %s5559 = smul.addr %s5558, 8
        %s5560 = scalar_lea.vmem %s11, %s5559
      $region84: #{interactive_forward.6} parent=79 // pred_fallthru
        _
    $region80: #{interactive_forward.6} parent=5 // pred_fallthru
      _
  $region6: #{interactive_forward.6} parent=0 // loop_footer
    %s21 = sadd.s32 1, %s17
  $region7: #{interactive_forward.6} parent=0 // loop_footer_branch
    %16 = sbr.rel target = $region3
  $region8: #{interactive_forward.6} parent=0 // loop_exit
    _

</llo_original>
